<compile_context>
chip_gen: v7x
topology: tpu7x:2x2x1
jax: 0.10.0
libtpu: 0.0.40
codegen_flags: <defaults>
</compile_context>

<pallas_src>
import functools
import math

import jax
import jax.numpy as jnp
from jax import lax
from jax.experimental import pallas as pl
from jax.experimental.pallas import tpu as pltpu

CP = 128                       # padded channel / lane width
VMEM_LIMIT_BYTES = 32 * 1024 * 1024   # safe on v5e (16 MiB default), v6e, v7x
_TARGET_BLOCK_ROWS = 2048      # ~8-32 images per M block


def _round_up(n, m):
    return ((n + m - 1) // m) * m


def _pad_last(a, mult):
    n = a.shape[-1]
    t = _round_up(n, mult)
    if t == n:
        return a
    pw = [(0, 0)] * (a.ndim - 1) + [(0, t - n)]
    return jnp.pad(a, pw)


# ---------------------------------------------------------------------------
# Pallas kernels
# ---------------------------------------------------------------------------
def _conv_relu_kernel(patches_ref, wc_ref, bc_ref, o_ref):
    """sw == 0 conv stage: relu(patches @ w + b), bf16 operands, f32 accumulate."""
    a = jnp.dot(patches_ref[...], wc_ref[...],
                preferred_element_type=jnp.float32) + bc_ref[...]
    o_ref[...] = jnp.maximum(a, 0.0).astype(o_ref.dtype)


def _conv_vip_stage_kernel(patches_ref, wc_ref, bc_ref, wv_ref, bv_ref,
                           wvb_ref, bvb_ref, o_ref, pad_buf,
                           *, taps, bm, halo, H, W, cin_v, cin_vb):
    """Fused: main conv -> vip -> relu -> vip_back -> +residual -> relu.

    The two sp x sp "same" convs use a packed-K formulation: floor(128/cin)
    taps share one 128-lane K group (lane-rolled into disjoint slots), so each
    same-conv is 1-2 bf16 MXU K-tiles instead of sp*sp f32 matmuls.
    """
    # main 5x5 valid conv as one dense bf16 matmul over the im2col patches
    a = jnp.dot(patches_ref[...], wc_ref[...],
                preferred_element_type=jnp.float32) + bc_ref[...]

    # zero only the halo rows; the interior is overwritten by each act store
    zero_halo = jnp.zeros((halo, CP), jnp.float32)
    pad_buf[:halo, :] = zero_halo
    pad_buf[halo + bm:, :] = zero_halo

    # Per-tap validity masks built in-kernel (no HBM mask operand).  Row ->
    # (ho, wo) via float reciprocal + floor (+0.5 keeps floors rounding-safe);
    # avoids integer div/mod on the VPU.  Computed once, reused by both convs.
    r = lax.broadcasted_iota(jnp.int32, (bm, 1), 0).astype(jnp.float32)
    img = jnp.floor((r + 0.5) * (1.0 / (H * W)))
    rin = r - img * (H * W)
    ho = jnp.floor((rin + 0.5) * (1.0 / W))
    wo = rin - ho * W
    tap_ok = []
    for (di, dj, _) in taps:
        if di == 0 and dj == 0:
            tap_ok.append(None)                      # center tap always valid
        else:
            tap_ok.append((ho + di >= 0.0) & (ho + di <= float(H - 1)) &
                          (wo + dj >= 0.0) & (wo + dj <= float(W - 1)))

    def same_conv(act, w_ref, b_ref, cin):
        # act: (bm, CP) f32 with exact zeros in lanes >= cin.
        pad_buf[halo:halo + bm, :] = act
        tpg = CP // cin                      # taps packed per 128-lane K group
        n_groups = -(-len(taps) // tpg)
        assert n_groups * CP == w_ref.shape[0], "packed weight / cin mismatch"
        groups = []
        for g in range(n_groups):
            acc = None
            for tl in range(tpg):
                t = g * tpg + tl
                if t >= len(taps):
                    break
                delta = taps[t][2]
                sl = pad_buf[halo + delta:halo + delta + bm, :]
                if tap_ok[t] is not None:
                    sl = jnp.where(tap_ok[t], sl, 0.0)
                if tl:
                    # move this tap's cin channels to lanes [tl*cin, (tl+1)*cin)
                    sl = pltpu.roll(sl, shift=tl * cin, axis=1)
                acc = sl if acc is None else acc + sl
            groups.append(acc)
        slab = groups[0] if n_groups == 1 else jnp.concatenate(groups, axis=1)
        return jnp.dot(slab.astype(jnp.bfloat16), w_ref[...],
                       preferred_element_type=jnp.float32) + b_ref[...]

    y = jnp.maximum(same_conv(a, wv_ref, bv_ref, cin_v), 0.0)        # relu(vip(a))
    out = jnp.maximum(same_conv(y, wvb_ref, bvb_ref, cin_vb) + a, 0.0)
    o_ref[...] = out.astype(o_ref.dtype)


def _head_vip_kernel(flat_ref, w1_ref, b1_ref, w3_ref, b3_ref,
                     wb3_ref, bb3_ref, wo_ref, bo_ref, o_ref):
    """Fused fc1 -> vip3 -> relu -> vip_back3 -> +res -> relu -> out."""
    e = jnp.dot(flat_ref[...], w1_ref[...],
                preferred_element_type=jnp.float32) + b1_ref[...]
    y3 = jnp.maximum(jnp.dot(e, w3_ref[...],
                             preferred_element_type=jnp.float32) + b3_ref[...], 0.0)
    f = jnp.maximum(jnp.dot(y3, wb3_ref[...],
                            preferred_element_type=jnp.float32) + bb3_ref[...] + e, 0.0)
    o_ref[...] = (jnp.dot(f, wo_ref[...],
                          preferred_element_type=jnp.float32) + bo_ref[...]
                  ).astype(o_ref.dtype)


def _head_plain_kernel(flat_ref, w1_ref, b1_ref, wo_ref, bo_ref, o_ref):
    f = jnp.maximum(jnp.dot(flat_ref[...], w1_ref[...],
                            preferred_element_type=jnp.float32) + b1_ref[...], 0.0)
    o_ref[...] = (jnp.dot(f, wo_ref[...],
                          preferred_element_type=jnp.float32) + bo_ref[...]
                  ).astype(o_ref.dtype)


# ---------------------------------------------------------------------------
# pallas_call helpers
# ---------------------------------------------------------------------------
def _stage_call(kernel, patches, weights, block_m, scratch_shapes, flops,
                out_dtype=jnp.bfloat16):
    """Conv-stage call: M-grid (whole-image blocks), weights resident, bf16 out."""
    m, kp = patches.shape
    grid = (m // block_m,)
    in_specs = [pl.BlockSpec((block_m, kp), lambda i: (i, 0))]
    in_specs += [pl.BlockSpec(w.shape, lambda i: (0, 0)) for w in weights]
    bytes_accessed = patches.size * patches.dtype.itemsize
    bytes_accessed += m * CP * jnp.dtype(out_dtype).itemsize
    bytes_accessed += sum(w.size * w.dtype.itemsize for w in weights)
    return pl.pallas_call(
        kernel,
        out_shape=jax.ShapeDtypeStruct((m, CP), out_dtype),
        grid=grid,
        in_specs=in_specs,
        out_specs=pl.BlockSpec((block_m, CP), lambda i: (i, 0)),
        scratch_shapes=list(scratch_shapes),
        compiler_params=pltpu.CompilerParams(
            dimension_semantics=("parallel",),
            vmem_limit_bytes=VMEM_LIMIT_BYTES),
        cost_estimate=pl.CostEstimate(flops=int(flops), transcendentals=0,
                                      bytes_accessed=int(bytes_accessed)),
    )(patches, *weights)


def _vmem_call(kernel, out_shape, args, flops=0):
    """Single-program pallas_call with everything resident in VMEM (head)."""
    vmem = pl.BlockSpec(memory_space=pltpu.MemorySpace.VMEM)
    bytes_accessed = sum(a.size * a.dtype.itemsize for a in args)
    bytes_accessed += math.prod(out_shape.shape) * jnp.dtype(out_shape.dtype).itemsize
    return pl.pallas_call(
        kernel,
        out_shape=out_shape,
        in_specs=[vmem] * len(args),
        out_specs=vmem,
        compiler_params=pltpu.CompilerParams(vmem_limit_bytes=VMEM_LIMIT_BYTES),
        cost_estimate=pl.CostEstimate(flops=int(flops), transcendentals=0,
                                      bytes_accessed=int(bytes_accessed)),
    )(*args)


# ---------------------------------------------------------------------------
# Wrapper-side glue (cheap XLA ops between the three fused kernels)
# ---------------------------------------------------------------------------
def _im2col_valid(x_nhwc, kh, kw):
    # TODO(synk): could be folded into the consumer kernel to cut inter-stage
    # HBM traffic further; kept wrapper-side (bf16) for simplicity.
    B, H, W, C = x_nhwc.shape
    Ho, Wo = H - kh + 1, W - kw + 1
    cols = []
    for i in range(kh):
        for j in range(kw):
            cols.append(x_nhwc[:, i:i + Ho, j:j + Wo, :])
    patches = jnp.concatenate(cols, axis=-1)            # (B, Ho, Wo, kh*kw*C)
    return patches.reshape(B * Ho * Wo, kh * kw * C), (B, Ho, Wo)


# ---------------------------------------------------------------------------
# Parameter init (PyTorch-like layouts) and one-time preparation for kernels.
# ---------------------------------------------------------------------------
def _uniform(key, shape, bound):
    return jax.random.uniform(key, shape, jnp.float32, -bound, bound)


def init_params(key, sz, sp, v1, v2):
    def conv_p(k, kh, kw, cin, cout):
        k1, k2 = jax.random.split(k)
        bound = 1.0 / math.sqrt(cin * kh * kw)
        return _uniform(k1, (kh, kw, cin, cout), bound), _uniform(k2, (cout,), bound)

    def lin_p(k, fin, fout):
        k1, k2 = jax.random.split(k)
        bound = 1.0 / math.sqrt(fin)
        return _uniform(k1, (fin, fout), bound), _uniform(k2, (fout,), bound)

    ks = jax.random.split(key, 10)
    p = {}
    p["cnn_1"] = conv_p(ks[0], 5, 5, 1, 16)
    p["cnn_2"] = conv_p(ks[1], 5, 5, 16, 8)
    p["fc1"] = lin_p(ks[2], 8 * (sz - 8) * (sz - 8), 64)
    p["out"] = lin_p(ks[3], 64, 10)
    p["vip1"] = conv_p(ks[4], sp, sp, 16, v1)
    p["vip_back1"] = conv_p(ks[5], sp, sp, v1, 16)
    p["vip2"] = conv_p(ks[6], sp, sp, 8, v1)
    p["vip_back2"] = conv_p(ks[7], sp, sp, v1, 8)
    p["vip3"] = lin_p(ks[8], 64, v2)
    p["vip_back3"] = lin_p(ks[9], v2, 64)
    return p


def prepare_params(params, sz, sp):
    """One-time host-side prep: 128-lane padding, bf16 casts, packed-K vip
    weights, NCHW flatten folded into fc1's weight rows."""

    def bias(b):
        return jnp.pad(b.astype(jnp.float32), (0, CP - b.shape[0])).reshape(1, CP)

    def conv_main(w, b):                      # (KH,KW,Cin,Cout) -> (Kp, CP) bf16
        KH, KW, Cin, Cout = w.shape
        w2 = w.reshape(KH * KW * Cin, Cout)
        w2 = jnp.pad(w2, ((0, _round_up(w2.shape[0], CP) - w2.shape[0]),
                          (0, CP - Cout)))
        return w2.astype(jnp.bfloat16), bias(b)

    def conv_vip_packed(w, b):
        # Pack sp*sp taps along K: row g*CP + tl*Cin + c  <-  w[t=g*tpg+tl, c, :]
        # so the kernel does ceil(T*Cin/128) bf16 K-tiles per same-conv.
        sp_k, _, Cin, Cout = w.shape
        T = sp_k * sp_k
        tpg = CP // Cin
        G = -(-T // tpg)
        w2 = w.reshape(T, Cin, Cout).astype(jnp.float32)
        wp = jnp.zeros((G * CP, CP), jnp.float32)
        for t in range(T):
            g, tl = divmod(t, tpg)
            r0 = g * CP + tl * Cin
            wp = wp.at[r0:r0 + Cin, :Cout].set(w2[t])
        return wp.astype(jnp.bfloat16), bias(b)

    def linear(w, b, dtype=jnp.float32):      # (In, Out) -> (Inp, CP)
        In, Out = w.shape
        w2 = jnp.pad(w, ((0, _round_up(In, CP) - In), (0, CP - Out)))
        return w2.astype(dtype), bias(b)

    p = {}
    p["w_c1"], p["b_c1"] = conv_main(*params["cnn_1"])
    p["w_c2"], p["b_c2"] = conv_main(*params["cnn_2"])
    p["w_v1"], p["b_v1"] = conv_vip_packed(*params["vip1"])
    p["w_vb1"], p["b_vb1"] = conv_vip_packed(*params["vip_back1"])
    p["w_v2"], p["b_v2"] = conv_vip_packed(*params["vip2"])
    p["w_vb2"], p["b_vb2"] = conv_vip_packed(*params["vip_back2"])

    # Fold PyTorch's NCHW flatten (out.view(B,-1)) into fc1's weight rows so the
    # kernel consumes the NHWC-contiguous stage-2 output directly:
    # new row (h*Wf + w)*Cf + c  <-  old row c*Hf*Wf + h*Wf + w.
    Hf = Wf = sz - 8
    Cf = 8
    perm = (jnp.arange(Cf)[None, None, :] * (Hf * Wf)
            + jnp.arange(Hf)[:, None, None] * Wf
            + jnp.arange(Wf)[None, :, None]).reshape(-1)
    w_fc1 = params["fc1"][0][perm]
    p["w_fc1"], p["b_fc1"] = linear(w_fc1, params["fc1"][1], jnp.bfloat16)
    p["w_v3"], p["b_v3"] = linear(*params["vip3"])
    p["w_vb3"], p["b_vb3"] = linear(*params["vip_back3"])
    p["w_out"], p["b_out"] = linear(*params["out"])
    return p


# ---------------------------------------------------------------------------
# Forward pass (mirrors CNN_switch_3L.forward; x is NCHW like PyTorch)
# ---------------------------------------------------------------------------
def cnn_switch_3l_forward(p, x_nchw, sw, s_pr, sp, v1):
    if sw == 1 and s_pr != 0:
        # TODO(synk): PyTorch branch `out = out * y1` references y1/y3 before
        # definition (NameError in the reference module); not reproducible.
        raise NotImplementedError("sw==1, s_pr!=0 is undefined in the reference module")
    assert sp % 2 == 1, "vip convs assume odd kernel size ('same' padding)"

    B = x_nchw.shape[0]
    x = jnp.transpose(x_nchw, (0, 2, 3, 1))                     # NCHW -> NHWC

    def conv_stage(x_in, wc, bc, wv, bv, wvb, bvb, cout, cin_v, cin_vb):
        patches, (Bb, Ho, Wo) = _im2col_valid(x_in, 5, 5)
        patches = _pad_last(patches, CP).astype(jnp.bfloat16)   # lane-dense K
        m, kp = patches.shape
        rows_per_img = Ho * Wo

        # M blocks on whole-image boundaries (keeps halo/mask logic image-local);
        # "parallel" lets blocks shard across TensorCores (v7x megacore).
        ipb = max(1, min(Bb, _TARGET_BLOCK_ROWS // rows_per_img))
        while Bb % ipb:
            ipb -= 1
        block_m = ipb * rows_per_img
        if block_m % 8 != 0:          # (8,128) block rule: fall back to 1 block
            block_m = m

        if sw == 1:
            pad = (sp - 1) // 2
            halo = _round_up(pad * Wo + pad, 8)
            assert halo >= pad * Wo + pad and halo % 8 == 0, "halo too small"
            taps = tuple((i - pad, j - pad, (i - pad) * Wo + (j - pad))
                         for i in range(sp) for j in range(sp))
            kern = functools.partial(_conv_vip_stage_kernel, taps=taps,
                                     bm=block_m, halo=halo, H=Ho, W=Wo,
                                     cin_v=cin_v, cin_vb=cin_vb)
            weights = (wc, bc, wv, bv, wvb, bvb)
            scratch = (pltpu.VMEM((block_m + 2 * halo, CP), jnp.float32),)
            flops = 2 * m * (kp + wv.shape[0] + wvb.shape[0]) * CP
        else:
            kern = _conv_relu_kernel
            weights = (wc, bc)
            scratch = ()
            flops = 2 * m * kp * CP
        out = _stage_call(kern, patches, weights, block_m, scratch, flops)
        return out[:, :cout].reshape(Bb, Ho, Wo, cout)          # bf16

    # ---- stage 1: cnn_1 (+ vip1 / vip_back1 residual) + ReLU --------------
    b1 = conv_stage(x, p["w_c1"], p["b_c1"],
                    p["w_v1"], p["b_v1"], p["w_vb1"], p["b_vb1"], 16, 16, v1)
    # ---- stage 2: cnn_2 (+ vip2 / vip_back2 residual) + ReLU --------------
    d = conv_stage(b1, p["w_c2"], p["b_c2"],
                   p["w_v2"], p["b_v2"], p["w_vb2"], p["b_vb2"], 8, 8, v1)

    # ---- stage 3: flatten (NCHW order folded into fc1 rows) + fused head --
    flat = _pad_last(d.reshape(B, -1), CP).astype(jnp.bfloat16)
    if sw == 1:
        args = (flat, p["w_fc1"], p["b_fc1"], p["w_v3"], p["b_v3"],
                p["w_vb3"], p["b_vb3"], p["w_out"], p["b_out"])
        kern = _head_vip_kernel
    else:
        args = (flat, p["w_fc1"], p["b_fc1"], p["w_out"], p["b_out"])
        kern = _head_plain_kernel
    flops = 2 * B * (flat.shape[1] * CP + 3 * CP * CP)
    logits = _vmem_call(kern, jax.ShapeDtypeStruct((B, CP), jnp.float32),
                        args, flops)
    return logits[:, :10]


# ---------------------------------------------------------------------------
# Pure-JAX f32 reference of the PyTorch module (for tolerance testing)
# ---------------------------------------------------------------------------
def _reference_forward(params, x_nchw, sw, sp):
    hi = lax.Precision.HIGHEST
    pad = (sp - 1) // 2
    same = [(pad, pad), (pad, pad)]

    def conv(xv, wb, padding):
        w, b = wb
        y = lax.conv_general_dilated(
            xv, w, (1, 1), padding,
            dimension_numbers=("NCHW", "HWIO", "NCHW"), precision=hi)
        return y + b[None, :, None, None]

    def lin(v, wb):
        w, b = wb
        return jnp.dot(v, w, precision=hi) + b

    out = conv(x_nchw, params["cnn_1"], "VALID")
    if sw == 1:
        y = jnp.maximum(conv(out, params["vip1"], same), 0.0)
        out = out + conv(y, params["vip_back1"], same)
    out = jnp.maximum(out, 0.0)
    out = conv(out, params["cnn_2"], "VALID")
    if sw == 1:
        y = jnp.maximum(conv(out, params["vip2"], same), 0.0)
        out = out + conv(y, params["vip_back2"], same)
    out = jnp.maximum(out, 0.0)
    flat = out.reshape(out.shape[0], -1)                 # NCHW flatten (PyTorch)
    e = lin(flat, params["fc1"])
    if sw == 1:
        y = jnp.maximum(lin(e, params["vip3"]), 0.0)
        e = e + lin(y, params["vip_back3"])
    f = jnp.maximum(e, 0.0)
    return lin(f, params["out"])


if __name__ == "__main__":
    sz, sp, v1, v2 = 16, 3, 4, 8
    key = jax.random.PRNGKey(0)
    pkey, xkey = jax.random.split(key)
    params = init_params(pkey, sz, sp, v1, v2)
    prepped = prepare_params(params, sz, sp)

    x = jax.random.normal(xkey, (2, 1, sz, sz), jnp.float32)    # NCHW like PyTorch

    fwd = jax.jit(cnn_switch_3l_forward,
                  static_argnames=("sw", "s_pr", "sp", "v1"))

    out1 = jax.block_until_ready(fwd(prepped, x, sw=1, s_pr=0, sp=sp, v1=v1))
    out0 = jax.block_until_ready(fwd(prepped, x, sw=0, s_pr=0, sp=sp, v1=v1))
    assert out1.shape == (2, 10) and out0.shape == (2, 10)

    # tolerance-check both paths against the pure-JAX f32 reference
    ref1 = _reference_forward(params, x, 1, sp)
    ref0 = _reference_forward(params, x, 0, sp)
    assert float(jnp.max(jnp.abs(out1 - ref1))) < 2e-2
    assert float(jnp.max(jnp.abs(out0 - ref0))) < 2e-2

    print("KERNEL_OK")
</pallas_src>

<mosaic_0001>
module attributes {stable_mosaic.version = 11 : i64} {
  func.func @_conv_vip_stage_kernel(%arg0: i32, %arg1: memref<288x128xbf16, #tpu.memory_space<vmem>>, %arg2: memref<128x128xbf16, #tpu.memory_space<vmem>>, %arg3: memref<1x128xf32, #tpu.memory_space<vmem>>, %arg4: memref<256x128xbf16, #tpu.memory_space<vmem>>, %arg5: memref<1x128xf32, #tpu.memory_space<vmem>>, %arg6: memref<128x128xbf16, #tpu.memory_space<vmem>>, %arg7: memref<1x128xf32, #tpu.memory_space<vmem>>, %arg8: memref<288x128xbf16, #tpu.memory_space<vmem>>, %arg9: memref<320x128xf32, #tpu.memory_space<vmem>>) attributes {dimension_semantics = [#tpu.dimension_semantics<parallel>], iteration_bounds = array<i64: 1>, scalar_prefetch = 0 : i64, scratch_operands = 1 : i64, tpu.core_type = #tpu.core_type<tc>, window_params = [{transform_indices = @transform_0, window_bounds = array<i64: 288, 128>}, {pipeline_mode = #tpu.pipeline_mode<synchronous>, transform_indices = @transform_1, window_bounds = array<i64: 128, 128>}, {pipeline_mode = #tpu.pipeline_mode<synchronous>, transform_indices = @transform_2, window_bounds = array<i64: 1, 128>}, {pipeline_mode = #tpu.pipeline_mode<synchronous>, transform_indices = @transform_3, window_bounds = array<i64: 256, 128>}, {pipeline_mode = #tpu.pipeline_mode<synchronous>, transform_indices = @transform_4, window_bounds = array<i64: 1, 128>}, {pipeline_mode = #tpu.pipeline_mode<synchronous>, transform_indices = @transform_5, window_bounds = array<i64: 128, 128>}, {pipeline_mode = #tpu.pipeline_mode<synchronous>, transform_indices = @transform_6, window_bounds = array<i64: 1, 128>}, {transform_indices = @transform_7, window_bounds = array<i64: 288, 128>}]} {
    %c0 = arith.constant 0 : index
    %c0_0 = arith.constant 0 : index
    %0 = vector.load %arg1[%c0, %c0_0] : memref<288x128xbf16, #tpu.memory_space<vmem>>, vector<288x128xbf16>
    %c0_1 = arith.constant 0 : index
    %c0_2 = arith.constant 0 : index
    %1 = vector.load %arg2[%c0_1, %c0_2] : memref<128x128xbf16, #tpu.memory_space<vmem>>, vector<128x128xbf16>
    %cst = arith.constant dense<0.000000e+00> : vector<288x128xf32>
    %2 = tpu.matmul %0, %1, %cst {dimension_numbers = #tpu.dot_dimension_numbers<[1], [0], [0], [1], [0, 0, 1, 1], [], []>} : vector<288x128xbf16>, vector<128x128xbf16>, vector<288x128xf32> -> vector<288x128xf32>
    %c0_3 = arith.constant 0 : index
    %c0_4 = arith.constant 0 : index
    %3 = vector.load %arg3[%c0_3, %c0_4] : memref<1x128xf32, #tpu.memory_space<vmem>>, vector<1x128xf32>
    %4 = vector.broadcast %3 : vector<1x128xf32> to vector<288x128xf32>
    %5 = arith.addf %2, %4 : vector<288x128xf32>
    %cst_5 = arith.constant 0.000000e+00 : f32
    %6 = vector.broadcast %cst_5 : f32 to vector<16x128xf32>
    %c0_6 = arith.constant 0 : index
    %c0_7 = arith.constant 0 : index
    %7 = vector.load %arg9[%c0_6, %c0_7] : memref<320x128xf32, #tpu.memory_space<vmem>>, vector<16x128xf32>
    tpu.vector_store %arg9[%c0_6, %c0_7], %6 {strides = array<i32>} : memref<320x128xf32, #tpu.memory_space<vmem>>, vector<16x128xf32>,
    %c304 = arith.constant 304 : index
    %c0_8 = arith.constant 0 : index
    %8 = vector.load %arg9[%c304, %c0_8] : memref<320x128xf32, #tpu.memory_space<vmem>>, vector<16x128xf32>
    tpu.vector_store %arg9[%c304, %c0_8], %6 {strides = array<i32>} : memref<320x128xf32, #tpu.memory_space<vmem>>, vector<16x128xf32>,
    %9 = tpu.iota {dimensions = array<i32: 0>} : vector<288x1xi32>
    %10 = arith.sitofp %9 : vector<288x1xi32> to vector<288x1xf32>
    %cst_9 = arith.constant 5.000000e-01 : f32
    %11 = vector.broadcast %cst_9 : f32 to vector<288x1xf32>
    %12 = arith.addf %10, %11 : vector<288x1xf32>
    %cst_10 = arith.constant 0.0069444445 : f32
    %13 = vector.broadcast %cst_10 : f32 to vector<288x1xf32>
    %14 = arith.mulf %12, %13 : vector<288x1xf32>
    %15 = math.floor %14 : vector<288x1xf32>
    %cst_11 = arith.constant 1.440000e+02 : f32
    %16 = vector.broadcast %cst_11 : f32 to vector<288x1xf32>
    %17 = arith.mulf %15, %16 : vector<288x1xf32>
    %18 = arith.subf %10, %17 : vector<288x1xf32>
    %cst_12 = arith.constant 5.000000e-01 : f32
    %19 = vector.broadcast %cst_12 : f32 to vector<288x1xf32>
    %20 = arith.addf %18, %19 : vector<288x1xf32>
    %cst_13 = arith.constant 0.0833333358 : f32
    %21 = vector.broadcast %cst_13 : f32 to vector<288x1xf32>
    %22 = arith.mulf %20, %21 : vector<288x1xf32>
    %23 = math.floor %22 : vector<288x1xf32>
    %cst_14 = arith.constant 1.200000e+01 : f32
    %24 = vector.broadcast %cst_14 : f32 to vector<288x1xf32>
    %25 = arith.mulf %23, %24 : vector<288x1xf32>
    %26 = arith.subf %18, %25 : vector<288x1xf32>
    %cst_15 = arith.constant -1.000000e+00 : f32
    %27 = vector.broadcast %cst_15 : f32 to vector<288x1xf32>
    %28 = arith.addf %23, %27 : vector<288x1xf32>
    %cst_16 = arith.constant 0.000000e+00 : f32
    %29 = vector.broadcast %cst_16 : f32 to vector<288x1xf32>
    %30 = arith.cmpf oge, %28, %29 : vector<288x1xf32>
    %cst_17 = arith.constant -1.000000e+00 : f32
    %31 = vector.broadcast %cst_17 : f32 to vector<288x1xf32>
    %32 = arith.addf %23, %31 : vector<288x1xf32>
    %cst_18 = arith.constant 1.100000e+01 : f32
    %33 = vector.broadcast %cst_18 : f32 to vector<288x1xf32>
    %34 = arith.cmpf ole, %32, %33 : vector<288x1xf32>
    %35 = arith.andi %30, %34 : vector<288x1xi1>
    %cst_19 = arith.constant -1.000000e+00 : f32
    %36 = vector.broadcast %cst_19 : f32 to vector<288x1xf32>
    %37 = arith.addf %26, %36 : vector<288x1xf32>
    %cst_20 = arith.constant 0.000000e+00 : f32
    %38 = vector.broadcast %cst_20 : f32 to vector<288x1xf32>
    %39 = arith.cmpf oge, %37, %38 : vector<288x1xf32>
    %40 = arith.andi %35, %39 : vector<288x1xi1>
    %cst_21 = arith.constant -1.000000e+00 : f32
    %41 = vector.broadcast %cst_21 : f32 to vector<288x1xf32>
    %42 = arith.addf %26, %41 : vector<288x1xf32>
    %cst_22 = arith.constant 1.100000e+01 : f32
    %43 = vector.broadcast %cst_22 : f32 to vector<288x1xf32>
    %44 = arith.cmpf ole, %42, %43 : vector<288x1xf32>
    %45 = arith.andi %40, %44 : vector<288x1xi1>
    %cst_23 = arith.constant -1.000000e+00 : f32
    %46 = vector.broadcast %cst_23 : f32 to vector<288x1xf32>
    %47 = arith.addf %23, %46 : vector<288x1xf32>
    %cst_24 = arith.constant 0.000000e+00 : f32
    %48 = vector.broadcast %cst_24 : f32 to vector<288x1xf32>
    %49 = arith.cmpf oge, %47, %48 : vector<288x1xf32>
    %cst_25 = arith.constant -1.000000e+00 : f32
    %50 = vector.broadcast %cst_25 : f32 to vector<288x1xf32>
    %51 = arith.addf %23, %50 : vector<288x1xf32>
    %cst_26 = arith.constant 1.100000e+01 : f32
    %52 = vector.broadcast %cst_26 : f32 to vector<288x1xf32>
    %53 = arith.cmpf ole, %51, %52 : vector<288x1xf32>
    %54 = arith.andi %49, %53 : vector<288x1xi1>
    %cst_27 = arith.constant 0.000000e+00 : f32
    %55 = vector.broadcast %cst_27 : f32 to vector<288x1xf32>
    %56 = arith.addf %26, %55 : vector<288x1xf32>
    %cst_28 = arith.constant 0.000000e+00 : f32
    %57 = vector.broadcast %cst_28 : f32 to vector<288x1xf32>
    %58 = arith.cmpf oge, %56, %57 : vector<288x1xf32>
    %59 = arith.andi %54, %58 : vector<288x1xi1>
    %cst_29 = arith.constant 0.000000e+00 : f32
    %60 = vector.broadcast %cst_29 : f32 to vector<288x1xf32>
    %61 = arith.addf %26, %60 : vector<288x1xf32>
    %cst_30 = arith.constant 1.100000e+01 : f32
    %62 = vector.broadcast %cst_30 : f32 to vector<288x1xf32>
    %63 = arith.cmpf ole, %61, %62 : vector<288x1xf32>
    %64 = arith.andi %59, %63 : vector<288x1xi1>
    %cst_31 = arith.constant -1.000000e+00 : f32
    %65 = vector.broadcast %cst_31 : f32 to vector<288x1xf32>
    %66 = arith.addf %23, %65 : vector<288x1xf32>
    %cst_32 = arith.constant 0.000000e+00 : f32
    %67 = vector.broadcast %cst_32 : f32 to vector<288x1xf32>
    %68 = arith.cmpf oge, %66, %67 : vector<288x1xf32>
    %cst_33 = arith.constant -1.000000e+00 : f32
    %69 = vector.broadcast %cst_33 : f32 to vector<288x1xf32>
    %70 = arith.addf %23, %69 : vector<288x1xf32>
    %cst_34 = arith.constant 1.100000e+01 : f32
    %71 = vector.broadcast %cst_34 : f32 to vector<288x1xf32>
    %72 = arith.cmpf ole, %70, %71 : vector<288x1xf32>
    %73 = arith.andi %68, %72 : vector<288x1xi1>
    %cst_35 = arith.constant 1.000000e+00 : f32
    %74 = vector.broadcast %cst_35 : f32 to vector<288x1xf32>
    %75 = arith.addf %26, %74 : vector<288x1xf32>
    %cst_36 = arith.constant 0.000000e+00 : f32
    %76 = vector.broadcast %cst_36 : f32 to vector<288x1xf32>
    %77 = arith.cmpf oge, %75, %76 : vector<288x1xf32>
    %78 = arith.andi %73, %77 : vector<288x1xi1>
    %cst_37 = arith.constant 1.000000e+00 : f32
    %79 = vector.broadcast %cst_37 : f32 to vector<288x1xf32>
    %80 = arith.addf %26, %79 : vector<288x1xf32>
    %cst_38 = arith.constant 1.100000e+01 : f32
    %81 = vector.broadcast %cst_38 : f32 to vector<288x1xf32>
    %82 = arith.cmpf ole, %80, %81 : vector<288x1xf32>
    %83 = arith.andi %78, %82 : vector<288x1xi1>
    %cst_39 = arith.constant 0.000000e+00 : f32
    %84 = vector.broadcast %cst_39 : f32 to vector<288x1xf32>
    %85 = arith.addf %23, %84 : vector<288x1xf32>
    %cst_40 = arith.constant 0.000000e+00 : f32
    %86 = vector.broadcast %cst_40 : f32 to vector<288x1xf32>
    %87 = arith.cmpf oge, %85, %86 : vector<288x1xf32>
    %cst_41 = arith.constant 0.000000e+00 : f32
    %88 = vector.broadcast %cst_41 : f32 to vector<288x1xf32>
    %89 = arith.addf %23, %88 : vector<288x1xf32>
    %cst_42 = arith.constant 1.100000e+01 : f32
    %90 = vector.broadcast %cst_42 : f32 to vector<288x1xf32>
    %91 = arith.cmpf ole, %89, %90 : vector<288x1xf32>
    %92 = arith.andi %87, %91 : vector<288x1xi1>
    %cst_43 = arith.constant -1.000000e+00 : f32
    %93 = vector.broadcast %cst_43 : f32 to vector<288x1xf32>
    %94 = arith.addf %26, %93 : vector<288x1xf32>
    %cst_44 = arith.constant 0.000000e+00 : f32
    %95 = vector.broadcast %cst_44 : f32 to vector<288x1xf32>
    %96 = arith.cmpf oge, %94, %95 : vector<288x1xf32>
    %97 = arith.andi %92, %96 : vector<288x1xi1>
    %cst_45 = arith.constant -1.000000e+00 : f32
    %98 = vector.broadcast %cst_45 : f32 to vector<288x1xf32>
    %99 = arith.addf %26, %98 : vector<288x1xf32>
    %cst_46 = arith.constant 1.100000e+01 : f32
    %100 = vector.broadcast %cst_46 : f32 to vector<288x1xf32>
    %101 = arith.cmpf ole, %99, %100 : vector<288x1xf32>
    %102 = arith.andi %97, %101 : vector<288x1xi1>
    %cst_47 = arith.constant 0.000000e+00 : f32
    %103 = vector.broadcast %cst_47 : f32 to vector<288x1xf32>
    %104 = arith.addf %23, %103 : vector<288x1xf32>
    %cst_48 = arith.constant 0.000000e+00 : f32
    %105 = vector.broadcast %cst_48 : f32 to vector<288x1xf32>
    %106 = arith.cmpf oge, %104, %105 : vector<288x1xf32>
    %cst_49 = arith.constant 0.000000e+00 : f32
    %107 = vector.broadcast %cst_49 : f32 to vector<288x1xf32>
    %108 = arith.addf %23, %107 : vector<288x1xf32>
    %cst_50 = arith.constant 1.100000e+01 : f32
    %109 = vector.broadcast %cst_50 : f32 to vector<288x1xf32>
    %110 = arith.cmpf ole, %108, %109 : vector<288x1xf32>
    %111 = arith.andi %106, %110 : vector<288x1xi1>
    %cst_51 = arith.constant 1.000000e+00 : f32
    %112 = vector.broadcast %cst_51 : f32 to vector<288x1xf32>
    %113 = arith.addf %26, %112 : vector<288x1xf32>
    %cst_52 = arith.constant 0.000000e+00 : f32
    %114 = vector.broadcast %cst_52 : f32 to vector<288x1xf32>
    %115 = arith.cmpf oge, %113, %114 : vector<288x1xf32>
    %116 = arith.andi %111, %115 : vector<288x1xi1>
    %cst_53 = arith.constant 1.000000e+00 : f32
    %117 = vector.broadcast %cst_53 : f32 to vector<288x1xf32>
    %118 = arith.addf %26, %117 : vector<288x1xf32>
    %cst_54 = arith.constant 1.100000e+01 : f32
    %119 = vector.broadcast %cst_54 : f32 to vector<288x1xf32>
    %120 = arith.cmpf ole, %118, %119 : vector<288x1xf32>
    %121 = arith.andi %116, %120 : vector<288x1xi1>
    %cst_55 = arith.constant 1.000000e+00 : f32
    %122 = vector.broadcast %cst_55 : f32 to vector<288x1xf32>
    %123 = arith.addf %23, %122 : vector<288x1xf32>
    %cst_56 = arith.constant 0.000000e+00 : f32
    %124 = vector.broadcast %cst_56 : f32 to vector<288x1xf32>
    %125 = arith.cmpf oge, %123, %124 : vector<288x1xf32>
    %cst_57 = arith.constant 1.000000e+00 : f32
    %126 = vector.broadcast %cst_57 : f32 to vector<288x1xf32>
    %127 = arith.addf %23, %126 : vector<288x1xf32>
    %cst_58 = arith.constant 1.100000e+01 : f32
    %128 = vector.broadcast %cst_58 : f32 to vector<288x1xf32>
    %129 = arith.cmpf ole, %127, %128 : vector<288x1xf32>
    %130 = arith.andi %125, %129 : vector<288x1xi1>
    %cst_59 = arith.constant -1.000000e+00 : f32
    %131 = vector.broadcast %cst_59 : f32 to vector<288x1xf32>
    %132 = arith.addf %26, %131 : vector<288x1xf32>
    %cst_60 = arith.constant 0.000000e+00 : f32
    %133 = vector.broadcast %cst_60 : f32 to vector<288x1xf32>
    %134 = arith.cmpf oge, %132, %133 : vector<288x1xf32>
    %135 = arith.andi %130, %134 : vector<288x1xi1>
    %cst_61 = arith.constant -1.000000e+00 : f32
    %136 = vector.broadcast %cst_61 : f32 to vector<288x1xf32>
    %137 = arith.addf %26, %136 : vector<288x1xf32>
    %cst_62 = arith.constant 1.100000e+01 : f32
    %138 = vector.broadcast %cst_62 : f32 to vector<288x1xf32>
    %139 = arith.cmpf ole, %137, %138 : vector<288x1xf32>
    %140 = arith.andi %135, %139 : vector<288x1xi1>
    %cst_63 = arith.constant 1.000000e+00 : f32
    %141 = vector.broadcast %cst_63 : f32 to vector<288x1xf32>
    %142 = arith.addf %23, %141 : vector<288x1xf32>
    %cst_64 = arith.constant 0.000000e+00 : f32
    %143 = vector.broadcast %cst_64 : f32 to vector<288x1xf32>
    %144 = arith.cmpf oge, %142, %143 : vector<288x1xf32>
    %cst_65 = arith.constant 1.000000e+00 : f32
    %145 = vector.broadcast %cst_65 : f32 to vector<288x1xf32>
    %146 = arith.addf %23, %145 : vector<288x1xf32>
    %cst_66 = arith.constant 1.100000e+01 : f32
    %147 = vector.broadcast %cst_66 : f32 to vector<288x1xf32>
    %148 = arith.cmpf ole, %146, %147 : vector<288x1xf32>
    %149 = arith.andi %144, %148 : vector<288x1xi1>
    %cst_67 = arith.constant 0.000000e+00 : f32
    %150 = vector.broadcast %cst_67 : f32 to vector<288x1xf32>
    %151 = arith.addf %26, %150 : vector<288x1xf32>
    %cst_68 = arith.constant 0.000000e+00 : f32
    %152 = vector.broadcast %cst_68 : f32 to vector<288x1xf32>
    %153 = arith.cmpf oge, %151, %152 : vector<288x1xf32>
    %154 = arith.andi %149, %153 : vector<288x1xi1>
    %cst_69 = arith.constant 0.000000e+00 : f32
    %155 = vector.broadcast %cst_69 : f32 to vector<288x1xf32>
    %156 = arith.addf %26, %155 : vector<288x1xf32>
    %cst_70 = arith.constant 1.100000e+01 : f32
    %157 = vector.broadcast %cst_70 : f32 to vector<288x1xf32>
    %158 = arith.cmpf ole, %156, %157 : vector<288x1xf32>
    %159 = arith.andi %154, %158 : vector<288x1xi1>
    %cst_71 = arith.constant 1.000000e+00 : f32
    %160 = vector.broadcast %cst_71 : f32 to vector<288x1xf32>
    %161 = arith.addf %23, %160 : vector<288x1xf32>
    %cst_72 = arith.constant 0.000000e+00 : f32
    %162 = vector.broadcast %cst_72 : f32 to vector<288x1xf32>
    %163 = arith.cmpf oge, %161, %162 : vector<288x1xf32>
    %cst_73 = arith.constant 1.000000e+00 : f32
    %164 = vector.broadcast %cst_73 : f32 to vector<288x1xf32>
    %165 = arith.addf %23, %164 : vector<288x1xf32>
    %cst_74 = arith.constant 1.100000e+01 : f32
    %166 = vector.broadcast %cst_74 : f32 to vector<288x1xf32>
    %167 = arith.cmpf ole, %165, %166 : vector<288x1xf32>
    %168 = arith.andi %163, %167 : vector<288x1xi1>
    %cst_75 = arith.constant 1.000000e+00 : f32
    %169 = vector.broadcast %cst_75 : f32 to vector<288x1xf32>
    %170 = arith.addf %26, %169 : vector<288x1xf32>
    %cst_76 = arith.constant 0.000000e+00 : f32
    %171 = vector.broadcast %cst_76 : f32 to vector<288x1xf32>
    %172 = arith.cmpf oge, %170, %171 : vector<288x1xf32>
    %173 = arith.andi %168, %172 : vector<288x1xi1>
    %cst_77 = arith.constant 1.000000e+00 : f32
    %174 = vector.broadcast %cst_77 : f32 to vector<288x1xf32>
    %175 = arith.addf %26, %174 : vector<288x1xf32>
    %cst_78 = arith.constant 1.100000e+01 : f32
    %176 = vector.broadcast %cst_78 : f32 to vector<288x1xf32>
    %177 = arith.cmpf ole, %175, %176 : vector<288x1xf32>
    %178 = arith.andi %173, %177 : vector<288x1xi1>
    %c16 = arith.constant 16 : index
    %c0_79 = arith.constant 0 : index
    %179 = vector.load %arg9[%c16, %c0_79] : memref<320x128xf32, #tpu.memory_space<vmem>>, vector<288x128xf32>
    tpu.vector_store %arg9[%c16, %c0_79], %5 {strides = array<i32>} : memref<320x128xf32, #tpu.memory_space<vmem>>, vector<288x128xf32>,
    %c3 = arith.constant 3 : index
    %c0_80 = arith.constant 0 : index
    %180 = vector.load %arg9[%c3, %c0_80] : memref<320x128xf32, #tpu.memory_space<vmem>>, vector<288x128xf32>
    %cst_81 = arith.constant 0.000000e+00 : f32
    %181 = vector.shape_cast %45 : vector<288x1xi1> to vector<288x1xi1>
    %182 = vector.broadcast %181 : vector<288x1xi1> to vector<288x128xi1>
    %183 = vector.broadcast %cst_81 : f32 to vector<288x128xf32>
    %184 = arith.select %182, %180, %183 : vector<288x128xi1>, vector<288x128xf32>
    %c4 = arith.constant 4 : index
    %c0_82 = arith.constant 0 : index
    %185 = vector.load %arg9[%c4, %c0_82] : memref<320x128xf32, #tpu.memory_space<vmem>>, vector<288x128xf32>
    %cst_83 = arith.constant 0.000000e+00 : f32
    %186 = vector.shape_cast %64 : vector<288x1xi1> to vector<288x1xi1>
    %187 = vector.broadcast %186 : vector<288x1xi1> to vector<288x128xi1>
    %188 = vector.broadcast %cst_83 : f32 to vector<288x128xf32>
    %189 = arith.select %187, %185, %188 : vector<288x128xi1>, vector<288x128xf32>
    %c16_i32 = arith.constant 16 : i32
    %190 = tpu.dynamic_rotate %189 by %c16_i32 dim 1 : vector<288x128xf32>, i32 -> vector<288x128xf32>
    %191 = arith.addf %184, %190 : vector<288x128xf32>
    %c5 = arith.constant 5 : index
    %c0_84 = arith.constant 0 : index
    %192 = vector.load %arg9[%c5, %c0_84] : memref<320x128xf32, #tpu.memory_space<vmem>>, vector<288x128xf32>
    %cst_85 = arith.constant 0.000000e+00 : f32
    %193 = vector.shape_cast %83 : vector<288x1xi1> to vector<288x1xi1>
    %194 = vector.broadcast %193 : vector<288x1xi1> to vector<288x128xi1>
    %195 = vector.broadcast %cst_85 : f32 to vector<288x128xf32>
    %196 = arith.select %194, %192, %195 : vector<288x128xi1>, vector<288x128xf32>
    %c32_i32 = arith.constant 32 : i32
    %197 = tpu.dynamic_rotate %196 by %c32_i32 dim 1 : vector<288x128xf32>, i32 -> vector<288x128xf32>
    %198 = arith.addf %191, %197 : vector<288x128xf32>
    %c15 = arith.constant 15 : index
    %c0_86 = arith.constant 0 : index
    %199 = vector.load %arg9[%c15, %c0_86] : memref<320x128xf32, #tpu.memory_space<vmem>>, vector<288x128xf32>
    %cst_87 = arith.constant 0.000000e+00 : f32
    %200 = vector.shape_cast %102 : vector<288x1xi1> to vector<288x1xi1>
    %201 = vector.broadcast %200 : vector<288x1xi1> to vector<288x128xi1>
    %202 = vector.broadcast %cst_87 : f32 to vector<288x128xf32>
    %203 = arith.select %201, %199, %202 : vector<288x128xi1>, vector<288x128xf32>
    %c48_i32 = arith.constant 48 : i32
    %204 = tpu.dynamic_rotate %203 by %c48_i32 dim 1 : vector<288x128xf32>, i32 -> vector<288x128xf32>
    %205 = arith.addf %198, %204 : vector<288x128xf32>
    %c16_88 = arith.constant 16 : index
    %c0_89 = arith.constant 0 : index
    %206 = vector.load %arg9[%c16_88, %c0_89] : memref<320x128xf32, #tpu.memory_space<vmem>>, vector<288x128xf32>
    %c64_i32 = arith.constant 64 : i32
    %207 = tpu.dynamic_rotate %206 by %c64_i32 dim 1 : vector<288x128xf32>, i32 -> vector<288x128xf32>
    %208 = arith.addf %205, %207 : vector<288x128xf32>
    %c17 = arith.constant 17 : index
    %c0_90 = arith.constant 0 : index
    %209 = vector.load %arg9[%c17, %c0_90] : memref<320x128xf32, #tpu.memory_space<vmem>>, vector<288x128xf32>
    %cst_91 = arith.constant 0.000000e+00 : f32
    %210 = vector.shape_cast %121 : vector<288x1xi1> to vector<288x1xi1>
    %211 = vector.broadcast %210 : vector<288x1xi1> to vector<288x128xi1>
    %212 = vector.broadcast %cst_91 : f32 to vector<288x128xf32>
    %213 = arith.select %211, %209, %212 : vector<288x128xi1>, vector<288x128xf32>
    %c80_i32 = arith.constant 80 : i32
    %214 = tpu.dynamic_rotate %213 by %c80_i32 dim 1 : vector<288x128xf32>, i32 -> vector<288x128xf32>
    %215 = arith.addf %208, %214 : vector<288x128xf32>
    %c27 = arith.constant 27 : index
    %c0_92 = arith.constant 0 : index
    %216 = vector.load %arg9[%c27, %c0_92] : memref<320x128xf32, #tpu.memory_space<vmem>>, vector<288x128xf32>
    %cst_93 = arith.constant 0.000000e+00 : f32
    %217 = vector.shape_cast %140 : vector<288x1xi1> to vector<288x1xi1>
    %218 = vector.broadcast %217 : vector<288x1xi1> to vector<288x128xi1>
    %219 = vector.broadcast %cst_93 : f32 to vector<288x128xf32>
    %220 = arith.select %218, %216, %219 : vector<288x128xi1>, vector<288x128xf32>
    %c96_i32 = arith.constant 96 : i32
    %221 = tpu.dynamic_rotate %220 by %c96_i32 dim 1 : vector<288x128xf32>, i32 -> vector<288x128xf32>
    %222 = arith.addf %215, %221 : vector<288x128xf32>
    %c28 = arith.constant 28 : index
    %c0_94 = arith.constant 0 : index
    %223 = vector.load %arg9[%c28, %c0_94] : memref<320x128xf32, #tpu.memory_space<vmem>>, vector<288x128xf32>
    %cst_95 = arith.constant 0.000000e+00 : f32
    %224 = vector.shape_cast %159 : vector<288x1xi1> to vector<288x1xi1>
    %225 = vector.broadcast %224 : vector<288x1xi1> to vector<288x128xi1>
    %226 = vector.broadcast %cst_95 : f32 to vector<288x128xf32>
    %227 = arith.select %225, %223, %226 : vector<288x128xi1>, vector<288x128xf32>
    %c112_i32 = arith.constant 112 : i32
    %228 = tpu.dynamic_rotate %227 by %c112_i32 dim 1 : vector<288x128xf32>, i32 -> vector<288x128xf32>
    %229 = arith.addf %222, %228 : vector<288x128xf32>
    %c29 = arith.constant 29 : index
    %c0_96 = arith.constant 0 : index
    %230 = vector.load %arg9[%c29, %c0_96] : memref<320x128xf32, #tpu.memory_space<vmem>>, vector<288x128xf32>
    %cst_97 = arith.constant 0.000000e+00 : f32
    %231 = vector.shape_cast %178 : vector<288x1xi1> to vector<288x1xi1>
    %232 = vector.broadcast %231 : vector<288x1xi1> to vector<288x128xi1>
    %233 = vector.broadcast %cst_97 : f32 to vector<288x128xf32>
    %234 = arith.select %232, %230, %233 : vector<288x128xi1>, vector<288x128xf32>
    %235 = tpu.concatenate %229, %234 in 1 : vector<288x128xf32>, vector<288x128xf32> -> vector<288x256xf32>
    %236 = arith.truncf %235 : vector<288x256xf32> to vector<288x256xbf16>
    %c0_98 = arith.constant 0 : index
    %c0_99 = arith.constant 0 : index
    %237 = vector.load %arg4[%c0_98, %c0_99] : memref<256x128xbf16, #tpu.memory_space<vmem>>, vector<256x128xbf16>
    %cst_100 = arith.constant dense<0.000000e+00> : vector<288x128xf32>
    %238 = tpu.matmul %236, %237, %cst_100 {dimension_numbers = #tpu.dot_dimension_numbers<[1], [0], [0], [1], [0, 0, 1, 1], [], []>} : vector<288x256xbf16>, vector<256x128xbf16>, vector<288x128xf32> -> vector<288x128xf32>
    %c0_101 = arith.constant 0 : index
    %c0_102 = arith.constant 0 : index
    %239 = vector.load %arg5[%c0_101, %c0_102] : memref<1x128xf32, #tpu.memory_space<vmem>>, vector<1x128xf32>
    %240 = vector.broadcast %239 : vector<1x128xf32> to vector<288x128xf32>
    %241 = arith.addf %238, %240 : vector<288x128xf32>
    %cst_103 = arith.constant 0.000000e+00 : f32
    %242 = vector.broadcast %cst_103 : f32 to vector<288x128xf32>
    %243 = arith.maximumf %241, %242 : vector<288x128xf32>
    %c16_104 = arith.constant 16 : index
    %c0_105 = arith.constant 0 : index
    %244 = vector.load %arg9[%c16_104, %c0_105] : memref<320x128xf32, #tpu.memory_space<vmem>>, vector<288x128xf32>
    tpu.vector_store %arg9[%c16_104, %c0_105], %243 {strides = array<i32>} : memref<320x128xf32, #tpu.memory_space<vmem>>, vector<288x128xf32>,
    %c3_106 = arith.constant 3 : index
    %c0_107 = arith.constant 0 : index
    %245 = vector.load %arg9[%c3_106, %c0_107] : memref<320x128xf32, #tpu.memory_space<vmem>>, vector<288x128xf32>
    %cst_108 = arith.constant 0.000000e+00 : f32
    %246 = vector.shape_cast %45 : vector<288x1xi1> to vector<288x1xi1>
    %247 = vector.broadcast %246 : vector<288x1xi1> to vector<288x128xi1>
    %248 = vector.broadcast %cst_108 : f32 to vector<288x128xf32>
    %249 = arith.select %247, %245, %248 : vector<288x128xi1>, vector<288x128xf32>
    %c4_109 = arith.constant 4 : index
    %c0_110 = arith.constant 0 : index
    %250 = vector.load %arg9[%c4_109, %c0_110] : memref<320x128xf32, #tpu.memory_space<vmem>>, vector<288x128xf32>
    %cst_111 = arith.constant 0.000000e+00 : f32
    %251 = vector.shape_cast %64 : vector<288x1xi1> to vector<288x1xi1>
    %252 = vector.broadcast %251 : vector<288x1xi1> to vector<288x128xi1>
    %253 = vector.broadcast %cst_111 : f32 to vector<288x128xf32>
    %254 = arith.select %252, %250, %253 : vector<288x128xi1>, vector<288x128xf32>
    %c4_i32 = arith.constant 4 : i32
    %255 = tpu.dynamic_rotate %254 by %c4_i32 dim 1 : vector<288x128xf32>, i32 -> vector<288x128xf32>
    %256 = arith.addf %249, %255 : vector<288x128xf32>
    %c5_112 = arith.constant 5 : index
    %c0_113 = arith.constant 0 : index
    %257 = vector.load %arg9[%c5_112, %c0_113] : memref<320x128xf32, #tpu.memory_space<vmem>>, vector<288x128xf32>
    %cst_114 = arith.constant 0.000000e+00 : f32
    %258 = vector.shape_cast %83 : vector<288x1xi1> to vector<288x1xi1>
    %259 = vector.broadcast %258 : vector<288x1xi1> to vector<288x128xi1>
    %260 = vector.broadcast %cst_114 : f32 to vector<288x128xf32>
    %261 = arith.select %259, %257, %260 : vector<288x128xi1>, vector<288x128xf32>
    %c8_i32 = arith.constant 8 : i32
    %262 = tpu.dynamic_rotate %261 by %c8_i32 dim 1 : vector<288x128xf32>, i32 -> vector<288x128xf32>
    %263 = arith.addf %256, %262 : vector<288x128xf32>
    %c15_115 = arith.constant 15 : index
    %c0_116 = arith.constant 0 : index
    %264 = vector.load %arg9[%c15_115, %c0_116] : memref<320x128xf32, #tpu.memory_space<vmem>>, vector<288x128xf32>
    %cst_117 = arith.constant 0.000000e+00 : f32
    %265 = vector.shape_cast %102 : vector<288x1xi1> to vector<288x1xi1>
    %266 = vector.broadcast %265 : vector<288x1xi1> to vector<288x128xi1>
    %267 = vector.broadcast %cst_117 : f32 to vector<288x128xf32>
    %268 = arith.select %266, %264, %267 : vector<288x128xi1>, vector<288x128xf32>
    %c12_i32 = arith.constant 12 : i32
    %269 = tpu.dynamic_rotate %268 by %c12_i32 dim 1 : vector<288x128xf32>, i32 -> vector<288x128xf32>
    %270 = arith.addf %263, %269 : vector<288x128xf32>
    %c16_118 = arith.constant 16 : index
    %c0_119 = arith.constant 0 : index
    %271 = vector.load %arg9[%c16_118, %c0_119] : memref<320x128xf32, #tpu.memory_space<vmem>>, vector<288x128xf32>
    %c16_i32_120 = arith.constant 16 : i32
    %272 = tpu.dynamic_rotate %271 by %c16_i32_120 dim 1 : vector<288x128xf32>, i32 -> vector<288x128xf32>
    %273 = arith.addf %270, %272 : vector<288x128xf32>
    %c17_121 = arith.constant 17 : index
    %c0_122 = arith.constant 0 : index
    %274 = vector.load %arg9[%c17_121, %c0_122] : memref<320x128xf32, #tpu.memory_space<vmem>>, vector<288x128xf32>
    %cst_123 = arith.constant 0.000000e+00 : f32
    %275 = vector.shape_cast %121 : vector<288x1xi1> to vector<288x1xi1>
    %276 = vector.broadcast %275 : vector<288x1xi1> to vector<288x128xi1>
    %277 = vector.broadcast %cst_123 : f32 to vector<288x128xf32>
    %278 = arith.select %276, %274, %277 : vector<288x128xi1>, vector<288x128xf32>
    %c20_i32 = arith.constant 20 : i32
    %279 = tpu.dynamic_rotate %278 by %c20_i32 dim 1 : vector<288x128xf32>, i32 -> vector<288x128xf32>
    %280 = arith.addf %273, %279 : vector<288x128xf32>
    %c27_124 = arith.constant 27 : index
    %c0_125 = arith.constant 0 : index
    %281 = vector.load %arg9[%c27_124, %c0_125] : memref<320x128xf32, #tpu.memory_space<vmem>>, vector<288x128xf32>
    %cst_126 = arith.constant 0.000000e+00 : f32
    %282 = vector.shape_cast %140 : vector<288x1xi1> to vector<288x1xi1>
    %283 = vector.broadcast %282 : vector<288x1xi1> to vector<288x128xi1>
    %284 = vector.broadcast %cst_126 : f32 to vector<288x128xf32>
    %285 = arith.select %283, %281, %284 : vector<288x128xi1>, vector<288x128xf32>
    %c24_i32 = arith.constant 24 : i32
    %286 = tpu.dynamic_rotate %285 by %c24_i32 dim 1 : vector<288x128xf32>, i32 -> vector<288x128xf32>
    %287 = arith.addf %280, %286 : vector<288x128xf32>
    %c28_127 = arith.constant 28 : index
    %c0_128 = arith.constant 0 : index
    %288 = vector.load %arg9[%c28_127, %c0_128] : memref<320x128xf32, #tpu.memory_space<vmem>>, vector<288x128xf32>
    %cst_129 = arith.constant 0.000000e+00 : f32
    %289 = vector.shape_cast %159 : vector<288x1xi1> to vector<288x1xi1>
    %290 = vector.broadcast %289 : vector<288x1xi1> to vector<288x128xi1>
    %291 = vector.broadcast %cst_129 : f32 to vector<288x128xf32>
    %292 = arith.select %290, %288, %291 : vector<288x128xi1>, vector<288x128xf32>
    %c28_i32 = arith.constant 28 : i32
    %293 = tpu.dynamic_rotate %292 by %c28_i32 dim 1 : vector<288x128xf32>, i32 -> vector<288x128xf32>
    %294 = arith.addf %287, %293 : vector<288x128xf32>
    %c29_130 = arith.constant 29 : index
    %c0_131 = arith.constant 0 : index
    %295 = vector.load %arg9[%c29_130, %c0_131] : memref<320x128xf32, #tpu.memory_space<vmem>>, vector<288x128xf32>
    %cst_132 = arith.constant 0.000000e+00 : f32
    %296 = vector.shape_cast %178 : vector<288x1xi1> to vector<288x1xi1>
    %297 = vector.broadcast %296 : vector<288x1xi1> to vector<288x128xi1>
    %298 = vector.broadcast %cst_132 : f32 to vector<288x128xf32>
    %299 = arith.select %297, %295, %298 : vector<288x128xi1>, vector<288x128xf32>
    %c32_i32_133 = arith.constant 32 : i32
    %300 = tpu.dynamic_rotate %299 by %c32_i32_133 dim 1 : vector<288x128xf32>, i32 -> vector<288x128xf32>
    %301 = arith.addf %294, %300 : vector<288x128xf32>
    %302 = arith.truncf %301 : vector<288x128xf32> to vector<288x128xbf16>
    %c0_134 = arith.constant 0 : index
    %c0_135 = arith.constant 0 : index
    %303 = vector.load %arg6[%c0_134, %c0_135] : memref<128x128xbf16, #tpu.memory_space<vmem>>, vector<128x128xbf16>
    %cst_136 = arith.constant dense<0.000000e+00> : vector<288x128xf32>
    %304 = tpu.matmul %302, %303, %cst_136 {dimension_numbers = #tpu.dot_dimension_numbers<[1], [0], [0], [1], [0, 0, 1, 1], [], []>} : vector<288x128xbf16>, vector<128x128xbf16>, vector<288x128xf32> -> vector<288x128xf32>
    %c0_137 = arith.constant 0 : index
    %c0_138 = arith.constant 0 : index
    %305 = vector.load %arg7[%c0_137, %c0_138] : memref<1x128xf32, #tpu.memory_space<vmem>>, vector<1x128xf32>
    %306 = vector.broadcast %305 : vector<1x128xf32> to vector<288x128xf32>
    %307 = arith.addf %304, %306 : vector<288x128xf32>
    %308 = arith.addf %307, %5 : vector<288x128xf32>
    %cst_139 = arith.constant 0.000000e+00 : f32
    %309 = vector.broadcast %cst_139 : f32 to vector<288x128xf32>
    %310 = arith.maximumf %308, %309 : vector<288x128xf32>
    %311 = arith.truncf %310 : vector<288x128xf32> to vector<288x128xbf16>
    %c0_140 = arith.constant 0 : index
    %c0_141 = arith.constant 0 : index
    %312 = vector.load %arg8[%c0_140, %c0_141] : memref<288x128xbf16, #tpu.memory_space<vmem>>, vector<288x128xbf16>
    tpu.vector_store %arg8[%c0_140, %c0_141], %311 {strides = array<i32>} : memref<288x128xbf16, #tpu.memory_space<vmem>>, vector<288x128xbf16>,
    return
  }
  func.func @transform_0(%arg0: i32) -> (i32, i32) {
    %c0_i32 = arith.constant 0 : i32
    %c0_i32_0 = arith.constant 0 : i32
    return %arg0, %c0_i32 : i32, i32
  }
  func.func @transform_1(%arg0: i32) -> (i32, i32) {
    %c0_i32 = arith.constant 0 : i32
    %c0_i32_0 = arith.constant 0 : i32
    %c0_i32_1 = arith.constant 0 : i32
    return %c0_i32, %c0_i32_0 : i32, i32
  }
  func.func @transform_2(%arg0: i32) -> (i32, i32) {
    %c0_i32 = arith.constant 0 : i32
    %c0_i32_0 = arith.constant 0 : i32
    %c0_i32_1 = arith.constant 0 : i32
    return %c0_i32, %c0_i32_0 : i32, i32
  }
  func.func @transform_3(%arg0: i32) -> (i32, i32) {
    %c0_i32 = arith.constant 0 : i32
    %c0_i32_0 = arith.constant 0 : i32
    %c0_i32_1 = arith.constant 0 : i32
    return %c0_i32, %c0_i32_0 : i32, i32
  }
  func.func @transform_4(%arg0: i32) -> (i32, i32) {
    %c0_i32 = arith.constant 0 : i32
    %c0_i32_0 = arith.constant 0 : i32
    %c0_i32_1 = arith.constant 0 : i32
    return %c0_i32, %c0_i32_0 : i32, i32
  }
  func.func @transform_5(%arg0: i32) -> (i32, i32) {
    %c0_i32 = arith.constant 0 : i32
    %c0_i32_0 = arith.constant 0 : i32
    %c0_i32_1 = arith.constant 0 : i32
    return %c0_i32, %c0_i32_0 : i32, i32
  }
  func.func @transform_6(%arg0: i32) -> (i32, i32) {
    %c0_i32 = arith.constant 0 : i32
    %c0_i32_0 = arith.constant 0 : i32
    %c0_i32_1 = arith.constant 0 : i32
    return %c0_i32, %c0_i32_0 : i32, i32
  }
  func.func @transform_7(%arg0: i32) -> (i32, i32) {
    %c0_i32 = arith.constant 0 : i32
    %c0_i32_0 = arith.constant 0 : i32
    return %arg0, %c0_i32 : i32, i32
  }
}

module attributes {stable_mosaic.version = 11 : i64} {
  func.func @_conv_vip_stage_kernel(%arg0: i32, %arg1: memref<128x512xbf16, #tpu.memory_space<vmem>>, %arg2: memref<512x128xbf16, #tpu.memory_space<vmem>>, %arg3: memref<1x128xf32, #tpu.memory_space<vmem>>, %arg4: memref<128x128xbf16, #tpu.memory_space<vmem>>, %arg5: memref<1x128xf32, #tpu.memory_space<vmem>>, %arg6: memref<128x128xbf16, #tpu.memory_space<vmem>>, %arg7: memref<1x128xf32, #tpu.memory_space<vmem>>, %arg8: memref<128x128xbf16, #tpu.memory_space<vmem>>, %arg9: memref<160x128xf32, #tpu.memory_space<vmem>>) attributes {dimension_semantics = [#tpu.dimension_semantics<parallel>], iteration_bounds = array<i64: 1>, scalar_prefetch = 0 : i64, scratch_operands = 1 : i64, tpu.core_type = #tpu.core_type<tc>, window_params = [{transform_indices = @transform_0, window_bounds = array<i64: 128, 512>}, {pipeline_mode = #tpu.pipeline_mode<synchronous>, transform_indices = @transform_1, window_bounds = array<i64: 512, 128>}, {pipeline_mode = #tpu.pipeline_mode<synchronous>, transform_indices = @transform_2, window_bounds = array<i64: 1, 128>}, {pipeline_mode = #tpu.pipeline_mode<synchronous>, transform_indices = @transform_3, window_bounds = array<i64: 128, 128>}, {pipeline_mode = #tpu.pipeline_mode<synchronous>, transform_indices = @transform_4, window_bounds = array<i64: 1, 128>}, {pipeline_mode = #tpu.pipeline_mode<synchronous>, transform_indices = @transform_5, window_bounds = array<i64: 128, 128>}, {pipeline_mode = #tpu.pipeline_mode<synchronous>, transform_indices = @transform_6, window_bounds = array<i64: 1, 128>}, {transform_indices = @transform_7, window_bounds = array<i64: 128, 128>}]} {
    %c0 = arith.constant 0 : index
    %c0_0 = arith.constant 0 : index
    %0 = vector.load %arg1[%c0, %c0_0] : memref<128x512xbf16, #tpu.memory_space<vmem>>, vector<128x512xbf16>
    %c0_1 = arith.constant 0 : index
    %c0_2 = arith.constant 0 : index
    %1 = vector.load %arg2[%c0_1, %c0_2] : memref<512x128xbf16, #tpu.memory_space<vmem>>, vector<512x128xbf16>
    %cst = arith.constant dense<0.000000e+00> : vector<128x128xf32>
    %2 = tpu.matmul %0, %1, %cst {dimension_numbers = #tpu.dot_dimension_numbers<[1], [0], [0], [1], [0, 0, 1, 1], [], []>} : vector<128x512xbf16>, vector<512x128xbf16>, vector<128x128xf32> -> vector<128x128xf32>
    %c0_3 = arith.constant 0 : index
    %c0_4 = arith.constant 0 : index
    %3 = vector.load %arg3[%c0_3, %c0_4] : memref<1x128xf32, #tpu.memory_space<vmem>>, vector<1x128xf32>
    %4 = vector.broadcast %3 : vector<1x128xf32> to vector<128x128xf32>
    %5 = arith.addf %2, %4 : vector<128x128xf32>
    %cst_5 = arith.constant 0.000000e+00 : f32
    %6 = vector.broadcast %cst_5 : f32 to vector<16x128xf32>
    %c0_6 = arith.constant 0 : index
    %c0_7 = arith.constant 0 : index
    %7 = vector.load %arg9[%c0_6, %c0_7] : memref<160x128xf32, #tpu.memory_space<vmem>>, vector<16x128xf32>
    tpu.vector_store %arg9[%c0_6, %c0_7], %6 {strides = array<i32>} : memref<160x128xf32, #tpu.memory_space<vmem>>, vector<16x128xf32>,
    %c144 = arith.constant 144 : index
    %c0_8 = arith.constant 0 : index
    %8 = vector.load %arg9[%c144, %c0_8] : memref<160x128xf32, #tpu.memory_space<vmem>>, vector<16x128xf32>
    tpu.vector_store %arg9[%c144, %c0_8], %6 {strides = array<i32>} : memref<160x128xf32, #tpu.memory_space<vmem>>, vector<16x128xf32>,
    %9 = tpu.iota {dimensions = array<i32: 0>} : vector<128x1xi32>
    %10 = arith.sitofp %9 : vector<128x1xi32> to vector<128x1xf32>
    %cst_9 = arith.constant 5.000000e-01 : f32
    %11 = vector.broadcast %cst_9 : f32 to vector<128x1xf32>
    %12 = arith.addf %10, %11 : vector<128x1xf32>
    %cst_10 = arith.constant 1.562500e-02 : f32
    %13 = vector.broadcast %cst_10 : f32 to vector<128x1xf32>
    %14 = arith.mulf %12, %13 : vector<128x1xf32>
    %15 = math.floor %14 : vector<128x1xf32>
    %cst_11 = arith.constant 6.400000e+01 : f32
    %16 = vector.broadcast %cst_11 : f32 to vector<128x1xf32>
    %17 = arith.mulf %15, %16 : vector<128x1xf32>
    %18 = arith.subf %10, %17 : vector<128x1xf32>
    %cst_12 = arith.constant 5.000000e-01 : f32
    %19 = vector.broadcast %cst_12 : f32 to vector<128x1xf32>
    %20 = arith.addf %18, %19 : vector<128x1xf32>
    %cst_13 = arith.constant 1.250000e-01 : f32
    %21 = vector.broadcast %cst_13 : f32 to vector<128x1xf32>
    %22 = arith.mulf %20, %21 : vector<128x1xf32>
    %23 = math.floor %22 : vector<128x1xf32>
    %cst_14 = arith.constant 8.000000e+00 : f32
    %24 = vector.broadcast %cst_14 : f32 to vector<128x1xf32>
    %25 = arith.mulf %23, %24 : vector<128x1xf32>
    %26 = arith.subf %18, %25 : vector<128x1xf32>
    %cst_15 = arith.constant -1.000000e+00 : f32
    %27 = vector.broadcast %cst_15 : f32 to vector<128x1xf32>
    %28 = arith.addf %23, %27 : vector<128x1xf32>
    %cst_16 = arith.constant 0.000000e+00 : f32
    %29 = vector.broadcast %cst_16 : f32 to vector<128x1xf32>
    %30 = arith.cmpf oge, %28, %29 : vector<128x1xf32>
    %cst_17 = arith.constant -1.000000e+00 : f32
    %31 = vector.broadcast %cst_17 : f32 to vector<128x1xf32>
    %32 = arith.addf %23, %31 : vector<128x1xf32>
    %cst_18 = arith.constant 7.000000e+00 : f32
    %33 = vector.broadcast %cst_18 : f32 to vector<128x1xf32>
    %34 = arith.cmpf ole, %32, %33 : vector<128x1xf32>
    %35 = arith.andi %30, %34 : vector<128x1xi1>
    %cst_19 = arith.constant -1.000000e+00 : f32
    %36 = vector.broadcast %cst_19 : f32 to vector<128x1xf32>
    %37 = arith.addf %26, %36 : vector<128x1xf32>
    %cst_20 = arith.constant 0.000000e+00 : f32
    %38 = vector.broadcast %cst_20 : f32 to vector<128x1xf32>
    %39 = arith.cmpf oge, %37, %38 : vector<128x1xf32>
    %40 = arith.andi %35, %39 : vector<128x1xi1>
    %cst_21 = arith.constant -1.000000e+00 : f32
    %41 = vector.broadcast %cst_21 : f32 to vector<128x1xf32>
    %42 = arith.addf %26, %41 : vector<128x1xf32>
    %cst_22 = arith.constant 7.000000e+00 : f32
    %43 = vector.broadcast %cst_22 : f32 to vector<128x1xf32>
    %44 = arith.cmpf ole, %42, %43 : vector<128x1xf32>
    %45 = arith.andi %40, %44 : vector<128x1xi1>
    %cst_23 = arith.constant -1.000000e+00 : f32
    %46 = vector.broadcast %cst_23 : f32 to vector<128x1xf32>
    %47 = arith.addf %23, %46 : vector<128x1xf32>
    %cst_24 = arith.constant 0.000000e+00 : f32
    %48 = vector.broadcast %cst_24 : f32 to vector<128x1xf32>
    %49 = arith.cmpf oge, %47, %48 : vector<128x1xf32>
    %cst_25 = arith.constant -1.000000e+00 : f32
    %50 = vector.broadcast %cst_25 : f32 to vector<128x1xf32>
    %51 = arith.addf %23, %50 : vector<128x1xf32>
    %cst_26 = arith.constant 7.000000e+00 : f32
    %52 = vector.broadcast %cst_26 : f32 to vector<128x1xf32>
    %53 = arith.cmpf ole, %51, %52 : vector<128x1xf32>
    %54 = arith.andi %49, %53 : vector<128x1xi1>
    %cst_27 = arith.constant 0.000000e+00 : f32
    %55 = vector.broadcast %cst_27 : f32 to vector<128x1xf32>
    %56 = arith.addf %26, %55 : vector<128x1xf32>
    %cst_28 = arith.constant 0.000000e+00 : f32
    %57 = vector.broadcast %cst_28 : f32 to vector<128x1xf32>
    %58 = arith.cmpf oge, %56, %57 : vector<128x1xf32>
    %59 = arith.andi %54, %58 : vector<128x1xi1>
    %cst_29 = arith.constant 0.000000e+00 : f32
    %60 = vector.broadcast %cst_29 : f32 to vector<128x1xf32>
    %61 = arith.addf %26, %60 : vector<128x1xf32>
    %cst_30 = arith.constant 7.000000e+00 : f32
    %62 = vector.broadcast %cst_30 : f32 to vector<128x1xf32>
    %63 = arith.cmpf ole, %61, %62 : vector<128x1xf32>
    %64 = arith.andi %59, %63 : vector<128x1xi1>
    %cst_31 = arith.constant -1.000000e+00 : f32
    %65 = vector.broadcast %cst_31 : f32 to vector<128x1xf32>
    %66 = arith.addf %23, %65 : vector<128x1xf32>
    %cst_32 = arith.constant 0.000000e+00 : f32
    %67 = vector.broadcast %cst_32 : f32 to vector<128x1xf32>
    %68 = arith.cmpf oge, %66, %67 : vector<128x1xf32>
    %cst_33 = arith.constant -1.000000e+00 : f32
    %69 = vector.broadcast %cst_33 : f32 to vector<128x1xf32>
    %70 = arith.addf %23, %69 : vector<128x1xf32>
    %cst_34 = arith.constant 7.000000e+00 : f32
    %71 = vector.broadcast %cst_34 : f32 to vector<128x1xf32>
    %72 = arith.cmpf ole, %70, %71 : vector<128x1xf32>
    %73 = arith.andi %68, %72 : vector<128x1xi1>
    %cst_35 = arith.constant 1.000000e+00 : f32
    %74 = vector.broadcast %cst_35 : f32 to vector<128x1xf32>
    %75 = arith.addf %26, %74 : vector<128x1xf32>
    %cst_36 = arith.constant 0.000000e+00 : f32
    %76 = vector.broadcast %cst_36 : f32 to vector<128x1xf32>
    %77 = arith.cmpf oge, %75, %76 : vector<128x1xf32>
    %78 = arith.andi %73, %77 : vector<128x1xi1>
    %cst_37 = arith.constant 1.000000e+00 : f32
    %79 = vector.broadcast %cst_37 : f32 to vector<128x1xf32>
    %80 = arith.addf %26, %79 : vector<128x1xf32>
    %cst_38 = arith.constant 7.000000e+00 : f32
    %81 = vector.broadcast %cst_38 : f32 to vector<128x1xf32>
    %82 = arith.cmpf ole, %80, %81 : vector<128x1xf32>
    %83 = arith.andi %78, %82 : vector<128x1xi1>
    %cst_39 = arith.constant 0.000000e+00 : f32
    %84 = vector.broadcast %cst_39 : f32 to vector<128x1xf32>
    %85 = arith.addf %23, %84 : vector<128x1xf32>
    %cst_40 = arith.constant 0.000000e+00 : f32
    %86 = vector.broadcast %cst_40 : f32 to vector<128x1xf32>
    %87 = arith.cmpf oge, %85, %86 : vector<128x1xf32>
    %cst_41 = arith.constant 0.000000e+00 : f32
    %88 = vector.broadcast %cst_41 : f32 to vector<128x1xf32>
    %89 = arith.addf %23, %88 : vector<128x1xf32>
    %cst_42 = arith.constant 7.000000e+00 : f32
    %90 = vector.broadcast %cst_42 : f32 to vector<128x1xf32>
    %91 = arith.cmpf ole, %89, %90 : vector<128x1xf32>
    %92 = arith.andi %87, %91 : vector<128x1xi1>
    %cst_43 = arith.constant -1.000000e+00 : f32
    %93 = vector.broadcast %cst_43 : f32 to vector<128x1xf32>
    %94 = arith.addf %26, %93 : vector<128x1xf32>
    %cst_44 = arith.constant 0.000000e+00 : f32
    %95 = vector.broadcast %cst_44 : f32 to vector<128x1xf32>
    %96 = arith.cmpf oge, %94, %95 : vector<128x1xf32>
    %97 = arith.andi %92, %96 : vector<128x1xi1>
    %cst_45 = arith.constant -1.000000e+00 : f32
    %98 = vector.broadcast %cst_45 : f32 to vector<128x1xf32>
    %99 = arith.addf %26, %98 : vector<128x1xf32>
    %cst_46 = arith.constant 7.000000e+00 : f32
    %100 = vector.broadcast %cst_46 : f32 to vector<128x1xf32>
    %101 = arith.cmpf ole, %99, %100 : vector<128x1xf32>
    %102 = arith.andi %97, %101 : vector<128x1xi1>
    %cst_47 = arith.constant 0.000000e+00 : f32
    %103 = vector.broadcast %cst_47 : f32 to vector<128x1xf32>
    %104 = arith.addf %23, %103 : vector<128x1xf32>
    %cst_48 = arith.constant 0.000000e+00 : f32
    %105 = vector.broadcast %cst_48 : f32 to vector<128x1xf32>
    %106 = arith.cmpf oge, %104, %105 : vector<128x1xf32>
    %cst_49 = arith.constant 0.000000e+00 : f32
    %107 = vector.broadcast %cst_49 : f32 to vector<128x1xf32>
    %108 = arith.addf %23, %107 : vector<128x1xf32>
    %cst_50 = arith.constant 7.000000e+00 : f32
    %109 = vector.broadcast %cst_50 : f32 to vector<128x1xf32>
    %110 = arith.cmpf ole, %108, %109 : vector<128x1xf32>
    %111 = arith.andi %106, %110 : vector<128x1xi1>
    %cst_51 = arith.constant 1.000000e+00 : f32
    %112 = vector.broadcast %cst_51 : f32 to vector<128x1xf32>
    %113 = arith.addf %26, %112 : vector<128x1xf32>
    %cst_52 = arith.constant 0.000000e+00 : f32
    %114 = vector.broadcast %cst_52 : f32 to vector<128x1xf32>
    %115 = arith.cmpf oge, %113, %114 : vector<128x1xf32>
    %116 = arith.andi %111, %115 : vector<128x1xi1>
    %cst_53 = arith.constant 1.000000e+00 : f32
    %117 = vector.broadcast %cst_53 : f32 to vector<128x1xf32>
    %118 = arith.addf %26, %117 : vector<128x1xf32>
    %cst_54 = arith.constant 7.000000e+00 : f32
    %119 = vector.broadcast %cst_54 : f32 to vector<128x1xf32>
    %120 = arith.cmpf ole, %118, %119 : vector<128x1xf32>
    %121 = arith.andi %116, %120 : vector<128x1xi1>
    %cst_55 = arith.constant 1.000000e+00 : f32
    %122 = vector.broadcast %cst_55 : f32 to vector<128x1xf32>
    %123 = arith.addf %23, %122 : vector<128x1xf32>
    %cst_56 = arith.constant 0.000000e+00 : f32
    %124 = vector.broadcast %cst_56 : f32 to vector<128x1xf32>
    %125 = arith.cmpf oge, %123, %124 : vector<128x1xf32>
    %cst_57 = arith.constant 1.000000e+00 : f32
    %126 = vector.broadcast %cst_57 : f32 to vector<128x1xf32>
    %127 = arith.addf %23, %126 : vector<128x1xf32>
    %cst_58 = arith.constant 7.000000e+00 : f32
    %128 = vector.broadcast %cst_58 : f32 to vector<128x1xf32>
    %129 = arith.cmpf ole, %127, %128 : vector<128x1xf32>
    %130 = arith.andi %125, %129 : vector<128x1xi1>
    %cst_59 = arith.constant -1.000000e+00 : f32
    %131 = vector.broadcast %cst_59 : f32 to vector<128x1xf32>
    %132 = arith.addf %26, %131 : vector<128x1xf32>
    %cst_60 = arith.constant 0.000000e+00 : f32
    %133 = vector.broadcast %cst_60 : f32 to vector<128x1xf32>
    %134 = arith.cmpf oge, %132, %133 : vector<128x1xf32>
    %135 = arith.andi %130, %134 : vector<128x1xi1>
    %cst_61 = arith.constant -1.000000e+00 : f32
    %136 = vector.broadcast %cst_61 : f32 to vector<128x1xf32>
    %137 = arith.addf %26, %136 : vector<128x1xf32>
    %cst_62 = arith.constant 7.000000e+00 : f32
    %138 = vector.broadcast %cst_62 : f32 to vector<128x1xf32>
    %139 = arith.cmpf ole, %137, %138 : vector<128x1xf32>
    %140 = arith.andi %135, %139 : vector<128x1xi1>
    %cst_63 = arith.constant 1.000000e+00 : f32
    %141 = vector.broadcast %cst_63 : f32 to vector<128x1xf32>
    %142 = arith.addf %23, %141 : vector<128x1xf32>
    %cst_64 = arith.constant 0.000000e+00 : f32
    %143 = vector.broadcast %cst_64 : f32 to vector<128x1xf32>
    %144 = arith.cmpf oge, %142, %143 : vector<128x1xf32>
    %cst_65 = arith.constant 1.000000e+00 : f32
    %145 = vector.broadcast %cst_65 : f32 to vector<128x1xf32>
    %146 = arith.addf %23, %145 : vector<128x1xf32>
    %cst_66 = arith.constant 7.000000e+00 : f32
    %147 = vector.broadcast %cst_66 : f32 to vector<128x1xf32>
    %148 = arith.cmpf ole, %146, %147 : vector<128x1xf32>
    %149 = arith.andi %144, %148 : vector<128x1xi1>
    %cst_67 = arith.constant 0.000000e+00 : f32
    %150 = vector.broadcast %cst_67 : f32 to vector<128x1xf32>
    %151 = arith.addf %26, %150 : vector<128x1xf32>
    %cst_68 = arith.constant 0.000000e+00 : f32
    %152 = vector.broadcast %cst_68 : f32 to vector<128x1xf32>
    %153 = arith.cmpf oge, %151, %152 : vector<128x1xf32>
    %154 = arith.andi %149, %153 : vector<128x1xi1>
    %cst_69 = arith.constant 0.000000e+00 : f32
    %155 = vector.broadcast %cst_69 : f32 to vector<128x1xf32>
    %156 = arith.addf %26, %155 : vector<128x1xf32>
    %cst_70 = arith.constant 7.000000e+00 : f32
    %157 = vector.broadcast %cst_70 : f32 to vector<128x1xf32>
    %158 = arith.cmpf ole, %156, %157 : vector<128x1xf32>
    %159 = arith.andi %154, %158 : vector<128x1xi1>
    %cst_71 = arith.constant 1.000000e+00 : f32
    %160 = vector.broadcast %cst_71 : f32 to vector<128x1xf32>
    %161 = arith.addf %23, %160 : vector<128x1xf32>
    %cst_72 = arith.constant 0.000000e+00 : f32
    %162 = vector.broadcast %cst_72 : f32 to vector<128x1xf32>
    %163 = arith.cmpf oge, %161, %162 : vector<128x1xf32>
    %cst_73 = arith.constant 1.000000e+00 : f32
    %164 = vector.broadcast %cst_73 : f32 to vector<128x1xf32>
    %165 = arith.addf %23, %164 : vector<128x1xf32>
    %cst_74 = arith.constant 7.000000e+00 : f32
    %166 = vector.broadcast %cst_74 : f32 to vector<128x1xf32>
    %167 = arith.cmpf ole, %165, %166 : vector<128x1xf32>
    %168 = arith.andi %163, %167 : vector<128x1xi1>
    %cst_75 = arith.constant 1.000000e+00 : f32
    %169 = vector.broadcast %cst_75 : f32 to vector<128x1xf32>
    %170 = arith.addf %26, %169 : vector<128x1xf32>
    %cst_76 = arith.constant 0.000000e+00 : f32
    %171 = vector.broadcast %cst_76 : f32 to vector<128x1xf32>
    %172 = arith.cmpf oge, %170, %171 : vector<128x1xf32>
    %173 = arith.andi %168, %172 : vector<128x1xi1>
    %cst_77 = arith.constant 1.000000e+00 : f32
    %174 = vector.broadcast %cst_77 : f32 to vector<128x1xf32>
    %175 = arith.addf %26, %174 : vector<128x1xf32>
    %cst_78 = arith.constant 7.000000e+00 : f32
    %176 = vector.broadcast %cst_78 : f32 to vector<128x1xf32>
    %177 = arith.cmpf ole, %175, %176 : vector<128x1xf32>
    %178 = arith.andi %173, %177 : vector<128x1xi1>
    %c16 = arith.constant 16 : index
    %c0_79 = arith.constant 0 : index
    %179 = vector.load %arg9[%c16, %c0_79] : memref<160x128xf32, #tpu.memory_space<vmem>>, vector<128x128xf32>
    tpu.vector_store %arg9[%c16, %c0_79], %5 {strides = array<i32>} : memref<160x128xf32, #tpu.memory_space<vmem>>, vector<128x128xf32>,
    %c7 = arith.constant 7 : index
    %c0_80 = arith.constant 0 : index
    %180 = vector.load %arg9[%c7, %c0_80] : memref<160x128xf32, #tpu.memory_space<vmem>>, vector<128x128xf32>
    %cst_81 = arith.constant 0.000000e+00 : f32
    %181 = vector.shape_cast %45 : vector<128x1xi1> to vector<128x1xi1>
    %182 = vector.broadcast %181 : vector<128x1xi1> to vector<128x128xi1>
    %183 = vector.broadcast %cst_81 : f32 to vector<128x128xf32>
    %184 = arith.select %182, %180, %183 : vector<128x128xi1>, vector<128x128xf32>
    %c8 = arith.constant 8 : index
    %c0_82 = arith.constant 0 : index
    %185 = vector.load %arg9[%c8, %c0_82] : memref<160x128xf32, #tpu.memory_space<vmem>>, vector<128x128xf32>
    %cst_83 = arith.constant 0.000000e+00 : f32
    %186 = vector.shape_cast %64 : vector<128x1xi1> to vector<128x1xi1>
    %187 = vector.broadcast %186 : vector<128x1xi1> to vector<128x128xi1>
    %188 = vector.broadcast %cst_83 : f32 to vector<128x128xf32>
    %189 = arith.select %187, %185, %188 : vector<128x128xi1>, vector<128x128xf32>
    %c8_i32 = arith.constant 8 : i32
    %190 = tpu.dynamic_rotate %189 by %c8_i32 dim 1 : vector<128x128xf32>, i32 -> vector<128x128xf32>
    %191 = arith.addf %184, %190 : vector<128x128xf32>
    %c9 = arith.constant 9 : index
    %c0_84 = arith.constant 0 : index
    %192 = vector.load %arg9[%c9, %c0_84] : memref<160x128xf32, #tpu.memory_space<vmem>>, vector<128x128xf32>
    %cst_85 = arith.constant 0.000000e+00 : f32
    %193 = vector.shape_cast %83 : vector<128x1xi1> to vector<128x1xi1>
    %194 = vector.broadcast %193 : vector<128x1xi1> to vector<128x128xi1>
    %195 = vector.broadcast %cst_85 : f32 to vector<128x128xf32>
    %196 = arith.select %194, %192, %195 : vector<128x128xi1>, vector<128x128xf32>
    %c16_i32 = arith.constant 16 : i32
    %197 = tpu.dynamic_rotate %196 by %c16_i32 dim 1 : vector<128x128xf32>, i32 -> vector<128x128xf32>
    %198 = arith.addf %191, %197 : vector<128x128xf32>
    %c15 = arith.constant 15 : index
    %c0_86 = arith.constant 0 : index
    %199 = vector.load %arg9[%c15, %c0_86] : memref<160x128xf32, #tpu.memory_space<vmem>>, vector<128x128xf32>
    %cst_87 = arith.constant 0.000000e+00 : f32
    %200 = vector.shape_cast %102 : vector<128x1xi1> to vector<128x1xi1>
    %201 = vector.broadcast %200 : vector<128x1xi1> to vector<128x128xi1>
    %202 = vector.broadcast %cst_87 : f32 to vector<128x128xf32>
    %203 = arith.select %201, %199, %202 : vector<128x128xi1>, vector<128x128xf32>
    %c24_i32 = arith.constant 24 : i32
    %204 = tpu.dynamic_rotate %203 by %c24_i32 dim 1 : vector<128x128xf32>, i32 -> vector<128x128xf32>
    %205 = arith.addf %198, %204 : vector<128x128xf32>
    %c16_88 = arith.constant 16 : index
    %c0_89 = arith.constant 0 : index
    %206 = vector.load %arg9[%c16_88, %c0_89] : memref<160x128xf32, #tpu.memory_space<vmem>>, vector<128x128xf32>
    %c32_i32 = arith.constant 32 : i32
    %207 = tpu.dynamic_rotate %206 by %c32_i32 dim 1 : vector<128x128xf32>, i32 -> vector<128x128xf32>
    %208 = arith.addf %205, %207 : vector<128x128xf32>
    %c17 = arith.constant 17 : index
    %c0_90 = arith.constant 0 : index
    %209 = vector.load %arg9[%c17, %c0_90] : memref<160x128xf32, #tpu.memory_space<vmem>>, vector<128x128xf32>
    %cst_91 = arith.constant 0.000000e+00 : f32
    %210 = vector.shape_cast %121 : vector<128x1xi1> to vector<128x1xi1>
    %211 = vector.broadcast %210 : vector<128x1xi1> to vector<128x128xi1>
    %212 = vector.broadcast %cst_91 : f32 to vector<128x128xf32>
    %213 = arith.select %211, %209, %212 : vector<128x128xi1>, vector<128x128xf32>
    %c40_i32 = arith.constant 40 : i32
    %214 = tpu.dynamic_rotate %213 by %c40_i32 dim 1 : vector<128x128xf32>, i32 -> vector<128x128xf32>
    %215 = arith.addf %208, %214 : vector<128x128xf32>
    %c23 = arith.constant 23 : index
    %c0_92 = arith.constant 0 : index
    %216 = vector.load %arg9[%c23, %c0_92] : memref<160x128xf32, #tpu.memory_space<vmem>>, vector<128x128xf32>
    %cst_93 = arith.constant 0.000000e+00 : f32
    %217 = vector.shape_cast %140 : vector<128x1xi1> to vector<128x1xi1>
    %218 = vector.broadcast %217 : vector<128x1xi1> to vector<128x128xi1>
    %219 = vector.broadcast %cst_93 : f32 to vector<128x128xf32>
    %220 = arith.select %218, %216, %219 : vector<128x128xi1>, vector<128x128xf32>
    %c48_i32 = arith.constant 48 : i32
    %221 = tpu.dynamic_rotate %220 by %c48_i32 dim 1 : vector<128x128xf32>, i32 -> vector<128x128xf32>
    %222 = arith.addf %215, %221 : vector<128x128xf32>
    %c24 = arith.constant 24 : index
    %c0_94 = arith.constant 0 : index
    %223 = vector.load %arg9[%c24, %c0_94] : memref<160x128xf32, #tpu.memory_space<vmem>>, vector<128x128xf32>
    %cst_95 = arith.constant 0.000000e+00 : f32
    %224 = vector.shape_cast %159 : vector<128x1xi1> to vector<128x1xi1>
    %225 = vector.broadcast %224 : vector<128x1xi1> to vector<128x128xi1>
    %226 = vector.broadcast %cst_95 : f32 to vector<128x128xf32>
    %227 = arith.select %225, %223, %226 : vector<128x128xi1>, vector<128x128xf32>
    %c56_i32 = arith.constant 56 : i32
    %228 = tpu.dynamic_rotate %227 by %c56_i32 dim 1 : vector<128x128xf32>, i32 -> vector<128x128xf32>
    %229 = arith.addf %222, %228 : vector<128x128xf32>
    %c25 = arith.constant 25 : index
    %c0_96 = arith.constant 0 : index
    %230 = vector.load %arg9[%c25, %c0_96] : memref<160x128xf32, #tpu.memory_space<vmem>>, vector<128x128xf32>
    %cst_97 = arith.constant 0.000000e+00 : f32
    %231 = vector.shape_cast %178 : vector<128x1xi1> to vector<128x1xi1>
    %232 = vector.broadcast %231 : vector<128x1xi1> to vector<128x128xi1>
    %233 = vector.broadcast %cst_97 : f32 to vector<128x128xf32>
    %234 = arith.select %232, %230, %233 : vector<128x128xi1>, vector<128x128xf32>
    %c64_i32 = arith.constant 64 : i32
    %235 = tpu.dynamic_rotate %234 by %c64_i32 dim 1 : vector<128x128xf32>, i32 -> vector<128x128xf32>
    %236 = arith.addf %229, %235 : vector<128x128xf32>
    %237 = arith.truncf %236 : vector<128x128xf32> to vector<128x128xbf16>
    %c0_98 = arith.constant 0 : index
    %c0_99 = arith.constant 0 : index
    %238 = vector.load %arg4[%c0_98, %c0_99] : memref<128x128xbf16, #tpu.memory_space<vmem>>, vector<128x128xbf16>
    %cst_100 = arith.constant dense<0.000000e+00> : vector<128x128xf32>
    %239 = tpu.matmul %237, %238, %cst_100 {dimension_numbers = #tpu.dot_dimension_numbers<[1], [0], [0], [1], [0, 0, 1, 1], [], []>} : vector<128x128xbf16>, vector<128x128xbf16>, vector<128x128xf32> -> vector<128x128xf32>
    %c0_101 = arith.constant 0 : index
    %c0_102 = arith.constant 0 : index
    %240 = vector.load %arg5[%c0_101, %c0_102] : memref<1x128xf32, #tpu.memory_space<vmem>>, vector<1x128xf32>
    %241 = vector.broadcast %240 : vector<1x128xf32> to vector<128x128xf32>
    %242 = arith.addf %239, %241 : vector<128x128xf32>
    %cst_103 = arith.constant 0.000000e+00 : f32
    %243 = vector.broadcast %cst_103 : f32 to vector<128x128xf32>
    %244 = arith.maximumf %242, %243 : vector<128x128xf32>
    %c16_104 = arith.constant 16 : index
    %c0_105 = arith.constant 0 : index
    %245 = vector.load %arg9[%c16_104, %c0_105] : memref<160x128xf32, #tpu.memory_space<vmem>>, vector<128x128xf32>
    tpu.vector_store %arg9[%c16_104, %c0_105], %244 {strides = array<i32>} : memref<160x128xf32, #tpu.memory_space<vmem>>, vector<128x128xf32>,
    %c7_106 = arith.constant 7 : index
    %c0_107 = arith.constant 0 : index
    %246 = vector.load %arg9[%c7_106, %c0_107] : memref<160x128xf32, #tpu.memory_space<vmem>>, vector<128x128xf32>
    %cst_108 = arith.constant 0.000000e+00 : f32
    %247 = vector.shape_cast %45 : vector<128x1xi1> to vector<128x1xi1>
    %248 = vector.broadcast %247 : vector<128x1xi1> to vector<128x128xi1>
    %249 = vector.broadcast %cst_108 : f32 to vector<128x128xf32>
    %250 = arith.select %248, %246, %249 : vector<128x128xi1>, vector<128x128xf32>
    %c8_109 = arith.constant 8 : index
    %c0_110 = arith.constant 0 : index
    %251 = vector.load %arg9[%c8_109, %c0_110] : memref<160x128xf32, #tpu.memory_space<vmem>>, vector<128x128xf32>
    %cst_111 = arith.constant 0.000000e+00 : f32
    %252 = vector.shape_cast %64 : vector<128x1xi1> to vector<128x1xi1>
    %253 = vector.broadcast %252 : vector<128x1xi1> to vector<128x128xi1>
    %254 = vector.broadcast %cst_111 : f32 to vector<128x128xf32>
    %255 = arith.select %253, %251, %254 : vector<128x128xi1>, vector<128x128xf32>
    %c4_i32 = arith.constant 4 : i32
    %256 = tpu.dynamic_rotate %255 by %c4_i32 dim 1 : vector<128x128xf32>, i32 -> vector<128x128xf32>
    %257 = arith.addf %250, %256 : vector<128x128xf32>
    %c9_112 = arith.constant 9 : index
    %c0_113 = arith.constant 0 : index
    %258 = vector.load %arg9[%c9_112, %c0_113] : memref<160x128xf32, #tpu.memory_space<vmem>>, vector<128x128xf32>
    %cst_114 = arith.constant 0.000000e+00 : f32
    %259 = vector.shape_cast %83 : vector<128x1xi1> to vector<128x1xi1>
    %260 = vector.broadcast %259 : vector<128x1xi1> to vector<128x128xi1>
    %261 = vector.broadcast %cst_114 : f32 to vector<128x128xf32>
    %262 = arith.select %260, %258, %261 : vector<128x128xi1>, vector<128x128xf32>
    %c8_i32_115 = arith.constant 8 : i32
    %263 = tpu.dynamic_rotate %262 by %c8_i32_115 dim 1 : vector<128x128xf32>, i32 -> vector<128x128xf32>
    %264 = arith.addf %257, %263 : vector<128x128xf32>
    %c15_116 = arith.constant 15 : index
    %c0_117 = arith.constant 0 : index
    %265 = vector.load %arg9[%c15_116, %c0_117] : memref<160x128xf32, #tpu.memory_space<vmem>>, vector<128x128xf32>
    %cst_118 = arith.constant 0.000000e+00 : f32
    %266 = vector.shape_cast %102 : vector<128x1xi1> to vector<128x1xi1>
    %267 = vector.broadcast %266 : vector<128x1xi1> to vector<128x128xi1>
    %268 = vector.broadcast %cst_118 : f32 to vector<128x128xf32>
    %269 = arith.select %267, %265, %268 : vector<128x128xi1>, vector<128x128xf32>
    %c12_i32 = arith.constant 12 : i32
    %270 = tpu.dynamic_rotate %269 by %c12_i32 dim 1 : vector<128x128xf32>, i32 -> vector<128x128xf32>
    %271 = arith.addf %264, %270 : vector<128x128xf32>
    %c16_119 = arith.constant 16 : index
    %c0_120 = arith.constant 0 : index
    %272 = vector.load %arg9[%c16_119, %c0_120] : memref<160x128xf32, #tpu.memory_space<vmem>>, vector<128x128xf32>
    %c16_i32_121 = arith.constant 16 : i32
    %273 = tpu.dynamic_rotate %272 by %c16_i32_121 dim 1 : vector<128x128xf32>, i32 -> vector<128x128xf32>
    %274 = arith.addf %271, %273 : vector<128x128xf32>
    %c17_122 = arith.constant 17 : index
    %c0_123 = arith.constant 0 : index
    %275 = vector.load %arg9[%c17_122, %c0_123] : memref<160x128xf32, #tpu.memory_space<vmem>>, vector<128x128xf32>
    %cst_124 = arith.constant 0.000000e+00 : f32
    %276 = vector.shape_cast %121 : vector<128x1xi1> to vector<128x1xi1>
    %277 = vector.broadcast %276 : vector<128x1xi1> to vector<128x128xi1>
    %278 = vector.broadcast %cst_124 : f32 to vector<128x128xf32>
    %279 = arith.select %277, %275, %278 : vector<128x128xi1>, vector<128x128xf32>
    %c20_i32 = arith.constant 20 : i32
    %280 = tpu.dynamic_rotate %279 by %c20_i32 dim 1 : vector<128x128xf32>, i32 -> vector<128x128xf32>
    %281 = arith.addf %274, %280 : vector<128x128xf32>
    %c23_125 = arith.constant 23 : index
    %c0_126 = arith.constant 0 : index
    %282 = vector.load %arg9[%c23_125, %c0_126] : memref<160x128xf32, #tpu.memory_space<vmem>>, vector<128x128xf32>
    %cst_127 = arith.constant 0.000000e+00 : f32
    %283 = vector.shape_cast %140 : vector<128x1xi1> to vector<128x1xi1>
    %284 = vector.broadcast %283 : vector<128x1xi1> to vector<128x128xi1>
    %285 = vector.broadcast %cst_127 : f32 to vector<128x128xf32>
    %286 = arith.select %284, %282, %285 : vector<128x128xi1>, vector<128x128xf32>
    %c24_i32_128 = arith.constant 24 : i32
    %287 = tpu.dynamic_rotate %286 by %c24_i32_128 dim 1 : vector<128x128xf32>, i32 -> vector<128x128xf32>
    %288 = arith.addf %281, %287 : vector<128x128xf32>
    %c24_129 = arith.constant 24 : index
    %c0_130 = arith.constant 0 : index
    %289 = vector.load %arg9[%c24_129, %c0_130] : memref<160x128xf32, #tpu.memory_space<vmem>>, vector<128x128xf32>
    %cst_131 = arith.constant 0.000000e+00 : f32
    %290 = vector.shape_cast %159 : vector<128x1xi1> to vector<128x1xi1>
    %291 = vector.broadcast %290 : vector<128x1xi1> to vector<128x128xi1>
    %292 = vector.broadcast %cst_131 : f32 to vector<128x128xf32>
    %293 = arith.select %291, %289, %292 : vector<128x128xi1>, vector<128x128xf32>
    %c28_i32 = arith.constant 28 : i32
    %294 = tpu.dynamic_rotate %293 by %c28_i32 dim 1 : vector<128x128xf32>, i32 -> vector<128x128xf32>
    %295 = arith.addf %288, %294 : vector<128x128xf32>
    %c25_132 = arith.constant 25 : index
    %c0_133 = arith.constant 0 : index
    %296 = vector.load %arg9[%c25_132, %c0_133] : memref<160x128xf32, #tpu.memory_space<vmem>>, vector<128x128xf32>
    %cst_134 = arith.constant 0.000000e+00 : f32
    %297 = vector.shape_cast %178 : vector<128x1xi1> to vector<128x1xi1>
    %298 = vector.broadcast %297 : vector<128x1xi1> to vector<128x128xi1>
    %299 = vector.broadcast %cst_134 : f32 to vector<128x128xf32>
    %300 = arith.select %298, %296, %299 : vector<128x128xi1>, vector<128x128xf32>
    %c32_i32_135 = arith.constant 32 : i32
    %301 = tpu.dynamic_rotate %300 by %c32_i32_135 dim 1 : vector<128x128xf32>, i32 -> vector<128x128xf32>
    %302 = arith.addf %295, %301 : vector<128x128xf32>
    %303 = arith.truncf %302 : vector<128x128xf32> to vector<128x128xbf16>
    %c0_136 = arith.constant 0 : index
    %c0_137 = arith.constant 0 : index
    %304 = vector.load %arg6[%c0_136, %c0_137] : memref<128x128xbf16, #tpu.memory_space<vmem>>, vector<128x128xbf16>
    %cst_138 = arith.constant dense<0.000000e+00> : vector<128x128xf32>
    %305 = tpu.matmul %303, %304, %cst_138 {dimension_numbers = #tpu.dot_dimension_numbers<[1], [0], [0], [1], [0, 0, 1, 1], [], []>} : vector<128x128xbf16>, vector<128x128xbf16>, vector<128x128xf32> -> vector<128x128xf32>
    %c0_139 = arith.constant 0 : index
    %c0_140 = arith.constant 0 : index
    %306 = vector.load %arg7[%c0_139, %c0_140] : memref<1x128xf32, #tpu.memory_space<vmem>>, vector<1x128xf32>
    %307 = vector.broadcast %306 : vector<1x128xf32> to vector<128x128xf32>
    %308 = arith.addf %305, %307 : vector<128x128xf32>
    %309 = arith.addf %308, %5 : vector<128x128xf32>
    %cst_141 = arith.constant 0.000000e+00 : f32
    %310 = vector.broadcast %cst_141 : f32 to vector<128x128xf32>
    %311 = arith.maximumf %309, %310 : vector<128x128xf32>
    %312 = arith.truncf %311 : vector<128x128xf32> to vector<128x128xbf16>
    %c0_142 = arith.constant 0 : index
    %c0_143 = arith.constant 0 : index
    %313 = vector.load %arg8[%c0_142, %c0_143] : memref<128x128xbf16, #tpu.memory_space<vmem>>, vector<128x128xbf16>
    tpu.vector_store %arg8[%c0_142, %c0_143], %312 {strides = array<i32>} : memref<128x128xbf16, #tpu.memory_space<vmem>>, vector<128x128xbf16>,
    return
  }
  func.func @transform_0(%arg0: i32) -> (i32, i32) {
    %c0_i32 = arith.constant 0 : i32
    %c0_i32_0 = arith.constant 0 : i32
    return %arg0, %c0_i32 : i32, i32
  }
  func.func @transform_1(%arg0: i32) -> (i32, i32) {
    %c0_i32 = arith.constant 0 : i32
    %c0_i32_0 = arith.constant 0 : i32
    %c0_i32_1 = arith.constant 0 : i32
    return %c0_i32, %c0_i32_0 : i32, i32
  }
  func.func @transform_2(%arg0: i32) -> (i32, i32) {
    %c0_i32 = arith.constant 0 : i32
    %c0_i32_0 = arith.constant 0 : i32
    %c0_i32_1 = arith.constant 0 : i32
    return %c0_i32, %c0_i32_0 : i32, i32
  }
  func.func @transform_3(%arg0: i32) -> (i32, i32) {
    %c0_i32 = arith.constant 0 : i32
    %c0_i32_0 = arith.constant 0 : i32
    %c0_i32_1 = arith.constant 0 : i32
    return %c0_i32, %c0_i32_0 : i32, i32
  }
  func.func @transform_4(%arg0: i32) -> (i32, i32) {
    %c0_i32 = arith.constant 0 : i32
    %c0_i32_0 = arith.constant 0 : i32
    %c0_i32_1 = arith.constant 0 : i32
    return %c0_i32, %c0_i32_0 : i32, i32
  }
  func.func @transform_5(%arg0: i32) -> (i32, i32) {
    %c0_i32 = arith.constant 0 : i32
    %c0_i32_0 = arith.constant 0 : i32
    %c0_i32_1 = arith.constant 0 : i32
    return %c0_i32, %c0_i32_0 : i32, i32
  }
  func.func @transform_6(%arg0: i32) -> (i32, i32) {
    %c0_i32 = arith.constant 0 : i32
    %c0_i32_0 = arith.constant 0 : i32
    %c0_i32_1 = arith.constant 0 : i32
    return %c0_i32, %c0_i32_0 : i32, i32
  }
  func.func @transform_7(%arg0: i32) -> (i32, i32) {
    %c0_i32 = arith.constant 0 : i32
    %c0_i32_0 = arith.constant 0 : i32
    return %arg0, %c0_i32 : i32, i32
  }
}

module attributes {stable_mosaic.version = 11 : i64} {
  func.func @_head_vip_kernel(%arg0: memref<2x512xbf16, #tpu.memory_space<vmem>>, %arg1: memref<512x128xbf16, #tpu.memory_space<vmem>>, %arg2: memref<1x128xf32, #tpu.memory_space<vmem>>, %arg3: memref<128x128xf32, #tpu.memory_space<vmem>>, %arg4: memref<1x128xf32, #tpu.memory_space<vmem>>, %arg5: memref<128x128xf32, #tpu.memory_space<vmem>>, %arg6: memref<1x128xf32, #tpu.memory_space<vmem>>, %arg7: memref<128x128xf32, #tpu.memory_space<vmem>>, %arg8: memref<1x128xf32, #tpu.memory_space<vmem>>, %arg9: memref<2x128xf32, #tpu.memory_space<vmem>>) attributes {dimension_semantics = [], scalar_prefetch = 0 : i64, scratch_operands = 0 : i64, tpu.core_type = #tpu.core_type<tc>} {
    %c0 = arith.constant 0 : index
    %c0_0 = arith.constant 0 : index
    %0 = vector.load %arg0[%c0, %c0_0] : memref<2x512xbf16, #tpu.memory_space<vmem>>, vector<2x512xbf16>
    %c0_1 = arith.constant 0 : index
    %c0_2 = arith.constant 0 : index
    %1 = vector.load %arg1[%c0_1, %c0_2] : memref<512x128xbf16, #tpu.memory_space<vmem>>, vector<512x128xbf16>
    %cst = arith.constant dense<0.000000e+00> : vector<2x128xf32>
    %2 = tpu.matmul %0, %1, %cst {dimension_numbers = #tpu.dot_dimension_numbers<[1], [0], [0], [1], [0, 0, 1, 1], [], []>} : vector<2x512xbf16>, vector<512x128xbf16>, vector<2x128xf32> -> vector<2x128xf32>
    %c0_3 = arith.constant 0 : index
    %c0_4 = arith.constant 0 : index
    %3 = vector.load %arg2[%c0_3, %c0_4] : memref<1x128xf32, #tpu.memory_space<vmem>>, vector<1x128xf32>
    %4 = vector.broadcast %3 : vector<1x128xf32> to vector<2x128xf32>
    %5 = arith.addf %2, %4 : vector<2x128xf32>
    %c0_5 = arith.constant 0 : index
    %c0_6 = arith.constant 0 : index
    %6 = vector.load %arg3[%c0_5, %c0_6] : memref<128x128xf32, #tpu.memory_space<vmem>>, vector<128x128xf32>
    %cst_7 = arith.constant dense<0.000000e+00> : vector<2x128xf32>
    %7 = tpu.matmul %5, %6, %cst_7 {dimension_numbers = #tpu.dot_dimension_numbers<[1], [0], [0], [1], [0, 0, 1, 1], [], []>} : vector<2x128xf32>, vector<128x128xf32>, vector<2x128xf32> -> vector<2x128xf32>
    %c0_8 = arith.constant 0 : index
    %c0_9 = arith.constant 0 : index
    %8 = vector.load %arg4[%c0_8, %c0_9] : memref<1x128xf32, #tpu.memory_space<vmem>>, vector<1x128xf32>
    %9 = vector.broadcast %8 : vector<1x128xf32> to vector<2x128xf32>
    %10 = arith.addf %7, %9 : vector<2x128xf32>
    %cst_10 = arith.constant 0.000000e+00 : f32
    %11 = vector.broadcast %cst_10 : f32 to vector<2x128xf32>
    %12 = arith.maximumf %10, %11 : vector<2x128xf32>
    %c0_11 = arith.constant 0 : index
    %c0_12 = arith.constant 0 : index
    %13 = vector.load %arg5[%c0_11, %c0_12] : memref<128x128xf32, #tpu.memory_space<vmem>>, vector<128x128xf32>
    %cst_13 = arith.constant dense<0.000000e+00> : vector<2x128xf32>
    %14 = tpu.matmul %12, %13, %cst_13 {dimension_numbers = #tpu.dot_dimension_numbers<[1], [0], [0], [1], [0, 0, 1, 1], [], []>} : vector<2x128xf32>, vector<128x128xf32>, vector<2x128xf32> -> vector<2x128xf32>
    %c0_14 = arith.constant 0 : index
    %c0_15 = arith.constant 0 : index
    %15 = vector.load %arg6[%c0_14, %c0_15] : memref<1x128xf32, #tpu.memory_space<vmem>>, vector<1x128xf32>
    %16 = vector.broadcast %15 : vector<1x128xf32> to vector<2x128xf32>
    %17 = arith.addf %14, %16 : vector<2x128xf32>
    %18 = arith.addf %17, %5 : vector<2x128xf32>
    %cst_16 = arith.constant 0.000000e+00 : f32
    %19 = vector.broadcast %cst_16 : f32 to vector<2x128xf32>
    %20 = arith.maximumf %18, %19 : vector<2x128xf32>
    %c0_17 = arith.constant 0 : index
    %c0_18 = arith.constant 0 : index
    %21 = vector.load %arg7[%c0_17, %c0_18] : memref<128x128xf32, #tpu.memory_space<vmem>>, vector<128x128xf32>
    %cst_19 = arith.constant dense<0.000000e+00> : vector<2x128xf32>
    %22 = tpu.matmul %20, %21, %cst_19 {dimension_numbers = #tpu.dot_dimension_numbers<[1], [0], [0], [1], [0, 0, 1, 1], [], []>} : vector<2x128xf32>, vector<128x128xf32>, vector<2x128xf32> -> vector<2x128xf32>
    %c0_20 = arith.constant 0 : index
    %c0_21 = arith.constant 0 : index
    %23 = vector.load %arg8[%c0_20, %c0_21] : memref<1x128xf32, #tpu.memory_space<vmem>>, vector<1x128xf32>
    %24 = vector.broadcast %23 : vector<1x128xf32> to vector<2x128xf32>
    %25 = arith.addf %22, %24 : vector<2x128xf32>
    %c0_22 = arith.constant 0 : index
    %c0_23 = arith.constant 0 : index
    %26 = vector.load %arg9[%c0_22, %c0_23] : memref<2x128xf32, #tpu.memory_space<vmem>>, vector<2x128xf32>
    tpu.vector_store %arg9[%c0_22, %c0_23], %25 {strides = array<i32>} : memref<2x128xf32, #tpu.memory_space<vmem>>, vector<2x128xf32>,
    return
  }
}

</mosaic_0001>

<llo_original>
// kernel: cnn_switch_3l_forward.3
$region0: #{cnn_switch_3l_forward.3}
  #allocation0 [shape = 'u32[]', space=smem, size = 0x4, offset = 0x4, fixed_abs, tag = 'smem constant byte address 0x4 - core index']
  #allocation1 [shape = 'u32[144,128]{1,0:T(1,128)}', space=vmem, size = 0x12000, scoped, tag = 'internal scratch']
  #allocation2 [shape = 'f32[320,128]{1,0:T(8,128)}', space=vmem, size = 0x28000, scoped, tag = 'scratch operand']
  %s0 = inlined_call_operand.vmem [shape: bf16[288,128], index: 0, kind: input, shape index: {}]
  %s1 = inlined_call_operand.vmem [shape: bf16[128,128], index: 1, kind: input, shape index: {}]
  %s2 = inlined_call_operand.vmem [shape: f32[1,128], index: 2, kind: input, shape index: {}]
  %s3 = inlined_call_operand.vmem [shape: bf16[256,128], index: 3, kind: input, shape index: {}]
  %s4 = inlined_call_operand.vmem [shape: f32[1,128], index: 4, kind: input, shape index: {}]
  %s5 = inlined_call_operand.vmem [shape: bf16[128,128], index: 5, kind: input, shape index: {}]
  %s6 = inlined_call_operand.vmem [shape: f32[1,128], index: 6, kind: input, shape index: {}]
  %s7 = inlined_call_operand.vmem [shape: bf16[288,128], index: 7, kind: output, shape index: {}]
  %s8 = sld [smem:[#allocation0]]
  $region38: #{cnn_switch_3l_forward.3} parent=0
    _
  %s10 = ssub.s32 1, %s8
  %s11 = scalar_select 0, %s10, %s8
  // Predicated region
  $region2: #{cnn_switch_3l_forward.3} parent=0 // pred_check
    _
  $region3: #{cnn_switch_3l_forward.3} parent=0 // pred_check_branch
    %13 = sbr.rel (0) target = $region5
  $region4: #{cnn_switch_3l_forward.3} parent=0 // pred_region
    _
  $region5: #{cnn_switch_3l_forward.3} parent=0 // pred_fallthru
    _
  // Predicated region
  $region6: #{cnn_switch_3l_forward.3} parent=0 // pred_check
    _
  $region7: #{cnn_switch_3l_forward.3} parent=0 // pred_check_branch
    %15 = sbr.rel (0) target = $region9
  $region8: #{cnn_switch_3l_forward.3} parent=0 // pred_region
    _
  $region9: #{cnn_switch_3l_forward.3} parent=0 // pred_fallthru
    _
  // Predicated region
  $region10: #{cnn_switch_3l_forward.3} parent=0 // pred_check
    _
  $region11: #{cnn_switch_3l_forward.3} parent=0 // pred_check_branch
    %17 = sbr.rel (0) target = $region13
  $region12: #{cnn_switch_3l_forward.3} parent=0 // pred_region
    _
  $region13: #{cnn_switch_3l_forward.3} parent=0 // pred_fallthru
    _
  // Predicated region
  $region14: #{cnn_switch_3l_forward.3} parent=0 // pred_check
    _
  $region15: #{cnn_switch_3l_forward.3} parent=0 // pred_check_branch
    %19 = sbr.rel (0) target = $region17
  $region16: #{cnn_switch_3l_forward.3} parent=0 // pred_region
    _
  $region17: #{cnn_switch_3l_forward.3} parent=0 // pred_fallthru
    _
  // Predicated region
  $region18: #{cnn_switch_3l_forward.3} parent=0 // pred_check
    _
  $region19: #{cnn_switch_3l_forward.3} parent=0 // pred_check_branch
    %21 = sbr.rel (0) target = $region21
  $region20: #{cnn_switch_3l_forward.3} parent=0 // pred_region
    _
  $region21: #{cnn_switch_3l_forward.3} parent=0 // pred_fallthru
    _
  // Predicated region
  $region22: #{cnn_switch_3l_forward.3} parent=0 // pred_check
    _
  $region23: #{cnn_switch_3l_forward.3} parent=0 // pred_check_branch
    %23 = sbr.rel (0) target = $region25
  $region24: #{cnn_switch_3l_forward.3} parent=0 // pred_region
    _
  $region25: #{cnn_switch_3l_forward.3} parent=0 // pred_fallthru
    _
  // Predicated region
  $region26: #{cnn_switch_3l_forward.3} parent=0 // pred_check
    _
  $region27: #{cnn_switch_3l_forward.3} parent=0 // pred_check_branch
    %25 = sbr.rel (0) target = $region29
  $region28: #{cnn_switch_3l_forward.3} parent=0 // pred_region
    _
  $region29: #{cnn_switch_3l_forward.3} parent=0 // pred_fallthru
    _
  %v27 = vld [vmem:[%s0] sm:$0xf]
  %v28 = vld [vmem:[%s0 + $0x4] sm:$0xf]
  %v29 = vld [vmem:[%s0 + $0x8] sm:$0xf]
  %v30 = vld [vmem:[%s0 + $0xc] sm:$0xf]
  %v31 = vld [vmem:[%s0 + $0x10] sm:$0xf]
  %v32 = vld [vmem:[%s0 + $0x14] sm:$0xf]
  %v33 = vld [vmem:[%s0 + $0x18] sm:$0xf]
  %v34 = vld [vmem:[%s0 + $0x1c] sm:$0xf]
  %v35 = vld [vmem:[%s0 + $0x20] sm:$0xf]
  %v36 = vld [vmem:[%s0 + $0x24] sm:$0xf]
  %v37 = vld [vmem:[%s0 + $0x28] sm:$0xf]
  %v38 = vld [vmem:[%s0 + $0x2c] sm:$0xf]
  %v39 = vld [vmem:[%s0 + $0x30] sm:$0xf]
  %v40 = vld [vmem:[%s0 + $0x34] sm:$0xf]
  %v41 = vld [vmem:[%s0 + $0x38] sm:$0xf]
  %v42 = vld [vmem:[%s0 + $0x3c] sm:$0xf]
  %v43 = vld [vmem:[%s0 + $0x40] sm:$0xf]
  %v44 = vld [vmem:[%s0 + $0x44] sm:$0xf]
  %v45 = vld [vmem:[%s0 + $0x48] sm:$0xf]
  %v46 = vld [vmem:[%s0 + $0x4c] sm:$0xf]
  %v47 = vld [vmem:[%s0 + $0x50] sm:$0xf]
  %v48 = vld [vmem:[%s0 + $0x54] sm:$0xf]
  %v49 = vld [vmem:[%s0 + $0x58] sm:$0xf]
  %v50 = vld [vmem:[%s0 + $0x5c] sm:$0xf]
  %v51 = vld [vmem:[%s0 + $0x60] sm:$0xf]
  %v52 = vld [vmem:[%s0 + $0x64] sm:$0xf]
  %v53 = vld [vmem:[%s0 + $0x68] sm:$0xf]
  %v54 = vld [vmem:[%s0 + $0x6c] sm:$0xf]
  %v55 = vld [vmem:[%s0 + $0x70] sm:$0xf]
  %v56 = vld [vmem:[%s0 + $0x74] sm:$0xf]
  %v57 = vld [vmem:[%s0 + $0x78] sm:$0xf]
  %v58 = vld [vmem:[%s0 + $0x7c] sm:$0xf]
  %v59 = vld [vmem:[%s0 + $0x80] sm:$0xf]
  %v60 = vld [vmem:[%s0 + $0x84] sm:$0xf]
  %v61 = vld [vmem:[%s0 + $0x88] sm:$0xf]
  %v62 = vld [vmem:[%s0 + $0x8c] sm:$0xf]
  %v63 = vld [vmem:[%s1] sm:$0xf]
  %v64 = vld [vmem:[%s1 + $0x4] sm:$0xf]
  %v65 = vld [vmem:[%s1 + $0x8] sm:$0xf]
  %v66 = vld [vmem:[%s1 + $0xc] sm:$0xf]
  %v67 = vld [vmem:[%s1 + $0x10] sm:$0xf]
  %v68 = vld [vmem:[%s1 + $0x14] sm:$0xf]
  %v69 = vld [vmem:[%s1 + $0x18] sm:$0xf]
  %v70 = vld [vmem:[%s1 + $0x1c] sm:$0xf]
  %v71 = vld [vmem:[%s1 + $0x20] sm:$0xf]
  %v72 = vld [vmem:[%s1 + $0x24] sm:$0xf]
  %v73 = vld [vmem:[%s1 + $0x28] sm:$0xf]
  %v74 = vld [vmem:[%s1 + $0x2c] sm:$0xf]
  %v75 = vld [vmem:[%s1 + $0x30] sm:$0xf]
  %v76 = vld [vmem:[%s1 + $0x34] sm:$0xf]
  %v77 = vld [vmem:[%s1 + $0x38] sm:$0xf]
  %v78 = vld [vmem:[%s1 + $0x3c] sm:$0xf]
  %v79 = vld [vmem:[%s2] sm:$0x1]
  %v81 = vlaneseq
  %v82 = vshrl.u32 %v81, 7
  %v83 = vsub.s32 0, %v82
  %v84 = vrot.slane %v79, %v83
  %v122 = vunpack.c.l.b16 %v27
  %v123 = vunpack.c.l.b16 %v28
  %v124 = vunpack.c.l.b16 %v29
  %v125 = vunpack.c.l.b16 %v30
  %v126 = vunpack.c.l.b16 %v31
  %v127 = vunpack.c.l.b16 %v32
  %v128 = vunpack.c.l.b16 %v33
  %v129 = vunpack.c.l.b16 %v34
  %v130 = vunpack.c.l.b16 %v35
  %v131 = vunpack.c.l.b16 %v36
  %v132 = vunpack.c.l.b16 %v37
  %v133 = vunpack.c.l.b16 %v38
  %v134 = vunpack.c.l.b16 %v39
  %v135 = vunpack.c.l.b16 %v40
  %v136 = vunpack.c.l.b16 %v41
  %v137 = vunpack.c.l.b16 %v42
  %v138 = vunpack.c.l.b16 %v43
  %v139 = vunpack.c.l.b16 %v44
  %v140 = vunpack.c.l.b16 %v45
  %v141 = vunpack.c.l.b16 %v46
  %v142 = vunpack.c.l.b16 %v47
  %v143 = vunpack.c.l.b16 %v48
  %v144 = vunpack.c.l.b16 %v49
  %v145 = vunpack.c.l.b16 %v50
  %v146 = vunpack.c.l.b16 %v51
  %v147 = vunpack.c.l.b16 %v52
  %v148 = vunpack.c.l.b16 %v53
  %v149 = vunpack.c.l.b16 %v54
  %v150 = vunpack.c.l.b16 %v55
  %v151 = vunpack.c.l.b16 %v56
  %v152 = vunpack.c.l.b16 %v57
  %v153 = vunpack.c.l.b16 %v58
  %v154 = vunpack.c.l.b16 %v59
  %v155 = vunpack.c.l.b16 %v60
  %v156 = vunpack.c.l.b16 %v61
  %v157 = vunpack.c.l.b16 %v62
  %v158 = vpack.c.b16 %v123, %v122
  %v159 = vpack.c.b16 %v125, %v124
  %v160 = vpack.c.b16 %v127, %v126
  %v161 = vpack.c.b16 %v129, %v128
  %v162 = vpack.c.b16 %v131, %v130
  %v163 = vpack.c.b16 %v133, %v132
  %v164 = vpack.c.b16 %v135, %v134
  %v165 = vpack.c.b16 %v137, %v136
  %v166 = vpack.c.b16 %v139, %v138
  %v167 = vpack.c.b16 %v141, %v140
  %v168 = vpack.c.b16 %v143, %v142
  %v169 = vpack.c.b16 %v145, %v144
  %v170 = vpack.c.b16 %v147, %v146
  %v171 = vpack.c.b16 %v149, %v148
  %v172 = vpack.c.b16 %v151, %v150
  %v173 = vpack.c.b16 %v153, %v152
  %v174 = vpack.c.b16 %v155, %v154
  %v175 = vpack.c.b16 %v157, %v156
  %v210 = vunpack.c.l.b16 %v63
  %v211 = vunpack.c.l.b16 %v64
  %v212 = vunpack.c.l.b16 %v65
  %v213 = vunpack.c.l.b16 %v66
  %v214 = vunpack.c.l.b16 %v67
  %v215 = vunpack.c.l.b16 %v68
  %v216 = vunpack.c.l.b16 %v69
  %v217 = vunpack.c.l.b16 %v70
  %v218 = vunpack.c.l.b16 %v71
  %v219 = vunpack.c.l.b16 %v72
  %v220 = vunpack.c.l.b16 %v73
  %v221 = vunpack.c.l.b16 %v74
  %v222 = vunpack.c.l.b16 %v75
  %v223 = vunpack.c.l.b16 %v76
  %v224 = vunpack.c.l.b16 %v77
  %v225 = vunpack.c.l.b16 %v78
  %v226 = vpack.c.b16 %v211, %v210
  %v227 = vpack.c.b16 %v213, %v212
  %v228 = vpack.c.b16 %v215, %v214
  %v229 = vpack.c.b16 %v217, %v216
  %v230 = vpack.c.b16 %v219, %v218
  %v231 = vpack.c.b16 %v221, %v220
  %v232 = vpack.c.b16 %v223, %v222
  %v233 = vpack.c.b16 %v225, %v224
  %242 = vmatprep.subr.bf16.mxu0 0
  %243 = vmatpush1.bf16.msra.mxu0 %v226
  %244 = vmatprep.subr.bf16.mxu0 0
  %245 = vmatpush1.bf16.msra.mxu0 %v227
  %246 = vmatprep.subr.bf16.mxu0 0
  %247 = vmatpush1.bf16.msra.mxu0 %v228
  %248 = vmatprep.subr.bf16.mxu0 0
  %249 = vmatpush1.bf16.msra.mxu0 %v229
  %250 = vmatprep.subr.bf16.mxu0 0
  %251 = vmatpush1.bf16.msra.mxu0 %v230
  %252 = vmatprep.subr.bf16.mxu0 0
  %253 = vmatpush1.bf16.msra.mxu0 %v231
  %254 = vmatprep.subr.bf16.mxu0 0
  %255 = vmatpush1.bf16.msra.mxu0 %v232
  %256 = vmatprep.subr.bf16.mxu0 0
  %257 = vmatpush1.bf16.msra.mxu0 %v233
  %258 = vmatprep.subr.bf16.mxu0 0
  %259 = vmatpush1.bf16.msra.mxu0 0
  %260 = vmatprep.subr.bf16.mxu0 0
  %261 = vmatpush1.bf16.msra.mxu0 0
  %262 = vmatprep.subr.bf16.mxu0 0
  %263 = vmatpush1.bf16.msra.mxu0 0
  %264 = vmatprep.subr.bf16.mxu0 0
  %265 = vmatpush1.bf16.msra.mxu0 0
  %266 = vmatprep.subr.bf16.mxu0 0
  %267 = vmatpush1.bf16.msra.mxu0 0
  %268 = vmatprep.subr.bf16.mxu0 0
  %269 = vmatpush1.bf16.msra.mxu0 0
  %270 = vmatprep.subr.bf16.mxu0 0
  %271 = vmatpush1.bf16.msra.mxu0 0
  %272 = vmatprep.subr.bf16.mxu0 0
  %273 = vmatpush1.bf16.msra.mxu0 0
  %274 = vmatprep.mubr.bf16.mxu0 0
  %275 = vmatmul.mubr.bf16.gmra.mrb[0].mxu0 %v158
  %v276 = vpop.f32.mrb[0].mxu0
  %v277 = vadd.f32 %v84, %v276
  %v278 = vpop.f32.mrb[0].mxu0
  %v279 = vpop.f32.mrb[0].mxu0
  %v280 = vadd.f32 %v84, %v279
  %v281 = vpop.f32.mrb[0].mxu0
  %282 = vmatprep.mubr.bf16.mxu0 0
  %283 = vmatmul.mubr.bf16.gmra.mrb[0].mxu0 %v159
  %v284 = vpop.f32.mrb[0].mxu0
  %v285 = vadd.f32 %v84, %v284
  %v286 = vpop.f32.mrb[0].mxu0
  %v287 = vpop.f32.mrb[0].mxu0
  %v288 = vadd.f32 %v84, %v287
  %v289 = vpop.f32.mrb[0].mxu0
  %290 = vmatprep.mubr.bf16.mxu0 0
  %291 = vmatmul.mubr.bf16.gmra.mrb[0].mxu0 %v160
  %v292 = vpop.f32.mrb[0].mxu0
  %v293 = vadd.f32 %v84, %v292
  %v294 = vpop.f32.mrb[0].mxu0
  %v295 = vpop.f32.mrb[0].mxu0
  %v296 = vadd.f32 %v84, %v295
  %v297 = vpop.f32.mrb[0].mxu0
  %298 = vmatprep.mubr.bf16.mxu0 0
  %299 = vmatmul.mubr.bf16.gmra.mrb[0].mxu0 %v161
  %v300 = vpop.f32.mrb[0].mxu0
  %v301 = vadd.f32 %v84, %v300
  %v302 = vpop.f32.mrb[0].mxu0
  %v303 = vpop.f32.mrb[0].mxu0
  %v304 = vadd.f32 %v84, %v303
  %v305 = vpop.f32.mrb[0].mxu0
  %306 = vmatprep.mubr.bf16.mxu0 0
  %307 = vmatmul.mubr.bf16.gmra.mrb[0].mxu0 %v162
  %v308 = vpop.f32.mrb[0].mxu0
  %v309 = vadd.f32 %v84, %v308
  %v310 = vpop.f32.mrb[0].mxu0
  %v311 = vpop.f32.mrb[0].mxu0
  %v312 = vadd.f32 %v84, %v311
  %v313 = vpop.f32.mrb[0].mxu0
  %314 = vmatprep.mubr.bf16.mxu0 0
  %315 = vmatmul.mubr.bf16.gmra.mrb[0].mxu0 %v163
  %v316 = vpop.f32.mrb[0].mxu0
  %v317 = vadd.f32 %v84, %v316
  %v318 = vpop.f32.mrb[0].mxu0
  %v319 = vpop.f32.mrb[0].mxu0
  %v320 = vadd.f32 %v84, %v319
  %v321 = vpop.f32.mrb[0].mxu0
  %322 = vmatprep.mubr.bf16.mxu0 0
  %323 = vmatmul.mubr.bf16.gmra.mrb[0].mxu0 %v164
  %v324 = vpop.f32.mrb[0].mxu0
  %v325 = vadd.f32 %v84, %v324
  %v326 = vpop.f32.mrb[0].mxu0
  %v327 = vpop.f32.mrb[0].mxu0
  %v328 = vadd.f32 %v84, %v327
  %v329 = vpop.f32.mrb[0].mxu0
  %330 = vmatprep.mubr.bf16.mxu0 0
  %331 = vmatmul.mubr.bf16.gmra.mrb[0].mxu0 %v165
  %v332 = vpop.f32.mrb[0].mxu0
  %v333 = vadd.f32 %v84, %v332
  %v334 = vpop.f32.mrb[0].mxu0
  %v335 = vpop.f32.mrb[0].mxu0
  %v336 = vadd.f32 %v84, %v335
  %v337 = vpop.f32.mrb[0].mxu0
  %338 = vmatprep.mubr.bf16.mxu0 0
  %339 = vmatmul.mubr.bf16.gmra.mrb[0].mxu0 %v166
  %v340 = vpop.f32.mrb[0].mxu0
  %v341 = vadd.f32 %v84, %v340
  %v342 = vpop.f32.mrb[0].mxu0
  %v343 = vpop.f32.mrb[0].mxu0
  %v344 = vadd.f32 %v84, %v343
  %v345 = vpop.f32.mrb[0].mxu0
  %346 = vmatprep.mubr.bf16.mxu0 0
  %347 = vmatmul.mubr.bf16.gmra.mrb[0].mxu0 %v167
  %v348 = vpop.f32.mrb[0].mxu0
  %v349 = vadd.f32 %v84, %v348
  %v350 = vpop.f32.mrb[0].mxu0
  %v351 = vpop.f32.mrb[0].mxu0
  %v352 = vadd.f32 %v84, %v351
  %v353 = vpop.f32.mrb[0].mxu0
  %354 = vmatprep.mubr.bf16.mxu0 0
  %355 = vmatmul.mubr.bf16.gmra.mrb[0].mxu0 %v168
  %v356 = vpop.f32.mrb[0].mxu0
  %v357 = vadd.f32 %v84, %v356
  %v358 = vpop.f32.mrb[0].mxu0
  %v359 = vpop.f32.mrb[0].mxu0
  %v360 = vadd.f32 %v84, %v359
  %v361 = vpop.f32.mrb[0].mxu0
  %362 = vmatprep.mubr.bf16.mxu0 0
  %363 = vmatmul.mubr.bf16.gmra.mrb[0].mxu0 %v169
  %v364 = vpop.f32.mrb[0].mxu0
  %v365 = vadd.f32 %v84, %v364
  %v366 = vpop.f32.mrb[0].mxu0
  %v367 = vpop.f32.mrb[0].mxu0
  %v368 = vadd.f32 %v84, %v367
  %v369 = vpop.f32.mrb[0].mxu0
  %370 = vmatprep.mubr.bf16.mxu0 0
  %371 = vmatmul.mubr.bf16.gmra.mrb[0].mxu0 %v170
  %v372 = vpop.f32.mrb[0].mxu0
  %v373 = vadd.f32 %v84, %v372
  %v374 = vpop.f32.mrb[0].mxu0
  %v375 = vpop.f32.mrb[0].mxu0
  %v376 = vadd.f32 %v84, %v375
  %v377 = vpop.f32.mrb[0].mxu0
  %378 = vmatprep.mubr.bf16.mxu0 0
  %379 = vmatmul.mubr.bf16.gmra.mrb[0].mxu0 %v171
  %v380 = vpop.f32.mrb[0].mxu0
  %v381 = vadd.f32 %v84, %v380
  %v382 = vpop.f32.mrb[0].mxu0
  %v383 = vpop.f32.mrb[0].mxu0
  %v384 = vadd.f32 %v84, %v383
  %v385 = vpop.f32.mrb[0].mxu0
  %386 = vmatprep.mubr.bf16.mxu0 0
  %387 = vmatmul.mubr.bf16.gmra.mrb[0].mxu0 %v172
  %v388 = vpop.f32.mrb[0].mxu0
  %v389 = vadd.f32 %v84, %v388
  %v390 = vpop.f32.mrb[0].mxu0
  %v391 = vpop.f32.mrb[0].mxu0
  %v392 = vadd.f32 %v84, %v391
  %v393 = vpop.f32.mrb[0].mxu0
  %394 = vmatprep.mubr.bf16.mxu0 0
  %395 = vmatmul.mubr.bf16.gmra.mrb[0].mxu0 %v173
  %v396 = vpop.f32.mrb[0].mxu0
  %v397 = vadd.f32 %v84, %v396
  %v398 = vpop.f32.mrb[0].mxu0
  %v399 = vpop.f32.mrb[0].mxu0
  %v400 = vadd.f32 %v84, %v399
  %v401 = vpop.f32.mrb[0].mxu0
  %402 = vmatprep.mubr.bf16.mxu0 0
  %403 = vmatmul.mubr.bf16.gmra.mrb[0].mxu0 %v174
  %v404 = vpop.f32.mrb[0].mxu0
  %v405 = vadd.f32 %v84, %v404
  %v406 = vpop.f32.mrb[0].mxu0
  %v407 = vpop.f32.mrb[0].mxu0
  %v408 = vadd.f32 %v84, %v407
  %v409 = vpop.f32.mrb[0].mxu0
  %410 = vmatprep.mubr.bf16.mxu0 0
  %411 = vmatmul.mubr.bf16.gmra.mrb[0].mxu0 %v175
  %v412 = vpop.f32.mrb[0].mxu0
  %v413 = vadd.f32 %v84, %v412
  %v414 = vpop.f32.mrb[0].mxu0
  %v415 = vpop.f32.mrb[0].mxu0
  %v416 = vadd.f32 %v84, %v415
  %v417 = vpop.f32.mrb[0].mxu0
  %418 = vdwg.mxu0
  %419 = vst [vmem:[#allocation2] sm:$0xff] 0.0
  %420 = vst [vmem:[#allocation2 + $0x8] sm:$0xff] 0.0
  %421 = vst [vmem:[#allocation2 + $0x130] sm:$0xff] 0.0
  %422 = vst [vmem:[#allocation2 + $0x138] sm:$0xff] 0.0
  %v423 = vlaneseq
  %v424 = vshrl.u32 %v423, 7
  %v425 = vadd.s32 %v424, 8
  %v426 = vadd.s32 %v424, 16
  %v427 = vadd.s32 %v424, 24
  %v428 = vadd.s32 %v424, 32
  %v429 = vadd.s32 %v424, 40
  %v430 = vadd.s32 %v424, 48
  %v431 = vadd.s32 %v424, 56
  %v432 = vadd.s32 %v424, 64
  %v433 = vadd.s32 %v424, 72
  %v434 = vadd.s32 %v424, 80
  %v435 = vadd.s32 %v424, 88
  %v436 = vadd.s32 %v424, 96
  %v437 = vadd.s32 %v424, 104
  %v438 = vadd.s32 %v424, 112
  %v439 = vadd.s32 %v424, 120
  %v440 = vadd.s32 %v424, 128
  %v441 = vadd.s32 %v424, 136
  %v442 = vadd.s32 %v424, 144
  %v443 = vadd.s32 %v424, 152
  %v444 = vadd.s32 %v424, 160
  %v445 = vadd.s32 %v424, 168
  %v446 = vadd.s32 %v424, 176
  %v447 = vadd.s32 %v424, 184
  %v448 = vadd.s32 %v424, 192
  %v449 = vadd.s32 %v424, 200
  %v450 = vadd.s32 %v424, 208
  %v451 = vadd.s32 %v424, 216
  %v452 = vadd.s32 %v424, 224
  %v453 = vadd.s32 %v424, 232
  %v454 = vadd.s32 %v424, 240
  %v455 = vadd.s32 %v424, 248
  %v456 = vadd.s32 %v424, 256
  %v457 = vadd.s32 %v424, 264
  %v458 = vadd.s32 %v424, 272
  %v459 = vadd.s32 %v424, 280
  %v460 = vcvt.s32.f32 %v424
  %v461 = vcvt.s32.f32 %v425
  %v462 = vcvt.s32.f32 %v426
  %v463 = vcvt.s32.f32 %v427
  %v464 = vcvt.s32.f32 %v428
  %v465 = vcvt.s32.f32 %v429
  %v466 = vcvt.s32.f32 %v430
  %v467 = vcvt.s32.f32 %v431
  %v468 = vcvt.s32.f32 %v432
  %v469 = vcvt.s32.f32 %v433
  %v470 = vcvt.s32.f32 %v434
  %v471 = vcvt.s32.f32 %v435
  %v472 = vcvt.s32.f32 %v436
  %v473 = vcvt.s32.f32 %v437
  %v474 = vcvt.s32.f32 %v438
  %v475 = vcvt.s32.f32 %v439
  %v476 = vcvt.s32.f32 %v440
  %v477 = vcvt.s32.f32 %v441
  %v478 = vcvt.s32.f32 %v442
  %v479 = vcvt.s32.f32 %v443
  %v480 = vcvt.s32.f32 %v444
  %v481 = vcvt.s32.f32 %v445
  %v482 = vcvt.s32.f32 %v446
  %v483 = vcvt.s32.f32 %v447
  %v484 = vcvt.s32.f32 %v448
  %v485 = vcvt.s32.f32 %v449
  %v486 = vcvt.s32.f32 %v450
  %v487 = vcvt.s32.f32 %v451
  %v488 = vcvt.s32.f32 %v452
  %v489 = vcvt.s32.f32 %v453
  %v490 = vcvt.s32.f32 %v454
  %v491 = vcvt.s32.f32 %v455
  %v492 = vcvt.s32.f32 %v456
  %v493 = vcvt.s32.f32 %v457
  %v494 = vcvt.s32.f32 %v458
  %v495 = vcvt.s32.f32 %v459
  %v496 = vadd.f32 %v460, 0.5
  %v497 = vadd.f32 %v461, 0.5
  %v498 = vadd.f32 %v462, 0.5
  %v499 = vadd.f32 %v463, 0.5
  %v500 = vadd.f32 %v464, 0.5
  %v501 = vadd.f32 %v465, 0.5
  %v502 = vadd.f32 %v466, 0.5
  %v503 = vadd.f32 %v467, 0.5
  %v504 = vadd.f32 %v468, 0.5
  %v505 = vadd.f32 %v469, 0.5
  %v506 = vadd.f32 %v470, 0.5
  %v507 = vadd.f32 %v471, 0.5
  %v508 = vadd.f32 %v472, 0.5
  %v509 = vadd.f32 %v473, 0.5
  %v510 = vadd.f32 %v474, 0.5
  %v511 = vadd.f32 %v475, 0.5
  %v512 = vadd.f32 %v476, 0.5
  %v513 = vadd.f32 %v477, 0.5
  %v514 = vadd.f32 %v478, 0.5
  %v515 = vadd.f32 %v479, 0.5
  %v516 = vadd.f32 %v480, 0.5
  %v517 = vadd.f32 %v481, 0.5
  %v518 = vadd.f32 %v482, 0.5
  %v519 = vadd.f32 %v483, 0.5
  %v520 = vadd.f32 %v484, 0.5
  %v521 = vadd.f32 %v485, 0.5
  %v522 = vadd.f32 %v486, 0.5
  %v523 = vadd.f32 %v487, 0.5
  %v524 = vadd.f32 %v488, 0.5
  %v525 = vadd.f32 %v489, 0.5
  %v526 = vadd.f32 %v490, 0.5
  %v527 = vadd.f32 %v491, 0.5
  %v528 = vadd.f32 %v492, 0.5
  %v529 = vadd.f32 %v493, 0.5
  %v530 = vadd.f32 %v494, 0.5
  %v531 = vadd.f32 %v495, 0.5
  %v532 = vmul.f32 %v496, 0.0069444445
  %v533 = vmul.f32 %v497, 0.0069444445
  %v534 = vmul.f32 %v498, 0.0069444445
  %v535 = vmul.f32 %v499, 0.0069444445
  %v536 = vmul.f32 %v500, 0.0069444445
  %v537 = vmul.f32 %v501, 0.0069444445
  %v538 = vmul.f32 %v502, 0.0069444445
  %v539 = vmul.f32 %v503, 0.0069444445
  %v540 = vmul.f32 %v504, 0.0069444445
  %v541 = vmul.f32 %v505, 0.0069444445
  %v542 = vmul.f32 %v506, 0.0069444445
  %v543 = vmul.f32 %v507, 0.0069444445
  %v544 = vmul.f32 %v508, 0.0069444445
  %v545 = vmul.f32 %v509, 0.0069444445
  %v546 = vmul.f32 %v510, 0.0069444445
  %v547 = vmul.f32 %v511, 0.0069444445
  %v548 = vmul.f32 %v512, 0.0069444445
  %v549 = vmul.f32 %v513, 0.0069444445
  %v550 = vmul.f32 %v514, 0.0069444445
  %v551 = vmul.f32 %v515, 0.0069444445
  %v552 = vmul.f32 %v516, 0.0069444445
  %v553 = vmul.f32 %v517, 0.0069444445
  %v554 = vmul.f32 %v518, 0.0069444445
  %v555 = vmul.f32 %v519, 0.0069444445
  %v556 = vmul.f32 %v520, 0.0069444445
  %v557 = vmul.f32 %v521, 0.0069444445
  %v558 = vmul.f32 %v522, 0.0069444445
  %v559 = vmul.f32 %v523, 0.0069444445
  %v560 = vmul.f32 %v524, 0.0069444445
  %v561 = vmul.f32 %v525, 0.0069444445
  %v562 = vmul.f32 %v526, 0.0069444445
  %v563 = vmul.f32 %v527, 0.0069444445
  %v564 = vmul.f32 %v528, 0.0069444445
  %v565 = vmul.f32 %v529, 0.0069444445
  %v566 = vmul.f32 %v530, 0.0069444445
  %v567 = vmul.f32 %v531, 0.0069444445
  %v568 = vfloor.f32 %v532
  %v569 = vfloor.f32 %v533
  %v570 = vfloor.f32 %v534
  %v571 = vfloor.f32 %v535
  %v572 = vfloor.f32 %v536
  %v573 = vfloor.f32 %v537
  %v574 = vfloor.f32 %v538
  %v575 = vfloor.f32 %v539
  %v576 = vfloor.f32 %v540
  %v577 = vfloor.f32 %v541
  %v578 = vfloor.f32 %v542
  %v579 = vfloor.f32 %v543
  %v580 = vfloor.f32 %v544
  %v581 = vfloor.f32 %v545
  %v582 = vfloor.f32 %v546
  %v583 = vfloor.f32 %v547
  %v584 = vfloor.f32 %v548
  %v585 = vfloor.f32 %v549
  %v586 = vfloor.f32 %v550
  %v587 = vfloor.f32 %v551
  %v588 = vfloor.f32 %v552
  %v589 = vfloor.f32 %v553
  %v590 = vfloor.f32 %v554
  %v591 = vfloor.f32 %v555
  %v592 = vfloor.f32 %v556
  %v593 = vfloor.f32 %v557
  %v594 = vfloor.f32 %v558
  %v595 = vfloor.f32 %v559
  %v596 = vfloor.f32 %v560
  %v597 = vfloor.f32 %v561
  %v598 = vfloor.f32 %v562
  %v599 = vfloor.f32 %v563
  %v600 = vfloor.f32 %v564
  %v601 = vfloor.f32 %v565
  %v602 = vfloor.f32 %v566
  %v603 = vfloor.f32 %v567
  %v604 = vmul.f32 %v568, 144.0
  %v605 = vmul.f32 %v569, 144.0
  %v606 = vmul.f32 %v570, 144.0
  %v607 = vmul.f32 %v571, 144.0
  %v608 = vmul.f32 %v572, 144.0
  %v609 = vmul.f32 %v573, 144.0
  %v610 = vmul.f32 %v574, 144.0
  %v611 = vmul.f32 %v575, 144.0
  %v612 = vmul.f32 %v576, 144.0
  %v613 = vmul.f32 %v577, 144.0
  %v614 = vmul.f32 %v578, 144.0
  %v615 = vmul.f32 %v579, 144.0
  %v616 = vmul.f32 %v580, 144.0
  %v617 = vmul.f32 %v581, 144.0
  %v618 = vmul.f32 %v582, 144.0
  %v619 = vmul.f32 %v583, 144.0
  %v620 = vmul.f32 %v584, 144.0
  %v621 = vmul.f32 %v585, 144.0
  %v622 = vmul.f32 %v586, 144.0
  %v623 = vmul.f32 %v587, 144.0
  %v624 = vmul.f32 %v588, 144.0
  %v625 = vmul.f32 %v589, 144.0
  %v626 = vmul.f32 %v590, 144.0
  %v627 = vmul.f32 %v591, 144.0
  %v628 = vmul.f32 %v592, 144.0
  %v629 = vmul.f32 %v593, 144.0
  %v630 = vmul.f32 %v594, 144.0
  %v631 = vmul.f32 %v595, 144.0
  %v632 = vmul.f32 %v596, 144.0
  %v633 = vmul.f32 %v597, 144.0
  %v634 = vmul.f32 %v598, 144.0
  %v635 = vmul.f32 %v599, 144.0
  %v636 = vmul.f32 %v600, 144.0
  %v637 = vmul.f32 %v601, 144.0
  %v638 = vmul.f32 %v602, 144.0
  %v639 = vmul.f32 %v603, 144.0
  %v640 = vsub.f32 %v460, %v604
  %v641 = vsub.f32 %v461, %v605
  %v642 = vsub.f32 %v462, %v606
  %v643 = vsub.f32 %v463, %v607
  %v644 = vsub.f32 %v464, %v608
  %v645 = vsub.f32 %v465, %v609
  %v646 = vsub.f32 %v466, %v610
  %v647 = vsub.f32 %v467, %v611
  %v648 = vsub.f32 %v468, %v612
  %v649 = vsub.f32 %v469, %v613
  %v650 = vsub.f32 %v470, %v614
  %v651 = vsub.f32 %v471, %v615
  %v652 = vsub.f32 %v472, %v616
  %v653 = vsub.f32 %v473, %v617
  %v654 = vsub.f32 %v474, %v618
  %v655 = vsub.f32 %v475, %v619
  %v656 = vsub.f32 %v476, %v620
  %v657 = vsub.f32 %v477, %v621
  %v658 = vsub.f32 %v478, %v622
  %v659 = vsub.f32 %v479, %v623
  %v660 = vsub.f32 %v480, %v624
  %v661 = vsub.f32 %v481, %v625
  %v662 = vsub.f32 %v482, %v626
  %v663 = vsub.f32 %v483, %v627
  %v664 = vsub.f32 %v484, %v628
  %v665 = vsub.f32 %v485, %v629
  %v666 = vsub.f32 %v486, %v630
  %v667 = vsub.f32 %v487, %v631
  %v668 = vsub.f32 %v488, %v632
  %v669 = vsub.f32 %v489, %v633
  %v670 = vsub.f32 %v490, %v634
  %v671 = vsub.f32 %v491, %v635
  %v672 = vsub.f32 %v492, %v636
  %v673 = vsub.f32 %v493, %v637
  %v674 = vsub.f32 %v494, %v638
  %v675 = vsub.f32 %v495, %v639
  %v676 = vadd.f32 %v640, 0.5
  %v677 = vadd.f32 %v641, 0.5
  %v678 = vadd.f32 %v642, 0.5
  %v679 = vadd.f32 %v643, 0.5
  %v680 = vadd.f32 %v644, 0.5
  %v681 = vadd.f32 %v645, 0.5
  %v682 = vadd.f32 %v646, 0.5
  %v683 = vadd.f32 %v647, 0.5
  %v684 = vadd.f32 %v648, 0.5
  %v685 = vadd.f32 %v649, 0.5
  %v686 = vadd.f32 %v650, 0.5
  %v687 = vadd.f32 %v651, 0.5
  %v688 = vadd.f32 %v652, 0.5
  %v689 = vadd.f32 %v653, 0.5
  %v690 = vadd.f32 %v654, 0.5
  %v691 = vadd.f32 %v655, 0.5
  %v692 = vadd.f32 %v656, 0.5
  %v693 = vadd.f32 %v657, 0.5
  %v694 = vadd.f32 %v658, 0.5
  %v695 = vadd.f32 %v659, 0.5
  %v696 = vadd.f32 %v660, 0.5
  %v697 = vadd.f32 %v661, 0.5
  %v698 = vadd.f32 %v662, 0.5
  %v699 = vadd.f32 %v663, 0.5
  %v700 = vadd.f32 %v664, 0.5
  %v701 = vadd.f32 %v665, 0.5
  %v702 = vadd.f32 %v666, 0.5
  %v703 = vadd.f32 %v667, 0.5
  %v704 = vadd.f32 %v668, 0.5
  %v705 = vadd.f32 %v669, 0.5
  %v706 = vadd.f32 %v670, 0.5
  %v707 = vadd.f32 %v671, 0.5
  %v708 = vadd.f32 %v672, 0.5
  %v709 = vadd.f32 %v673, 0.5
  %v710 = vadd.f32 %v674, 0.5
  %v711 = vadd.f32 %v675, 0.5
  %v712 = vmul.f32 %v676, 0.083333336
  %v713 = vmul.f32 %v677, 0.083333336
  %v714 = vmul.f32 %v678, 0.083333336
  %v715 = vmul.f32 %v679, 0.083333336
  %v716 = vmul.f32 %v680, 0.083333336
  %v717 = vmul.f32 %v681, 0.083333336
  %v718 = vmul.f32 %v682, 0.083333336
  %v719 = vmul.f32 %v683, 0.083333336
  %v720 = vmul.f32 %v684, 0.083333336
  %v721 = vmul.f32 %v685, 0.083333336
  %v722 = vmul.f32 %v686, 0.083333336
  %v723 = vmul.f32 %v687, 0.083333336
  %v724 = vmul.f32 %v688, 0.083333336
  %v725 = vmul.f32 %v689, 0.083333336
  %v726 = vmul.f32 %v690, 0.083333336
  %v727 = vmul.f32 %v691, 0.083333336
  %v728 = vmul.f32 %v692, 0.083333336
  %v729 = vmul.f32 %v693, 0.083333336
  %v730 = vmul.f32 %v694, 0.083333336
  %v731 = vmul.f32 %v695, 0.083333336
  %v732 = vmul.f32 %v696, 0.083333336
  %v733 = vmul.f32 %v697, 0.083333336
  %v734 = vmul.f32 %v698, 0.083333336
  %v735 = vmul.f32 %v699, 0.083333336
  %v736 = vmul.f32 %v700, 0.083333336
  %v737 = vmul.f32 %v701, 0.083333336
  %v738 = vmul.f32 %v702, 0.083333336
  %v739 = vmul.f32 %v703, 0.083333336
  %v740 = vmul.f32 %v704, 0.083333336
  %v741 = vmul.f32 %v705, 0.083333336
  %v742 = vmul.f32 %v706, 0.083333336
  %v743 = vmul.f32 %v707, 0.083333336
  %v744 = vmul.f32 %v708, 0.083333336
  %v745 = vmul.f32 %v709, 0.083333336
  %v746 = vmul.f32 %v710, 0.083333336
  %v747 = vmul.f32 %v711, 0.083333336
  %v748 = vfloor.f32 %v712
  %v749 = vfloor.f32 %v713
  %v750 = vfloor.f32 %v714
  %v751 = vfloor.f32 %v715
  %v752 = vfloor.f32 %v716
  %v753 = vfloor.f32 %v717
  %v754 = vfloor.f32 %v718
  %v755 = vfloor.f32 %v719
  %v756 = vfloor.f32 %v720
  %v757 = vfloor.f32 %v721
  %v758 = vfloor.f32 %v722
  %v759 = vfloor.f32 %v723
  %v760 = vfloor.f32 %v724
  %v761 = vfloor.f32 %v725
  %v762 = vfloor.f32 %v726
  %v763 = vfloor.f32 %v727
  %v764 = vfloor.f32 %v728
  %v765 = vfloor.f32 %v729
  %v766 = vfloor.f32 %v730
  %v767 = vfloor.f32 %v731
  %v768 = vfloor.f32 %v732
  %v769 = vfloor.f32 %v733
  %v770 = vfloor.f32 %v734
  %v771 = vfloor.f32 %v735
  %v772 = vfloor.f32 %v736
  %v773 = vfloor.f32 %v737
  %v774 = vfloor.f32 %v738
  %v775 = vfloor.f32 %v739
  %v776 = vfloor.f32 %v740
  %v777 = vfloor.f32 %v741
  %v778 = vfloor.f32 %v742
  %v779 = vfloor.f32 %v743
  %v780 = vfloor.f32 %v744
  %v781 = vfloor.f32 %v745
  %v782 = vfloor.f32 %v746
  %v783 = vfloor.f32 %v747
  %v784 = vmul.f32 %v748, 12.0
  %v785 = vmul.f32 %v749, 12.0
  %v786 = vmul.f32 %v750, 12.0
  %v787 = vmul.f32 %v751, 12.0
  %v788 = vmul.f32 %v752, 12.0
  %v789 = vmul.f32 %v753, 12.0
  %v790 = vmul.f32 %v754, 12.0
  %v791 = vmul.f32 %v755, 12.0
  %v792 = vmul.f32 %v756, 12.0
  %v793 = vmul.f32 %v757, 12.0
  %v794 = vmul.f32 %v758, 12.0
  %v795 = vmul.f32 %v759, 12.0
  %v796 = vmul.f32 %v760, 12.0
  %v797 = vmul.f32 %v761, 12.0
  %v798 = vmul.f32 %v762, 12.0
  %v799 = vmul.f32 %v763, 12.0
  %v800 = vmul.f32 %v764, 12.0
  %v801 = vmul.f32 %v765, 12.0
  %v802 = vmul.f32 %v766, 12.0
  %v803 = vmul.f32 %v767, 12.0
  %v804 = vmul.f32 %v768, 12.0
  %v805 = vmul.f32 %v769, 12.0
  %v806 = vmul.f32 %v770, 12.0
  %v807 = vmul.f32 %v771, 12.0
  %v808 = vmul.f32 %v772, 12.0
  %v809 = vmul.f32 %v773, 12.0
  %v810 = vmul.f32 %v774, 12.0
  %v811 = vmul.f32 %v775, 12.0
  %v812 = vmul.f32 %v776, 12.0
  %v813 = vmul.f32 %v777, 12.0
  %v814 = vmul.f32 %v778, 12.0
  %v815 = vmul.f32 %v779, 12.0
  %v816 = vmul.f32 %v780, 12.0
  %v817 = vmul.f32 %v781, 12.0
  %v818 = vmul.f32 %v782, 12.0
  %v819 = vmul.f32 %v783, 12.0
  %v820 = vsub.f32 %v640, %v784
  %v821 = vsub.f32 %v641, %v785
  %v822 = vsub.f32 %v642, %v786
  %v823 = vsub.f32 %v643, %v787
  %v824 = vsub.f32 %v644, %v788
  %v825 = vsub.f32 %v645, %v789
  %v826 = vsub.f32 %v646, %v790
  %v827 = vsub.f32 %v647, %v791
  %v828 = vsub.f32 %v648, %v792
  %v829 = vsub.f32 %v649, %v793
  %v830 = vsub.f32 %v650, %v794
  %v831 = vsub.f32 %v651, %v795
  %v832 = vsub.f32 %v652, %v796
  %v833 = vsub.f32 %v653, %v797
  %v834 = vsub.f32 %v654, %v798
  %v835 = vsub.f32 %v655, %v799
  %v836 = vsub.f32 %v656, %v800
  %v837 = vsub.f32 %v657, %v801
  %v838 = vsub.f32 %v658, %v802
  %v839 = vsub.f32 %v659, %v803
  %v840 = vsub.f32 %v660, %v804
  %v841 = vsub.f32 %v661, %v805
  %v842 = vsub.f32 %v662, %v806
  %v843 = vsub.f32 %v663, %v807
  %v844 = vsub.f32 %v664, %v808
  %v845 = vsub.f32 %v665, %v809
  %v846 = vsub.f32 %v666, %v810
  %v847 = vsub.f32 %v667, %v811
  %v848 = vsub.f32 %v668, %v812
  %v849 = vsub.f32 %v669, %v813
  %v850 = vsub.f32 %v670, %v814
  %v851 = vsub.f32 %v671, %v815
  %v852 = vsub.f32 %v672, %v816
  %v853 = vsub.f32 %v673, %v817
  %v854 = vsub.f32 %v674, %v818
  %v855 = vsub.f32 %v675, %v819
  %v856 = vadd.f32 %v748, -1.0
  %v857 = vadd.f32 %v749, -1.0
  %v858 = vadd.f32 %v750, -1.0
  %v859 = vadd.f32 %v751, -1.0
  %v860 = vadd.f32 %v752, -1.0
  %v861 = vadd.f32 %v753, -1.0
  %v862 = vadd.f32 %v754, -1.0
  %v863 = vadd.f32 %v755, -1.0
  %v864 = vadd.f32 %v756, -1.0
  %v865 = vadd.f32 %v757, -1.0
  %v866 = vadd.f32 %v758, -1.0
  %v867 = vadd.f32 %v759, -1.0
  %v868 = vadd.f32 %v760, -1.0
  %v869 = vadd.f32 %v761, -1.0
  %v870 = vadd.f32 %v762, -1.0
  %v871 = vadd.f32 %v763, -1.0
  %v872 = vadd.f32 %v764, -1.0
  %v873 = vadd.f32 %v765, -1.0
  %v874 = vadd.f32 %v766, -1.0
  %v875 = vadd.f32 %v767, -1.0
  %v876 = vadd.f32 %v768, -1.0
  %v877 = vadd.f32 %v769, -1.0
  %v878 = vadd.f32 %v770, -1.0
  %v879 = vadd.f32 %v771, -1.0
  %v880 = vadd.f32 %v772, -1.0
  %v881 = vadd.f32 %v773, -1.0
  %v882 = vadd.f32 %v774, -1.0
  %v883 = vadd.f32 %v775, -1.0
  %v884 = vadd.f32 %v776, -1.0
  %v885 = vadd.f32 %v777, -1.0
  %v886 = vadd.f32 %v778, -1.0
  %v887 = vadd.f32 %v779, -1.0
  %v888 = vadd.f32 %v780, -1.0
  %v889 = vadd.f32 %v781, -1.0
  %v890 = vadd.f32 %v782, -1.0
  %v891 = vadd.f32 %v783, -1.0
  %vm892 = vcmp.ge.f32.partialorder %v856, 0.0
  %vm893 = vcmp.ge.f32.partialorder %v857, 0.0
  %vm894 = vcmp.ge.f32.partialorder %v858, 0.0
  %vm895 = vcmp.ge.f32.partialorder %v859, 0.0
  %vm896 = vcmp.ge.f32.partialorder %v860, 0.0
  %vm897 = vcmp.ge.f32.partialorder %v861, 0.0
  %vm898 = vcmp.ge.f32.partialorder %v862, 0.0
  %vm899 = vcmp.ge.f32.partialorder %v863, 0.0
  %vm900 = vcmp.ge.f32.partialorder %v864, 0.0
  %vm901 = vcmp.ge.f32.partialorder %v865, 0.0
  %vm902 = vcmp.ge.f32.partialorder %v866, 0.0
  %vm903 = vcmp.ge.f32.partialorder %v867, 0.0
  %vm904 = vcmp.ge.f32.partialorder %v868, 0.0
  %vm905 = vcmp.ge.f32.partialorder %v869, 0.0
  %vm906 = vcmp.ge.f32.partialorder %v870, 0.0
  %vm907 = vcmp.ge.f32.partialorder %v871, 0.0
  %vm908 = vcmp.ge.f32.partialorder %v872, 0.0
  %vm909 = vcmp.ge.f32.partialorder %v873, 0.0
  %vm910 = vcmp.ge.f32.partialorder %v874, 0.0
  %vm911 = vcmp.ge.f32.partialorder %v875, 0.0
  %vm912 = vcmp.ge.f32.partialorder %v876, 0.0
  %vm913 = vcmp.ge.f32.partialorder %v877, 0.0
  %vm914 = vcmp.ge.f32.partialorder %v878, 0.0
  %vm915 = vcmp.ge.f32.partialorder %v879, 0.0
  %vm916 = vcmp.ge.f32.partialorder %v880, 0.0
  %vm917 = vcmp.ge.f32.partialorder %v881, 0.0
  %vm918 = vcmp.ge.f32.partialorder %v882, 0.0
  %vm919 = vcmp.ge.f32.partialorder %v883, 0.0
  %vm920 = vcmp.ge.f32.partialorder %v884, 0.0
  %vm921 = vcmp.ge.f32.partialorder %v885, 0.0
  %vm922 = vcmp.ge.f32.partialorder %v886, 0.0
  %vm923 = vcmp.ge.f32.partialorder %v887, 0.0
  %vm924 = vcmp.ge.f32.partialorder %v888, 0.0
  %vm925 = vcmp.ge.f32.partialorder %v889, 0.0
  %vm926 = vcmp.ge.f32.partialorder %v890, 0.0
  %vm927 = vcmp.ge.f32.partialorder %v891, 0.0
  %vm928 = vcmp.le.f32.partialorder %v856, 11.0
  %vm929 = vcmp.le.f32.partialorder %v857, 11.0
  %vm930 = vcmp.le.f32.partialorder %v858, 11.0
  %vm931 = vcmp.le.f32.partialorder %v859, 11.0
  %vm932 = vcmp.le.f32.partialorder %v860, 11.0
  %vm933 = vcmp.le.f32.partialorder %v861, 11.0
  %vm934 = vcmp.le.f32.partialorder %v862, 11.0
  %vm935 = vcmp.le.f32.partialorder %v863, 11.0
  %vm936 = vcmp.le.f32.partialorder %v864, 11.0
  %vm937 = vcmp.le.f32.partialorder %v865, 11.0
  %vm938 = vcmp.le.f32.partialorder %v866, 11.0
  %vm939 = vcmp.le.f32.partialorder %v867, 11.0
  %vm940 = vcmp.le.f32.partialorder %v868, 11.0
  %vm941 = vcmp.le.f32.partialorder %v869, 11.0
  %vm942 = vcmp.le.f32.partialorder %v870, 11.0
  %vm943 = vcmp.le.f32.partialorder %v871, 11.0
  %vm944 = vcmp.le.f32.partialorder %v872, 11.0
  %vm945 = vcmp.le.f32.partialorder %v873, 11.0
  %vm946 = vcmp.le.f32.partialorder %v874, 11.0
  %vm947 = vcmp.le.f32.partialorder %v875, 11.0
  %vm948 = vcmp.le.f32.partialorder %v876, 11.0
  %vm949 = vcmp.le.f32.partialorder %v877, 11.0
  %vm950 = vcmp.le.f32.partialorder %v878, 11.0
  %vm951 = vcmp.le.f32.partialorder %v879, 11.0
  %vm952 = vcmp.le.f32.partialorder %v880, 11.0
  %vm953 = vcmp.le.f32.partialorder %v881, 11.0
  %vm954 = vcmp.le.f32.partialorder %v882, 11.0
  %vm955 = vcmp.le.f32.partialorder %v883, 11.0
  %vm956 = vcmp.le.f32.partialorder %v884, 11.0
  %vm957 = vcmp.le.f32.partialorder %v885, 11.0
  %vm958 = vcmp.le.f32.partialorder %v886, 11.0
  %vm959 = vcmp.le.f32.partialorder %v887, 11.0
  %vm960 = vcmp.le.f32.partialorder %v888, 11.0
  %vm961 = vcmp.le.f32.partialorder %v889, 11.0
  %vm962 = vcmp.le.f32.partialorder %v890, 11.0
  %vm963 = vcmp.le.f32.partialorder %v891, 11.0
  %vm964 = vmand %vm892, %vm928
  %vm965 = vmand %vm893, %vm929
  %vm966 = vmand %vm894, %vm930
  %vm967 = vmand %vm895, %vm931
  %vm968 = vmand %vm896, %vm932
  %vm969 = vmand %vm897, %vm933
  %vm970 = vmand %vm898, %vm934
  %vm971 = vmand %vm899, %vm935
  %vm972 = vmand %vm900, %vm936
  %vm973 = vmand %vm901, %vm937
  %vm974 = vmand %vm902, %vm938
  %vm975 = vmand %vm903, %vm939
  %vm976 = vmand %vm904, %vm940
  %vm977 = vmand %vm905, %vm941
  %vm978 = vmand %vm906, %vm942
  %vm979 = vmand %vm907, %vm943
  %vm980 = vmand %vm908, %vm944
  %vm981 = vmand %vm909, %vm945
  %vm982 = vmand %vm910, %vm946
  %vm983 = vmand %vm911, %vm947
  %vm984 = vmand %vm912, %vm948
  %vm985 = vmand %vm913, %vm949
  %vm986 = vmand %vm914, %vm950
  %vm987 = vmand %vm915, %vm951
  %vm988 = vmand %vm916, %vm952
  %vm989 = vmand %vm917, %vm953
  %vm990 = vmand %vm918, %vm954
  %vm991 = vmand %vm919, %vm955
  %vm992 = vmand %vm920, %vm956
  %vm993 = vmand %vm921, %vm957
  %vm994 = vmand %vm922, %vm958
  %vm995 = vmand %vm923, %vm959
  %vm996 = vmand %vm924, %vm960
  %vm997 = vmand %vm925, %vm961
  %vm998 = vmand %vm926, %vm962
  %vm999 = vmand %vm927, %vm963
  %v1000 = vadd.f32 %v820, -1.0
  %v1001 = vadd.f32 %v821, -1.0
  %v1002 = vadd.f32 %v822, -1.0
  %v1003 = vadd.f32 %v823, -1.0
  %v1004 = vadd.f32 %v824, -1.0
  %v1005 = vadd.f32 %v825, -1.0
  %v1006 = vadd.f32 %v826, -1.0
  %v1007 = vadd.f32 %v827, -1.0
  %v1008 = vadd.f32 %v828, -1.0
  %v1009 = vadd.f32 %v829, -1.0
  %v1010 = vadd.f32 %v830, -1.0
  %v1011 = vadd.f32 %v831, -1.0
  %v1012 = vadd.f32 %v832, -1.0
  %v1013 = vadd.f32 %v833, -1.0
  %v1014 = vadd.f32 %v834, -1.0
  %v1015 = vadd.f32 %v835, -1.0
  %v1016 = vadd.f32 %v836, -1.0
  %v1017 = vadd.f32 %v837, -1.0
  %v1018 = vadd.f32 %v838, -1.0
  %v1019 = vadd.f32 %v839, -1.0
  %v1020 = vadd.f32 %v840, -1.0
  %v1021 = vadd.f32 %v841, -1.0
  %v1022 = vadd.f32 %v842, -1.0
  %v1023 = vadd.f32 %v843, -1.0
  %v1024 = vadd.f32 %v844, -1.0
  %v1025 = vadd.f32 %v845, -1.0
  %v1026 = vadd.f32 %v846, -1.0
  %v1027 = vadd.f32 %v847, -1.0
  %v1028 = vadd.f32 %v848, -1.0
  %v1029 = vadd.f32 %v849, -1.0
  %v1030 = vadd.f32 %v850, -1.0
  %v1031 = vadd.f32 %v851, -1.0
  %v1032 = vadd.f32 %v852, -1.0
  %v1033 = vadd.f32 %v853, -1.0
  %v1034 = vadd.f32 %v854, -1.0
  %v1035 = vadd.f32 %v855, -1.0
  %vm1036 = vcmp.ge.f32.partialorder %v1000, 0.0
  %vm1037 = vcmp.ge.f32.partialorder %v1001, 0.0
  %vm1038 = vcmp.ge.f32.partialorder %v1002, 0.0
  %vm1039 = vcmp.ge.f32.partialorder %v1003, 0.0
  %vm1040 = vcmp.ge.f32.partialorder %v1004, 0.0
  %vm1041 = vcmp.ge.f32.partialorder %v1005, 0.0
  %vm1042 = vcmp.ge.f32.partialorder %v1006, 0.0
  %vm1043 = vcmp.ge.f32.partialorder %v1007, 0.0
  %vm1044 = vcmp.ge.f32.partialorder %v1008, 0.0
  %vm1045 = vcmp.ge.f32.partialorder %v1009, 0.0
  %vm1046 = vcmp.ge.f32.partialorder %v1010, 0.0
  %vm1047 = vcmp.ge.f32.partialorder %v1011, 0.0
  %vm1048 = vcmp.ge.f32.partialorder %v1012, 0.0
  %vm1049 = vcmp.ge.f32.partialorder %v1013, 0.0
  %vm1050 = vcmp.ge.f32.partialorder %v1014, 0.0
  %vm1051 = vcmp.ge.f32.partialorder %v1015, 0.0
  %vm1052 = vcmp.ge.f32.partialorder %v1016, 0.0
  %vm1053 = vcmp.ge.f32.partialorder %v1017, 0.0
  %vm1054 = vcmp.ge.f32.partialorder %v1018, 0.0
  %vm1055 = vcmp.ge.f32.partialorder %v1019, 0.0
  %vm1056 = vcmp.ge.f32.partialorder %v1020, 0.0
  %vm1057 = vcmp.ge.f32.partialorder %v1021, 0.0
  %vm1058 = vcmp.ge.f32.partialorder %v1022, 0.0
  %vm1059 = vcmp.ge.f32.partialorder %v1023, 0.0
  %vm1060 = vcmp.ge.f32.partialorder %v1024, 0.0
  %vm1061 = vcmp.ge.f32.partialorder %v1025, 0.0
  %vm1062 = vcmp.ge.f32.partialorder %v1026, 0.0
  %vm1063 = vcmp.ge.f32.partialorder %v1027, 0.0
  %vm1064 = vcmp.ge.f32.partialorder %v1028, 0.0
  %vm1065 = vcmp.ge.f32.partialorder %v1029, 0.0
  %vm1066 = vcmp.ge.f32.partialorder %v1030, 0.0
  %vm1067 = vcmp.ge.f32.partialorder %v1031, 0.0
  %vm1068 = vcmp.ge.f32.partialorder %v1032, 0.0
  %vm1069 = vcmp.ge.f32.partialorder %v1033, 0.0
  %vm1070 = vcmp.ge.f32.partialorder %v1034, 0.0
  %vm1071 = vcmp.ge.f32.partialorder %v1035, 0.0
  %vm1072 = vmand %vm964, %vm1036
  %vm1073 = vmand %vm965, %vm1037
  %vm1074 = vmand %vm966, %vm1038
  %vm1075 = vmand %vm967, %vm1039
  %vm1076 = vmand %vm968, %vm1040
  %vm1077 = vmand %vm969, %vm1041
  %vm1078 = vmand %vm970, %vm1042
  %vm1079 = vmand %vm971, %vm1043
  %vm1080 = vmand %vm972, %vm1044
  %vm1081 = vmand %vm973, %vm1045
  %vm1082 = vmand %vm974, %vm1046
  %vm1083 = vmand %vm975, %vm1047
  %vm1084 = vmand %vm976, %vm1048
  %vm1085 = vmand %vm977, %vm1049
  %vm1086 = vmand %vm978, %vm1050
  %vm1087 = vmand %vm979, %vm1051
  %vm1088 = vmand %vm980, %vm1052
  %vm1089 = vmand %vm981, %vm1053
  %vm1090 = vmand %vm982, %vm1054
  %vm1091 = vmand %vm983, %vm1055
  %vm1092 = vmand %vm984, %vm1056
  %vm1093 = vmand %vm985, %vm1057
  %vm1094 = vmand %vm986, %vm1058
  %vm1095 = vmand %vm987, %vm1059
  %vm1096 = vmand %vm988, %vm1060
  %vm1097 = vmand %vm989, %vm1061
  %vm1098 = vmand %vm990, %vm1062
  %vm1099 = vmand %vm991, %vm1063
  %vm1100 = vmand %vm992, %vm1064
  %vm1101 = vmand %vm993, %vm1065
  %vm1102 = vmand %vm994, %vm1066
  %vm1103 = vmand %vm995, %vm1067
  %vm1104 = vmand %vm996, %vm1068
  %vm1105 = vmand %vm997, %vm1069
  %vm1106 = vmand %vm998, %vm1070
  %vm1107 = vmand %vm999, %vm1071
  %vm1108 = vcmp.le.f32.partialorder %v1000, 11.0
  %vm1109 = vcmp.le.f32.partialorder %v1001, 11.0
  %vm1110 = vcmp.le.f32.partialorder %v1002, 11.0
  %vm1111 = vcmp.le.f32.partialorder %v1003, 11.0
  %vm1112 = vcmp.le.f32.partialorder %v1004, 11.0
  %vm1113 = vcmp.le.f32.partialorder %v1005, 11.0
  %vm1114 = vcmp.le.f32.partialorder %v1006, 11.0
  %vm1115 = vcmp.le.f32.partialorder %v1007, 11.0
  %vm1116 = vcmp.le.f32.partialorder %v1008, 11.0
  %vm1117 = vcmp.le.f32.partialorder %v1009, 11.0
  %vm1118 = vcmp.le.f32.partialorder %v1010, 11.0
  %vm1119 = vcmp.le.f32.partialorder %v1011, 11.0
  %vm1120 = vcmp.le.f32.partialorder %v1012, 11.0
  %vm1121 = vcmp.le.f32.partialorder %v1013, 11.0
  %vm1122 = vcmp.le.f32.partialorder %v1014, 11.0
  %vm1123 = vcmp.le.f32.partialorder %v1015, 11.0
  %vm1124 = vcmp.le.f32.partialorder %v1016, 11.0
  %vm1125 = vcmp.le.f32.partialorder %v1017, 11.0
  %vm1126 = vcmp.le.f32.partialorder %v1018, 11.0
  %vm1127 = vcmp.le.f32.partialorder %v1019, 11.0
  %vm1128 = vcmp.le.f32.partialorder %v1020, 11.0
  %vm1129 = vcmp.le.f32.partialorder %v1021, 11.0
  %vm1130 = vcmp.le.f32.partialorder %v1022, 11.0
  %vm1131 = vcmp.le.f32.partialorder %v1023, 11.0
  %vm1132 = vcmp.le.f32.partialorder %v1024, 11.0
  %vm1133 = vcmp.le.f32.partialorder %v1025, 11.0
  %vm1134 = vcmp.le.f32.partialorder %v1026, 11.0
  %vm1135 = vcmp.le.f32.partialorder %v1027, 11.0
  %vm1136 = vcmp.le.f32.partialorder %v1028, 11.0
  %vm1137 = vcmp.le.f32.partialorder %v1029, 11.0
  %vm1138 = vcmp.le.f32.partialorder %v1030, 11.0
  %vm1139 = vcmp.le.f32.partialorder %v1031, 11.0
  %vm1140 = vcmp.le.f32.partialorder %v1032, 11.0
  %vm1141 = vcmp.le.f32.partialorder %v1033, 11.0
  %vm1142 = vcmp.le.f32.partialorder %v1034, 11.0
  %vm1143 = vcmp.le.f32.partialorder %v1035, 11.0
  %vm1144 = vmand %vm1072, %vm1108
  %vm1145 = vmand %vm1073, %vm1109
  %vm1146 = vmand %vm1074, %vm1110
  %vm1147 = vmand %vm1075, %vm1111
  %vm1148 = vmand %vm1076, %vm1112
  %vm1149 = vmand %vm1077, %vm1113
  %vm1150 = vmand %vm1078, %vm1114
  %vm1151 = vmand %vm1079, %vm1115
  %vm1152 = vmand %vm1080, %vm1116
  %vm1153 = vmand %vm1081, %vm1117
  %vm1154 = vmand %vm1082, %vm1118
  %vm1155 = vmand %vm1083, %vm1119
  %vm1156 = vmand %vm1084, %vm1120
  %vm1157 = vmand %vm1085, %vm1121
  %vm1158 = vmand %vm1086, %vm1122
  %vm1159 = vmand %vm1087, %vm1123
  %vm1160 = vmand %vm1088, %vm1124
  %vm1161 = vmand %vm1089, %vm1125
  %vm1162 = vmand %vm1090, %vm1126
  %vm1163 = vmand %vm1091, %vm1127
  %vm1164 = vmand %vm1092, %vm1128
  %vm1165 = vmand %vm1093, %vm1129
  %vm1166 = vmand %vm1094, %vm1130
  %vm1167 = vmand %vm1095, %vm1131
  %vm1168 = vmand %vm1096, %vm1132
  %vm1169 = vmand %vm1097, %vm1133
  %vm1170 = vmand %vm1098, %vm1134
  %vm1171 = vmand %vm1099, %vm1135
  %vm1172 = vmand %vm1100, %vm1136
  %vm1173 = vmand %vm1101, %vm1137
  %vm1174 = vmand %vm1102, %vm1138
  %vm1175 = vmand %vm1103, %vm1139
  %vm1176 = vmand %vm1104, %vm1140
  %vm1177 = vmand %vm1105, %vm1141
  %vm1178 = vmand %vm1106, %vm1142
  %vm1179 = vmand %vm1107, %vm1143
  %v1180 = vadd.f32 %v820, 0.0
  %v1181 = vadd.f32 %v821, 0.0
  %v1182 = vadd.f32 %v822, 0.0
  %v1183 = vadd.f32 %v823, 0.0
  %v1184 = vadd.f32 %v824, 0.0
  %v1185 = vadd.f32 %v825, 0.0
  %v1186 = vadd.f32 %v826, 0.0
  %v1187 = vadd.f32 %v827, 0.0
  %v1188 = vadd.f32 %v828, 0.0
  %v1189 = vadd.f32 %v829, 0.0
  %v1190 = vadd.f32 %v830, 0.0
  %v1191 = vadd.f32 %v831, 0.0
  %v1192 = vadd.f32 %v832, 0.0
  %v1193 = vadd.f32 %v833, 0.0
  %v1194 = vadd.f32 %v834, 0.0
  %v1195 = vadd.f32 %v835, 0.0
  %v1196 = vadd.f32 %v836, 0.0
  %v1197 = vadd.f32 %v837, 0.0
  %v1198 = vadd.f32 %v838, 0.0
  %v1199 = vadd.f32 %v839, 0.0
  %v1200 = vadd.f32 %v840, 0.0
  %v1201 = vadd.f32 %v841, 0.0
  %v1202 = vadd.f32 %v842, 0.0
  %v1203 = vadd.f32 %v843, 0.0
  %v1204 = vadd.f32 %v844, 0.0
  %v1205 = vadd.f32 %v845, 0.0
  %v1206 = vadd.f32 %v846, 0.0
  %v1207 = vadd.f32 %v847, 0.0
  %v1208 = vadd.f32 %v848, 0.0
  %v1209 = vadd.f32 %v849, 0.0
  %v1210 = vadd.f32 %v850, 0.0
  %v1211 = vadd.f32 %v851, 0.0
  %v1212 = vadd.f32 %v852, 0.0
  %v1213 = vadd.f32 %v853, 0.0
  %v1214 = vadd.f32 %v854, 0.0
  %v1215 = vadd.f32 %v855, 0.0
  %vm1216 = vcmp.ge.f32.partialorder %v1180, 0.0
  %vm1217 = vcmp.ge.f32.partialorder %v1181, 0.0
  %vm1218 = vcmp.ge.f32.partialorder %v1182, 0.0
  %vm1219 = vcmp.ge.f32.partialorder %v1183, 0.0
  %vm1220 = vcmp.ge.f32.partialorder %v1184, 0.0
  %vm1221 = vcmp.ge.f32.partialorder %v1185, 0.0
  %vm1222 = vcmp.ge.f32.partialorder %v1186, 0.0
  %vm1223 = vcmp.ge.f32.partialorder %v1187, 0.0
  %vm1224 = vcmp.ge.f32.partialorder %v1188, 0.0
  %vm1225 = vcmp.ge.f32.partialorder %v1189, 0.0
  %vm1226 = vcmp.ge.f32.partialorder %v1190, 0.0
  %vm1227 = vcmp.ge.f32.partialorder %v1191, 0.0
  %vm1228 = vcmp.ge.f32.partialorder %v1192, 0.0
  %vm1229 = vcmp.ge.f32.partialorder %v1193, 0.0
  %vm1230 = vcmp.ge.f32.partialorder %v1194, 0.0
  %vm1231 = vcmp.ge.f32.partialorder %v1195, 0.0
  %vm1232 = vcmp.ge.f32.partialorder %v1196, 0.0
  %vm1233 = vcmp.ge.f32.partialorder %v1197, 0.0
  %vm1234 = vcmp.ge.f32.partialorder %v1198, 0.0
  %vm1235 = vcmp.ge.f32.partialorder %v1199, 0.0
  %vm1236 = vcmp.ge.f32.partialorder %v1200, 0.0
  %vm1237 = vcmp.ge.f32.partialorder %v1201, 0.0
  %vm1238 = vcmp.ge.f32.partialorder %v1202, 0.0
  %vm1239 = vcmp.ge.f32.partialorder %v1203, 0.0
  %vm1240 = vcmp.ge.f32.partialorder %v1204, 0.0
  %vm1241 = vcmp.ge.f32.partialorder %v1205, 0.0
  %vm1242 = vcmp.ge.f32.partialorder %v1206, 0.0
  %vm1243 = vcmp.ge.f32.partialorder %v1207, 0.0
  %vm1244 = vcmp.ge.f32.partialorder %v1208, 0.0
  %vm1245 = vcmp.ge.f32.partialorder %v1209, 0.0
  %vm1246 = vcmp.ge.f32.partialorder %v1210, 0.0
  %vm1247 = vcmp.ge.f32.partialorder %v1211, 0.0
  %vm1248 = vcmp.ge.f32.partialorder %v1212, 0.0
  %vm1249 = vcmp.ge.f32.partialorder %v1213, 0.0
  %vm1250 = vcmp.ge.f32.partialorder %v1214, 0.0
  %vm1251 = vcmp.ge.f32.partialorder %v1215, 0.0
  %vm1252 = vmand %vm964, %vm1216
  %vm1253 = vmand %vm965, %vm1217
  %vm1254 = vmand %vm966, %vm1218
  %vm1255 = vmand %vm967, %vm1219
  %vm1256 = vmand %vm968, %vm1220
  %vm1257 = vmand %vm969, %vm1221
  %vm1258 = vmand %vm970, %vm1222
  %vm1259 = vmand %vm971, %vm1223
  %vm1260 = vmand %vm972, %vm1224
  %vm1261 = vmand %vm973, %vm1225
  %vm1262 = vmand %vm974, %vm1226
  %vm1263 = vmand %vm975, %vm1227
  %vm1264 = vmand %vm976, %vm1228
  %vm1265 = vmand %vm977, %vm1229
  %vm1266 = vmand %vm978, %vm1230
  %vm1267 = vmand %vm979, %vm1231
  %vm1268 = vmand %vm980, %vm1232
  %vm1269 = vmand %vm981, %vm1233
  %vm1270 = vmand %vm982, %vm1234
  %vm1271 = vmand %vm983, %vm1235
  %vm1272 = vmand %vm984, %vm1236
  %vm1273 = vmand %vm985, %vm1237
  %vm1274 = vmand %vm986, %vm1238
  %vm1275 = vmand %vm987, %vm1239
  %vm1276 = vmand %vm988, %vm1240
  %vm1277 = vmand %vm989, %vm1241
  %vm1278 = vmand %vm990, %vm1242
  %vm1279 = vmand %vm991, %vm1243
  %vm1280 = vmand %vm992, %vm1244
  %vm1281 = vmand %vm993, %vm1245
  %vm1282 = vmand %vm994, %vm1246
  %vm1283 = vmand %vm995, %vm1247
  %vm1284 = vmand %vm996, %vm1248
  %vm1285 = vmand %vm997, %vm1249
  %vm1286 = vmand %vm998, %vm1250
  %vm1287 = vmand %vm999, %vm1251
  %vm1288 = vcmp.le.f32.partialorder %v1180, 11.0
  %vm1289 = vcmp.le.f32.partialorder %v1181, 11.0
  %vm1290 = vcmp.le.f32.partialorder %v1182, 11.0
  %vm1291 = vcmp.le.f32.partialorder %v1183, 11.0
  %vm1292 = vcmp.le.f32.partialorder %v1184, 11.0
  %vm1293 = vcmp.le.f32.partialorder %v1185, 11.0
  %vm1294 = vcmp.le.f32.partialorder %v1186, 11.0
  %vm1295 = vcmp.le.f32.partialorder %v1187, 11.0
  %vm1296 = vcmp.le.f32.partialorder %v1188, 11.0
  %vm1297 = vcmp.le.f32.partialorder %v1189, 11.0
  %vm1298 = vcmp.le.f32.partialorder %v1190, 11.0
  %vm1299 = vcmp.le.f32.partialorder %v1191, 11.0
  %vm1300 = vcmp.le.f32.partialorder %v1192, 11.0
  %vm1301 = vcmp.le.f32.partialorder %v1193, 11.0
  %vm1302 = vcmp.le.f32.partialorder %v1194, 11.0
  %vm1303 = vcmp.le.f32.partialorder %v1195, 11.0
  %vm1304 = vcmp.le.f32.partialorder %v1196, 11.0
  %vm1305 = vcmp.le.f32.partialorder %v1197, 11.0
  %vm1306 = vcmp.le.f32.partialorder %v1198, 11.0
  %vm1307 = vcmp.le.f32.partialorder %v1199, 11.0
  %vm1308 = vcmp.le.f32.partialorder %v1200, 11.0
  %vm1309 = vcmp.le.f32.partialorder %v1201, 11.0
  %vm1310 = vcmp.le.f32.partialorder %v1202, 11.0
  %vm1311 = vcmp.le.f32.partialorder %v1203, 11.0
  %vm1312 = vcmp.le.f32.partialorder %v1204, 11.0
  %vm1313 = vcmp.le.f32.partialorder %v1205, 11.0
  %vm1314 = vcmp.le.f32.partialorder %v1206, 11.0
  %vm1315 = vcmp.le.f32.partialorder %v1207, 11.0
  %vm1316 = vcmp.le.f32.partialorder %v1208, 11.0
  %vm1317 = vcmp.le.f32.partialorder %v1209, 11.0
  %vm1318 = vcmp.le.f32.partialorder %v1210, 11.0
  %vm1319 = vcmp.le.f32.partialorder %v1211, 11.0
  %vm1320 = vcmp.le.f32.partialorder %v1212, 11.0
  %vm1321 = vcmp.le.f32.partialorder %v1213, 11.0
  %vm1322 = vcmp.le.f32.partialorder %v1214, 11.0
  %vm1323 = vcmp.le.f32.partialorder %v1215, 11.0
  %vm1324 = vmand %vm1252, %vm1288
  %vm1325 = vmand %vm1253, %vm1289
  %vm1326 = vmand %vm1254, %vm1290
  %vm1327 = vmand %vm1255, %vm1291
  %vm1328 = vmand %vm1256, %vm1292
  %vm1329 = vmand %vm1257, %vm1293
  %vm1330 = vmand %vm1258, %vm1294
  %vm1331 = vmand %vm1259, %vm1295
  %vm1332 = vmand %vm1260, %vm1296
  %vm1333 = vmand %vm1261, %vm1297
  %vm1334 = vmand %vm1262, %vm1298
  %vm1335 = vmand %vm1263, %vm1299
  %vm1336 = vmand %vm1264, %vm1300
  %vm1337 = vmand %vm1265, %vm1301
  %vm1338 = vmand %vm1266, %vm1302
  %vm1339 = vmand %vm1267, %vm1303
  %vm1340 = vmand %vm1268, %vm1304
  %vm1341 = vmand %vm1269, %vm1305
  %vm1342 = vmand %vm1270, %vm1306
  %vm1343 = vmand %vm1271, %vm1307
  %vm1344 = vmand %vm1272, %vm1308
  %vm1345 = vmand %vm1273, %vm1309
  %vm1346 = vmand %vm1274, %vm1310
  %vm1347 = vmand %vm1275, %vm1311
  %vm1348 = vmand %vm1276, %vm1312
  %vm1349 = vmand %vm1277, %vm1313
  %vm1350 = vmand %vm1278, %vm1314
  %vm1351 = vmand %vm1279, %vm1315
  %vm1352 = vmand %vm1280, %vm1316
  %vm1353 = vmand %vm1281, %vm1317
  %vm1354 = vmand %vm1282, %vm1318
  %vm1355 = vmand %vm1283, %vm1319
  %vm1356 = vmand %vm1284, %vm1320
  %vm1357 = vmand %vm1285, %vm1321
  %vm1358 = vmand %vm1286, %vm1322
  %vm1359 = vmand %vm1287, %vm1323
  %v1360 = vadd.f32 %v820, 1.0
  %v1361 = vadd.f32 %v821, 1.0
  %v1362 = vadd.f32 %v822, 1.0
  %v1363 = vadd.f32 %v823, 1.0
  %v1364 = vadd.f32 %v824, 1.0
  %v1365 = vadd.f32 %v825, 1.0
  %v1366 = vadd.f32 %v826, 1.0
  %v1367 = vadd.f32 %v827, 1.0
  %v1368 = vadd.f32 %v828, 1.0
  %v1369 = vadd.f32 %v829, 1.0
  %v1370 = vadd.f32 %v830, 1.0
  %v1371 = vadd.f32 %v831, 1.0
  %v1372 = vadd.f32 %v832, 1.0
  %v1373 = vadd.f32 %v833, 1.0
  %v1374 = vadd.f32 %v834, 1.0
  %v1375 = vadd.f32 %v835, 1.0
  %v1376 = vadd.f32 %v836, 1.0
  %v1377 = vadd.f32 %v837, 1.0
  %v1378 = vadd.f32 %v838, 1.0
  %v1379 = vadd.f32 %v839, 1.0
  %v1380 = vadd.f32 %v840, 1.0
  %v1381 = vadd.f32 %v841, 1.0
  %v1382 = vadd.f32 %v842, 1.0
  %v1383 = vadd.f32 %v843, 1.0
  %v1384 = vadd.f32 %v844, 1.0
  %v1385 = vadd.f32 %v845, 1.0
  %v1386 = vadd.f32 %v846, 1.0
  %v1387 = vadd.f32 %v847, 1.0
  %v1388 = vadd.f32 %v848, 1.0
  %v1389 = vadd.f32 %v849, 1.0
  %v1390 = vadd.f32 %v850, 1.0
  %v1391 = vadd.f32 %v851, 1.0
  %v1392 = vadd.f32 %v852, 1.0
  %v1393 = vadd.f32 %v853, 1.0
  %v1394 = vadd.f32 %v854, 1.0
  %v1395 = vadd.f32 %v855, 1.0
  %vm1396 = vcmp.ge.f32.partialorder %v1360, 0.0
  %vm1397 = vcmp.ge.f32.partialorder %v1361, 0.0
  %vm1398 = vcmp.ge.f32.partialorder %v1362, 0.0
  %vm1399 = vcmp.ge.f32.partialorder %v1363, 0.0
  %vm1400 = vcmp.ge.f32.partialorder %v1364, 0.0
  %vm1401 = vcmp.ge.f32.partialorder %v1365, 0.0
  %vm1402 = vcmp.ge.f32.partialorder %v1366, 0.0
  %vm1403 = vcmp.ge.f32.partialorder %v1367, 0.0
  %vm1404 = vcmp.ge.f32.partialorder %v1368, 0.0
  %vm1405 = vcmp.ge.f32.partialorder %v1369, 0.0
  %vm1406 = vcmp.ge.f32.partialorder %v1370, 0.0
  %vm1407 = vcmp.ge.f32.partialorder %v1371, 0.0
  %vm1408 = vcmp.ge.f32.partialorder %v1372, 0.0
  %vm1409 = vcmp.ge.f32.partialorder %v1373, 0.0
  %vm1410 = vcmp.ge.f32.partialorder %v1374, 0.0
  %vm1411 = vcmp.ge.f32.partialorder %v1375, 0.0
  %vm1412 = vcmp.ge.f32.partialorder %v1376, 0.0
  %vm1413 = vcmp.ge.f32.partialorder %v1377, 0.0
  %vm1414 = vcmp.ge.f32.partialorder %v1378, 0.0
  %vm1415 = vcmp.ge.f32.partialorder %v1379, 0.0
  %vm1416 = vcmp.ge.f32.partialorder %v1380, 0.0
  %vm1417 = vcmp.ge.f32.partialorder %v1381, 0.0
  %vm1418 = vcmp.ge.f32.partialorder %v1382, 0.0
  %vm1419 = vcmp.ge.f32.partialorder %v1383, 0.0
  %vm1420 = vcmp.ge.f32.partialorder %v1384, 0.0
  %vm1421 = vcmp.ge.f32.partialorder %v1385, 0.0
  %vm1422 = vcmp.ge.f32.partialorder %v1386, 0.0
  %vm1423 = vcmp.ge.f32.partialorder %v1387, 0.0
  %vm1424 = vcmp.ge.f32.partialorder %v1388, 0.0
  %vm1425 = vcmp.ge.f32.partialorder %v1389, 0.0
  %vm1426 = vcmp.ge.f32.partialorder %v1390, 0.0
  %vm1427 = vcmp.ge.f32.partialorder %v1391, 0.0
  %vm1428 = vcmp.ge.f32.partialorder %v1392, 0.0
  %vm1429 = vcmp.ge.f32.partialorder %v1393, 0.0
  %vm1430 = vcmp.ge.f32.partialorder %v1394, 0.0
  %vm1431 = vcmp.ge.f32.partialorder %v1395, 0.0
  %vm1432 = vmand %vm964, %vm1396
  %vm1433 = vmand %vm965, %vm1397
  %vm1434 = vmand %vm966, %vm1398
  %vm1435 = vmand %vm967, %vm1399
  %vm1436 = vmand %vm968, %vm1400
  %vm1437 = vmand %vm969, %vm1401
  %vm1438 = vmand %vm970, %vm1402
  %vm1439 = vmand %vm971, %vm1403
  %vm1440 = vmand %vm972, %vm1404
  %vm1441 = vmand %vm973, %vm1405
  %vm1442 = vmand %vm974, %vm1406
  %vm1443 = vmand %vm975, %vm1407
  %vm1444 = vmand %vm976, %vm1408
  %vm1445 = vmand %vm977, %vm1409
  %vm1446 = vmand %vm978, %vm1410
  %vm1447 = vmand %vm979, %vm1411
  %vm1448 = vmand %vm980, %vm1412
  %vm1449 = vmand %vm981, %vm1413
  %vm1450 = vmand %vm982, %vm1414
  %vm1451 = vmand %vm983, %vm1415
  %vm1452 = vmand %vm984, %vm1416
  %vm1453 = vmand %vm985, %vm1417
  %vm1454 = vmand %vm986, %vm1418
  %vm1455 = vmand %vm987, %vm1419
  %vm1456 = vmand %vm988, %vm1420
  %vm1457 = vmand %vm989, %vm1421
  %vm1458 = vmand %vm990, %vm1422
  %vm1459 = vmand %vm991, %vm1423
  %vm1460 = vmand %vm992, %vm1424
  %vm1461 = vmand %vm993, %vm1425
  %vm1462 = vmand %vm994, %vm1426
  %vm1463 = vmand %vm995, %vm1427
  %vm1464 = vmand %vm996, %vm1428
  %vm1465 = vmand %vm997, %vm1429
  %vm1466 = vmand %vm998, %vm1430
  %vm1467 = vmand %vm999, %vm1431
  %vm1468 = vcmp.le.f32.partialorder %v1360, 11.0
  %vm1469 = vcmp.le.f32.partialorder %v1361, 11.0
  %vm1470 = vcmp.le.f32.partialorder %v1362, 11.0
  %vm1471 = vcmp.le.f32.partialorder %v1363, 11.0
  %vm1472 = vcmp.le.f32.partialorder %v1364, 11.0
  %vm1473 = vcmp.le.f32.partialorder %v1365, 11.0
  %vm1474 = vcmp.le.f32.partialorder %v1366, 11.0
  %vm1475 = vcmp.le.f32.partialorder %v1367, 11.0
  %vm1476 = vcmp.le.f32.partialorder %v1368, 11.0
  %vm1477 = vcmp.le.f32.partialorder %v1369, 11.0
  %vm1478 = vcmp.le.f32.partialorder %v1370, 11.0
  %vm1479 = vcmp.le.f32.partialorder %v1371, 11.0
  %vm1480 = vcmp.le.f32.partialorder %v1372, 11.0
  %vm1481 = vcmp.le.f32.partialorder %v1373, 11.0
  %vm1482 = vcmp.le.f32.partialorder %v1374, 11.0
  %vm1483 = vcmp.le.f32.partialorder %v1375, 11.0
  %vm1484 = vcmp.le.f32.partialorder %v1376, 11.0
  %vm1485 = vcmp.le.f32.partialorder %v1377, 11.0
  %vm1486 = vcmp.le.f32.partialorder %v1378, 11.0
  %vm1487 = vcmp.le.f32.partialorder %v1379, 11.0
  %vm1488 = vcmp.le.f32.partialorder %v1380, 11.0
  %vm1489 = vcmp.le.f32.partialorder %v1381, 11.0
  %vm1490 = vcmp.le.f32.partialorder %v1382, 11.0
  %vm1491 = vcmp.le.f32.partialorder %v1383, 11.0
  %vm1492 = vcmp.le.f32.partialorder %v1384, 11.0
  %vm1493 = vcmp.le.f32.partialorder %v1385, 11.0
  %vm1494 = vcmp.le.f32.partialorder %v1386, 11.0
  %vm1495 = vcmp.le.f32.partialorder %v1387, 11.0
  %vm1496 = vcmp.le.f32.partialorder %v1388, 11.0
  %vm1497 = vcmp.le.f32.partialorder %v1389, 11.0
  %vm1498 = vcmp.le.f32.partialorder %v1390, 11.0
  %vm1499 = vcmp.le.f32.partialorder %v1391, 11.0
  %vm1500 = vcmp.le.f32.partialorder %v1392, 11.0
  %vm1501 = vcmp.le.f32.partialorder %v1393, 11.0
  %vm1502 = vcmp.le.f32.partialorder %v1394, 11.0
  %vm1503 = vcmp.le.f32.partialorder %v1395, 11.0
  %vm1504 = vmand %vm1432, %vm1468
  %vm1505 = vmand %vm1433, %vm1469
  %vm1506 = vmand %vm1434, %vm1470
  %vm1507 = vmand %vm1435, %vm1471
  %vm1508 = vmand %vm1436, %vm1472
  %vm1509 = vmand %vm1437, %vm1473
  %vm1510 = vmand %vm1438, %vm1474
  %vm1511 = vmand %vm1439, %vm1475
  %vm1512 = vmand %vm1440, %vm1476
  %vm1513 = vmand %vm1441, %vm1477
  %vm1514 = vmand %vm1442, %vm1478
  %vm1515 = vmand %vm1443, %vm1479
  %vm1516 = vmand %vm1444, %vm1480
  %vm1517 = vmand %vm1445, %vm1481
  %vm1518 = vmand %vm1446, %vm1482
  %vm1519 = vmand %vm1447, %vm1483
  %vm1520 = vmand %vm1448, %vm1484
  %vm1521 = vmand %vm1449, %vm1485
  %vm1522 = vmand %vm1450, %vm1486
  %vm1523 = vmand %vm1451, %vm1487
  %vm1524 = vmand %vm1452, %vm1488
  %vm1525 = vmand %vm1453, %vm1489
  %vm1526 = vmand %vm1454, %vm1490
  %vm1527 = vmand %vm1455, %vm1491
  %vm1528 = vmand %vm1456, %vm1492
  %vm1529 = vmand %vm1457, %vm1493
  %vm1530 = vmand %vm1458, %vm1494
  %vm1531 = vmand %vm1459, %vm1495
  %vm1532 = vmand %vm1460, %vm1496
  %vm1533 = vmand %vm1461, %vm1497
  %vm1534 = vmand %vm1462, %vm1498
  %vm1535 = vmand %vm1463, %vm1499
  %vm1536 = vmand %vm1464, %vm1500
  %vm1537 = vmand %vm1465, %vm1501
  %vm1538 = vmand %vm1466, %vm1502
  %vm1539 = vmand %vm1467, %vm1503
  %v1540 = vadd.f32 %v748, 0.0
  %v1541 = vadd.f32 %v749, 0.0
  %v1542 = vadd.f32 %v750, 0.0
  %v1543 = vadd.f32 %v751, 0.0
  %v1544 = vadd.f32 %v752, 0.0
  %v1545 = vadd.f32 %v753, 0.0
  %v1546 = vadd.f32 %v754, 0.0
  %v1547 = vadd.f32 %v755, 0.0
  %v1548 = vadd.f32 %v756, 0.0
  %v1549 = vadd.f32 %v757, 0.0
  %v1550 = vadd.f32 %v758, 0.0
  %v1551 = vadd.f32 %v759, 0.0
  %v1552 = vadd.f32 %v760, 0.0
  %v1553 = vadd.f32 %v761, 0.0
  %v1554 = vadd.f32 %v762, 0.0
  %v1555 = vadd.f32 %v763, 0.0
  %v1556 = vadd.f32 %v764, 0.0
  %v1557 = vadd.f32 %v765, 0.0
  %v1558 = vadd.f32 %v766, 0.0
  %v1559 = vadd.f32 %v767, 0.0
  %v1560 = vadd.f32 %v768, 0.0
  %v1561 = vadd.f32 %v769, 0.0
  %v1562 = vadd.f32 %v770, 0.0
  %v1563 = vadd.f32 %v771, 0.0
  %v1564 = vadd.f32 %v772, 0.0
  %v1565 = vadd.f32 %v773, 0.0
  %v1566 = vadd.f32 %v774, 0.0
  %v1567 = vadd.f32 %v775, 0.0
  %v1568 = vadd.f32 %v776, 0.0
  %v1569 = vadd.f32 %v777, 0.0
  %v1570 = vadd.f32 %v778, 0.0
  %v1571 = vadd.f32 %v779, 0.0
  %v1572 = vadd.f32 %v780, 0.0
  %v1573 = vadd.f32 %v781, 0.0
  %v1574 = vadd.f32 %v782, 0.0
  %v1575 = vadd.f32 %v783, 0.0
  %vm1576 = vcmp.ge.f32.partialorder %v1540, 0.0
  %vm1577 = vcmp.ge.f32.partialorder %v1541, 0.0
  %vm1578 = vcmp.ge.f32.partialorder %v1542, 0.0
  %vm1579 = vcmp.ge.f32.partialorder %v1543, 0.0
  %vm1580 = vcmp.ge.f32.partialorder %v1544, 0.0
  %vm1581 = vcmp.ge.f32.partialorder %v1545, 0.0
  %vm1582 = vcmp.ge.f32.partialorder %v1546, 0.0
  %vm1583 = vcmp.ge.f32.partialorder %v1547, 0.0
  %vm1584 = vcmp.ge.f32.partialorder %v1548, 0.0
  %vm1585 = vcmp.ge.f32.partialorder %v1549, 0.0
  %vm1586 = vcmp.ge.f32.partialorder %v1550, 0.0
  %vm1587 = vcmp.ge.f32.partialorder %v1551, 0.0
  %vm1588 = vcmp.ge.f32.partialorder %v1552, 0.0
  %vm1589 = vcmp.ge.f32.partialorder %v1553, 0.0
  %vm1590 = vcmp.ge.f32.partialorder %v1554, 0.0
  %vm1591 = vcmp.ge.f32.partialorder %v1555, 0.0
  %vm1592 = vcmp.ge.f32.partialorder %v1556, 0.0
  %vm1593 = vcmp.ge.f32.partialorder %v1557, 0.0
  %vm1594 = vcmp.ge.f32.partialorder %v1558, 0.0
  %vm1595 = vcmp.ge.f32.partialorder %v1559, 0.0
  %vm1596 = vcmp.ge.f32.partialorder %v1560, 0.0
  %vm1597 = vcmp.ge.f32.partialorder %v1561, 0.0
  %vm1598 = vcmp.ge.f32.partialorder %v1562, 0.0
  %vm1599 = vcmp.ge.f32.partialorder %v1563, 0.0
  %vm1600 = vcmp.ge.f32.partialorder %v1564, 0.0
  %vm1601 = vcmp.ge.f32.partialorder %v1565, 0.0
  %vm1602 = vcmp.ge.f32.partialorder %v1566, 0.0
  %vm1603 = vcmp.ge.f32.partialorder %v1567, 0.0
  %vm1604 = vcmp.ge.f32.partialorder %v1568, 0.0
  %vm1605 = vcmp.ge.f32.partialorder %v1569, 0.0
  %vm1606 = vcmp.ge.f32.partialorder %v1570, 0.0
  %vm1607 = vcmp.ge.f32.partialorder %v1571, 0.0
  %vm1608 = vcmp.ge.f32.partialorder %v1572, 0.0
  %vm1609 = vcmp.ge.f32.partialorder %v1573, 0.0
  %vm1610 = vcmp.ge.f32.partialorder %v1574, 0.0
  %vm1611 = vcmp.ge.f32.partialorder %v1575, 0.0
  %vm1612 = vcmp.le.f32.partialorder %v1540, 11.0
  %vm1613 = vcmp.le.f32.partialorder %v1541, 11.0
  %vm1614 = vcmp.le.f32.partialorder %v1542, 11.0
  %vm1615 = vcmp.le.f32.partialorder %v1543, 11.0
  %vm1616 = vcmp.le.f32.partialorder %v1544, 11.0
  %vm1617 = vcmp.le.f32.partialorder %v1545, 11.0
  %vm1618 = vcmp.le.f32.partialorder %v1546, 11.0
  %vm1619 = vcmp.le.f32.partialorder %v1547, 11.0
  %vm1620 = vcmp.le.f32.partialorder %v1548, 11.0
  %vm1621 = vcmp.le.f32.partialorder %v1549, 11.0
  %vm1622 = vcmp.le.f32.partialorder %v1550, 11.0
  %vm1623 = vcmp.le.f32.partialorder %v1551, 11.0
  %vm1624 = vcmp.le.f32.partialorder %v1552, 11.0
  %vm1625 = vcmp.le.f32.partialorder %v1553, 11.0
  %vm1626 = vcmp.le.f32.partialorder %v1554, 11.0
  %vm1627 = vcmp.le.f32.partialorder %v1555, 11.0
  %vm1628 = vcmp.le.f32.partialorder %v1556, 11.0
  %vm1629 = vcmp.le.f32.partialorder %v1557, 11.0
  %vm1630 = vcmp.le.f32.partialorder %v1558, 11.0
  %vm1631 = vcmp.le.f32.partialorder %v1559, 11.0
  %vm1632 = vcmp.le.f32.partialorder %v1560, 11.0
  %vm1633 = vcmp.le.f32.partialorder %v1561, 11.0
  %vm1634 = vcmp.le.f32.partialorder %v1562, 11.0
  %vm1635 = vcmp.le.f32.partialorder %v1563, 11.0
  %vm1636 = vcmp.le.f32.partialorder %v1564, 11.0
  %vm1637 = vcmp.le.f32.partialorder %v1565, 11.0
  %vm1638 = vcmp.le.f32.partialorder %v1566, 11.0
  %vm1639 = vcmp.le.f32.partialorder %v1567, 11.0
  %vm1640 = vcmp.le.f32.partialorder %v1568, 11.0
  %vm1641 = vcmp.le.f32.partialorder %v1569, 11.0
  %vm1642 = vcmp.le.f32.partialorder %v1570, 11.0
  %vm1643 = vcmp.le.f32.partialorder %v1571, 11.0
  %vm1644 = vcmp.le.f32.partialorder %v1572, 11.0
  %vm1645 = vcmp.le.f32.partialorder %v1573, 11.0
  %vm1646 = vcmp.le.f32.partialorder %v1574, 11.0
  %vm1647 = vcmp.le.f32.partialorder %v1575, 11.0
  %vm1648 = vmand %vm1576, %vm1612
  %vm1649 = vmand %vm1577, %vm1613
  %vm1650 = vmand %vm1578, %vm1614
  %vm1651 = vmand %vm1579, %vm1615
  %vm1652 = vmand %vm1580, %vm1616
  %vm1653 = vmand %vm1581, %vm1617
  %vm1654 = vmand %vm1582, %vm1618
  %vm1655 = vmand %vm1583, %vm1619
  %vm1656 = vmand %vm1584, %vm1620
  %vm1657 = vmand %vm1585, %vm1621
  %vm1658 = vmand %vm1586, %vm1622
  %vm1659 = vmand %vm1587, %vm1623
  %vm1660 = vmand %vm1588, %vm1624
  %vm1661 = vmand %vm1589, %vm1625
  %vm1662 = vmand %vm1590, %vm1626
  %vm1663 = vmand %vm1591, %vm1627
  %vm1664 = vmand %vm1592, %vm1628
  %vm1665 = vmand %vm1593, %vm1629
  %vm1666 = vmand %vm1594, %vm1630
  %vm1667 = vmand %vm1595, %vm1631
  %vm1668 = vmand %vm1596, %vm1632
  %vm1669 = vmand %vm1597, %vm1633
  %vm1670 = vmand %vm1598, %vm1634
  %vm1671 = vmand %vm1599, %vm1635
  %vm1672 = vmand %vm1600, %vm1636
  %vm1673 = vmand %vm1601, %vm1637
  %vm1674 = vmand %vm1602, %vm1638
  %vm1675 = vmand %vm1603, %vm1639
  %vm1676 = vmand %vm1604, %vm1640
  %vm1677 = vmand %vm1605, %vm1641
  %vm1678 = vmand %vm1606, %vm1642
  %vm1679 = vmand %vm1607, %vm1643
  %vm1680 = vmand %vm1608, %vm1644
  %vm1681 = vmand %vm1609, %vm1645
  %vm1682 = vmand %vm1610, %vm1646
  %vm1683 = vmand %vm1611, %vm1647
  %vm1684 = vmand %vm1648, %vm1036
  %vm1685 = vmand %vm1649, %vm1037
  %vm1686 = vmand %vm1650, %vm1038
  %vm1687 = vmand %vm1651, %vm1039
  %vm1688 = vmand %vm1652, %vm1040
  %vm1689 = vmand %vm1653, %vm1041
  %vm1690 = vmand %vm1654, %vm1042
  %vm1691 = vmand %vm1655, %vm1043
  %vm1692 = vmand %vm1656, %vm1044
  %vm1693 = vmand %vm1657, %vm1045
  %vm1694 = vmand %vm1658, %vm1046
  %vm1695 = vmand %vm1659, %vm1047
  %vm1696 = vmand %vm1660, %vm1048
  %vm1697 = vmand %vm1661, %vm1049
  %vm1698 = vmand %vm1662, %vm1050
  %vm1699 = vmand %vm1663, %vm1051
  %vm1700 = vmand %vm1664, %vm1052
  %vm1701 = vmand %vm1665, %vm1053
  %vm1702 = vmand %vm1666, %vm1054
  %vm1703 = vmand %vm1667, %vm1055
  %vm1704 = vmand %vm1668, %vm1056
  %vm1705 = vmand %vm1669, %vm1057
  %vm1706 = vmand %vm1670, %vm1058
  %vm1707 = vmand %vm1671, %vm1059
  %vm1708 = vmand %vm1672, %vm1060
  %vm1709 = vmand %vm1673, %vm1061
  %vm1710 = vmand %vm1674, %vm1062
  %vm1711 = vmand %vm1675, %vm1063
  %vm1712 = vmand %vm1676, %vm1064
  %vm1713 = vmand %vm1677, %vm1065
  %vm1714 = vmand %vm1678, %vm1066
  %vm1715 = vmand %vm1679, %vm1067
  %vm1716 = vmand %vm1680, %vm1068
  %vm1717 = vmand %vm1681, %vm1069
  %vm1718 = vmand %vm1682, %vm1070
  %vm1719 = vmand %vm1683, %vm1071
  %vm1720 = vmand %vm1684, %vm1108
  %vm1721 = vmand %vm1685, %vm1109
  %vm1722 = vmand %vm1686, %vm1110
  %vm1723 = vmand %vm1687, %vm1111
  %vm1724 = vmand %vm1688, %vm1112
  %vm1725 = vmand %vm1689, %vm1113
  %vm1726 = vmand %vm1690, %vm1114
  %vm1727 = vmand %vm1691, %vm1115
  %vm1728 = vmand %vm1692, %vm1116
  %vm1729 = vmand %vm1693, %vm1117
  %vm1730 = vmand %vm1694, %vm1118
  %vm1731 = vmand %vm1695, %vm1119
  %vm1732 = vmand %vm1696, %vm1120
  %vm1733 = vmand %vm1697, %vm1121
  %vm1734 = vmand %vm1698, %vm1122
  %vm1735 = vmand %vm1699, %vm1123
  %vm1736 = vmand %vm1700, %vm1124
  %vm1737 = vmand %vm1701, %vm1125
  %vm1738 = vmand %vm1702, %vm1126
  %vm1739 = vmand %vm1703, %vm1127
  %vm1740 = vmand %vm1704, %vm1128
  %vm1741 = vmand %vm1705, %vm1129
  %vm1742 = vmand %vm1706, %vm1130
  %vm1743 = vmand %vm1707, %vm1131
  %vm1744 = vmand %vm1708, %vm1132
  %vm1745 = vmand %vm1709, %vm1133
  %vm1746 = vmand %vm1710, %vm1134
  %vm1747 = vmand %vm1711, %vm1135
  %vm1748 = vmand %vm1712, %vm1136
  %vm1749 = vmand %vm1713, %vm1137
  %vm1750 = vmand %vm1714, %vm1138
  %vm1751 = vmand %vm1715, %vm1139
  %vm1752 = vmand %vm1716, %vm1140
  %vm1753 = vmand %vm1717, %vm1141
  %vm1754 = vmand %vm1718, %vm1142
  %vm1755 = vmand %vm1719, %vm1143
  %vm1756 = vmand %vm1648, %vm1396
  %vm1757 = vmand %vm1649, %vm1397
  %vm1758 = vmand %vm1650, %vm1398
  %vm1759 = vmand %vm1651, %vm1399
  %vm1760 = vmand %vm1652, %vm1400
  %vm1761 = vmand %vm1653, %vm1401
  %vm1762 = vmand %vm1654, %vm1402
  %vm1763 = vmand %vm1655, %vm1403
  %vm1764 = vmand %vm1656, %vm1404
  %vm1765 = vmand %vm1657, %vm1405
  %vm1766 = vmand %vm1658, %vm1406
  %vm1767 = vmand %vm1659, %vm1407
  %vm1768 = vmand %vm1660, %vm1408
  %vm1769 = vmand %vm1661, %vm1409
  %vm1770 = vmand %vm1662, %vm1410
  %vm1771 = vmand %vm1663, %vm1411
  %vm1772 = vmand %vm1664, %vm1412
  %vm1773 = vmand %vm1665, %vm1413
  %vm1774 = vmand %vm1666, %vm1414
  %vm1775 = vmand %vm1667, %vm1415
  %vm1776 = vmand %vm1668, %vm1416
  %vm1777 = vmand %vm1669, %vm1417
  %vm1778 = vmand %vm1670, %vm1418
  %vm1779 = vmand %vm1671, %vm1419
  %vm1780 = vmand %vm1672, %vm1420
  %vm1781 = vmand %vm1673, %vm1421
  %vm1782 = vmand %vm1674, %vm1422
  %vm1783 = vmand %vm1675, %vm1423
  %vm1784 = vmand %vm1676, %vm1424
  %vm1785 = vmand %vm1677, %vm1425
  %vm1786 = vmand %vm1678, %vm1426
  %vm1787 = vmand %vm1679, %vm1427
  %vm1788 = vmand %vm1680, %vm1428
  %vm1789 = vmand %vm1681, %vm1429
  %vm1790 = vmand %vm1682, %vm1430
  %vm1791 = vmand %vm1683, %vm1431
  %vm1792 = vmand %vm1756, %vm1468
  %vm1793 = vmand %vm1757, %vm1469
  %vm1794 = vmand %vm1758, %vm1470
  %vm1795 = vmand %vm1759, %vm1471
  %vm1796 = vmand %vm1760, %vm1472
  %vm1797 = vmand %vm1761, %vm1473
  %vm1798 = vmand %vm1762, %vm1474
  %vm1799 = vmand %vm1763, %vm1475
  %vm1800 = vmand %vm1764, %vm1476
  %vm1801 = vmand %vm1765, %vm1477
  %vm1802 = vmand %vm1766, %vm1478
  %vm1803 = vmand %vm1767, %vm1479
  %vm1804 = vmand %vm1768, %vm1480
  %vm1805 = vmand %vm1769, %vm1481
  %vm1806 = vmand %vm1770, %vm1482
  %vm1807 = vmand %vm1771, %vm1483
  %vm1808 = vmand %vm1772, %vm1484
  %vm1809 = vmand %vm1773, %vm1485
  %vm1810 = vmand %vm1774, %vm1486
  %vm1811 = vmand %vm1775, %vm1487
  %vm1812 = vmand %vm1776, %vm1488
  %vm1813 = vmand %vm1777, %vm1489
  %vm1814 = vmand %vm1778, %vm1490
  %vm1815 = vmand %vm1779, %vm1491
  %vm1816 = vmand %vm1780, %vm1492
  %vm1817 = vmand %vm1781, %vm1493
  %vm1818 = vmand %vm1782, %vm1494
  %vm1819 = vmand %vm1783, %vm1495
  %vm1820 = vmand %vm1784, %vm1496
  %vm1821 = vmand %vm1785, %vm1497
  %vm1822 = vmand %vm1786, %vm1498
  %vm1823 = vmand %vm1787, %vm1499
  %vm1824 = vmand %vm1788, %vm1500
  %vm1825 = vmand %vm1789, %vm1501
  %vm1826 = vmand %vm1790, %vm1502
  %vm1827 = vmand %vm1791, %vm1503
  %v1828 = vadd.f32 %v748, 1.0
  %v1829 = vadd.f32 %v749, 1.0
  %v1830 = vadd.f32 %v750, 1.0
  %v1831 = vadd.f32 %v751, 1.0
  %v1832 = vadd.f32 %v752, 1.0
  %v1833 = vadd.f32 %v753, 1.0
  %v1834 = vadd.f32 %v754, 1.0
  %v1835 = vadd.f32 %v755, 1.0
  %v1836 = vadd.f32 %v756, 1.0
  %v1837 = vadd.f32 %v757, 1.0
  %v1838 = vadd.f32 %v758, 1.0
  %v1839 = vadd.f32 %v759, 1.0
  %v1840 = vadd.f32 %v760, 1.0
  %v1841 = vadd.f32 %v761, 1.0
  %v1842 = vadd.f32 %v762, 1.0
  %v1843 = vadd.f32 %v763, 1.0
  %v1844 = vadd.f32 %v764, 1.0
  %v1845 = vadd.f32 %v765, 1.0
  %v1846 = vadd.f32 %v766, 1.0
  %v1847 = vadd.f32 %v767, 1.0
  %v1848 = vadd.f32 %v768, 1.0
  %v1849 = vadd.f32 %v769, 1.0
  %v1850 = vadd.f32 %v770, 1.0
  %v1851 = vadd.f32 %v771, 1.0
  %v1852 = vadd.f32 %v772, 1.0
  %v1853 = vadd.f32 %v773, 1.0
  %v1854 = vadd.f32 %v774, 1.0
  %v1855 = vadd.f32 %v775, 1.0
  %v1856 = vadd.f32 %v776, 1.0
  %v1857 = vadd.f32 %v777, 1.0
  %v1858 = vadd.f32 %v778, 1.0
  %v1859 = vadd.f32 %v779, 1.0
  %v1860 = vadd.f32 %v780, 1.0
  %v1861 = vadd.f32 %v781, 1.0
  %v1862 = vadd.f32 %v782, 1.0
  %v1863 = vadd.f32 %v783, 1.0
  %vm1864 = vcmp.ge.f32.partialorder %v1828, 0.0
  %vm1865 = vcmp.ge.f32.partialorder %v1829, 0.0
  %vm1866 = vcmp.ge.f32.partialorder %v1830, 0.0
  %vm1867 = vcmp.ge.f32.partialorder %v1831, 0.0
  %vm1868 = vcmp.ge.f32.partialorder %v1832, 0.0
  %vm1869 = vcmp.ge.f32.partialorder %v1833, 0.0
  %vm1870 = vcmp.ge.f32.partialorder %v1834, 0.0
  %vm1871 = vcmp.ge.f32.partialorder %v1835, 0.0
  %vm1872 = vcmp.ge.f32.partialorder %v1836, 0.0
  %vm1873 = vcmp.ge.f32.partialorder %v1837, 0.0
  %vm1874 = vcmp.ge.f32.partialorder %v1838, 0.0
  %vm1875 = vcmp.ge.f32.partialorder %v1839, 0.0
  %vm1876 = vcmp.ge.f32.partialorder %v1840, 0.0
  %vm1877 = vcmp.ge.f32.partialorder %v1841, 0.0
  %vm1878 = vcmp.ge.f32.partialorder %v1842, 0.0
  %vm1879 = vcmp.ge.f32.partialorder %v1843, 0.0
  %vm1880 = vcmp.ge.f32.partialorder %v1844, 0.0
  %vm1881 = vcmp.ge.f32.partialorder %v1845, 0.0
  %vm1882 = vcmp.ge.f32.partialorder %v1846, 0.0
  %vm1883 = vcmp.ge.f32.partialorder %v1847, 0.0
  %vm1884 = vcmp.ge.f32.partialorder %v1848, 0.0
  %vm1885 = vcmp.ge.f32.partialorder %v1849, 0.0
  %vm1886 = vcmp.ge.f32.partialorder %v1850, 0.0
  %vm1887 = vcmp.ge.f32.partialorder %v1851, 0.0
  %vm1888 = vcmp.ge.f32.partialorder %v1852, 0.0
  %vm1889 = vcmp.ge.f32.partialorder %v1853, 0.0
  %vm1890 = vcmp.ge.f32.partialorder %v1854, 0.0
  %vm1891 = vcmp.ge.f32.partialorder %v1855, 0.0
  %vm1892 = vcmp.ge.f32.partialorder %v1856, 0.0
  %vm1893 = vcmp.ge.f32.partialorder %v1857, 0.0
  %vm1894 = vcmp.ge.f32.partialorder %v1858, 0.0
  %vm1895 = vcmp.ge.f32.partialorder %v1859, 0.0
  %vm1896 = vcmp.ge.f32.partialorder %v1860, 0.0
  %vm1897 = vcmp.ge.f32.partialorder %v1861, 0.0
  %vm1898 = vcmp.ge.f32.partialorder %v1862, 0.0
  %vm1899 = vcmp.ge.f32.partialorder %v1863, 0.0
  %vm1900 = vcmp.le.f32.partialorder %v1828, 11.0
  %vm1901 = vcmp.le.f32.partialorder %v1829, 11.0
  %vm1902 = vcmp.le.f32.partialorder %v1830, 11.0
  %vm1903 = vcmp.le.f32.partialorder %v1831, 11.0
  %vm1904 = vcmp.le.f32.partialorder %v1832, 11.0
  %vm1905 = vcmp.le.f32.partialorder %v1833, 11.0
  %vm1906 = vcmp.le.f32.partialorder %v1834, 11.0
  %vm1907 = vcmp.le.f32.partialorder %v1835, 11.0
  %vm1908 = vcmp.le.f32.partialorder %v1836, 11.0
  %vm1909 = vcmp.le.f32.partialorder %v1837, 11.0
  %vm1910 = vcmp.le.f32.partialorder %v1838, 11.0
  %vm1911 = vcmp.le.f32.partialorder %v1839, 11.0
  %vm1912 = vcmp.le.f32.partialorder %v1840, 11.0
  %vm1913 = vcmp.le.f32.partialorder %v1841, 11.0
  %vm1914 = vcmp.le.f32.partialorder %v1842, 11.0
  %vm1915 = vcmp.le.f32.partialorder %v1843, 11.0
  %vm1916 = vcmp.le.f32.partialorder %v1844, 11.0
  %vm1917 = vcmp.le.f32.partialorder %v1845, 11.0
  %vm1918 = vcmp.le.f32.partialorder %v1846, 11.0
  %vm1919 = vcmp.le.f32.partialorder %v1847, 11.0
  %vm1920 = vcmp.le.f32.partialorder %v1848, 11.0
  %vm1921 = vcmp.le.f32.partialorder %v1849, 11.0
  %vm1922 = vcmp.le.f32.partialorder %v1850, 11.0
  %vm1923 = vcmp.le.f32.partialorder %v1851, 11.0
  %vm1924 = vcmp.le.f32.partialorder %v1852, 11.0
  %vm1925 = vcmp.le.f32.partialorder %v1853, 11.0
  %vm1926 = vcmp.le.f32.partialorder %v1854, 11.0
  %vm1927 = vcmp.le.f32.partialorder %v1855, 11.0
  %vm1928 = vcmp.le.f32.partialorder %v1856, 11.0
  %vm1929 = vcmp.le.f32.partialorder %v1857, 11.0
  %vm1930 = vcmp.le.f32.partialorder %v1858, 11.0
  %vm1931 = vcmp.le.f32.partialorder %v1859, 11.0
  %vm1932 = vcmp.le.f32.partialorder %v1860, 11.0
  %vm1933 = vcmp.le.f32.partialorder %v1861, 11.0
  %vm1934 = vcmp.le.f32.partialorder %v1862, 11.0
  %vm1935 = vcmp.le.f32.partialorder %v1863, 11.0
  %vm1936 = vmand %vm1864, %vm1900
  %vm1937 = vmand %vm1865, %vm1901
  %vm1938 = vmand %vm1866, %vm1902
  %vm1939 = vmand %vm1867, %vm1903
  %vm1940 = vmand %vm1868, %vm1904
  %vm1941 = vmand %vm1869, %vm1905
  %vm1942 = vmand %vm1870, %vm1906
  %vm1943 = vmand %vm1871, %vm1907
  %vm1944 = vmand %vm1872, %vm1908
  %vm1945 = vmand %vm1873, %vm1909
  %vm1946 = vmand %vm1874, %vm1910
  %vm1947 = vmand %vm1875, %vm1911
  %vm1948 = vmand %vm1876, %vm1912
  %vm1949 = vmand %vm1877, %vm1913
  %vm1950 = vmand %vm1878, %vm1914
  %vm1951 = vmand %vm1879, %vm1915
  %vm1952 = vmand %vm1880, %vm1916
  %vm1953 = vmand %vm1881, %vm1917
  %vm1954 = vmand %vm1882, %vm1918
  %vm1955 = vmand %vm1883, %vm1919
  %vm1956 = vmand %vm1884, %vm1920
  %vm1957 = vmand %vm1885, %vm1921
  %vm1958 = vmand %vm1886, %vm1922
  %vm1959 = vmand %vm1887, %vm1923
  %vm1960 = vmand %vm1888, %vm1924
  %vm1961 = vmand %vm1889, %vm1925
  %vm1962 = vmand %vm1890, %vm1926
  %vm1963 = vmand %vm1891, %vm1927
  %vm1964 = vmand %vm1892, %vm1928
  %vm1965 = vmand %vm1893, %vm1929
  %vm1966 = vmand %vm1894, %vm1930
  %vm1967 = vmand %vm1895, %vm1931
  %vm1968 = vmand %vm1896, %vm1932
  %vm1969 = vmand %vm1897, %vm1933
  %vm1970 = vmand %vm1898, %vm1934
  %vm1971 = vmand %vm1899, %vm1935
  %vm1972 = vmand %vm1936, %vm1036
  %vm1973 = vmand %vm1937, %vm1037
  %vm1974 = vmand %vm1938, %vm1038
  %vm1975 = vmand %vm1939, %vm1039
  %vm1976 = vmand %vm1940, %vm1040
  %vm1977 = vmand %vm1941, %vm1041
  %vm1978 = vmand %vm1942, %vm1042
  %vm1979 = vmand %vm1943, %vm1043
  %vm1980 = vmand %vm1944, %vm1044
  %vm1981 = vmand %vm1945, %vm1045
  %vm1982 = vmand %vm1946, %vm1046
  %vm1983 = vmand %vm1947, %vm1047
  %vm1984 = vmand %vm1948, %vm1048
  %vm1985 = vmand %vm1949, %vm1049
  %vm1986 = vmand %vm1950, %vm1050
  %vm1987 = vmand %vm1951, %vm1051
  %vm1988 = vmand %vm1952, %vm1052
  %vm1989 = vmand %vm1953, %vm1053
  %vm1990 = vmand %vm1954, %vm1054
  %vm1991 = vmand %vm1955, %vm1055
  %vm1992 = vmand %vm1956, %vm1056
  %vm1993 = vmand %vm1957, %vm1057
  %vm1994 = vmand %vm1958, %vm1058
  %vm1995 = vmand %vm1959, %vm1059
  %vm1996 = vmand %vm1960, %vm1060
  %vm1997 = vmand %vm1961, %vm1061
  %vm1998 = vmand %vm1962, %vm1062
  %vm1999 = vmand %vm1963, %vm1063
  %vm2000 = vmand %vm1964, %vm1064
  %vm2001 = vmand %vm1965, %vm1065
  %vm2002 = vmand %vm1966, %vm1066
  %vm2003 = vmand %vm1967, %vm1067
  %vm2004 = vmand %vm1968, %vm1068
  %vm2005 = vmand %vm1969, %vm1069
  %vm2006 = vmand %vm1970, %vm1070
  %vm2007 = vmand %vm1971, %vm1071
  %vm2008 = vmand %vm1972, %vm1108
  %vm2009 = vmand %vm1973, %vm1109
  %vm2010 = vmand %vm1974, %vm1110
  %vm2011 = vmand %vm1975, %vm1111
  %vm2012 = vmand %vm1976, %vm1112
  %vm2013 = vmand %vm1977, %vm1113
  %vm2014 = vmand %vm1978, %vm1114
  %vm2015 = vmand %vm1979, %vm1115
  %vm2016 = vmand %vm1980, %vm1116
  %vm2017 = vmand %vm1981, %vm1117
  %vm2018 = vmand %vm1982, %vm1118
  %vm2019 = vmand %vm1983, %vm1119
  %vm2020 = vmand %vm1984, %vm1120
  %vm2021 = vmand %vm1985, %vm1121
  %vm2022 = vmand %vm1986, %vm1122
  %vm2023 = vmand %vm1987, %vm1123
  %vm2024 = vmand %vm1988, %vm1124
  %vm2025 = vmand %vm1989, %vm1125
  %vm2026 = vmand %vm1990, %vm1126
  %vm2027 = vmand %vm1991, %vm1127
  %vm2028 = vmand %vm1992, %vm1128
  %vm2029 = vmand %vm1993, %vm1129
  %vm2030 = vmand %vm1994, %vm1130
  %vm2031 = vmand %vm1995, %vm1131
  %vm2032 = vmand %vm1996, %vm1132
  %vm2033 = vmand %vm1997, %vm1133
  %vm2034 = vmand %vm1998, %vm1134
  %vm2035 = vmand %vm1999, %vm1135
  %vm2036 = vmand %vm2000, %vm1136
  %vm2037 = vmand %vm2001, %vm1137
  %vm2038 = vmand %vm2002, %vm1138
  %vm2039 = vmand %vm2003, %vm1139
  %vm2040 = vmand %vm2004, %vm1140
  %vm2041 = vmand %vm2005, %vm1141
  %vm2042 = vmand %vm2006, %vm1142
  %vm2043 = vmand %vm2007, %vm1143
  %vm2044 = vmand %vm1936, %vm1216
  %vm2045 = vmand %vm1937, %vm1217
  %vm2046 = vmand %vm1938, %vm1218
  %vm2047 = vmand %vm1939, %vm1219
  %vm2048 = vmand %vm1940, %vm1220
  %vm2049 = vmand %vm1941, %vm1221
  %vm2050 = vmand %vm1942, %vm1222
  %vm2051 = vmand %vm1943, %vm1223
  %vm2052 = vmand %vm1944, %vm1224
  %vm2053 = vmand %vm1945, %vm1225
  %vm2054 = vmand %vm1946, %vm1226
  %vm2055 = vmand %vm1947, %vm1227
  %vm2056 = vmand %vm1948, %vm1228
  %vm2057 = vmand %vm1949, %vm1229
  %vm2058 = vmand %vm1950, %vm1230
  %vm2059 = vmand %vm1951, %vm1231
  %vm2060 = vmand %vm1952, %vm1232
  %vm2061 = vmand %vm1953, %vm1233
  %vm2062 = vmand %vm1954, %vm1234
  %vm2063 = vmand %vm1955, %vm1235
  %vm2064 = vmand %vm1956, %vm1236
  %vm2065 = vmand %vm1957, %vm1237
  %vm2066 = vmand %vm1958, %vm1238
  %vm2067 = vmand %vm1959, %vm1239
  %vm2068 = vmand %vm1960, %vm1240
  %vm2069 = vmand %vm1961, %vm1241
  %vm2070 = vmand %vm1962, %vm1242
  %vm2071 = vmand %vm1963, %vm1243
  %vm2072 = vmand %vm1964, %vm1244
  %vm2073 = vmand %vm1965, %vm1245
  %vm2074 = vmand %vm1966, %vm1246
  %vm2075 = vmand %vm1967, %vm1247
  %vm2076 = vmand %vm1968, %vm1248
  %vm2077 = vmand %vm1969, %vm1249
  %vm2078 = vmand %vm1970, %vm1250
  %vm2079 = vmand %vm1971, %vm1251
  %vm2080 = vmand %vm2044, %vm1288
  %vm2081 = vmand %vm2045, %vm1289
  %vm2082 = vmand %vm2046, %vm1290
  %vm2083 = vmand %vm2047, %vm1291
  %vm2084 = vmand %vm2048, %vm1292
  %vm2085 = vmand %vm2049, %vm1293
  %vm2086 = vmand %vm2050, %vm1294
  %vm2087 = vmand %vm2051, %vm1295
  %vm2088 = vmand %vm2052, %vm1296
  %vm2089 = vmand %vm2053, %vm1297
  %vm2090 = vmand %vm2054, %vm1298
  %vm2091 = vmand %vm2055, %vm1299
  %vm2092 = vmand %vm2056, %vm1300
  %vm2093 = vmand %vm2057, %vm1301
  %vm2094 = vmand %vm2058, %vm1302
  %vm2095 = vmand %vm2059, %vm1303
  %vm2096 = vmand %vm2060, %vm1304
  %vm2097 = vmand %vm2061, %vm1305
  %vm2098 = vmand %vm2062, %vm1306
  %vm2099 = vmand %vm2063, %vm1307
  %vm2100 = vmand %vm2064, %vm1308
  %vm2101 = vmand %vm2065, %vm1309
  %vm2102 = vmand %vm2066, %vm1310
  %vm2103 = vmand %vm2067, %vm1311
  %vm2104 = vmand %vm2068, %vm1312
  %vm2105 = vmand %vm2069, %vm1313
  %vm2106 = vmand %vm2070, %vm1314
  %vm2107 = vmand %vm2071, %vm1315
  %vm2108 = vmand %vm2072, %vm1316
  %vm2109 = vmand %vm2073, %vm1317
  %vm2110 = vmand %vm2074, %vm1318
  %vm2111 = vmand %vm2075, %vm1319
  %vm2112 = vmand %vm2076, %vm1320
  %vm2113 = vmand %vm2077, %vm1321
  %vm2114 = vmand %vm2078, %vm1322
  %vm2115 = vmand %vm2079, %vm1323
  %vm2116 = vmand %vm1936, %vm1396
  %vm2117 = vmand %vm1937, %vm1397
  %vm2118 = vmand %vm1938, %vm1398
  %vm2119 = vmand %vm1939, %vm1399
  %vm2120 = vmand %vm1940, %vm1400
  %vm2121 = vmand %vm1941, %vm1401
  %vm2122 = vmand %vm1942, %vm1402
  %vm2123 = vmand %vm1943, %vm1403
  %vm2124 = vmand %vm1944, %vm1404
  %vm2125 = vmand %vm1945, %vm1405
  %vm2126 = vmand %vm1946, %vm1406
  %vm2127 = vmand %vm1947, %vm1407
  %vm2128 = vmand %vm1948, %vm1408
  %vm2129 = vmand %vm1949, %vm1409
  %vm2130 = vmand %vm1950, %vm1410
  %vm2131 = vmand %vm1951, %vm1411
  %vm2132 = vmand %vm1952, %vm1412
  %vm2133 = vmand %vm1953, %vm1413
  %vm2134 = vmand %vm1954, %vm1414
  %vm2135 = vmand %vm1955, %vm1415
  %vm2136 = vmand %vm1956, %vm1416
  %vm2137 = vmand %vm1957, %vm1417
  %vm2138 = vmand %vm1958, %vm1418
  %vm2139 = vmand %vm1959, %vm1419
  %vm2140 = vmand %vm1960, %vm1420
  %vm2141 = vmand %vm1961, %vm1421
  %vm2142 = vmand %vm1962, %vm1422
  %vm2143 = vmand %vm1963, %vm1423
  %vm2144 = vmand %vm1964, %vm1424
  %vm2145 = vmand %vm1965, %vm1425
  %vm2146 = vmand %vm1966, %vm1426
  %vm2147 = vmand %vm1967, %vm1427
  %vm2148 = vmand %vm1968, %vm1428
  %vm2149 = vmand %vm1969, %vm1429
  %vm2150 = vmand %vm1970, %vm1430
  %vm2151 = vmand %vm1971, %vm1431
  %vm2152 = vmand %vm2116, %vm1468
  %vm2153 = vmand %vm2117, %vm1469
  %vm2154 = vmand %vm2118, %vm1470
  %vm2155 = vmand %vm2119, %vm1471
  %vm2156 = vmand %vm2120, %vm1472
  %vm2157 = vmand %vm2121, %vm1473
  %vm2158 = vmand %vm2122, %vm1474
  %vm2159 = vmand %vm2123, %vm1475
  %vm2160 = vmand %vm2124, %vm1476
  %vm2161 = vmand %vm2125, %vm1477
  %vm2162 = vmand %vm2126, %vm1478
  %vm2163 = vmand %vm2127, %vm1479
  %vm2164 = vmand %vm2128, %vm1480
  %vm2165 = vmand %vm2129, %vm1481
  %vm2166 = vmand %vm2130, %vm1482
  %vm2167 = vmand %vm2131, %vm1483
  %vm2168 = vmand %vm2132, %vm1484
  %vm2169 = vmand %vm2133, %vm1485
  %vm2170 = vmand %vm2134, %vm1486
  %vm2171 = vmand %vm2135, %vm1487
  %vm2172 = vmand %vm2136, %vm1488
  %vm2173 = vmand %vm2137, %vm1489
  %vm2174 = vmand %vm2138, %vm1490
  %vm2175 = vmand %vm2139, %vm1491
  %vm2176 = vmand %vm2140, %vm1492
  %vm2177 = vmand %vm2141, %vm1493
  %vm2178 = vmand %vm2142, %vm1494
  %vm2179 = vmand %vm2143, %vm1495
  %vm2180 = vmand %vm2144, %vm1496
  %vm2181 = vmand %vm2145, %vm1497
  %vm2182 = vmand %vm2146, %vm1498
  %vm2183 = vmand %vm2147, %vm1499
  %vm2184 = vmand %vm2148, %vm1500
  %vm2185 = vmand %vm2149, %vm1501
  %vm2186 = vmand %vm2150, %vm1502
  %vm2187 = vmand %vm2151, %vm1503
  %2188 = vst [vmem:[#allocation2 + $0x10] sm:$0xff] %v277
  %2189 = vst [vmem:[#allocation2 + $0x18] sm:$0xff] %v280
  %2190 = vst [vmem:[#allocation2 + $0x20] sm:$0xff] %v285
  %2191 = vst [vmem:[#allocation2 + $0x28] sm:$0xff] %v288
  %2192 = vst [vmem:[#allocation2 + $0x30] sm:$0xff] %v293
  %2193 = vst [vmem:[#allocation2 + $0x38] sm:$0xff] %v296
  %2194 = vst [vmem:[#allocation2 + $0x40] sm:$0xff] %v301
  %2195 = vst [vmem:[#allocation2 + $0x48] sm:$0xff] %v304
  %2196 = vst [vmem:[#allocation2 + $0x50] sm:$0xff] %v309
  %2197 = vst [vmem:[#allocation2 + $0x58] sm:$0xff] %v312
  %2198 = vst [vmem:[#allocation2 + $0x60] sm:$0xff] %v317
  %2199 = vst [vmem:[#allocation2 + $0x68] sm:$0xff] %v320
  %2200 = vst [vmem:[#allocation2 + $0x70] sm:$0xff] %v325
  %2201 = vst [vmem:[#allocation2 + $0x78] sm:$0xff] %v328
  %2202 = vst [vmem:[#allocation2 + $0x80] sm:$0xff] %v333
  %2203 = vst [vmem:[#allocation2 + $0x88] sm:$0xff] %v336
  %2204 = vst [vmem:[#allocation2 + $0x90] sm:$0xff] %v341
  %2205 = vst [vmem:[#allocation2 + $0x98] sm:$0xff] %v344
  %2206 = vst [vmem:[#allocation2 + $0xa0] sm:$0xff] %v349
  %2207 = vst [vmem:[#allocation2 + $0xa8] sm:$0xff] %v352
  %2208 = vst [vmem:[#allocation2 + $0xb0] sm:$0xff] %v357
  %2209 = vst [vmem:[#allocation2 + $0xb8] sm:$0xff] %v360
  %2210 = vst [vmem:[#allocation2 + $0xc0] sm:$0xff] %v365
  %2211 = vst [vmem:[#allocation2 + $0xc8] sm:$0xff] %v368
  %2212 = vst [vmem:[#allocation2 + $0xd0] sm:$0xff] %v373
  %2213 = vst [vmem:[#allocation2 + $0xd8] sm:$0xff] %v376
  %2214 = vst [vmem:[#allocation2 + $0xe0] sm:$0xff] %v381
  %2215 = vst [vmem:[#allocation2 + $0xe8] sm:$0xff] %v384
  %2216 = vst [vmem:[#allocation2 + $0xf0] sm:$0xff] %v389
  %2217 = vst [vmem:[#allocation2 + $0xf8] sm:$0xff] %v392
  %2218 = vst [vmem:[#allocation2 + $0x100] sm:$0xff] %v397
  %2219 = vst [vmem:[#allocation2 + $0x108] sm:$0xff] %v400
  %2220 = vst [vmem:[#allocation2 + $0x110] sm:$0xff] %v405
  %2221 = vst [vmem:[#allocation2 + $0x118] sm:$0xff] %v408
  %2222 = vst [vmem:[#allocation2 + $0x120] sm:$0xff] %v413
  %2223 = vst [vmem:[#allocation2 + $0x128] sm:$0xff] %v416
  %v2224 = vld [vmem:[#allocation2 + $0x3] sm:$0xff]
  %v2225 = vld [vmem:[#allocation2 + $0xb] sm:$0xff]
  %v2226 = vld [vmem:[#allocation2 + $0x13] sm:$0xff]
  %v2227 = vld [vmem:[#allocation2 + $0x1b] sm:$0xff]
  %v2228 = vld [vmem:[#allocation2 + $0x23] sm:$0xff]
  %v2229 = vld [vmem:[#allocation2 + $0x2b] sm:$0xff]
  %v2230 = vld [vmem:[#allocation2 + $0x33] sm:$0xff]
  %v2231 = vld [vmem:[#allocation2 + $0x3b] sm:$0xff]
  %v2232 = vld [vmem:[#allocation2 + $0x43] sm:$0xff]
  %v2233 = vld [vmem:[#allocation2 + $0x4b] sm:$0xff]
  %v2234 = vld [vmem:[#allocation2 + $0x53] sm:$0xff]
  %v2235 = vld [vmem:[#allocation2 + $0x5b] sm:$0xff]
  %v2236 = vld [vmem:[#allocation2 + $0x63] sm:$0xff]
  %v2237 = vld [vmem:[#allocation2 + $0x6b] sm:$0xff]
  %v2238 = vld [vmem:[#allocation2 + $0x73] sm:$0xff]
  %v2239 = vld [vmem:[#allocation2 + $0x7b] sm:$0xff]
  %v2240 = vld [vmem:[#allocation2 + $0x83] sm:$0xff]
  %v2241 = vld [vmem:[#allocation2 + $0x8b] sm:$0xff]
  %v2242 = vld [vmem:[#allocation2 + $0x93] sm:$0xff]
  %v2243 = vld [vmem:[#allocation2 + $0x9b] sm:$0xff]
  %v2244 = vld [vmem:[#allocation2 + $0xa3] sm:$0xff]
  %v2245 = vld [vmem:[#allocation2 + $0xab] sm:$0xff]
  %v2246 = vld [vmem:[#allocation2 + $0xb3] sm:$0xff]
  %v2247 = vld [vmem:[#allocation2 + $0xbb] sm:$0xff]
  %v2248 = vld [vmem:[#allocation2 + $0xc3] sm:$0xff]
  %v2249 = vld [vmem:[#allocation2 + $0xcb] sm:$0xff]
  %v2250 = vld [vmem:[#allocation2 + $0xd3] sm:$0xff]
  %v2251 = vld [vmem:[#allocation2 + $0xdb] sm:$0xff]
  %v2252 = vld [vmem:[#allocation2 + $0xe3] sm:$0xff]
  %v2253 = vld [vmem:[#allocation2 + $0xeb] sm:$0xff]
  %v2254 = vld [vmem:[#allocation2 + $0xf3] sm:$0xff]
  %v2255 = vld [vmem:[#allocation2 + $0xfb] sm:$0xff]
  %v2256 = vld [vmem:[#allocation2 + $0x103] sm:$0xff]
  %v2257 = vld [vmem:[#allocation2 + $0x10b] sm:$0xff]
  %v2258 = vld [vmem:[#allocation2 + $0x113] sm:$0xff]
  %v2259 = vld [vmem:[#allocation2 + $0x11b] sm:$0xff]
  %v2260 = vsel %vm1144, 1, 0
  %v2261 = vsel %vm1145, 1, 0
  %v2262 = vsel %vm1146, 1, 0
  %v2263 = vsel %vm1147, 1, 0
  %v2264 = vsel %vm1148, 1, 0
  %v2265 = vsel %vm1149, 1, 0
  %v2266 = vsel %vm1150, 1, 0
  %v2267 = vsel %vm1151, 1, 0
  %v2268 = vsel %vm1152, 1, 0
  %v2269 = vsel %vm1153, 1, 0
  %v2270 = vsel %vm1154, 1, 0
  %v2271 = vsel %vm1155, 1, 0
  %v2272 = vsel %vm1156, 1, 0
  %v2273 = vsel %vm1157, 1, 0
  %v2274 = vsel %vm1158, 1, 0
  %v2275 = vsel %vm1159, 1, 0
  %v2276 = vsel %vm1160, 1, 0
  %v2277 = vsel %vm1161, 1, 0
  %v2278 = vsel %vm1162, 1, 0
  %v2279 = vsel %vm1163, 1, 0
  %v2280 = vsel %vm1164, 1, 0
  %v2281 = vsel %vm1165, 1, 0
  %v2282 = vsel %vm1166, 1, 0
  %v2283 = vsel %vm1167, 1, 0
  %v2284 = vsel %vm1168, 1, 0
  %v2285 = vsel %vm1169, 1, 0
  %v2286 = vsel %vm1170, 1, 0
  %v2287 = vsel %vm1171, 1, 0
  %v2288 = vsel %vm1172, 1, 0
  %v2289 = vsel %vm1173, 1, 0
  %v2290 = vsel %vm1174, 1, 0
  %v2291 = vsel %vm1175, 1, 0
  %v2292 = vsel %vm1176, 1, 0
  %v2293 = vsel %vm1177, 1, 0
  %v2294 = vsel %vm1178, 1, 0
  %v2295 = vsel %vm1179, 1, 0
  %vm2296 = vcmp.eq.s32.totalorder %v2260, 1
  %vm2297 = vcmp.eq.s32.totalorder %v2261, 1
  %vm2298 = vcmp.eq.s32.totalorder %v2262, 1
  %vm2299 = vcmp.eq.s32.totalorder %v2263, 1
  %vm2300 = vcmp.eq.s32.totalorder %v2264, 1
  %vm2301 = vcmp.eq.s32.totalorder %v2265, 1
  %vm2302 = vcmp.eq.s32.totalorder %v2266, 1
  %vm2303 = vcmp.eq.s32.totalorder %v2267, 1
  %vm2304 = vcmp.eq.s32.totalorder %v2268, 1
  %vm2305 = vcmp.eq.s32.totalorder %v2269, 1
  %vm2306 = vcmp.eq.s32.totalorder %v2270, 1
  %vm2307 = vcmp.eq.s32.totalorder %v2271, 1
  %vm2308 = vcmp.eq.s32.totalorder %v2272, 1
  %vm2309 = vcmp.eq.s32.totalorder %v2273, 1
  %vm2310 = vcmp.eq.s32.totalorder %v2274, 1
  %vm2311 = vcmp.eq.s32.totalorder %v2275, 1
  %vm2312 = vcmp.eq.s32.totalorder %v2276, 1
  %vm2313 = vcmp.eq.s32.totalorder %v2277, 1
  %vm2314 = vcmp.eq.s32.totalorder %v2278, 1
  %vm2315 = vcmp.eq.s32.totalorder %v2279, 1
  %vm2316 = vcmp.eq.s32.totalorder %v2280, 1
  %vm2317 = vcmp.eq.s32.totalorder %v2281, 1
  %vm2318 = vcmp.eq.s32.totalorder %v2282, 1
  %vm2319 = vcmp.eq.s32.totalorder %v2283, 1
  %vm2320 = vcmp.eq.s32.totalorder %v2284, 1
  %vm2321 = vcmp.eq.s32.totalorder %v2285, 1
  %vm2322 = vcmp.eq.s32.totalorder %v2286, 1
  %vm2323 = vcmp.eq.s32.totalorder %v2287, 1
  %vm2324 = vcmp.eq.s32.totalorder %v2288, 1
  %vm2325 = vcmp.eq.s32.totalorder %v2289, 1
  %vm2326 = vcmp.eq.s32.totalorder %v2290, 1
  %vm2327 = vcmp.eq.s32.totalorder %v2291, 1
  %vm2328 = vcmp.eq.s32.totalorder %v2292, 1
  %vm2329 = vcmp.eq.s32.totalorder %v2293, 1
  %vm2330 = vcmp.eq.s32.totalorder %v2294, 1
  %vm2331 = vcmp.eq.s32.totalorder %v2295, 1
  %v2332 = vsel %vm2296, %v2224, 0.0
  %v2333 = vsel %vm2297, %v2225, 0.0
  %v2334 = vsel %vm2298, %v2226, 0.0
  %v2335 = vsel %vm2299, %v2227, 0.0
  %v2336 = vsel %vm2300, %v2228, 0.0
  %v2337 = vsel %vm2301, %v2229, 0.0
  %v2338 = vsel %vm2302, %v2230, 0.0
  %v2339 = vsel %vm2303, %v2231, 0.0
  %v2340 = vsel %vm2304, %v2232, 0.0
  %v2341 = vsel %vm2305, %v2233, 0.0
  %v2342 = vsel %vm2306, %v2234, 0.0
  %v2343 = vsel %vm2307, %v2235, 0.0
  %v2344 = vsel %vm2308, %v2236, 0.0
  %v2345 = vsel %vm2309, %v2237, 0.0
  %v2346 = vsel %vm2310, %v2238, 0.0
  %v2347 = vsel %vm2311, %v2239, 0.0
  %v2348 = vsel %vm2312, %v2240, 0.0
  %v2349 = vsel %vm2313, %v2241, 0.0
  %v2350 = vsel %vm2314, %v2242, 0.0
  %v2351 = vsel %vm2315, %v2243, 0.0
  %v2352 = vsel %vm2316, %v2244, 0.0
  %v2353 = vsel %vm2317, %v2245, 0.0
  %v2354 = vsel %vm2318, %v2246, 0.0
  %v2355 = vsel %vm2319, %v2247, 0.0
  %v2356 = vsel %vm2320, %v2248, 0.0
  %v2357 = vsel %vm2321, %v2249, 0.0
  %v2358 = vsel %vm2322, %v2250, 0.0
  %v2359 = vsel %vm2323, %v2251, 0.0
  %v2360 = vsel %vm2324, %v2252, 0.0
  %v2361 = vsel %vm2325, %v2253, 0.0
  %v2362 = vsel %vm2326, %v2254, 0.0
  %v2363 = vsel %vm2327, %v2255, 0.0
  %v2364 = vsel %vm2328, %v2256, 0.0
  %v2365 = vsel %vm2329, %v2257, 0.0
  %v2366 = vsel %vm2330, %v2258, 0.0
  %v2367 = vsel %vm2331, %v2259, 0.0
  %v2368 = vld [vmem:[#allocation2 + $0x4] sm:$0xff]
  %v2369 = vld [vmem:[#allocation2 + $0xc] sm:$0xff]
  %v2370 = vld [vmem:[#allocation2 + $0x14] sm:$0xff]
  %v2371 = vld [vmem:[#allocation2 + $0x1c] sm:$0xff]
  %v2372 = vld [vmem:[#allocation2 + $0x24] sm:$0xff]
  %v2373 = vld [vmem:[#allocation2 + $0x2c] sm:$0xff]
  %v2374 = vld [vmem:[#allocation2 + $0x34] sm:$0xff]
  %v2375 = vld [vmem:[#allocation2 + $0x3c] sm:$0xff]
  %v2376 = vld [vmem:[#allocation2 + $0x44] sm:$0xff]
  %v2377 = vld [vmem:[#allocation2 + $0x4c] sm:$0xff]
  %v2378 = vld [vmem:[#allocation2 + $0x54] sm:$0xff]
  %v2379 = vld [vmem:[#allocation2 + $0x5c] sm:$0xff]
  %v2380 = vld [vmem:[#allocation2 + $0x64] sm:$0xff]
  %v2381 = vld [vmem:[#allocation2 + $0x6c] sm:$0xff]
  %v2382 = vld [vmem:[#allocation2 + $0x74] sm:$0xff]
  %v2383 = vld [vmem:[#allocation2 + $0x7c] sm:$0xff]
  %v2384 = vld [vmem:[#allocation2 + $0x84] sm:$0xff]
  %v2385 = vld [vmem:[#allocation2 + $0x8c] sm:$0xff]
  %v2386 = vld [vmem:[#allocation2 + $0x94] sm:$0xff]
  %v2387 = vld [vmem:[#allocation2 + $0x9c] sm:$0xff]
  %v2388 = vld [vmem:[#allocation2 + $0xa4] sm:$0xff]
  %v2389 = vld [vmem:[#allocation2 + $0xac] sm:$0xff]
  %v2390 = vld [vmem:[#allocation2 + $0xb4] sm:$0xff]
  %v2391 = vld [vmem:[#allocation2 + $0xbc] sm:$0xff]
  %v2392 = vld [vmem:[#allocation2 + $0xc4] sm:$0xff]
  %v2393 = vld [vmem:[#allocation2 + $0xcc] sm:$0xff]
  %v2394 = vld [vmem:[#allocation2 + $0xd4] sm:$0xff]
  %v2395 = vld [vmem:[#allocation2 + $0xdc] sm:$0xff]
  %v2396 = vld [vmem:[#allocation2 + $0xe4] sm:$0xff]
  %v2397 = vld [vmem:[#allocation2 + $0xec] sm:$0xff]
  %v2398 = vld [vmem:[#allocation2 + $0xf4] sm:$0xff]
  %v2399 = vld [vmem:[#allocation2 + $0xfc] sm:$0xff]
  %v2400 = vld [vmem:[#allocation2 + $0x104] sm:$0xff]
  %v2401 = vld [vmem:[#allocation2 + $0x10c] sm:$0xff]
  %v2402 = vld [vmem:[#allocation2 + $0x114] sm:$0xff]
  %v2403 = vld [vmem:[#allocation2 + $0x11c] sm:$0xff]
  %v2404 = vsel %vm1324, 1, 0
  %v2405 = vsel %vm1325, 1, 0
  %v2406 = vsel %vm1326, 1, 0
  %v2407 = vsel %vm1327, 1, 0
  %v2408 = vsel %vm1328, 1, 0
  %v2409 = vsel %vm1329, 1, 0
  %v2410 = vsel %vm1330, 1, 0
  %v2411 = vsel %vm1331, 1, 0
  %v2412 = vsel %vm1332, 1, 0
  %v2413 = vsel %vm1333, 1, 0
  %v2414 = vsel %vm1334, 1, 0
  %v2415 = vsel %vm1335, 1, 0
  %v2416 = vsel %vm1336, 1, 0
  %v2417 = vsel %vm1337, 1, 0
  %v2418 = vsel %vm1338, 1, 0
  %v2419 = vsel %vm1339, 1, 0
  %v2420 = vsel %vm1340, 1, 0
  %v2421 = vsel %vm1341, 1, 0
  %v2422 = vsel %vm1342, 1, 0
  %v2423 = vsel %vm1343, 1, 0
  %v2424 = vsel %vm1344, 1, 0
  %v2425 = vsel %vm1345, 1, 0
  %v2426 = vsel %vm1346, 1, 0
  %v2427 = vsel %vm1347, 1, 0
  %v2428 = vsel %vm1348, 1, 0
  %v2429 = vsel %vm1349, 1, 0
  %v2430 = vsel %vm1350, 1, 0
  %v2431 = vsel %vm1351, 1, 0
  %v2432 = vsel %vm1352, 1, 0
  %v2433 = vsel %vm1353, 1, 0
  %v2434 = vsel %vm1354, 1, 0
  %v2435 = vsel %vm1355, 1, 0
  %v2436 = vsel %vm1356, 1, 0
  %v2437 = vsel %vm1357, 1, 0
  %v2438 = vsel %vm1358, 1, 0
  %v2439 = vsel %vm1359, 1, 0
  %vm2440 = vcmp.eq.s32.totalorder %v2404, 1
  %vm2441 = vcmp.eq.s32.totalorder %v2405, 1
  %vm2442 = vcmp.eq.s32.totalorder %v2406, 1
  %vm2443 = vcmp.eq.s32.totalorder %v2407, 1
  %vm2444 = vcmp.eq.s32.totalorder %v2408, 1
  %vm2445 = vcmp.eq.s32.totalorder %v2409, 1
  %vm2446 = vcmp.eq.s32.totalorder %v2410, 1
  %vm2447 = vcmp.eq.s32.totalorder %v2411, 1
  %vm2448 = vcmp.eq.s32.totalorder %v2412, 1
  %vm2449 = vcmp.eq.s32.totalorder %v2413, 1
  %vm2450 = vcmp.eq.s32.totalorder %v2414, 1
  %vm2451 = vcmp.eq.s32.totalorder %v2415, 1
  %vm2452 = vcmp.eq.s32.totalorder %v2416, 1
  %vm2453 = vcmp.eq.s32.totalorder %v2417, 1
  %vm2454 = vcmp.eq.s32.totalorder %v2418, 1
  %vm2455 = vcmp.eq.s32.totalorder %v2419, 1
  %vm2456 = vcmp.eq.s32.totalorder %v2420, 1
  %vm2457 = vcmp.eq.s32.totalorder %v2421, 1
  %vm2458 = vcmp.eq.s32.totalorder %v2422, 1
  %vm2459 = vcmp.eq.s32.totalorder %v2423, 1
  %vm2460 = vcmp.eq.s32.totalorder %v2424, 1
  %vm2461 = vcmp.eq.s32.totalorder %v2425, 1
  %vm2462 = vcmp.eq.s32.totalorder %v2426, 1
  %vm2463 = vcmp.eq.s32.totalorder %v2427, 1
  %vm2464 = vcmp.eq.s32.totalorder %v2428, 1
  %vm2465 = vcmp.eq.s32.totalorder %v2429, 1
  %vm2466 = vcmp.eq.s32.totalorder %v2430, 1
  %vm2467 = vcmp.eq.s32.totalorder %v2431, 1
  %vm2468 = vcmp.eq.s32.totalorder %v2432, 1
  %vm2469 = vcmp.eq.s32.totalorder %v2433, 1
  %vm2470 = vcmp.eq.s32.totalorder %v2434, 1
  %vm2471 = vcmp.eq.s32.totalorder %v2435, 1
  %vm2472 = vcmp.eq.s32.totalorder %v2436, 1
  %vm2473 = vcmp.eq.s32.totalorder %v2437, 1
  %vm2474 = vcmp.eq.s32.totalorder %v2438, 1
  %vm2475 = vcmp.eq.s32.totalorder %v2439, 1
  %v2476 = vsel %vm2440, %v2368, 0.0
  %v2477 = vsel %vm2441, %v2369, 0.0
  %v2478 = vsel %vm2442, %v2370, 0.0
  %v2479 = vsel %vm2443, %v2371, 0.0
  %v2480 = vsel %vm2444, %v2372, 0.0
  %v2481 = vsel %vm2445, %v2373, 0.0
  %v2482 = vsel %vm2446, %v2374, 0.0
  %v2483 = vsel %vm2447, %v2375, 0.0
  %v2484 = vsel %vm2448, %v2376, 0.0
  %v2485 = vsel %vm2449, %v2377, 0.0
  %v2486 = vsel %vm2450, %v2378, 0.0
  %v2487 = vsel %vm2451, %v2379, 0.0
  %v2488 = vsel %vm2452, %v2380, 0.0
  %v2489 = vsel %vm2453, %v2381, 0.0
  %v2490 = vsel %vm2454, %v2382, 0.0
  %v2491 = vsel %vm2455, %v2383, 0.0
  %v2492 = vsel %vm2456, %v2384, 0.0
  %v2493 = vsel %vm2457, %v2385, 0.0
  %v2494 = vsel %vm2458, %v2386, 0.0
  %v2495 = vsel %vm2459, %v2387, 0.0
  %v2496 = vsel %vm2460, %v2388, 0.0
  %v2497 = vsel %vm2461, %v2389, 0.0
  %v2498 = vsel %vm2462, %v2390, 0.0
  %v2499 = vsel %vm2463, %v2391, 0.0
  %v2500 = vsel %vm2464, %v2392, 0.0
  %v2501 = vsel %vm2465, %v2393, 0.0
  %v2502 = vsel %vm2466, %v2394, 0.0
  %v2503 = vsel %vm2467, %v2395, 0.0
  %v2504 = vsel %vm2468, %v2396, 0.0
  %v2505 = vsel %vm2469, %v2397, 0.0
  %v2506 = vsel %vm2470, %v2398, 0.0
  %v2507 = vsel %vm2471, %v2399, 0.0
  %v2508 = vsel %vm2472, %v2400, 0.0
  %v2509 = vsel %vm2473, %v2401, 0.0
  %v2510 = vsel %vm2474, %v2402, 0.0
  %v2511 = vsel %vm2475, %v2403, 0.0
  %2512 = vrot.lane.b32.xlu0 %v2476, 16
  %v2513 = vpop.permute.xlu0 %2512
  %2514 = vrot.lane.b32.xlu0 %v2477, 16
  %v2515 = vpop.permute.xlu0 %2514
  %2516 = vrot.lane.b32.xlu0 %v2478, 16
  %v2517 = vpop.permute.xlu0 %2516
  %2518 = vrot.lane.b32.xlu0 %v2479, 16
  %v2519 = vpop.permute.xlu0 %2518
  %2520 = vrot.lane.b32.xlu0 %v2480, 16
  %v2521 = vpop.permute.xlu0 %2520
  %2522 = vrot.lane.b32.xlu0 %v2481, 16
  %v2523 = vpop.permute.xlu0 %2522
  %2524 = vrot.lane.b32.xlu0 %v2482, 16
  %v2525 = vpop.permute.xlu0 %2524
  %2526 = vrot.lane.b32.xlu0 %v2483, 16
  %v2527 = vpop.permute.xlu0 %2526
  %2528 = vrot.lane.b32.xlu0 %v2484, 16
  %v2529 = vpop.permute.xlu0 %2528
  %2530 = vrot.lane.b32.xlu0 %v2485, 16
  %v2531 = vpop.permute.xlu0 %2530
  %2532 = vrot.lane.b32.xlu0 %v2486, 16
  %v2533 = vpop.permute.xlu0 %2532
  %2534 = vrot.lane.b32.xlu0 %v2487, 16
  %v2535 = vpop.permute.xlu0 %2534
  %2536 = vrot.lane.b32.xlu0 %v2488, 16
  %v2537 = vpop.permute.xlu0 %2536
  %2538 = vrot.lane.b32.xlu0 %v2489, 16
  %v2539 = vpop.permute.xlu0 %2538
  %2540 = vrot.lane.b32.xlu0 %v2490, 16
  %v2541 = vpop.permute.xlu0 %2540
  %2542 = vrot.lane.b32.xlu0 %v2491, 16
  %v2543 = vpop.permute.xlu0 %2542
  %2544 = vrot.lane.b32.xlu0 %v2492, 16
  %v2545 = vpop.permute.xlu0 %2544
  %2546 = vrot.lane.b32.xlu0 %v2493, 16
  %v2547 = vpop.permute.xlu0 %2546
  %2548 = vrot.lane.b32.xlu0 %v2494, 16
  %v2549 = vpop.permute.xlu0 %2548
  %2550 = vrot.lane.b32.xlu0 %v2495, 16
  %v2551 = vpop.permute.xlu0 %2550
  %2552 = vrot.lane.b32.xlu0 %v2496, 16
  %v2553 = vpop.permute.xlu0 %2552
  %2554 = vrot.lane.b32.xlu0 %v2497, 16
  %v2555 = vpop.permute.xlu0 %2554
  %2556 = vrot.lane.b32.xlu0 %v2498, 16
  %v2557 = vpop.permute.xlu0 %2556
  %2558 = vrot.lane.b32.xlu0 %v2499, 16
  %v2559 = vpop.permute.xlu0 %2558
  %2560 = vrot.lane.b32.xlu0 %v2500, 16
  %v2561 = vpop.permute.xlu0 %2560
  %2562 = vrot.lane.b32.xlu0 %v2501, 16
  %v2563 = vpop.permute.xlu0 %2562
  %2564 = vrot.lane.b32.xlu0 %v2502, 16
  %v2565 = vpop.permute.xlu0 %2564
  %2566 = vrot.lane.b32.xlu0 %v2503, 16
  %v2567 = vpop.permute.xlu0 %2566
  %2568 = vrot.lane.b32.xlu0 %v2504, 16
  %v2569 = vpop.permute.xlu0 %2568
  %2570 = vrot.lane.b32.xlu0 %v2505, 16
  %v2571 = vpop.permute.xlu0 %2570
  %2572 = vrot.lane.b32.xlu0 %v2506, 16
  %v2573 = vpop.permute.xlu0 %2572
  %2574 = vrot.lane.b32.xlu0 %v2507, 16
  %v2575 = vpop.permute.xlu0 %2574
  %2576 = vrot.lane.b32.xlu0 %v2508, 16
  %v2577 = vpop.permute.xlu0 %2576
  %2578 = vrot.lane.b32.xlu0 %v2509, 16
  %v2579 = vpop.permute.xlu0 %2578
  %2580 = vrot.lane.b32.xlu0 %v2510, 16
  %v2581 = vpop.permute.xlu0 %2580
  %2582 = vrot.lane.b32.xlu0 %v2511, 16
  %v2583 = vpop.permute.xlu0 %2582
  %v2584 = vadd.f32 %v2332, %v2513
  %v2585 = vadd.f32 %v2333, %v2515
  %v2586 = vadd.f32 %v2334, %v2517
  %v2587 = vadd.f32 %v2335, %v2519
  %v2588 = vadd.f32 %v2336, %v2521
  %v2589 = vadd.f32 %v2337, %v2523
  %v2590 = vadd.f32 %v2338, %v2525
  %v2591 = vadd.f32 %v2339, %v2527
  %v2592 = vadd.f32 %v2340, %v2529
  %v2593 = vadd.f32 %v2341, %v2531
  %v2594 = vadd.f32 %v2342, %v2533
  %v2595 = vadd.f32 %v2343, %v2535
  %v2596 = vadd.f32 %v2344, %v2537
  %v2597 = vadd.f32 %v2345, %v2539
  %v2598 = vadd.f32 %v2346, %v2541
  %v2599 = vadd.f32 %v2347, %v2543
  %v2600 = vadd.f32 %v2348, %v2545
  %v2601 = vadd.f32 %v2349, %v2547
  %v2602 = vadd.f32 %v2350, %v2549
  %v2603 = vadd.f32 %v2351, %v2551
  %v2604 = vadd.f32 %v2352, %v2553
  %v2605 = vadd.f32 %v2353, %v2555
  %v2606 = vadd.f32 %v2354, %v2557
  %v2607 = vadd.f32 %v2355, %v2559
  %v2608 = vadd.f32 %v2356, %v2561
  %v2609 = vadd.f32 %v2357, %v2563
  %v2610 = vadd.f32 %v2358, %v2565
  %v2611 = vadd.f32 %v2359, %v2567
  %v2612 = vadd.f32 %v2360, %v2569
  %v2613 = vadd.f32 %v2361, %v2571
  %v2614 = vadd.f32 %v2362, %v2573
  %v2615 = vadd.f32 %v2363, %v2575
  %v2616 = vadd.f32 %v2364, %v2577
  %v2617 = vadd.f32 %v2365, %v2579
  %v2618 = vadd.f32 %v2366, %v2581
  %v2619 = vadd.f32 %v2367, %v2583
  %v2620 = vld [vmem:[#allocation2 + $0x5] sm:$0xff]
  %v2621 = vld [vmem:[#allocation2 + $0xd] sm:$0xff]
  %v2622 = vld [vmem:[#allocation2 + $0x15] sm:$0xff]
  %v2623 = vld [vmem:[#allocation2 + $0x1d] sm:$0xff]
  %v2624 = vld [vmem:[#allocation2 + $0x25] sm:$0xff]
  %v2625 = vld [vmem:[#allocation2 + $0x2d] sm:$0xff]
  %v2626 = vld [vmem:[#allocation2 + $0x35] sm:$0xff]
  %v2627 = vld [vmem:[#allocation2 + $0x3d] sm:$0xff]
  %v2628 = vld [vmem:[#allocation2 + $0x45] sm:$0xff]
  %v2629 = vld [vmem:[#allocation2 + $0x4d] sm:$0xff]
  %v2630 = vld [vmem:[#allocation2 + $0x55] sm:$0xff]
  %v2631 = vld [vmem:[#allocation2 + $0x5d] sm:$0xff]
  %v2632 = vld [vmem:[#allocation2 + $0x65] sm:$0xff]
  %v2633 = vld [vmem:[#allocation2 + $0x6d] sm:$0xff]
  %v2634 = vld [vmem:[#allocation2 + $0x75] sm:$0xff]
  %v2635 = vld [vmem:[#allocation2 + $0x7d] sm:$0xff]
  %v2636 = vld [vmem:[#allocation2 + $0x85] sm:$0xff]
  %v2637 = vld [vmem:[#allocation2 + $0x8d] sm:$0xff]
  %v2638 = vld [vmem:[#allocation2 + $0x95] sm:$0xff]
  %v2639 = vld [vmem:[#allocation2 + $0x9d] sm:$0xff]
  %v2640 = vld [vmem:[#allocation2 + $0xa5] sm:$0xff]
  %v2641 = vld [vmem:[#allocation2 + $0xad] sm:$0xff]
  %v2642 = vld [vmem:[#allocation2 + $0xb5] sm:$0xff]
  %v2643 = vld [vmem:[#allocation2 + $0xbd] sm:$0xff]
  %v2644 = vld [vmem:[#allocation2 + $0xc5] sm:$0xff]
  %v2645 = vld [vmem:[#allocation2 + $0xcd] sm:$0xff]
  %v2646 = vld [vmem:[#allocation2 + $0xd5] sm:$0xff]
  %v2647 = vld [vmem:[#allocation2 + $0xdd] sm:$0xff]
  %v2648 = vld [vmem:[#allocation2 + $0xe5] sm:$0xff]
  %v2649 = vld [vmem:[#allocation2 + $0xed] sm:$0xff]
  %v2650 = vld [vmem:[#allocation2 + $0xf5] sm:$0xff]
  %v2651 = vld [vmem:[#allocation2 + $0xfd] sm:$0xff]
  %v2652 = vld [vmem:[#allocation2 + $0x105] sm:$0xff]
  %v2653 = vld [vmem:[#allocation2 + $0x10d] sm:$0xff]
  %v2654 = vld [vmem:[#allocation2 + $0x115] sm:$0xff]
  %v2655 = vld [vmem:[#allocation2 + $0x11d] sm:$0xff]
  %v2656 = vsel %vm1504, 1, 0
  %v2657 = vsel %vm1505, 1, 0
  %v2658 = vsel %vm1506, 1, 0
  %v2659 = vsel %vm1507, 1, 0
  %v2660 = vsel %vm1508, 1, 0
  %v2661 = vsel %vm1509, 1, 0
  %v2662 = vsel %vm1510, 1, 0
  %v2663 = vsel %vm1511, 1, 0
  %v2664 = vsel %vm1512, 1, 0
  %v2665 = vsel %vm1513, 1, 0
  %v2666 = vsel %vm1514, 1, 0
  %v2667 = vsel %vm1515, 1, 0
  %v2668 = vsel %vm1516, 1, 0
  %v2669 = vsel %vm1517, 1, 0
  %v2670 = vsel %vm1518, 1, 0
  %v2671 = vsel %vm1519, 1, 0
  %v2672 = vsel %vm1520, 1, 0
  %v2673 = vsel %vm1521, 1, 0
  %v2674 = vsel %vm1522, 1, 0
  %v2675 = vsel %vm1523, 1, 0
  %v2676 = vsel %vm1524, 1, 0
  %v2677 = vsel %vm1525, 1, 0
  %v2678 = vsel %vm1526, 1, 0
  %v2679 = vsel %vm1527, 1, 0
  %v2680 = vsel %vm1528, 1, 0
  %v2681 = vsel %vm1529, 1, 0
  %v2682 = vsel %vm1530, 1, 0
  %v2683 = vsel %vm1531, 1, 0
  %v2684 = vsel %vm1532, 1, 0
  %v2685 = vsel %vm1533, 1, 0
  %v2686 = vsel %vm1534, 1, 0
  %v2687 = vsel %vm1535, 1, 0
  %v2688 = vsel %vm1536, 1, 0
  %v2689 = vsel %vm1537, 1, 0
  %v2690 = vsel %vm1538, 1, 0
  %v2691 = vsel %vm1539, 1, 0
  %vm2692 = vcmp.eq.s32.totalorder %v2656, 1
  %vm2693 = vcmp.eq.s32.totalorder %v2657, 1
  %vm2694 = vcmp.eq.s32.totalorder %v2658, 1
  %vm2695 = vcmp.eq.s32.totalorder %v2659, 1
  %vm2696 = vcmp.eq.s32.totalorder %v2660, 1
  %vm2697 = vcmp.eq.s32.totalorder %v2661, 1
  %vm2698 = vcmp.eq.s32.totalorder %v2662, 1
  %vm2699 = vcmp.eq.s32.totalorder %v2663, 1
  %vm2700 = vcmp.eq.s32.totalorder %v2664, 1
  %vm2701 = vcmp.eq.s32.totalorder %v2665, 1
  %vm2702 = vcmp.eq.s32.totalorder %v2666, 1
  %vm2703 = vcmp.eq.s32.totalorder %v2667, 1
  %vm2704 = vcmp.eq.s32.totalorder %v2668, 1
  %vm2705 = vcmp.eq.s32.totalorder %v2669, 1
  %vm2706 = vcmp.eq.s32.totalorder %v2670, 1
  %vm2707 = vcmp.eq.s32.totalorder %v2671, 1
  %vm2708 = vcmp.eq.s32.totalorder %v2672, 1
  %vm2709 = vcmp.eq.s32.totalorder %v2673, 1
  %vm2710 = vcmp.eq.s32.totalorder %v2674, 1
  %vm2711 = vcmp.eq.s32.totalorder %v2675, 1
  %vm2712 = vcmp.eq.s32.totalorder %v2676, 1
  %vm2713 = vcmp.eq.s32.totalorder %v2677, 1
  %vm2714 = vcmp.eq.s32.totalorder %v2678, 1
  %vm2715 = vcmp.eq.s32.totalorder %v2679, 1
  %vm2716 = vcmp.eq.s32.totalorder %v2680, 1
  %vm2717 = vcmp.eq.s32.totalorder %v2681, 1
  %vm2718 = vcmp.eq.s32.totalorder %v2682, 1
  %vm2719 = vcmp.eq.s32.totalorder %v2683, 1
  %vm2720 = vcmp.eq.s32.totalorder %v2684, 1
  %vm2721 = vcmp.eq.s32.totalorder %v2685, 1
  %vm2722 = vcmp.eq.s32.totalorder %v2686, 1
  %vm2723 = vcmp.eq.s32.totalorder %v2687, 1
  %vm2724 = vcmp.eq.s32.totalorder %v2688, 1
  %vm2725 = vcmp.eq.s32.totalorder %v2689, 1
  %vm2726 = vcmp.eq.s32.totalorder %v2690, 1
  %vm2727 = vcmp.eq.s32.totalorder %v2691, 1
  %v2728 = vsel %vm2692, %v2620, 0.0
  %v2729 = vsel %vm2693, %v2621, 0.0
  %v2730 = vsel %vm2694, %v2622, 0.0
  %v2731 = vsel %vm2695, %v2623, 0.0
  %v2732 = vsel %vm2696, %v2624, 0.0
  %v2733 = vsel %vm2697, %v2625, 0.0
  %v2734 = vsel %vm2698, %v2626, 0.0
  %v2735 = vsel %vm2699, %v2627, 0.0
  %v2736 = vsel %vm2700, %v2628, 0.0
  %v2737 = vsel %vm2701, %v2629, 0.0
  %v2738 = vsel %vm2702, %v2630, 0.0
  %v2739 = vsel %vm2703, %v2631, 0.0
  %v2740 = vsel %vm2704, %v2632, 0.0
  %v2741 = vsel %vm2705, %v2633, 0.0
  %v2742 = vsel %vm2706, %v2634, 0.0
  %v2743 = vsel %vm2707, %v2635, 0.0
  %v2744 = vsel %vm2708, %v2636, 0.0
  %v2745 = vsel %vm2709, %v2637, 0.0
  %v2746 = vsel %vm2710, %v2638, 0.0
  %v2747 = vsel %vm2711, %v2639, 0.0
  %v2748 = vsel %vm2712, %v2640, 0.0
  %v2749 = vsel %vm2713, %v2641, 0.0
  %v2750 = vsel %vm2714, %v2642, 0.0
  %v2751 = vsel %vm2715, %v2643, 0.0
  %v2752 = vsel %vm2716, %v2644, 0.0
  %v2753 = vsel %vm2717, %v2645, 0.0
  %v2754 = vsel %vm2718, %v2646, 0.0
  %v2755 = vsel %vm2719, %v2647, 0.0
  %v2756 = vsel %vm2720, %v2648, 0.0
  %v2757 = vsel %vm2721, %v2649, 0.0
  %v2758 = vsel %vm2722, %v2650, 0.0
  %v2759 = vsel %vm2723, %v2651, 0.0
  %v2760 = vsel %vm2724, %v2652, 0.0
  %v2761 = vsel %vm2725, %v2653, 0.0
  %v2762 = vsel %vm2726, %v2654, 0.0
  %v2763 = vsel %vm2727, %v2655, 0.0
  %2764 = vrot.lane.b32.xlu0 %v2728, 32
  %v2765 = vpop.permute.xlu0 %2764
  %2766 = vrot.lane.b32.xlu0 %v2729, 32
  %v2767 = vpop.permute.xlu0 %2766
  %2768 = vrot.lane.b32.xlu0 %v2730, 32
  %v2769 = vpop.permute.xlu0 %2768
  %2770 = vrot.lane.b32.xlu0 %v2731, 32
  %v2771 = vpop.permute.xlu0 %2770
  %2772 = vrot.lane.b32.xlu0 %v2732, 32
  %v2773 = vpop.permute.xlu0 %2772
  %2774 = vrot.lane.b32.xlu0 %v2733, 32
  %v2775 = vpop.permute.xlu0 %2774
  %2776 = vrot.lane.b32.xlu0 %v2734, 32
  %v2777 = vpop.permute.xlu0 %2776
  %2778 = vrot.lane.b32.xlu0 %v2735, 32
  %v2779 = vpop.permute.xlu0 %2778
  %2780 = vrot.lane.b32.xlu0 %v2736, 32
  %v2781 = vpop.permute.xlu0 %2780
  %2782 = vrot.lane.b32.xlu0 %v2737, 32
  %v2783 = vpop.permute.xlu0 %2782
  %2784 = vrot.lane.b32.xlu0 %v2738, 32
  %v2785 = vpop.permute.xlu0 %2784
  %2786 = vrot.lane.b32.xlu0 %v2739, 32
  %v2787 = vpop.permute.xlu0 %2786
  %2788 = vrot.lane.b32.xlu0 %v2740, 32
  %v2789 = vpop.permute.xlu0 %2788
  %2790 = vrot.lane.b32.xlu0 %v2741, 32
  %v2791 = vpop.permute.xlu0 %2790
  %2792 = vrot.lane.b32.xlu0 %v2742, 32
  %v2793 = vpop.permute.xlu0 %2792
  %2794 = vrot.lane.b32.xlu0 %v2743, 32
  %v2795 = vpop.permute.xlu0 %2794
  %2796 = vrot.lane.b32.xlu0 %v2744, 32
  %v2797 = vpop.permute.xlu0 %2796
  %2798 = vrot.lane.b32.xlu0 %v2745, 32
  %v2799 = vpop.permute.xlu0 %2798
  %2800 = vrot.lane.b32.xlu0 %v2746, 32
  %v2801 = vpop.permute.xlu0 %2800
  %2802 = vrot.lane.b32.xlu0 %v2747, 32
  %v2803 = vpop.permute.xlu0 %2802
  %2804 = vrot.lane.b32.xlu0 %v2748, 32
  %v2805 = vpop.permute.xlu0 %2804
  %2806 = vrot.lane.b32.xlu0 %v2749, 32
  %v2807 = vpop.permute.xlu0 %2806
  %2808 = vrot.lane.b32.xlu0 %v2750, 32
  %v2809 = vpop.permute.xlu0 %2808
  %2810 = vrot.lane.b32.xlu0 %v2751, 32
  %v2811 = vpop.permute.xlu0 %2810
  %2812 = vrot.lane.b32.xlu0 %v2752, 32
  %v2813 = vpop.permute.xlu0 %2812
  %2814 = vrot.lane.b32.xlu0 %v2753, 32
  %v2815 = vpop.permute.xlu0 %2814
  %2816 = vrot.lane.b32.xlu0 %v2754, 32
  %v2817 = vpop.permute.xlu0 %2816
  %2818 = vrot.lane.b32.xlu0 %v2755, 32
  %v2819 = vpop.permute.xlu0 %2818
  %2820 = vrot.lane.b32.xlu0 %v2756, 32
  %v2821 = vpop.permute.xlu0 %2820
  %2822 = vrot.lane.b32.xlu0 %v2757, 32
  %v2823 = vpop.permute.xlu0 %2822
  %2824 = vrot.lane.b32.xlu0 %v2758, 32
  %v2825 = vpop.permute.xlu0 %2824
  %2826 = vrot.lane.b32.xlu0 %v2759, 32
  %v2827 = vpop.permute.xlu0 %2826
  %2828 = vrot.lane.b32.xlu0 %v2760, 32
  %v2829 = vpop.permute.xlu0 %2828
  %2830 = vrot.lane.b32.xlu0 %v2761, 32
  %v2831 = vpop.permute.xlu0 %2830
  %2832 = vrot.lane.b32.xlu0 %v2762, 32
  %v2833 = vpop.permute.xlu0 %2832
  %2834 = vrot.lane.b32.xlu0 %v2763, 32
  %v2835 = vpop.permute.xlu0 %2834
  %v2836 = vadd.f32 %v2584, %v2765
  %v2837 = vadd.f32 %v2585, %v2767
  %v2838 = vadd.f32 %v2586, %v2769
  %v2839 = vadd.f32 %v2587, %v2771
  %v2840 = vadd.f32 %v2588, %v2773
  %v2841 = vadd.f32 %v2589, %v2775
  %v2842 = vadd.f32 %v2590, %v2777
  %v2843 = vadd.f32 %v2591, %v2779
  %v2844 = vadd.f32 %v2592, %v2781
  %v2845 = vadd.f32 %v2593, %v2783
  %v2846 = vadd.f32 %v2594, %v2785
  %v2847 = vadd.f32 %v2595, %v2787
  %v2848 = vadd.f32 %v2596, %v2789
  %v2849 = vadd.f32 %v2597, %v2791
  %v2850 = vadd.f32 %v2598, %v2793
  %v2851 = vadd.f32 %v2599, %v2795
  %v2852 = vadd.f32 %v2600, %v2797
  %v2853 = vadd.f32 %v2601, %v2799
  %v2854 = vadd.f32 %v2602, %v2801
  %v2855 = vadd.f32 %v2603, %v2803
  %v2856 = vadd.f32 %v2604, %v2805
  %v2857 = vadd.f32 %v2605, %v2807
  %v2858 = vadd.f32 %v2606, %v2809
  %v2859 = vadd.f32 %v2607, %v2811
  %v2860 = vadd.f32 %v2608, %v2813
  %v2861 = vadd.f32 %v2609, %v2815
  %v2862 = vadd.f32 %v2610, %v2817
  %v2863 = vadd.f32 %v2611, %v2819
  %v2864 = vadd.f32 %v2612, %v2821
  %v2865 = vadd.f32 %v2613, %v2823
  %v2866 = vadd.f32 %v2614, %v2825
  %v2867 = vadd.f32 %v2615, %v2827
  %v2868 = vadd.f32 %v2616, %v2829
  %v2869 = vadd.f32 %v2617, %v2831
  %v2870 = vadd.f32 %v2618, %v2833
  %v2871 = vadd.f32 %v2619, %v2835
  %v2872 = vld [vmem:[#allocation2 + $0xf] sm:$0xff]
  %v2873 = vld [vmem:[#allocation2 + $0x17] sm:$0xff]
  %v2874 = vld [vmem:[#allocation2 + $0x1f] sm:$0xff]
  %v2875 = vld [vmem:[#allocation2 + $0x27] sm:$0xff]
  %v2876 = vld [vmem:[#allocation2 + $0x2f] sm:$0xff]
  %v2877 = vld [vmem:[#allocation2 + $0x37] sm:$0xff]
  %v2878 = vld [vmem:[#allocation2 + $0x3f] sm:$0xff]
  %v2879 = vld [vmem:[#allocation2 + $0x47] sm:$0xff]
  %v2880 = vld [vmem:[#allocation2 + $0x4f] sm:$0xff]
  %v2881 = vld [vmem:[#allocation2 + $0x57] sm:$0xff]
  %v2882 = vld [vmem:[#allocation2 + $0x5f] sm:$0xff]
  %v2883 = vld [vmem:[#allocation2 + $0x67] sm:$0xff]
  %v2884 = vld [vmem:[#allocation2 + $0x6f] sm:$0xff]
  %v2885 = vld [vmem:[#allocation2 + $0x77] sm:$0xff]
  %v2886 = vld [vmem:[#allocation2 + $0x7f] sm:$0xff]
  %v2887 = vld [vmem:[#allocation2 + $0x87] sm:$0xff]
  %v2888 = vld [vmem:[#allocation2 + $0x8f] sm:$0xff]
  %v2889 = vld [vmem:[#allocation2 + $0x97] sm:$0xff]
  %v2890 = vld [vmem:[#allocation2 + $0x9f] sm:$0xff]
  %v2891 = vld [vmem:[#allocation2 + $0xa7] sm:$0xff]
  %v2892 = vld [vmem:[#allocation2 + $0xaf] sm:$0xff]
  %v2893 = vld [vmem:[#allocation2 + $0xb7] sm:$0xff]
  %v2894 = vld [vmem:[#allocation2 + $0xbf] sm:$0xff]
  %v2895 = vld [vmem:[#allocation2 + $0xc7] sm:$0xff]
  %v2896 = vld [vmem:[#allocation2 + $0xcf] sm:$0xff]
  %v2897 = vld [vmem:[#allocation2 + $0xd7] sm:$0xff]
  %v2898 = vld [vmem:[#allocation2 + $0xdf] sm:$0xff]
  %v2899 = vld [vmem:[#allocation2 + $0xe7] sm:$0xff]
  %v2900 = vld [vmem:[#allocation2 + $0xef] sm:$0xff]
  %v2901 = vld [vmem:[#allocation2 + $0xf7] sm:$0xff]
  %v2902 = vld [vmem:[#allocation2 + $0xff] sm:$0xff]
  %v2903 = vld [vmem:[#allocation2 + $0x107] sm:$0xff]
  %v2904 = vld [vmem:[#allocation2 + $0x10f] sm:$0xff]
  %v2905 = vld [vmem:[#allocation2 + $0x117] sm:$0xff]
  %v2906 = vld [vmem:[#allocation2 + $0x11f] sm:$0xff]
  %v2907 = vld [vmem:[#allocation2 + $0x127] sm:$0xff]
  %v2908 = vsel %vm1720, 1, 0
  %v2909 = vsel %vm1721, 1, 0
  %v2910 = vsel %vm1722, 1, 0
  %v2911 = vsel %vm1723, 1, 0
  %v2912 = vsel %vm1724, 1, 0
  %v2913 = vsel %vm1725, 1, 0
  %v2914 = vsel %vm1726, 1, 0
  %v2915 = vsel %vm1727, 1, 0
  %v2916 = vsel %vm1728, 1, 0
  %v2917 = vsel %vm1729, 1, 0
  %v2918 = vsel %vm1730, 1, 0
  %v2919 = vsel %vm1731, 1, 0
  %v2920 = vsel %vm1732, 1, 0
  %v2921 = vsel %vm1733, 1, 0
  %v2922 = vsel %vm1734, 1, 0
  %v2923 = vsel %vm1735, 1, 0
  %v2924 = vsel %vm1736, 1, 0
  %v2925 = vsel %vm1737, 1, 0
  %v2926 = vsel %vm1738, 1, 0
  %v2927 = vsel %vm1739, 1, 0
  %v2928 = vsel %vm1740, 1, 0
  %v2929 = vsel %vm1741, 1, 0
  %v2930 = vsel %vm1742, 1, 0
  %v2931 = vsel %vm1743, 1, 0
  %v2932 = vsel %vm1744, 1, 0
  %v2933 = vsel %vm1745, 1, 0
  %v2934 = vsel %vm1746, 1, 0
  %v2935 = vsel %vm1747, 1, 0
  %v2936 = vsel %vm1748, 1, 0
  %v2937 = vsel %vm1749, 1, 0
  %v2938 = vsel %vm1750, 1, 0
  %v2939 = vsel %vm1751, 1, 0
  %v2940 = vsel %vm1752, 1, 0
  %v2941 = vsel %vm1753, 1, 0
  %v2942 = vsel %vm1754, 1, 0
  %v2943 = vsel %vm1755, 1, 0
  %vm2944 = vcmp.eq.s32.totalorder %v2908, 1
  %vm2945 = vcmp.eq.s32.totalorder %v2909, 1
  %vm2946 = vcmp.eq.s32.totalorder %v2910, 1
  %vm2947 = vcmp.eq.s32.totalorder %v2911, 1
  %vm2948 = vcmp.eq.s32.totalorder %v2912, 1
  %vm2949 = vcmp.eq.s32.totalorder %v2913, 1
  %vm2950 = vcmp.eq.s32.totalorder %v2914, 1
  %vm2951 = vcmp.eq.s32.totalorder %v2915, 1
  %vm2952 = vcmp.eq.s32.totalorder %v2916, 1
  %vm2953 = vcmp.eq.s32.totalorder %v2917, 1
  %vm2954 = vcmp.eq.s32.totalorder %v2918, 1
  %vm2955 = vcmp.eq.s32.totalorder %v2919, 1
  %vm2956 = vcmp.eq.s32.totalorder %v2920, 1
  %vm2957 = vcmp.eq.s32.totalorder %v2921, 1
  %vm2958 = vcmp.eq.s32.totalorder %v2922, 1
  %vm2959 = vcmp.eq.s32.totalorder %v2923, 1
  %vm2960 = vcmp.eq.s32.totalorder %v2924, 1
  %vm2961 = vcmp.eq.s32.totalorder %v2925, 1
  %vm2962 = vcmp.eq.s32.totalorder %v2926, 1
  %vm2963 = vcmp.eq.s32.totalorder %v2927, 1
  %vm2964 = vcmp.eq.s32.totalorder %v2928, 1
  %vm2965 = vcmp.eq.s32.totalorder %v2929, 1
  %vm2966 = vcmp.eq.s32.totalorder %v2930, 1
  %vm2967 = vcmp.eq.s32.totalorder %v2931, 1
  %vm2968 = vcmp.eq.s32.totalorder %v2932, 1
  %vm2969 = vcmp.eq.s32.totalorder %v2933, 1
  %vm2970 = vcmp.eq.s32.totalorder %v2934, 1
  %vm2971 = vcmp.eq.s32.totalorder %v2935, 1
  %vm2972 = vcmp.eq.s32.totalorder %v2936, 1
  %vm2973 = vcmp.eq.s32.totalorder %v2937, 1
  %vm2974 = vcmp.eq.s32.totalorder %v2938, 1
  %vm2975 = vcmp.eq.s32.totalorder %v2939, 1
  %vm2976 = vcmp.eq.s32.totalorder %v2940, 1
  %vm2977 = vcmp.eq.s32.totalorder %v2941, 1
  %vm2978 = vcmp.eq.s32.totalorder %v2942, 1
  %vm2979 = vcmp.eq.s32.totalorder %v2943, 1
  %v2980 = vsel %vm2944, %v2872, 0.0
  %v2981 = vsel %vm2945, %v2873, 0.0
  %v2982 = vsel %vm2946, %v2874, 0.0
  %v2983 = vsel %vm2947, %v2875, 0.0
  %v2984 = vsel %vm2948, %v2876, 0.0
  %v2985 = vsel %vm2949, %v2877, 0.0
  %v2986 = vsel %vm2950, %v2878, 0.0
  %v2987 = vsel %vm2951, %v2879, 0.0
  %v2988 = vsel %vm2952, %v2880, 0.0
  %v2989 = vsel %vm2953, %v2881, 0.0
  %v2990 = vsel %vm2954, %v2882, 0.0
  %v2991 = vsel %vm2955, %v2883, 0.0
  %v2992 = vsel %vm2956, %v2884, 0.0
  %v2993 = vsel %vm2957, %v2885, 0.0
  %v2994 = vsel %vm2958, %v2886, 0.0
  %v2995 = vsel %vm2959, %v2887, 0.0
  %v2996 = vsel %vm2960, %v2888, 0.0
  %v2997 = vsel %vm2961, %v2889, 0.0
  %v2998 = vsel %vm2962, %v2890, 0.0
  %v2999 = vsel %vm2963, %v2891, 0.0
  %v3000 = vsel %vm2964, %v2892, 0.0
  %v3001 = vsel %vm2965, %v2893, 0.0
  %v3002 = vsel %vm2966, %v2894, 0.0
  %v3003 = vsel %vm2967, %v2895, 0.0
  %v3004 = vsel %vm2968, %v2896, 0.0
  %v3005 = vsel %vm2969, %v2897, 0.0
  %v3006 = vsel %vm2970, %v2898, 0.0
  %v3007 = vsel %vm2971, %v2899, 0.0
  %v3008 = vsel %vm2972, %v2900, 0.0
  %v3009 = vsel %vm2973, %v2901, 0.0
  %v3010 = vsel %vm2974, %v2902, 0.0
  %v3011 = vsel %vm2975, %v2903, 0.0
  %v3012 = vsel %vm2976, %v2904, 0.0
  %v3013 = vsel %vm2977, %v2905, 0.0
  %v3014 = vsel %vm2978, %v2906, 0.0
  %v3015 = vsel %vm2979, %v2907, 0.0
  %3016 = vrot.lane.b32.xlu0 %v2980, 48
  %v3017 = vpop.permute.xlu0 %3016
  %3018 = vrot.lane.b32.xlu0 %v2981, 48
  %v3019 = vpop.permute.xlu0 %3018
  %3020 = vrot.lane.b32.xlu0 %v2982, 48
  %v3021 = vpop.permute.xlu0 %3020
  %3022 = vrot.lane.b32.xlu0 %v2983, 48
  %v3023 = vpop.permute.xlu0 %3022
  %3024 = vrot.lane.b32.xlu0 %v2984, 48
  %v3025 = vpop.permute.xlu0 %3024
  %3026 = vrot.lane.b32.xlu0 %v2985, 48
  %v3027 = vpop.permute.xlu0 %3026
  %3028 = vrot.lane.b32.xlu0 %v2986, 48
  %v3029 = vpop.permute.xlu0 %3028
  %3030 = vrot.lane.b32.xlu0 %v2987, 48
  %v3031 = vpop.permute.xlu0 %3030
  %3032 = vrot.lane.b32.xlu0 %v2988, 48
  %v3033 = vpop.permute.xlu0 %3032
  %3034 = vrot.lane.b32.xlu0 %v2989, 48
  %v3035 = vpop.permute.xlu0 %3034
  %3036 = vrot.lane.b32.xlu0 %v2990, 48
  %v3037 = vpop.permute.xlu0 %3036
  %3038 = vrot.lane.b32.xlu0 %v2991, 48
  %v3039 = vpop.permute.xlu0 %3038
  %3040 = vrot.lane.b32.xlu0 %v2992, 48
  %v3041 = vpop.permute.xlu0 %3040
  %3042 = vrot.lane.b32.xlu0 %v2993, 48
  %v3043 = vpop.permute.xlu0 %3042
  %3044 = vrot.lane.b32.xlu0 %v2994, 48
  %v3045 = vpop.permute.xlu0 %3044
  %3046 = vrot.lane.b32.xlu0 %v2995, 48
  %v3047 = vpop.permute.xlu0 %3046
  %3048 = vrot.lane.b32.xlu0 %v2996, 48
  %v3049 = vpop.permute.xlu0 %3048
  %3050 = vrot.lane.b32.xlu0 %v2997, 48
  %v3051 = vpop.permute.xlu0 %3050
  %3052 = vrot.lane.b32.xlu0 %v2998, 48
  %v3053 = vpop.permute.xlu0 %3052
  %3054 = vrot.lane.b32.xlu0 %v2999, 48
  %v3055 = vpop.permute.xlu0 %3054
  %3056 = vrot.lane.b32.xlu0 %v3000, 48
  %v3057 = vpop.permute.xlu0 %3056
  %3058 = vrot.lane.b32.xlu0 %v3001, 48
  %v3059 = vpop.permute.xlu0 %3058
  %3060 = vrot.lane.b32.xlu0 %v3002, 48
  %v3061 = vpop.permute.xlu0 %3060
  %3062 = vrot.lane.b32.xlu0 %v3003, 48
  %v3063 = vpop.permute.xlu0 %3062
  %3064 = vrot.lane.b32.xlu0 %v3004, 48
  %v3065 = vpop.permute.xlu0 %3064
  %3066 = vrot.lane.b32.xlu0 %v3005, 48
  %v3067 = vpop.permute.xlu0 %3066
  %3068 = vrot.lane.b32.xlu0 %v3006, 48
  %v3069 = vpop.permute.xlu0 %3068
  %3070 = vrot.lane.b32.xlu0 %v3007, 48
  %v3071 = vpop.permute.xlu0 %3070
  %3072 = vrot.lane.b32.xlu0 %v3008, 48
  %v3073 = vpop.permute.xlu0 %3072
  %3074 = vrot.lane.b32.xlu0 %v3009, 48
  %v3075 = vpop.permute.xlu0 %3074
  %3076 = vrot.lane.b32.xlu0 %v3010, 48
  %v3077 = vpop.permute.xlu0 %3076
  %3078 = vrot.lane.b32.xlu0 %v3011, 48
  %v3079 = vpop.permute.xlu0 %3078
  %3080 = vrot.lane.b32.xlu0 %v3012, 48
  %v3081 = vpop.permute.xlu0 %3080
  %3082 = vrot.lane.b32.xlu0 %v3013, 48
  %v3083 = vpop.permute.xlu0 %3082
  %3084 = vrot.lane.b32.xlu0 %v3014, 48
  %v3085 = vpop.permute.xlu0 %3084
  %3086 = vrot.lane.b32.xlu0 %v3015, 48
  %v3087 = vpop.permute.xlu0 %3086
  %v3088 = vadd.f32 %v2836, %v3017
  %v3089 = vadd.f32 %v2837, %v3019
  %v3090 = vadd.f32 %v2838, %v3021
  %v3091 = vadd.f32 %v2839, %v3023
  %v3092 = vadd.f32 %v2840, %v3025
  %v3093 = vadd.f32 %v2841, %v3027
  %v3094 = vadd.f32 %v2842, %v3029
  %v3095 = vadd.f32 %v2843, %v3031
  %v3096 = vadd.f32 %v2844, %v3033
  %v3097 = vadd.f32 %v2845, %v3035
  %v3098 = vadd.f32 %v2846, %v3037
  %v3099 = vadd.f32 %v2847, %v3039
  %v3100 = vadd.f32 %v2848, %v3041
  %v3101 = vadd.f32 %v2849, %v3043
  %v3102 = vadd.f32 %v2850, %v3045
  %v3103 = vadd.f32 %v2851, %v3047
  %v3104 = vadd.f32 %v2852, %v3049
  %v3105 = vadd.f32 %v2853, %v3051
  %v3106 = vadd.f32 %v2854, %v3053
  %v3107 = vadd.f32 %v2855, %v3055
  %v3108 = vadd.f32 %v2856, %v3057
  %v3109 = vadd.f32 %v2857, %v3059
  %v3110 = vadd.f32 %v2858, %v3061
  %v3111 = vadd.f32 %v2859, %v3063
  %v3112 = vadd.f32 %v2860, %v3065
  %v3113 = vadd.f32 %v2861, %v3067
  %v3114 = vadd.f32 %v2862, %v3069
  %v3115 = vadd.f32 %v2863, %v3071
  %v3116 = vadd.f32 %v2864, %v3073
  %v3117 = vadd.f32 %v2865, %v3075
  %v3118 = vadd.f32 %v2866, %v3077
  %v3119 = vadd.f32 %v2867, %v3079
  %v3120 = vadd.f32 %v2868, %v3081
  %v3121 = vadd.f32 %v2869, %v3083
  %v3122 = vadd.f32 %v2870, %v3085
  %v3123 = vadd.f32 %v2871, %v3087
  %v3124 = vld [vmem:[#allocation2 + $0x10] sm:$0xff]
  %v3125 = vld [vmem:[#allocation2 + $0x18] sm:$0xff]
  %v3126 = vld [vmem:[#allocation2 + $0x20] sm:$0xff]
  %v3127 = vld [vmem:[#allocation2 + $0x28] sm:$0xff]
  %v3128 = vld [vmem:[#allocation2 + $0x30] sm:$0xff]
  %v3129 = vld [vmem:[#allocation2 + $0x38] sm:$0xff]
  %v3130 = vld [vmem:[#allocation2 + $0x40] sm:$0xff]
  %v3131 = vld [vmem:[#allocation2 + $0x48] sm:$0xff]
  %v3132 = vld [vmem:[#allocation2 + $0x50] sm:$0xff]
  %v3133 = vld [vmem:[#allocation2 + $0x58] sm:$0xff]
  %v3134 = vld [vmem:[#allocation2 + $0x60] sm:$0xff]
  %v3135 = vld [vmem:[#allocation2 + $0x68] sm:$0xff]
  %v3136 = vld [vmem:[#allocation2 + $0x70] sm:$0xff]
  %v3137 = vld [vmem:[#allocation2 + $0x78] sm:$0xff]
  %v3138 = vld [vmem:[#allocation2 + $0x80] sm:$0xff]
  %v3139 = vld [vmem:[#allocation2 + $0x88] sm:$0xff]
  %v3140 = vld [vmem:[#allocation2 + $0x90] sm:$0xff]
  %v3141 = vld [vmem:[#allocation2 + $0x98] sm:$0xff]
  %v3142 = vld [vmem:[#allocation2 + $0xa0] sm:$0xff]
  %v3143 = vld [vmem:[#allocation2 + $0xa8] sm:$0xff]
  %v3144 = vld [vmem:[#allocation2 + $0xb0] sm:$0xff]
  %v3145 = vld [vmem:[#allocation2 + $0xb8] sm:$0xff]
  %v3146 = vld [vmem:[#allocation2 + $0xc0] sm:$0xff]
  %v3147 = vld [vmem:[#allocation2 + $0xc8] sm:$0xff]
  %v3148 = vld [vmem:[#allocation2 + $0xd0] sm:$0xff]
  %v3149 = vld [vmem:[#allocation2 + $0xd8] sm:$0xff]
  %v3150 = vld [vmem:[#allocation2 + $0xe0] sm:$0xff]
  %v3151 = vld [vmem:[#allocation2 + $0xe8] sm:$0xff]
  %v3152 = vld [vmem:[#allocation2 + $0xf0] sm:$0xff]
  %v3153 = vld [vmem:[#allocation2 + $0xf8] sm:$0xff]
  %v3154 = vld [vmem:[#allocation2 + $0x100] sm:$0xff]
  %v3155 = vld [vmem:[#allocation2 + $0x108] sm:$0xff]
  %v3156 = vld [vmem:[#allocation2 + $0x110] sm:$0xff]
  %v3157 = vld [vmem:[#allocation2 + $0x118] sm:$0xff]
  %v3158 = vld [vmem:[#allocation2 + $0x120] sm:$0xff]
  %v3159 = vld [vmem:[#allocation2 + $0x128] sm:$0xff]
  %3160 = vrot.lane.b32.xlu0 %v3124, 64
  %v3161 = vpop.permute.xlu0 %3160
  %3162 = vrot.lane.b32.xlu0 %v3125, 64
  %v3163 = vpop.permute.xlu0 %3162
  %3164 = vrot.lane.b32.xlu0 %v3126, 64
  %v3165 = vpop.permute.xlu0 %3164
  %3166 = vrot.lane.b32.xlu0 %v3127, 64
  %v3167 = vpop.permute.xlu0 %3166
  %3168 = vrot.lane.b32.xlu0 %v3128, 64
  %v3169 = vpop.permute.xlu0 %3168
  %3170 = vrot.lane.b32.xlu0 %v3129, 64
  %v3171 = vpop.permute.xlu0 %3170
  %3172 = vrot.lane.b32.xlu0 %v3130, 64
  %v3173 = vpop.permute.xlu0 %3172
  %3174 = vrot.lane.b32.xlu0 %v3131, 64
  %v3175 = vpop.permute.xlu0 %3174
  %3176 = vrot.lane.b32.xlu0 %v3132, 64
  %v3177 = vpop.permute.xlu0 %3176
  %3178 = vrot.lane.b32.xlu0 %v3133, 64
  %v3179 = vpop.permute.xlu0 %3178
  %3180 = vrot.lane.b32.xlu0 %v3134, 64
  %v3181 = vpop.permute.xlu0 %3180
  %3182 = vrot.lane.b32.xlu0 %v3135, 64
  %v3183 = vpop.permute.xlu0 %3182
  %3184 = vrot.lane.b32.xlu0 %v3136, 64
  %v3185 = vpop.permute.xlu0 %3184
  %3186 = vrot.lane.b32.xlu0 %v3137, 64
  %v3187 = vpop.permute.xlu0 %3186
  %3188 = vrot.lane.b32.xlu0 %v3138, 64
  %v3189 = vpop.permute.xlu0 %3188
  %3190 = vrot.lane.b32.xlu0 %v3139, 64
  %v3191 = vpop.permute.xlu0 %3190
  %3192 = vrot.lane.b32.xlu0 %v3140, 64
  %v3193 = vpop.permute.xlu0 %3192
  %3194 = vrot.lane.b32.xlu0 %v3141, 64
  %v3195 = vpop.permute.xlu0 %3194
  %3196 = vrot.lane.b32.xlu0 %v3142, 64
  %v3197 = vpop.permute.xlu0 %3196
  %3198 = vrot.lane.b32.xlu0 %v3143, 64
  %v3199 = vpop.permute.xlu0 %3198
  %3200 = vrot.lane.b32.xlu0 %v3144, 64
  %v3201 = vpop.permute.xlu0 %3200
  %3202 = vrot.lane.b32.xlu0 %v3145, 64
  %v3203 = vpop.permute.xlu0 %3202
  %3204 = vrot.lane.b32.xlu0 %v3146, 64
  %v3205 = vpop.permute.xlu0 %3204
  %3206 = vrot.lane.b32.xlu0 %v3147, 64
  %v3207 = vpop.permute.xlu0 %3206
  %3208 = vrot.lane.b32.xlu0 %v3148, 64
  %v3209 = vpop.permute.xlu0 %3208
  %3210 = vrot.lane.b32.xlu0 %v3149, 64
  %v3211 = vpop.permute.xlu0 %3210
  %3212 = vrot.lane.b32.xlu0 %v3150, 64
  %v3213 = vpop.permute.xlu0 %3212
  %3214 = vrot.lane.b32.xlu0 %v3151, 64
  %v3215 = vpop.permute.xlu0 %3214
  %3216 = vrot.lane.b32.xlu0 %v3152, 64
  %v3217 = vpop.permute.xlu0 %3216
  %3218 = vrot.lane.b32.xlu0 %v3153, 64
  %v3219 = vpop.permute.xlu0 %3218
  %3220 = vrot.lane.b32.xlu0 %v3154, 64
  %v3221 = vpop.permute.xlu0 %3220
  %3222 = vrot.lane.b32.xlu0 %v3155, 64
  %v3223 = vpop.permute.xlu0 %3222
  %3224 = vrot.lane.b32.xlu0 %v3156, 64
  %v3225 = vpop.permute.xlu0 %3224
  %3226 = vrot.lane.b32.xlu0 %v3157, 64
  %v3227 = vpop.permute.xlu0 %3226
  %3228 = vrot.lane.b32.xlu0 %v3158, 64
  %v3229 = vpop.permute.xlu0 %3228
  %3230 = vrot.lane.b32.xlu0 %v3159, 64
  %v3231 = vpop.permute.xlu0 %3230
  %v3232 = vadd.f32 %v3088, %v3161
  %v3233 = vadd.f32 %v3089, %v3163
  %v3234 = vadd.f32 %v3090, %v3165
  %v3235 = vadd.f32 %v3091, %v3167
  %v3236 = vadd.f32 %v3092, %v3169
  %v3237 = vadd.f32 %v3093, %v3171
  %v3238 = vadd.f32 %v3094, %v3173
  %v3239 = vadd.f32 %v3095, %v3175
  %v3240 = vadd.f32 %v3096, %v3177
  %v3241 = vadd.f32 %v3097, %v3179
  %v3242 = vadd.f32 %v3098, %v3181
  %v3243 = vadd.f32 %v3099, %v3183
  %v3244 = vadd.f32 %v3100, %v3185
  %v3245 = vadd.f32 %v3101, %v3187
  %v3246 = vadd.f32 %v3102, %v3189
  %v3247 = vadd.f32 %v3103, %v3191
  %v3248 = vadd.f32 %v3104, %v3193
  %v3249 = vadd.f32 %v3105, %v3195
  %v3250 = vadd.f32 %v3106, %v3197
  %v3251 = vadd.f32 %v3107, %v3199
  %v3252 = vadd.f32 %v3108, %v3201
  %v3253 = vadd.f32 %v3109, %v3203
  %v3254 = vadd.f32 %v3110, %v3205
  %v3255 = vadd.f32 %v3111, %v3207
  %v3256 = vadd.f32 %v3112, %v3209
  %v3257 = vadd.f32 %v3113, %v3211
  %v3258 = vadd.f32 %v3114, %v3213
  %v3259 = vadd.f32 %v3115, %v3215
  %v3260 = vadd.f32 %v3116, %v3217
  %v3261 = vadd.f32 %v3117, %v3219
  %v3262 = vadd.f32 %v3118, %v3221
  %v3263 = vadd.f32 %v3119, %v3223
  %v3264 = vadd.f32 %v3120, %v3225
  %v3265 = vadd.f32 %v3121, %v3227
  %v3266 = vadd.f32 %v3122, %v3229
  %v3267 = vadd.f32 %v3123, %v3231
  %v3268 = vld [vmem:[#allocation2 + $0x11] sm:$0xff]
  %v3269 = vld [vmem:[#allocation2 + $0x19] sm:$0xff]
  %v3270 = vld [vmem:[#allocation2 + $0x21] sm:$0xff]
  %v3271 = vld [vmem:[#allocation2 + $0x29] sm:$0xff]
  %v3272 = vld [vmem:[#allocation2 + $0x31] sm:$0xff]
  %v3273 = vld [vmem:[#allocation2 + $0x39] sm:$0xff]
  %v3274 = vld [vmem:[#allocation2 + $0x41] sm:$0xff]
  %v3275 = vld [vmem:[#allocation2 + $0x49] sm:$0xff]
  %v3276 = vld [vmem:[#allocation2 + $0x51] sm:$0xff]
  %v3277 = vld [vmem:[#allocation2 + $0x59] sm:$0xff]
  %v3278 = vld [vmem:[#allocation2 + $0x61] sm:$0xff]
  %v3279 = vld [vmem:[#allocation2 + $0x69] sm:$0xff]
  %v3280 = vld [vmem:[#allocation2 + $0x71] sm:$0xff]
  %v3281 = vld [vmem:[#allocation2 + $0x79] sm:$0xff]
  %v3282 = vld [vmem:[#allocation2 + $0x81] sm:$0xff]
  %v3283 = vld [vmem:[#allocation2 + $0x89] sm:$0xff]
  %v3284 = vld [vmem:[#allocation2 + $0x91] sm:$0xff]
  %v3285 = vld [vmem:[#allocation2 + $0x99] sm:$0xff]
  %v3286 = vld [vmem:[#allocation2 + $0xa1] sm:$0xff]
  %v3287 = vld [vmem:[#allocation2 + $0xa9] sm:$0xff]
  %v3288 = vld [vmem:[#allocation2 + $0xb1] sm:$0xff]
  %v3289 = vld [vmem:[#allocation2 + $0xb9] sm:$0xff]
  %v3290 = vld [vmem:[#allocation2 + $0xc1] sm:$0xff]
  %v3291 = vld [vmem:[#allocation2 + $0xc9] sm:$0xff]
  %v3292 = vld [vmem:[#allocation2 + $0xd1] sm:$0xff]
  %v3293 = vld [vmem:[#allocation2 + $0xd9] sm:$0xff]
  %v3294 = vld [vmem:[#allocation2 + $0xe1] sm:$0xff]
  %v3295 = vld [vmem:[#allocation2 + $0xe9] sm:$0xff]
  %v3296 = vld [vmem:[#allocation2 + $0xf1] sm:$0xff]
  %v3297 = vld [vmem:[#allocation2 + $0xf9] sm:$0xff]
  %v3298 = vld [vmem:[#allocation2 + $0x101] sm:$0xff]
  %v3299 = vld [vmem:[#allocation2 + $0x109] sm:$0xff]
  %v3300 = vld [vmem:[#allocation2 + $0x111] sm:$0xff]
  %v3301 = vld [vmem:[#allocation2 + $0x119] sm:$0xff]
  %v3302 = vld [vmem:[#allocation2 + $0x121] sm:$0xff]
  %v3303 = vld [vmem:[#allocation2 + $0x129] sm:$0xff]
  %v3304 = vsel %vm1792, 1, 0
  %v3305 = vsel %vm1793, 1, 0
  %v3306 = vsel %vm1794, 1, 0
  %v3307 = vsel %vm1795, 1, 0
  %v3308 = vsel %vm1796, 1, 0
  %v3309 = vsel %vm1797, 1, 0
  %v3310 = vsel %vm1798, 1, 0
  %v3311 = vsel %vm1799, 1, 0
  %v3312 = vsel %vm1800, 1, 0
  %v3313 = vsel %vm1801, 1, 0
  %v3314 = vsel %vm1802, 1, 0
  %v3315 = vsel %vm1803, 1, 0
  %v3316 = vsel %vm1804, 1, 0
  %v3317 = vsel %vm1805, 1, 0
  %v3318 = vsel %vm1806, 1, 0
  %v3319 = vsel %vm1807, 1, 0
  %v3320 = vsel %vm1808, 1, 0
  %v3321 = vsel %vm1809, 1, 0
  %v3322 = vsel %vm1810, 1, 0
  %v3323 = vsel %vm1811, 1, 0
  %v3324 = vsel %vm1812, 1, 0
  %v3325 = vsel %vm1813, 1, 0
  %v3326 = vsel %vm1814, 1, 0
  %v3327 = vsel %vm1815, 1, 0
  %v3328 = vsel %vm1816, 1, 0
  %v3329 = vsel %vm1817, 1, 0
  %v3330 = vsel %vm1818, 1, 0
  %v3331 = vsel %vm1819, 1, 0
  %v3332 = vsel %vm1820, 1, 0
  %v3333 = vsel %vm1821, 1, 0
  %v3334 = vsel %vm1822, 1, 0
  %v3335 = vsel %vm1823, 1, 0
  %v3336 = vsel %vm1824, 1, 0
  %v3337 = vsel %vm1825, 1, 0
  %v3338 = vsel %vm1826, 1, 0
  %v3339 = vsel %vm1827, 1, 0
  %vm3340 = vcmp.eq.s32.totalorder %v3304, 1
  %vm3341 = vcmp.eq.s32.totalorder %v3305, 1
  %vm3342 = vcmp.eq.s32.totalorder %v3306, 1
  %vm3343 = vcmp.eq.s32.totalorder %v3307, 1
  %vm3344 = vcmp.eq.s32.totalorder %v3308, 1
  %vm3345 = vcmp.eq.s32.totalorder %v3309, 1
  %vm3346 = vcmp.eq.s32.totalorder %v3310, 1
  %vm3347 = vcmp.eq.s32.totalorder %v3311, 1
  %vm3348 = vcmp.eq.s32.totalorder %v3312, 1
  %vm3349 = vcmp.eq.s32.totalorder %v3313, 1
  %vm3350 = vcmp.eq.s32.totalorder %v3314, 1
  %vm3351 = vcmp.eq.s32.totalorder %v3315, 1
  %vm3352 = vcmp.eq.s32.totalorder %v3316, 1
  %vm3353 = vcmp.eq.s32.totalorder %v3317, 1
  %vm3354 = vcmp.eq.s32.totalorder %v3318, 1
  %vm3355 = vcmp.eq.s32.totalorder %v3319, 1
  %vm3356 = vcmp.eq.s32.totalorder %v3320, 1
  %vm3357 = vcmp.eq.s32.totalorder %v3321, 1
  %vm3358 = vcmp.eq.s32.totalorder %v3322, 1
  %vm3359 = vcmp.eq.s32.totalorder %v3323, 1
  %vm3360 = vcmp.eq.s32.totalorder %v3324, 1
  %vm3361 = vcmp.eq.s32.totalorder %v3325, 1
  %vm3362 = vcmp.eq.s32.totalorder %v3326, 1
  %vm3363 = vcmp.eq.s32.totalorder %v3327, 1
  %vm3364 = vcmp.eq.s32.totalorder %v3328, 1
  %vm3365 = vcmp.eq.s32.totalorder %v3329, 1
  %vm3366 = vcmp.eq.s32.totalorder %v3330, 1
  %vm3367 = vcmp.eq.s32.totalorder %v3331, 1
  %vm3368 = vcmp.eq.s32.totalorder %v3332, 1
  %vm3369 = vcmp.eq.s32.totalorder %v3333, 1
  %vm3370 = vcmp.eq.s32.totalorder %v3334, 1
  %vm3371 = vcmp.eq.s32.totalorder %v3335, 1
  %vm3372 = vcmp.eq.s32.totalorder %v3336, 1
  %vm3373 = vcmp.eq.s32.totalorder %v3337, 1
  %vm3374 = vcmp.eq.s32.totalorder %v3338, 1
  %vm3375 = vcmp.eq.s32.totalorder %v3339, 1
  %v3376 = vsel %vm3340, %v3268, 0.0
  %v3377 = vsel %vm3341, %v3269, 0.0
  %v3378 = vsel %vm3342, %v3270, 0.0
  %v3379 = vsel %vm3343, %v3271, 0.0
  %v3380 = vsel %vm3344, %v3272, 0.0
  %v3381 = vsel %vm3345, %v3273, 0.0
  %v3382 = vsel %vm3346, %v3274, 0.0
  %v3383 = vsel %vm3347, %v3275, 0.0
  %v3384 = vsel %vm3348, %v3276, 0.0
  %v3385 = vsel %vm3349, %v3277, 0.0
  %v3386 = vsel %vm3350, %v3278, 0.0
  %v3387 = vsel %vm3351, %v3279, 0.0
  %v3388 = vsel %vm3352, %v3280, 0.0
  %v3389 = vsel %vm3353, %v3281, 0.0
  %v3390 = vsel %vm3354, %v3282, 0.0
  %v3391 = vsel %vm3355, %v3283, 0.0
  %v3392 = vsel %vm3356, %v3284, 0.0
  %v3393 = vsel %vm3357, %v3285, 0.0
  %v3394 = vsel %vm3358, %v3286, 0.0
  %v3395 = vsel %vm3359, %v3287, 0.0
  %v3396 = vsel %vm3360, %v3288, 0.0
  %v3397 = vsel %vm3361, %v3289, 0.0
  %v3398 = vsel %vm3362, %v3290, 0.0
  %v3399 = vsel %vm3363, %v3291, 0.0
  %v3400 = vsel %vm3364, %v3292, 0.0
  %v3401 = vsel %vm3365, %v3293, 0.0
  %v3402 = vsel %vm3366, %v3294, 0.0
  %v3403 = vsel %vm3367, %v3295, 0.0
  %v3404 = vsel %vm3368, %v3296, 0.0
  %v3405 = vsel %vm3369, %v3297, 0.0
  %v3406 = vsel %vm3370, %v3298, 0.0
  %v3407 = vsel %vm3371, %v3299, 0.0
  %v3408 = vsel %vm3372, %v3300, 0.0
  %v3409 = vsel %vm3373, %v3301, 0.0
  %v3410 = vsel %vm3374, %v3302, 0.0
  %v3411 = vsel %vm3375, %v3303, 0.0
  %3412 = vrot.lane.b32.xlu0 %v3376, 80
  %v3413 = vpop.permute.xlu0 %3412
  %3414 = vrot.lane.b32.xlu0 %v3377, 80
  %v3415 = vpop.permute.xlu0 %3414
  %3416 = vrot.lane.b32.xlu0 %v3378, 80
  %v3417 = vpop.permute.xlu0 %3416
  %3418 = vrot.lane.b32.xlu0 %v3379, 80
  %v3419 = vpop.permute.xlu0 %3418
  %3420 = vrot.lane.b32.xlu0 %v3380, 80
  %v3421 = vpop.permute.xlu0 %3420
  %3422 = vrot.lane.b32.xlu0 %v3381, 80
  %v3423 = vpop.permute.xlu0 %3422
  %3424 = vrot.lane.b32.xlu0 %v3382, 80
  %v3425 = vpop.permute.xlu0 %3424
  %3426 = vrot.lane.b32.xlu0 %v3383, 80
  %v3427 = vpop.permute.xlu0 %3426
  %3428 = vrot.lane.b32.xlu0 %v3384, 80
  %v3429 = vpop.permute.xlu0 %3428
  %3430 = vrot.lane.b32.xlu0 %v3385, 80
  %v3431 = vpop.permute.xlu0 %3430
  %3432 = vrot.lane.b32.xlu0 %v3386, 80
  %v3433 = vpop.permute.xlu0 %3432
  %3434 = vrot.lane.b32.xlu0 %v3387, 80
  %v3435 = vpop.permute.xlu0 %3434
  %3436 = vrot.lane.b32.xlu0 %v3388, 80
  %v3437 = vpop.permute.xlu0 %3436
  %3438 = vrot.lane.b32.xlu0 %v3389, 80
  %v3439 = vpop.permute.xlu0 %3438
  %3440 = vrot.lane.b32.xlu0 %v3390, 80
  %v3441 = vpop.permute.xlu0 %3440
  %3442 = vrot.lane.b32.xlu0 %v3391, 80
  %v3443 = vpop.permute.xlu0 %3442
  %3444 = vrot.lane.b32.xlu0 %v3392, 80
  %v3445 = vpop.permute.xlu0 %3444
  %3446 = vrot.lane.b32.xlu0 %v3393, 80
  %v3447 = vpop.permute.xlu0 %3446
  %3448 = vrot.lane.b32.xlu0 %v3394, 80
  %v3449 = vpop.permute.xlu0 %3448
  %3450 = vrot.lane.b32.xlu0 %v3395, 80
  %v3451 = vpop.permute.xlu0 %3450
  %3452 = vrot.lane.b32.xlu0 %v3396, 80
  %v3453 = vpop.permute.xlu0 %3452
  %3454 = vrot.lane.b32.xlu0 %v3397, 80
  %v3455 = vpop.permute.xlu0 %3454
  %3456 = vrot.lane.b32.xlu0 %v3398, 80
  %v3457 = vpop.permute.xlu0 %3456
  %3458 = vrot.lane.b32.xlu0 %v3399, 80
  %v3459 = vpop.permute.xlu0 %3458
  %3460 = vrot.lane.b32.xlu0 %v3400, 80
  %v3461 = vpop.permute.xlu0 %3460
  %3462 = vrot.lane.b32.xlu0 %v3401, 80
  %v3463 = vpop.permute.xlu0 %3462
  %3464 = vrot.lane.b32.xlu0 %v3402, 80
  %v3465 = vpop.permute.xlu0 %3464
  %3466 = vrot.lane.b32.xlu0 %v3403, 80
  %v3467 = vpop.permute.xlu0 %3466
  %3468 = vrot.lane.b32.xlu0 %v3404, 80
  %v3469 = vpop.permute.xlu0 %3468
  %3470 = vrot.lane.b32.xlu0 %v3405, 80
  %v3471 = vpop.permute.xlu0 %3470
  %3472 = vrot.lane.b32.xlu0 %v3406, 80
  %v3473 = vpop.permute.xlu0 %3472
  %3474 = vrot.lane.b32.xlu0 %v3407, 80
  %v3475 = vpop.permute.xlu0 %3474
  %3476 = vrot.lane.b32.xlu0 %v3408, 80
  %v3477 = vpop.permute.xlu0 %3476
  %3478 = vrot.lane.b32.xlu0 %v3409, 80
  %v3479 = vpop.permute.xlu0 %3478
  %3480 = vrot.lane.b32.xlu0 %v3410, 80
  %v3481 = vpop.permute.xlu0 %3480
  %3482 = vrot.lane.b32.xlu0 %v3411, 80
  %v3483 = vpop.permute.xlu0 %3482
  %v3484 = vadd.f32 %v3232, %v3413
  %v3485 = vadd.f32 %v3233, %v3415
  %v3486 = vadd.f32 %v3234, %v3417
  %v3487 = vadd.f32 %v3235, %v3419
  %v3488 = vadd.f32 %v3236, %v3421
  %v3489 = vadd.f32 %v3237, %v3423
  %v3490 = vadd.f32 %v3238, %v3425
  %v3491 = vadd.f32 %v3239, %v3427
  %v3492 = vadd.f32 %v3240, %v3429
  %v3493 = vadd.f32 %v3241, %v3431
  %v3494 = vadd.f32 %v3242, %v3433
  %v3495 = vadd.f32 %v3243, %v3435
  %v3496 = vadd.f32 %v3244, %v3437
  %v3497 = vadd.f32 %v3245, %v3439
  %v3498 = vadd.f32 %v3246, %v3441
  %v3499 = vadd.f32 %v3247, %v3443
  %v3500 = vadd.f32 %v3248, %v3445
  %v3501 = vadd.f32 %v3249, %v3447
  %v3502 = vadd.f32 %v3250, %v3449
  %v3503 = vadd.f32 %v3251, %v3451
  %v3504 = vadd.f32 %v3252, %v3453
  %v3505 = vadd.f32 %v3253, %v3455
  %v3506 = vadd.f32 %v3254, %v3457
  %v3507 = vadd.f32 %v3255, %v3459
  %v3508 = vadd.f32 %v3256, %v3461
  %v3509 = vadd.f32 %v3257, %v3463
  %v3510 = vadd.f32 %v3258, %v3465
  %v3511 = vadd.f32 %v3259, %v3467
  %v3512 = vadd.f32 %v3260, %v3469
  %v3513 = vadd.f32 %v3261, %v3471
  %v3514 = vadd.f32 %v3262, %v3473
  %v3515 = vadd.f32 %v3263, %v3475
  %v3516 = vadd.f32 %v3264, %v3477
  %v3517 = vadd.f32 %v3265, %v3479
  %v3518 = vadd.f32 %v3266, %v3481
  %v3519 = vadd.f32 %v3267, %v3483
  %v3520 = vld [vmem:[#allocation2 + $0x123] sm:$0xff]
  %v3521 = vld [vmem:[#allocation2 + $0x12b] sm:$0xff]
  %v3522 = vld [vmem:[#allocation2 + $0x133] sm:$0xff]
  %v3523 = vsel %vm2008, 1, 0
  %v3524 = vsel %vm2009, 1, 0
  %v3525 = vsel %vm2010, 1, 0
  %v3526 = vsel %vm2011, 1, 0
  %v3527 = vsel %vm2012, 1, 0
  %v3528 = vsel %vm2013, 1, 0
  %v3529 = vsel %vm2014, 1, 0
  %v3530 = vsel %vm2015, 1, 0
  %v3531 = vsel %vm2016, 1, 0
  %v3532 = vsel %vm2017, 1, 0
  %v3533 = vsel %vm2018, 1, 0
  %v3534 = vsel %vm2019, 1, 0
  %v3535 = vsel %vm2020, 1, 0
  %v3536 = vsel %vm2021, 1, 0
  %v3537 = vsel %vm2022, 1, 0
  %v3538 = vsel %vm2023, 1, 0
  %v3539 = vsel %vm2024, 1, 0
  %v3540 = vsel %vm2025, 1, 0
  %v3541 = vsel %vm2026, 1, 0
  %v3542 = vsel %vm2027, 1, 0
  %v3543 = vsel %vm2028, 1, 0
  %v3544 = vsel %vm2029, 1, 0
  %v3545 = vsel %vm2030, 1, 0
  %v3546 = vsel %vm2031, 1, 0
  %v3547 = vsel %vm2032, 1, 0
  %v3548 = vsel %vm2033, 1, 0
  %v3549 = vsel %vm2034, 1, 0
  %v3550 = vsel %vm2035, 1, 0
  %v3551 = vsel %vm2036, 1, 0
  %v3552 = vsel %vm2037, 1, 0
  %v3553 = vsel %vm2038, 1, 0
  %v3554 = vsel %vm2039, 1, 0
  %v3555 = vsel %vm2040, 1, 0
  %v3556 = vsel %vm2041, 1, 0
  %v3557 = vsel %vm2042, 1, 0
  %v3558 = vsel %vm2043, 1, 0
  %vm3559 = vcmp.eq.s32.totalorder %v3523, 1
  %vm3560 = vcmp.eq.s32.totalorder %v3524, 1
  %vm3561 = vcmp.eq.s32.totalorder %v3525, 1
  %vm3562 = vcmp.eq.s32.totalorder %v3526, 1
  %vm3563 = vcmp.eq.s32.totalorder %v3527, 1
  %vm3564 = vcmp.eq.s32.totalorder %v3528, 1
  %vm3565 = vcmp.eq.s32.totalorder %v3529, 1
  %vm3566 = vcmp.eq.s32.totalorder %v3530, 1
  %vm3567 = vcmp.eq.s32.totalorder %v3531, 1
  %vm3568 = vcmp.eq.s32.totalorder %v3532, 1
  %vm3569 = vcmp.eq.s32.totalorder %v3533, 1
  %vm3570 = vcmp.eq.s32.totalorder %v3534, 1
  %vm3571 = vcmp.eq.s32.totalorder %v3535, 1
  %vm3572 = vcmp.eq.s32.totalorder %v3536, 1
  %vm3573 = vcmp.eq.s32.totalorder %v3537, 1
  %vm3574 = vcmp.eq.s32.totalorder %v3538, 1
  %vm3575 = vcmp.eq.s32.totalorder %v3539, 1
  %vm3576 = vcmp.eq.s32.totalorder %v3540, 1
  %vm3577 = vcmp.eq.s32.totalorder %v3541, 1
  %vm3578 = vcmp.eq.s32.totalorder %v3542, 1
  %vm3579 = vcmp.eq.s32.totalorder %v3543, 1
  %vm3580 = vcmp.eq.s32.totalorder %v3544, 1
  %vm3581 = vcmp.eq.s32.totalorder %v3545, 1
  %vm3582 = vcmp.eq.s32.totalorder %v3546, 1
  %vm3583 = vcmp.eq.s32.totalorder %v3547, 1
  %vm3584 = vcmp.eq.s32.totalorder %v3548, 1
  %vm3585 = vcmp.eq.s32.totalorder %v3549, 1
  %vm3586 = vcmp.eq.s32.totalorder %v3550, 1
  %vm3587 = vcmp.eq.s32.totalorder %v3551, 1
  %vm3588 = vcmp.eq.s32.totalorder %v3552, 1
  %vm3589 = vcmp.eq.s32.totalorder %v3553, 1
  %vm3590 = vcmp.eq.s32.totalorder %v3554, 1
  %vm3591 = vcmp.eq.s32.totalorder %v3555, 1
  %vm3592 = vcmp.eq.s32.totalorder %v3556, 1
  %vm3593 = vcmp.eq.s32.totalorder %v3557, 1
  %vm3594 = vcmp.eq.s32.totalorder %v3558, 1
  %v3595 = vsel %vm3559, %v2227, 0.0
  %v3596 = vsel %vm3560, %v2228, 0.0
  %v3597 = vsel %vm3561, %v2229, 0.0
  %v3598 = vsel %vm3562, %v2230, 0.0
  %v3599 = vsel %vm3563, %v2231, 0.0
  %v3600 = vsel %vm3564, %v2232, 0.0
  %v3601 = vsel %vm3565, %v2233, 0.0
  %v3602 = vsel %vm3566, %v2234, 0.0
  %v3603 = vsel %vm3567, %v2235, 0.0
  %v3604 = vsel %vm3568, %v2236, 0.0
  %v3605 = vsel %vm3569, %v2237, 0.0
  %v3606 = vsel %vm3570, %v2238, 0.0
  %v3607 = vsel %vm3571, %v2239, 0.0
  %v3608 = vsel %vm3572, %v2240, 0.0
  %v3609 = vsel %vm3573, %v2241, 0.0
  %v3610 = vsel %vm3574, %v2242, 0.0
  %v3611 = vsel %vm3575, %v2243, 0.0
  %v3612 = vsel %vm3576, %v2244, 0.0
  %v3613 = vsel %vm3577, %v2245, 0.0
  %v3614 = vsel %vm3578, %v2246, 0.0
  %v3615 = vsel %vm3579, %v2247, 0.0
  %v3616 = vsel %vm3580, %v2248, 0.0
  %v3617 = vsel %vm3581, %v2249, 0.0
  %v3618 = vsel %vm3582, %v2250, 0.0
  %v3619 = vsel %vm3583, %v2251, 0.0
  %v3620 = vsel %vm3584, %v2252, 0.0
  %v3621 = vsel %vm3585, %v2253, 0.0
  %v3622 = vsel %vm3586, %v2254, 0.0
  %v3623 = vsel %vm3587, %v2255, 0.0
  %v3624 = vsel %vm3588, %v2256, 0.0
  %v3625 = vsel %vm3589, %v2257, 0.0
  %v3626 = vsel %vm3590, %v2258, 0.0
  %v3627 = vsel %vm3591, %v2259, 0.0
  %v3628 = vsel %vm3592, %v3520, 0.0
  %v3629 = vsel %vm3593, %v3521, 0.0
  %v3630 = vsel %vm3594, %v3522, 0.0
  %3631 = vrot.lane.b32.xlu0 %v3595, 96
  %v3632 = vpop.permute.xlu0 %3631
  %3633 = vrot.lane.b32.xlu0 %v3596, 96
  %v3634 = vpop.permute.xlu0 %3633
  %3635 = vrot.lane.b32.xlu0 %v3597, 96
  %v3636 = vpop.permute.xlu0 %3635
  %3637 = vrot.lane.b32.xlu0 %v3598, 96
  %v3638 = vpop.permute.xlu0 %3637
  %3639 = vrot.lane.b32.xlu0 %v3599, 96
  %v3640 = vpop.permute.xlu0 %3639
  %3641 = vrot.lane.b32.xlu0 %v3600, 96
  %v3642 = vpop.permute.xlu0 %3641
  %3643 = vrot.lane.b32.xlu0 %v3601, 96
  %v3644 = vpop.permute.xlu0 %3643
  %3645 = vrot.lane.b32.xlu0 %v3602, 96
  %v3646 = vpop.permute.xlu0 %3645
  %3647 = vrot.lane.b32.xlu0 %v3603, 96
  %v3648 = vpop.permute.xlu0 %3647
  %3649 = vrot.lane.b32.xlu0 %v3604, 96
  %v3650 = vpop.permute.xlu0 %3649
  %3651 = vrot.lane.b32.xlu0 %v3605, 96
  %v3652 = vpop.permute.xlu0 %3651
  %3653 = vrot.lane.b32.xlu0 %v3606, 96
  %v3654 = vpop.permute.xlu0 %3653
  %3655 = vrot.lane.b32.xlu0 %v3607, 96
  %v3656 = vpop.permute.xlu0 %3655
  %3657 = vrot.lane.b32.xlu0 %v3608, 96
  %v3658 = vpop.permute.xlu0 %3657
  %3659 = vrot.lane.b32.xlu0 %v3609, 96
  %v3660 = vpop.permute.xlu0 %3659
  %3661 = vrot.lane.b32.xlu0 %v3610, 96
  %v3662 = vpop.permute.xlu0 %3661
  %3663 = vrot.lane.b32.xlu0 %v3611, 96
  %v3664 = vpop.permute.xlu0 %3663
  %3665 = vrot.lane.b32.xlu0 %v3612, 96
  %v3666 = vpop.permute.xlu0 %3665
  %3667 = vrot.lane.b32.xlu0 %v3613, 96
  %v3668 = vpop.permute.xlu0 %3667
  %3669 = vrot.lane.b32.xlu0 %v3614, 96
  %v3670 = vpop.permute.xlu0 %3669
  %3671 = vrot.lane.b32.xlu0 %v3615, 96
  %v3672 = vpop.permute.xlu0 %3671
  %3673 = vrot.lane.b32.xlu0 %v3616, 96
  %v3674 = vpop.permute.xlu0 %3673
  %3675 = vrot.lane.b32.xlu0 %v3617, 96
  %v3676 = vpop.permute.xlu0 %3675
  %3677 = vrot.lane.b32.xlu0 %v3618, 96
  %v3678 = vpop.permute.xlu0 %3677
  %3679 = vrot.lane.b32.xlu0 %v3619, 96
  %v3680 = vpop.permute.xlu0 %3679
  %3681 = vrot.lane.b32.xlu0 %v3620, 96
  %v3682 = vpop.permute.xlu0 %3681
  %3683 = vrot.lane.b32.xlu0 %v3621, 96
  %v3684 = vpop.permute.xlu0 %3683
  %3685 = vrot.lane.b32.xlu0 %v3622, 96
  %v3686 = vpop.permute.xlu0 %3685
  %3687 = vrot.lane.b32.xlu0 %v3623, 96
  %v3688 = vpop.permute.xlu0 %3687
  %3689 = vrot.lane.b32.xlu0 %v3624, 96
  %v3690 = vpop.permute.xlu0 %3689
  %3691 = vrot.lane.b32.xlu0 %v3625, 96
  %v3692 = vpop.permute.xlu0 %3691
  %3693 = vrot.lane.b32.xlu0 %v3626, 96
  %v3694 = vpop.permute.xlu0 %3693
  %3695 = vrot.lane.b32.xlu0 %v3627, 96
  %v3696 = vpop.permute.xlu0 %3695
  %3697 = vrot.lane.b32.xlu0 %v3628, 96
  %v3698 = vpop.permute.xlu0 %3697
  %3699 = vrot.lane.b32.xlu0 %v3629, 96
  %v3700 = vpop.permute.xlu0 %3699
  %3701 = vrot.lane.b32.xlu0 %v3630, 96
  %v3702 = vpop.permute.xlu0 %3701
  %v3703 = vadd.f32 %v3484, %v3632
  %v3704 = vadd.f32 %v3485, %v3634
  %v3705 = vadd.f32 %v3486, %v3636
  %v3706 = vadd.f32 %v3487, %v3638
  %v3707 = vadd.f32 %v3488, %v3640
  %v3708 = vadd.f32 %v3489, %v3642
  %v3709 = vadd.f32 %v3490, %v3644
  %v3710 = vadd.f32 %v3491, %v3646
  %v3711 = vadd.f32 %v3492, %v3648
  %v3712 = vadd.f32 %v3493, %v3650
  %v3713 = vadd.f32 %v3494, %v3652
  %v3714 = vadd.f32 %v3495, %v3654
  %v3715 = vadd.f32 %v3496, %v3656
  %v3716 = vadd.f32 %v3497, %v3658
  %v3717 = vadd.f32 %v3498, %v3660
  %v3718 = vadd.f32 %v3499, %v3662
  %v3719 = vadd.f32 %v3500, %v3664
  %v3720 = vadd.f32 %v3501, %v3666
  %v3721 = vadd.f32 %v3502, %v3668
  %v3722 = vadd.f32 %v3503, %v3670
  %v3723 = vadd.f32 %v3504, %v3672
  %v3724 = vadd.f32 %v3505, %v3674
  %v3725 = vadd.f32 %v3506, %v3676
  %v3726 = vadd.f32 %v3507, %v3678
  %v3727 = vadd.f32 %v3508, %v3680
  %v3728 = vadd.f32 %v3509, %v3682
  %v3729 = vadd.f32 %v3510, %v3684
  %v3730 = vadd.f32 %v3511, %v3686
  %v3731 = vadd.f32 %v3512, %v3688
  %v3732 = vadd.f32 %v3513, %v3690
  %v3733 = vadd.f32 %v3514, %v3692
  %v3734 = vadd.f32 %v3515, %v3694
  %v3735 = vadd.f32 %v3516, %v3696
  %v3736 = vadd.f32 %v3517, %v3698
  %v3737 = vadd.f32 %v3518, %v3700
  %v3738 = vadd.f32 %v3519, %v3702
  %v3739 = vld [vmem:[#allocation2 + $0x124] sm:$0xff]
  %v3740 = vld [vmem:[#allocation2 + $0x12c] sm:$0xff]
  %v3741 = vld [vmem:[#allocation2 + $0x134] sm:$0xff]
  %v3742 = vsel %vm2080, 1, 0
  %v3743 = vsel %vm2081, 1, 0
  %v3744 = vsel %vm2082, 1, 0
  %v3745 = vsel %vm2083, 1, 0
  %v3746 = vsel %vm2084, 1, 0
  %v3747 = vsel %vm2085, 1, 0
  %v3748 = vsel %vm2086, 1, 0
  %v3749 = vsel %vm2087, 1, 0
  %v3750 = vsel %vm2088, 1, 0
  %v3751 = vsel %vm2089, 1, 0
  %v3752 = vsel %vm2090, 1, 0
  %v3753 = vsel %vm2091, 1, 0
  %v3754 = vsel %vm2092, 1, 0
  %v3755 = vsel %vm2093, 1, 0
  %v3756 = vsel %vm2094, 1, 0
  %v3757 = vsel %vm2095, 1, 0
  %v3758 = vsel %vm2096, 1, 0
  %v3759 = vsel %vm2097, 1, 0
  %v3760 = vsel %vm2098, 1, 0
  %v3761 = vsel %vm2099, 1, 0
  %v3762 = vsel %vm2100, 1, 0
  %v3763 = vsel %vm2101, 1, 0
  %v3764 = vsel %vm2102, 1, 0
  %v3765 = vsel %vm2103, 1, 0
  %v3766 = vsel %vm2104, 1, 0
  %v3767 = vsel %vm2105, 1, 0
  %v3768 = vsel %vm2106, 1, 0
  %v3769 = vsel %vm2107, 1, 0
  %v3770 = vsel %vm2108, 1, 0
  %v3771 = vsel %vm2109, 1, 0
  %v3772 = vsel %vm2110, 1, 0
  %v3773 = vsel %vm2111, 1, 0
  %v3774 = vsel %vm2112, 1, 0
  %v3775 = vsel %vm2113, 1, 0
  %v3776 = vsel %vm2114, 1, 0
  %v3777 = vsel %vm2115, 1, 0
  %vm3778 = vcmp.eq.s32.totalorder %v3742, 1
  %vm3779 = vcmp.eq.s32.totalorder %v3743, 1
  %vm3780 = vcmp.eq.s32.totalorder %v3744, 1
  %vm3781 = vcmp.eq.s32.totalorder %v3745, 1
  %vm3782 = vcmp.eq.s32.totalorder %v3746, 1
  %vm3783 = vcmp.eq.s32.totalorder %v3747, 1
  %vm3784 = vcmp.eq.s32.totalorder %v3748, 1
  %vm3785 = vcmp.eq.s32.totalorder %v3749, 1
  %vm3786 = vcmp.eq.s32.totalorder %v3750, 1
  %vm3787 = vcmp.eq.s32.totalorder %v3751, 1
  %vm3788 = vcmp.eq.s32.totalorder %v3752, 1
  %vm3789 = vcmp.eq.s32.totalorder %v3753, 1
  %vm3790 = vcmp.eq.s32.totalorder %v3754, 1
  %vm3791 = vcmp.eq.s32.totalorder %v3755, 1
  %vm3792 = vcmp.eq.s32.totalorder %v3756, 1
  %vm3793 = vcmp.eq.s32.totalorder %v3757, 1
  %vm3794 = vcmp.eq.s32.totalorder %v3758, 1
  %vm3795 = vcmp.eq.s32.totalorder %v3759, 1
  %vm3796 = vcmp.eq.s32.totalorder %v3760, 1
  %vm3797 = vcmp.eq.s32.totalorder %v3761, 1
  %vm3798 = vcmp.eq.s32.totalorder %v3762, 1
  %vm3799 = vcmp.eq.s32.totalorder %v3763, 1
  %vm3800 = vcmp.eq.s32.totalorder %v3764, 1
  %vm3801 = vcmp.eq.s32.totalorder %v3765, 1
  %vm3802 = vcmp.eq.s32.totalorder %v3766, 1
  %vm3803 = vcmp.eq.s32.totalorder %v3767, 1
  %vm3804 = vcmp.eq.s32.totalorder %v3768, 1
  %vm3805 = vcmp.eq.s32.totalorder %v3769, 1
  %vm3806 = vcmp.eq.s32.totalorder %v3770, 1
  %vm3807 = vcmp.eq.s32.totalorder %v3771, 1
  %vm3808 = vcmp.eq.s32.totalorder %v3772, 1
  %vm3809 = vcmp.eq.s32.totalorder %v3773, 1
  %vm3810 = vcmp.eq.s32.totalorder %v3774, 1
  %vm3811 = vcmp.eq.s32.totalorder %v3775, 1
  %vm3812 = vcmp.eq.s32.totalorder %v3776, 1
  %vm3813 = vcmp.eq.s32.totalorder %v3777, 1
  %v3814 = vsel %vm3778, %v2371, 0.0
  %v3815 = vsel %vm3779, %v2372, 0.0
  %v3816 = vsel %vm3780, %v2373, 0.0
  %v3817 = vsel %vm3781, %v2374, 0.0
  %v3818 = vsel %vm3782, %v2375, 0.0
  %v3819 = vsel %vm3783, %v2376, 0.0
  %v3820 = vsel %vm3784, %v2377, 0.0
  %v3821 = vsel %vm3785, %v2378, 0.0
  %v3822 = vsel %vm3786, %v2379, 0.0
  %v3823 = vsel %vm3787, %v2380, 0.0
  %v3824 = vsel %vm3788, %v2381, 0.0
  %v3825 = vsel %vm3789, %v2382, 0.0
  %v3826 = vsel %vm3790, %v2383, 0.0
  %v3827 = vsel %vm3791, %v2384, 0.0
  %v3828 = vsel %vm3792, %v2385, 0.0
  %v3829 = vsel %vm3793, %v2386, 0.0
  %v3830 = vsel %vm3794, %v2387, 0.0
  %v3831 = vsel %vm3795, %v2388, 0.0
  %v3832 = vsel %vm3796, %v2389, 0.0
  %v3833 = vsel %vm3797, %v2390, 0.0
  %v3834 = vsel %vm3798, %v2391, 0.0
  %v3835 = vsel %vm3799, %v2392, 0.0
  %v3836 = vsel %vm3800, %v2393, 0.0
  %v3837 = vsel %vm3801, %v2394, 0.0
  %v3838 = vsel %vm3802, %v2395, 0.0
  %v3839 = vsel %vm3803, %v2396, 0.0
  %v3840 = vsel %vm3804, %v2397, 0.0
  %v3841 = vsel %vm3805, %v2398, 0.0
  %v3842 = vsel %vm3806, %v2399, 0.0
  %v3843 = vsel %vm3807, %v2400, 0.0
  %v3844 = vsel %vm3808, %v2401, 0.0
  %v3845 = vsel %vm3809, %v2402, 0.0
  %v3846 = vsel %vm3810, %v2403, 0.0
  %v3847 = vsel %vm3811, %v3739, 0.0
  %v3848 = vsel %vm3812, %v3740, 0.0
  %v3849 = vsel %vm3813, %v3741, 0.0
  %3850 = vrot.lane.b32.xlu0 %v3814, 112
  %v3851 = vpop.permute.xlu0 %3850
  %3852 = vrot.lane.b32.xlu0 %v3815, 112
  %v3853 = vpop.permute.xlu0 %3852
  %3854 = vrot.lane.b32.xlu0 %v3816, 112
  %v3855 = vpop.permute.xlu0 %3854
  %3856 = vrot.lane.b32.xlu0 %v3817, 112
  %v3857 = vpop.permute.xlu0 %3856
  %3858 = vrot.lane.b32.xlu0 %v3818, 112
  %v3859 = vpop.permute.xlu0 %3858
  %3860 = vrot.lane.b32.xlu0 %v3819, 112
  %v3861 = vpop.permute.xlu0 %3860
  %3862 = vrot.lane.b32.xlu0 %v3820, 112
  %v3863 = vpop.permute.xlu0 %3862
  %3864 = vrot.lane.b32.xlu0 %v3821, 112
  %v3865 = vpop.permute.xlu0 %3864
  %3866 = vrot.lane.b32.xlu0 %v3822, 112
  %v3867 = vpop.permute.xlu0 %3866
  %3868 = vrot.lane.b32.xlu0 %v3823, 112
  %v3869 = vpop.permute.xlu0 %3868
  %3870 = vrot.lane.b32.xlu0 %v3824, 112
  %v3871 = vpop.permute.xlu0 %3870
  %3872 = vrot.lane.b32.xlu0 %v3825, 112
  %v3873 = vpop.permute.xlu0 %3872
  %3874 = vrot.lane.b32.xlu0 %v3826, 112
  %v3875 = vpop.permute.xlu0 %3874
  %3876 = vrot.lane.b32.xlu0 %v3827, 112
  %v3877 = vpop.permute.xlu0 %3876
  %3878 = vrot.lane.b32.xlu0 %v3828, 112
  %v3879 = vpop.permute.xlu0 %3878
  %3880 = vrot.lane.b32.xlu0 %v3829, 112
  %v3881 = vpop.permute.xlu0 %3880
  %3882 = vrot.lane.b32.xlu0 %v3830, 112
  %v3883 = vpop.permute.xlu0 %3882
  %3884 = vrot.lane.b32.xlu0 %v3831, 112
  %v3885 = vpop.permute.xlu0 %3884
  %3886 = vrot.lane.b32.xlu0 %v3832, 112
  %v3887 = vpop.permute.xlu0 %3886
  %3888 = vrot.lane.b32.xlu0 %v3833, 112
  %v3889 = vpop.permute.xlu0 %3888
  %3890 = vrot.lane.b32.xlu0 %v3834, 112
  %v3891 = vpop.permute.xlu0 %3890
  %3892 = vrot.lane.b32.xlu0 %v3835, 112
  %v3893 = vpop.permute.xlu0 %3892
  %3894 = vrot.lane.b32.xlu0 %v3836, 112
  %v3895 = vpop.permute.xlu0 %3894
  %3896 = vrot.lane.b32.xlu0 %v3837, 112
  %v3897 = vpop.permute.xlu0 %3896
  %3898 = vrot.lane.b32.xlu0 %v3838, 112
  %v3899 = vpop.permute.xlu0 %3898
  %3900 = vrot.lane.b32.xlu0 %v3839, 112
  %v3901 = vpop.permute.xlu0 %3900
  %3902 = vrot.lane.b32.xlu0 %v3840, 112
  %v3903 = vpop.permute.xlu0 %3902
  %3904 = vrot.lane.b32.xlu0 %v3841, 112
  %v3905 = vpop.permute.xlu0 %3904
  %3906 = vrot.lane.b32.xlu0 %v3842, 112
  %v3907 = vpop.permute.xlu0 %3906
  %3908 = vrot.lane.b32.xlu0 %v3843, 112
  %v3909 = vpop.permute.xlu0 %3908
  %3910 = vrot.lane.b32.xlu0 %v3844, 112
  %v3911 = vpop.permute.xlu0 %3910
  %3912 = vrot.lane.b32.xlu0 %v3845, 112
  %v3913 = vpop.permute.xlu0 %3912
  %3914 = vrot.lane.b32.xlu0 %v3846, 112
  %v3915 = vpop.permute.xlu0 %3914
  %3916 = vrot.lane.b32.xlu0 %v3847, 112
  %v3917 = vpop.permute.xlu0 %3916
  %3918 = vrot.lane.b32.xlu0 %v3848, 112
  %v3919 = vpop.permute.xlu0 %3918
  %3920 = vrot.lane.b32.xlu0 %v3849, 112
  %v3921 = vpop.permute.xlu0 %3920
  %v3922 = vadd.f32 %v3703, %v3851
  %v3923 = vadd.f32 %v3704, %v3853
  %v3924 = vadd.f32 %v3705, %v3855
  %v3925 = vadd.f32 %v3706, %v3857
  %v3926 = vadd.f32 %v3707, %v3859
  %v3927 = vadd.f32 %v3708, %v3861
  %v3928 = vadd.f32 %v3709, %v3863
  %v3929 = vadd.f32 %v3710, %v3865
  %v3930 = vadd.f32 %v3711, %v3867
  %v3931 = vadd.f32 %v3712, %v3869
  %v3932 = vadd.f32 %v3713, %v3871
  %v3933 = vadd.f32 %v3714, %v3873
  %v3934 = vadd.f32 %v3715, %v3875
  %v3935 = vadd.f32 %v3716, %v3877
  %v3936 = vadd.f32 %v3717, %v3879
  %v3937 = vadd.f32 %v3718, %v3881
  %v3938 = vadd.f32 %v3719, %v3883
  %v3939 = vadd.f32 %v3720, %v3885
  %v3940 = vadd.f32 %v3721, %v3887
  %v3941 = vadd.f32 %v3722, %v3889
  %v3942 = vadd.f32 %v3723, %v3891
  %v3943 = vadd.f32 %v3724, %v3893
  %v3944 = vadd.f32 %v3725, %v3895
  %v3945 = vadd.f32 %v3726, %v3897
  %v3946 = vadd.f32 %v3727, %v3899
  %v3947 = vadd.f32 %v3728, %v3901
  %v3948 = vadd.f32 %v3729, %v3903
  %v3949 = vadd.f32 %v3730, %v3905
  %v3950 = vadd.f32 %v3731, %v3907
  %v3951 = vadd.f32 %v3732, %v3909
  %v3952 = vadd.f32 %v3733, %v3911
  %v3953 = vadd.f32 %v3734, %v3913
  %v3954 = vadd.f32 %v3735, %v3915
  %v3955 = vadd.f32 %v3736, %v3917
  %v3956 = vadd.f32 %v3737, %v3919
  %v3957 = vadd.f32 %v3738, %v3921
  %v3958 = vld [vmem:[#allocation2 + $0x125] sm:$0xff]
  %v3959 = vld [vmem:[#allocation2 + $0x12d] sm:$0xff]
  %v3960 = vld [vmem:[#allocation2 + $0x135] sm:$0xff]
  %v3961 = vsel %vm2152, 1, 0
  %v3962 = vsel %vm2153, 1, 0
  %v3963 = vsel %vm2154, 1, 0
  %v3964 = vsel %vm2155, 1, 0
  %v3965 = vsel %vm2156, 1, 0
  %v3966 = vsel %vm2157, 1, 0
  %v3967 = vsel %vm2158, 1, 0
  %v3968 = vsel %vm2159, 1, 0
  %v3969 = vsel %vm2160, 1, 0
  %v3970 = vsel %vm2161, 1, 0
  %v3971 = vsel %vm2162, 1, 0
  %v3972 = vsel %vm2163, 1, 0
  %v3973 = vsel %vm2164, 1, 0
  %v3974 = vsel %vm2165, 1, 0
  %v3975 = vsel %vm2166, 1, 0
  %v3976 = vsel %vm2167, 1, 0
  %v3977 = vsel %vm2168, 1, 0
  %v3978 = vsel %vm2169, 1, 0
  %v3979 = vsel %vm2170, 1, 0
  %v3980 = vsel %vm2171, 1, 0
  %v3981 = vsel %vm2172, 1, 0
  %v3982 = vsel %vm2173, 1, 0
  %v3983 = vsel %vm2174, 1, 0
  %v3984 = vsel %vm2175, 1, 0
  %v3985 = vsel %vm2176, 1, 0
  %v3986 = vsel %vm2177, 1, 0
  %v3987 = vsel %vm2178, 1, 0
  %v3988 = vsel %vm2179, 1, 0
  %v3989 = vsel %vm2180, 1, 0
  %v3990 = vsel %vm2181, 1, 0
  %v3991 = vsel %vm2182, 1, 0
  %v3992 = vsel %vm2183, 1, 0
  %v3993 = vsel %vm2184, 1, 0
  %v3994 = vsel %vm2185, 1, 0
  %v3995 = vsel %vm2186, 1, 0
  %v3996 = vsel %vm2187, 1, 0
  %vm3997 = vcmp.eq.s32.totalorder %v3961, 1
  %vm3998 = vcmp.eq.s32.totalorder %v3962, 1
  %vm3999 = vcmp.eq.s32.totalorder %v3963, 1
  %vm4000 = vcmp.eq.s32.totalorder %v3964, 1
  %vm4001 = vcmp.eq.s32.totalorder %v3965, 1
  %vm4002 = vcmp.eq.s32.totalorder %v3966, 1
  %vm4003 = vcmp.eq.s32.totalorder %v3967, 1
  %vm4004 = vcmp.eq.s32.totalorder %v3968, 1
  %vm4005 = vcmp.eq.s32.totalorder %v3969, 1
  %vm4006 = vcmp.eq.s32.totalorder %v3970, 1
  %vm4007 = vcmp.eq.s32.totalorder %v3971, 1
  %vm4008 = vcmp.eq.s32.totalorder %v3972, 1
  %vm4009 = vcmp.eq.s32.totalorder %v3973, 1
  %vm4010 = vcmp.eq.s32.totalorder %v3974, 1
  %vm4011 = vcmp.eq.s32.totalorder %v3975, 1
  %vm4012 = vcmp.eq.s32.totalorder %v3976, 1
  %vm4013 = vcmp.eq.s32.totalorder %v3977, 1
  %vm4014 = vcmp.eq.s32.totalorder %v3978, 1
  %vm4015 = vcmp.eq.s32.totalorder %v3979, 1
  %vm4016 = vcmp.eq.s32.totalorder %v3980, 1
  %vm4017 = vcmp.eq.s32.totalorder %v3981, 1
  %vm4018 = vcmp.eq.s32.totalorder %v3982, 1
  %vm4019 = vcmp.eq.s32.totalorder %v3983, 1
  %vm4020 = vcmp.eq.s32.totalorder %v3984, 1
  %vm4021 = vcmp.eq.s32.totalorder %v3985, 1
  %vm4022 = vcmp.eq.s32.totalorder %v3986, 1
  %vm4023 = vcmp.eq.s32.totalorder %v3987, 1
  %vm4024 = vcmp.eq.s32.totalorder %v3988, 1
  %vm4025 = vcmp.eq.s32.totalorder %v3989, 1
  %vm4026 = vcmp.eq.s32.totalorder %v3990, 1
  %vm4027 = vcmp.eq.s32.totalorder %v3991, 1
  %vm4028 = vcmp.eq.s32.totalorder %v3992, 1
  %vm4029 = vcmp.eq.s32.totalorder %v3993, 1
  %vm4030 = vcmp.eq.s32.totalorder %v3994, 1
  %vm4031 = vcmp.eq.s32.totalorder %v3995, 1
  %vm4032 = vcmp.eq.s32.totalorder %v3996, 1
  %v4033 = vsel %vm3997, %v2623, 0.0
  %v4034 = vsel %vm3998, %v2624, 0.0
  %v4035 = vsel %vm3999, %v2625, 0.0
  %v4036 = vsel %vm4000, %v2626, 0.0
  %v4037 = vsel %vm4001, %v2627, 0.0
  %v4038 = vsel %vm4002, %v2628, 0.0
  %v4039 = vsel %vm4003, %v2629, 0.0
  %v4040 = vsel %vm4004, %v2630, 0.0
  %v4041 = vsel %vm4005, %v2631, 0.0
  %v4042 = vsel %vm4006, %v2632, 0.0
  %v4043 = vsel %vm4007, %v2633, 0.0
  %v4044 = vsel %vm4008, %v2634, 0.0
  %v4045 = vsel %vm4009, %v2635, 0.0
  %v4046 = vsel %vm4010, %v2636, 0.0
  %v4047 = vsel %vm4011, %v2637, 0.0
  %v4048 = vsel %vm4012, %v2638, 0.0
  %v4049 = vsel %vm4013, %v2639, 0.0
  %v4050 = vsel %vm4014, %v2640, 0.0
  %v4051 = vsel %vm4015, %v2641, 0.0
  %v4052 = vsel %vm4016, %v2642, 0.0
  %v4053 = vsel %vm4017, %v2643, 0.0
  %v4054 = vsel %vm4018, %v2644, 0.0
  %v4055 = vsel %vm4019, %v2645, 0.0
  %v4056 = vsel %vm4020, %v2646, 0.0
  %v4057 = vsel %vm4021, %v2647, 0.0
  %v4058 = vsel %vm4022, %v2648, 0.0
  %v4059 = vsel %vm4023, %v2649, 0.0
  %v4060 = vsel %vm4024, %v2650, 0.0
  %v4061 = vsel %vm4025, %v2651, 0.0
  %v4062 = vsel %vm4026, %v2652, 0.0
  %v4063 = vsel %vm4027, %v2653, 0.0
  %v4064 = vsel %vm4028, %v2654, 0.0
  %v4065 = vsel %vm4029, %v2655, 0.0
  %v4066 = vsel %vm4030, %v3958, 0.0
  %v4067 = vsel %vm4031, %v3959, 0.0
  %v4068 = vsel %vm4032, %v3960, 0.0
  %v4069 = vpack.c.bf16 %v3923, %v3922
  %v4070 = vpack.c.bf16 %v4034, %v4033
  %v4071 = vpack.c.bf16 %v3925, %v3924
  %v4072 = vpack.c.bf16 %v4036, %v4035
  %v4073 = vpack.c.bf16 %v3927, %v3926
  %v4074 = vpack.c.bf16 %v4038, %v4037
  %v4075 = vpack.c.bf16 %v3929, %v3928
  %v4076 = vpack.c.bf16 %v4040, %v4039
  %v4077 = vpack.c.bf16 %v3931, %v3930
  %v4078 = vpack.c.bf16 %v4042, %v4041
  %v4079 = vpack.c.bf16 %v3933, %v3932
  %v4080 = vpack.c.bf16 %v4044, %v4043
  %v4081 = vpack.c.bf16 %v3935, %v3934
  %v4082 = vpack.c.bf16 %v4046, %v4045
  %v4083 = vpack.c.bf16 %v3937, %v3936
  %v4084 = vpack.c.bf16 %v4048, %v4047
  %v4085 = vpack.c.bf16 %v3939, %v3938
  %v4086 = vpack.c.bf16 %v4050, %v4049
  %v4087 = vpack.c.bf16 %v3941, %v3940
  %v4088 = vpack.c.bf16 %v4052, %v4051
  %v4089 = vpack.c.bf16 %v3943, %v3942
  %v4090 = vpack.c.bf16 %v4054, %v4053
  %v4091 = vpack.c.bf16 %v3945, %v3944
  %v4092 = vpack.c.bf16 %v4056, %v4055
  %v4093 = vpack.c.bf16 %v3947, %v3946
  %v4094 = vpack.c.bf16 %v4058, %v4057
  %v4095 = vpack.c.bf16 %v3949, %v3948
  %v4096 = vpack.c.bf16 %v4060, %v4059
  %v4097 = vpack.c.bf16 %v3951, %v3950
  %v4098 = vpack.c.bf16 %v4062, %v4061
  %v4099 = vpack.c.bf16 %v3953, %v3952
  %v4100 = vpack.c.bf16 %v4064, %v4063
  %v4101 = vpack.c.bf16 %v3955, %v3954
  %v4102 = vpack.c.bf16 %v4066, %v4065
  %v4103 = vpack.c.bf16 %v3957, %v3956
  %v4104 = vpack.c.bf16 %v4068, %v4067
  %v4105 = vld [vmem:[%s3] sm:$0xf]
  %v4106 = vld [vmem:[%s3 + $0x4] sm:$0xf]
  %v4107 = vld [vmem:[%s3 + $0x8] sm:$0xf]
  %v4108 = vld [vmem:[%s3 + $0xc] sm:$0xf]
  %v4109 = vld [vmem:[%s3 + $0x10] sm:$0xf]
  %v4110 = vld [vmem:[%s3 + $0x14] sm:$0xf]
  %v4111 = vld [vmem:[%s3 + $0x18] sm:$0xf]
  %v4112 = vld [vmem:[%s3 + $0x1c] sm:$0xf]
  %v4113 = vld [vmem:[%s3 + $0x20] sm:$0xf]
  %v4114 = vld [vmem:[%s3 + $0x24] sm:$0xf]
  %v4115 = vld [vmem:[%s3 + $0x28] sm:$0xf]
  %v4116 = vld [vmem:[%s3 + $0x2c] sm:$0xf]
  %v4117 = vld [vmem:[%s3 + $0x30] sm:$0xf]
  %v4118 = vld [vmem:[%s3 + $0x34] sm:$0xf]
  %v4119 = vld [vmem:[%s3 + $0x38] sm:$0xf]
  %v4120 = vld [vmem:[%s3 + $0x3c] sm:$0xf]
  %v4121 = vld [vmem:[%s3 + $0x40] sm:$0xf]
  %v4122 = vld [vmem:[%s3 + $0x44] sm:$0xf]
  %v4123 = vld [vmem:[%s3 + $0x48] sm:$0xf]
  %v4124 = vld [vmem:[%s3 + $0x4c] sm:$0xf]
  %v4125 = vld [vmem:[%s3 + $0x50] sm:$0xf]
  %v4126 = vld [vmem:[%s3 + $0x54] sm:$0xf]
  %v4127 = vld [vmem:[%s3 + $0x58] sm:$0xf]
  %v4128 = vld [vmem:[%s3 + $0x5c] sm:$0xf]
  %v4129 = vld [vmem:[%s3 + $0x60] sm:$0xf]
  %v4130 = vld [vmem:[%s3 + $0x64] sm:$0xf]
  %v4131 = vld [vmem:[%s3 + $0x68] sm:$0xf]
  %v4132 = vld [vmem:[%s3 + $0x6c] sm:$0xf]
  %v4133 = vld [vmem:[%s3 + $0x70] sm:$0xf]
  %v4134 = vld [vmem:[%s3 + $0x74] sm:$0xf]
  %v4135 = vld [vmem:[%s3 + $0x78] sm:$0xf]
  %v4136 = vld [vmem:[%s3 + $0x7c] sm:$0xf]
  %v4137 = vld [vmem:[%s4] sm:$0x1]
  %v4139 = vlaneseq
  %v4140 = vshrl.u32 %v4139, 7
  %v4141 = vsub.s32 0, %v4140
  %v4142 = vrot.slane %v4137, %v4141
  %v4176 = vunpack.c.l.b16 %v4105
  %v4177 = vunpack.c.l.b16 %v4106
  %v4178 = vunpack.c.l.b16 %v4107
  %v4179 = vunpack.c.l.b16 %v4108
  %v4180 = vunpack.c.l.b16 %v4109
  %v4181 = vunpack.c.l.b16 %v4110
  %v4182 = vunpack.c.l.b16 %v4111
  %v4183 = vunpack.c.l.b16 %v4112
  %v4184 = vunpack.c.l.b16 %v4113
  %v4185 = vunpack.c.l.b16 %v4114
  %v4186 = vunpack.c.l.b16 %v4115
  %v4187 = vunpack.c.l.b16 %v4116
  %v4188 = vunpack.c.l.b16 %v4117
  %v4189 = vunpack.c.l.b16 %v4118
  %v4190 = vunpack.c.l.b16 %v4119
  %v4191 = vunpack.c.l.b16 %v4120
  %v4192 = vunpack.c.l.b16 %v4121
  %v4193 = vunpack.c.l.b16 %v4122
  %v4194 = vunpack.c.l.b16 %v4123
  %v4195 = vunpack.c.l.b16 %v4124
  %v4196 = vunpack.c.l.b16 %v4125
  %v4197 = vunpack.c.l.b16 %v4126
  %v4198 = vunpack.c.l.b16 %v4127
  %v4199 = vunpack.c.l.b16 %v4128
  %v4200 = vunpack.c.l.b16 %v4129
  %v4201 = vunpack.c.l.b16 %v4130
  %v4202 = vunpack.c.l.b16 %v4131
  %v4203 = vunpack.c.l.b16 %v4132
  %v4204 = vunpack.c.l.b16 %v4133
  %v4205 = vunpack.c.l.b16 %v4134
  %v4206 = vunpack.c.l.b16 %v4135
  %v4207 = vunpack.c.l.b16 %v4136
  %v4208 = vpack.c.b16 %v4177, %v4176
  %v4209 = vpack.c.b16 %v4179, %v4178
  %v4210 = vpack.c.b16 %v4181, %v4180
  %v4211 = vpack.c.b16 %v4183, %v4182
  %v4212 = vpack.c.b16 %v4185, %v4184
  %v4213 = vpack.c.b16 %v4187, %v4186
  %v4214 = vpack.c.b16 %v4189, %v4188
  %v4215 = vpack.c.b16 %v4191, %v4190
  %v4216 = vpack.c.b16 %v4193, %v4192
  %v4217 = vpack.c.b16 %v4195, %v4194
  %v4218 = vpack.c.b16 %v4197, %v4196
  %v4219 = vpack.c.b16 %v4199, %v4198
  %v4220 = vpack.c.b16 %v4201, %v4200
  %v4221 = vpack.c.b16 %v4203, %v4202
  %v4222 = vpack.c.b16 %v4205, %v4204
  %v4223 = vpack.c.b16 %v4207, %v4206
  %4240 = vmatprep.subr.bf16.mxu0 0
  %4241 = vmatpush1.bf16.msra.mxu0 %v4208
  %4242 = vmatprep.subr.bf16.mxu0 0
  %4243 = vmatpush1.bf16.msra.mxu0 %v4209
  %4244 = vmatprep.subr.bf16.mxu0 0
  %4245 = vmatpush1.bf16.msra.mxu0 %v4210
  %4246 = vmatprep.subr.bf16.mxu0 0
  %4247 = vmatpush1.bf16.msra.mxu0 %v4211
  %4248 = vmatprep.subr.bf16.mxu0 0
  %4249 = vmatpush1.bf16.msra.mxu0 %v4212
  %4250 = vmatprep.subr.bf16.mxu0 0
  %4251 = vmatpush1.bf16.msra.mxu0 %v4213
  %4252 = vmatprep.subr.bf16.mxu0 0
  %4253 = vmatpush1.bf16.msra.mxu0 %v4214
  %4254 = vmatprep.subr.bf16.mxu0 0
  %4255 = vmatpush1.bf16.msra.mxu0 %v4215
  %4256 = vmatprep.subr.bf16.mxu0 0
  %4257 = vmatpush1.bf16.msra.mxu0 %v4216
  %4258 = vmatprep.subr.bf16.mxu0 0
  %4259 = vmatpush1.bf16.msra.mxu0 %v4217
  %4260 = vmatprep.subr.bf16.mxu0 0
  %4261 = vmatpush1.bf16.msra.mxu0 %v4218
  %4262 = vmatprep.subr.bf16.mxu0 0
  %4263 = vmatpush1.bf16.msra.mxu0 %v4219
  %4264 = vmatprep.subr.bf16.mxu0 0
  %4265 = vmatpush1.bf16.msra.mxu0 %v4220
  %4266 = vmatprep.subr.bf16.mxu0 0
  %4267 = vmatpush1.bf16.msra.mxu0 %v4221
  %4268 = vmatprep.subr.bf16.mxu0 0
  %4269 = vmatpush1.bf16.msra.mxu0 %v4222
  %4270 = vmatprep.subr.bf16.mxu0 0
  %4271 = vmatpush1.bf16.msra.mxu0 %v4223
  %4272 = vmatprep.mubr.bf16.mxu0 %v4070
  %4273 = vmatmul.mubr.bf16.gmra.mrb[0].mxu0 %v4069
  %v4274 = vpop.f32.mrb[0].mxu0
  %v4275 = vadd.f32 %v4142, %v4274
  %v4276 = vpop.f32.mrb[0].mxu0
  %v4277 = vpop.f32.mrb[0].mxu0
  %v4278 = vadd.f32 %v4142, %v4277
  %v4279 = vpop.f32.mrb[0].mxu0
  %4280 = vmatprep.mubr.bf16.mxu0 %v4072
  %4281 = vmatmul.mubr.bf16.gmra.mrb[0].mxu0 %v4071
  %v4282 = vpop.f32.mrb[0].mxu0
  %v4283 = vadd.f32 %v4142, %v4282
  %v4284 = vpop.f32.mrb[0].mxu0
  %v4285 = vpop.f32.mrb[0].mxu0
  %v4286 = vadd.f32 %v4142, %v4285
  %v4287 = vpop.f32.mrb[0].mxu0
  %4288 = vmatprep.mubr.bf16.mxu0 %v4074
  %4289 = vmatmul.mubr.bf16.gmra.mrb[0].mxu0 %v4073
  %v4290 = vpop.f32.mrb[0].mxu0
  %v4291 = vadd.f32 %v4142, %v4290
  %v4292 = vpop.f32.mrb[0].mxu0
  %v4293 = vpop.f32.mrb[0].mxu0
  %v4294 = vadd.f32 %v4142, %v4293
  %v4295 = vpop.f32.mrb[0].mxu0
  %4296 = vmatprep.mubr.bf16.mxu0 %v4076
  %4297 = vmatmul.mubr.bf16.gmra.mrb[0].mxu0 %v4075
  %v4298 = vpop.f32.mrb[0].mxu0
  %v4299 = vadd.f32 %v4142, %v4298
  %v4300 = vpop.f32.mrb[0].mxu0
  %v4301 = vpop.f32.mrb[0].mxu0
  %v4302 = vadd.f32 %v4142, %v4301
  %v4303 = vpop.f32.mrb[0].mxu0
  %4304 = vmatprep.mubr.bf16.mxu0 %v4078
  %4305 = vmatmul.mubr.bf16.gmra.mrb[0].mxu0 %v4077
  %v4306 = vpop.f32.mrb[0].mxu0
  %v4307 = vadd.f32 %v4142, %v4306
  %v4308 = vpop.f32.mrb[0].mxu0
  %v4309 = vpop.f32.mrb[0].mxu0
  %v4310 = vadd.f32 %v4142, %v4309
  %v4311 = vpop.f32.mrb[0].mxu0
  %4312 = vmatprep.mubr.bf16.mxu0 %v4080
  %4313 = vmatmul.mubr.bf16.gmra.mrb[0].mxu0 %v4079
  %v4314 = vpop.f32.mrb[0].mxu0
  %v4315 = vadd.f32 %v4142, %v4314
  %v4316 = vpop.f32.mrb[0].mxu0
  %v4317 = vpop.f32.mrb[0].mxu0
  %v4318 = vadd.f32 %v4142, %v4317
  %v4319 = vpop.f32.mrb[0].mxu0
  %4320 = vmatprep.mubr.bf16.mxu0 %v4082
  %4321 = vmatmul.mubr.bf16.gmra.mrb[0].mxu0 %v4081
  %v4322 = vpop.f32.mrb[0].mxu0
  %v4323 = vadd.f32 %v4142, %v4322
  %v4324 = vpop.f32.mrb[0].mxu0
  %v4325 = vpop.f32.mrb[0].mxu0
  %v4326 = vadd.f32 %v4142, %v4325
  %v4327 = vpop.f32.mrb[0].mxu0
  %4328 = vmatprep.mubr.bf16.mxu0 %v4084
  %4329 = vmatmul.mubr.bf16.gmra.mrb[0].mxu0 %v4083
  %v4330 = vpop.f32.mrb[0].mxu0
  %v4331 = vadd.f32 %v4142, %v4330
  %v4332 = vpop.f32.mrb[0].mxu0
  %v4333 = vpop.f32.mrb[0].mxu0
  %v4334 = vadd.f32 %v4142, %v4333
  %v4335 = vpop.f32.mrb[0].mxu0
  %4336 = vmatprep.mubr.bf16.mxu0 %v4086
  %4337 = vmatmul.mubr.bf16.gmra.mrb[0].mxu0 %v4085
  %v4338 = vpop.f32.mrb[0].mxu0
  %v4339 = vadd.f32 %v4142, %v4338
  %v4340 = vpop.f32.mrb[0].mxu0
  %v4341 = vpop.f32.mrb[0].mxu0
  %v4342 = vadd.f32 %v4142, %v4341
  %v4343 = vpop.f32.mrb[0].mxu0
  %4344 = vmatprep.mubr.bf16.mxu0 %v4088
  %4345 = vmatmul.mubr.bf16.gmra.mrb[0].mxu0 %v4087
  %v4346 = vpop.f32.mrb[0].mxu0
  %v4347 = vadd.f32 %v4142, %v4346
  %v4348 = vpop.f32.mrb[0].mxu0
  %v4349 = vpop.f32.mrb[0].mxu0
  %v4350 = vadd.f32 %v4142, %v4349
  %v4351 = vpop.f32.mrb[0].mxu0
  %4352 = vmatprep.mubr.bf16.mxu0 %v4090
  %4353 = vmatmul.mubr.bf16.gmra.mrb[0].mxu0 %v4089
  %v4354 = vpop.f32.mrb[0].mxu0
  %v4355 = vadd.f32 %v4142, %v4354
  %v4356 = vpop.f32.mrb[0].mxu0
  %v4357 = vpop.f32.mrb[0].mxu0
  %v4358 = vadd.f32 %v4142, %v4357
  %v4359 = vpop.f32.mrb[0].mxu0
  %4360 = vmatprep.mubr.bf16.mxu0 %v4092
  %4361 = vmatmul.mubr.bf16.gmra.mrb[0].mxu0 %v4091
  %v4362 = vpop.f32.mrb[0].mxu0
  %v4363 = vadd.f32 %v4142, %v4362
  %v4364 = vpop.f32.mrb[0].mxu0
  %v4365 = vpop.f32.mrb[0].mxu0
  %v4366 = vadd.f32 %v4142, %v4365
  %v4367 = vpop.f32.mrb[0].mxu0
  %4368 = vmatprep.mubr.bf16.mxu0 %v4094
  %4369 = vmatmul.mubr.bf16.gmra.mrb[0].mxu0 %v4093
  %v4370 = vpop.f32.mrb[0].mxu0
  %v4371 = vadd.f32 %v4142, %v4370
  %v4372 = vpop.f32.mrb[0].mxu0
  %v4373 = vpop.f32.mrb[0].mxu0
  %v4374 = vadd.f32 %v4142, %v4373
  %v4375 = vpop.f32.mrb[0].mxu0
  %4376 = vmatprep.mubr.bf16.mxu0 %v4096
  %4377 = vmatmul.mubr.bf16.gmra.mrb[0].mxu0 %v4095
  %v4378 = vpop.f32.mrb[0].mxu0
  %v4379 = vadd.f32 %v4142, %v4378
  %v4380 = vpop.f32.mrb[0].mxu0
  %v4381 = vpop.f32.mrb[0].mxu0
  %v4382 = vadd.f32 %v4142, %v4381
  %v4383 = vpop.f32.mrb[0].mxu0
  %4384 = vmatprep.mubr.bf16.mxu0 %v4098
  %4385 = vmatmul.mubr.bf16.gmra.mrb[0].mxu0 %v4097
  %v4386 = vpop.f32.mrb[0].mxu0
  %v4387 = vadd.f32 %v4142, %v4386
  %v4388 = vpop.f32.mrb[0].mxu0
  %v4389 = vpop.f32.mrb[0].mxu0
  %v4390 = vadd.f32 %v4142, %v4389
  %v4391 = vpop.f32.mrb[0].mxu0
  %4392 = vmatprep.mubr.bf16.mxu0 %v4100
  %4393 = vmatmul.mubr.bf16.gmra.mrb[0].mxu0 %v4099
  %v4394 = vpop.f32.mrb[0].mxu0
  %v4395 = vadd.f32 %v4142, %v4394
  %v4396 = vpop.f32.mrb[0].mxu0
  %v4397 = vpop.f32.mrb[0].mxu0
  %v4398 = vadd.f32 %v4142, %v4397
  %v4399 = vpop.f32.mrb[0].mxu0
  %4400 = vmatprep.mubr.bf16.mxu0 %v4102
  %4401 = vmatmul.mubr.bf16.gmra.mrb[0].mxu0 %v4101
  %v4402 = vpop.f32.mrb[0].mxu0
  %v4403 = vadd.f32 %v4142, %v4402
  %v4404 = vpop.f32.mrb[0].mxu0
  %v4405 = vpop.f32.mrb[0].mxu0
  %v4406 = vadd.f32 %v4142, %v4405
  %v4407 = vpop.f32.mrb[0].mxu0
  %4408 = vmatprep.mubr.bf16.mxu0 %v4104
  %4409 = vmatmul.mubr.bf16.gmra.mrb[0].mxu0 %v4103
  %v4410 = vpop.f32.mrb[0].mxu0
  %v4411 = vadd.f32 %v4142, %v4410
  %v4412 = vpop.f32.mrb[0].mxu0
  %v4413 = vpop.f32.mrb[0].mxu0
  %v4414 = vadd.f32 %v4142, %v4413
  %v4415 = vpop.f32.mrb[0].mxu0
  %4416 = vdwg.mxu0
  %v4417 = vmax.f32 %v4275, 0.0
  %v4418 = vmax.f32 %v4278, 0.0
  %v4419 = vmax.f32 %v4283, 0.0
  %v4420 = vmax.f32 %v4286, 0.0
  %v4421 = vmax.f32 %v4291, 0.0
  %v4422 = vmax.f32 %v4294, 0.0
  %v4423 = vmax.f32 %v4299, 0.0
  %v4424 = vmax.f32 %v4302, 0.0
  %v4425 = vmax.f32 %v4307, 0.0
  %v4426 = vmax.f32 %v4310, 0.0
  %v4427 = vmax.f32 %v4315, 0.0
  %v4428 = vmax.f32 %v4318, 0.0
  %v4429 = vmax.f32 %v4323, 0.0
  %v4430 = vmax.f32 %v4326, 0.0
  %v4431 = vmax.f32 %v4331, 0.0
  %v4432 = vmax.f32 %v4334, 0.0
  %v4433 = vmax.f32 %v4339, 0.0
  %v4434 = vmax.f32 %v4342, 0.0
  %v4435 = vmax.f32 %v4347, 0.0
  %v4436 = vmax.f32 %v4350, 0.0
  %v4437 = vmax.f32 %v4355, 0.0
  %v4438 = vmax.f32 %v4358, 0.0
  %v4439 = vmax.f32 %v4363, 0.0
  %v4440 = vmax.f32 %v4366, 0.0
  %v4441 = vmax.f32 %v4371, 0.0
  %v4442 = vmax.f32 %v4374, 0.0
  %v4443 = vmax.f32 %v4379, 0.0
  %v4444 = vmax.f32 %v4382, 0.0
  %v4445 = vmax.f32 %v4387, 0.0
  %v4446 = vmax.f32 %v4390, 0.0
  %v4447 = vmax.f32 %v4395, 0.0
  %v4448 = vmax.f32 %v4398, 0.0
  %v4449 = vmax.f32 %v4403, 0.0
  %v4450 = vmax.f32 %v4406, 0.0
  %v4451 = vmax.f32 %v4411, 0.0
  %v4452 = vmax.f32 %v4414, 0.0
  %4453 = vst [vmem:[#allocation2 + $0x10] sm:$0xff] %v4417
  %4454 = vst [vmem:[#allocation2 + $0x18] sm:$0xff] %v4418
  %4455 = vst [vmem:[#allocation2 + $0x20] sm:$0xff] %v4419
  %4456 = vst [vmem:[#allocation2 + $0x28] sm:$0xff] %v4420
  %4457 = vst [vmem:[#allocation2 + $0x30] sm:$0xff] %v4421
  %4458 = vst [vmem:[#allocation2 + $0x38] sm:$0xff] %v4422
  %4459 = vst [vmem:[#allocation2 + $0x40] sm:$0xff] %v4423
  %4460 = vst [vmem:[#allocation2 + $0x48] sm:$0xff] %v4424
  %4461 = vst [vmem:[#allocation2 + $0x50] sm:$0xff] %v4425
  %4462 = vst [vmem:[#allocation2 + $0x58] sm:$0xff] %v4426
  %4463 = vst [vmem:[#allocation2 + $0x60] sm:$0xff] %v4427
  %4464 = vst [vmem:[#allocation2 + $0x68] sm:$0xff] %v4428
  %4465 = vst [vmem:[#allocation2 + $0x70] sm:$0xff] %v4429
  %4466 = vst [vmem:[#allocation2 + $0x78] sm:$0xff] %v4430
  %4467 = vst [vmem:[#allocation2 + $0x80] sm:$0xff] %v4431
  %4468 = vst [vmem:[#allocation2 + $0x88] sm:$0xff] %v4432
  %4469 = vst [vmem:[#allocation2 + $0x90] sm:$0xff] %v4433
  %4470 = vst [vmem:[#allocation2 + $0x98] sm:$0xff] %v4434
  %4471 = vst [vmem:[#allocation2 + $0xa0] sm:$0xff] %v4435
  %4472 = vst [vmem:[#allocation2 + $0xa8] sm:$0xff] %v4436
  %4473 = vst [vmem:[#allocation2 + $0xb0] sm:$0xff] %v4437
  %4474 = vst [vmem:[#allocation2 + $0xb8] sm:$0xff] %v4438
  %4475 = vst [vmem:[#allocation2 + $0xc0] sm:$0xff] %v4439
  %4476 = vst [vmem:[#allocation2 + $0xc8] sm:$0xff] %v4440
  %4477 = vst [vmem:[#allocation2 + $0xd0] sm:$0xff] %v4441
  %4478 = vst [vmem:[#allocation2 + $0xd8] sm:$0xff] %v4442
  %4479 = vst [vmem:[#allocation2 + $0xe0] sm:$0xff] %v4443
  %4480 = vst [vmem:[#allocation2 + $0xe8] sm:$0xff] %v4444
  %4481 = vst [vmem:[#allocation2 + $0xf0] sm:$0xff] %v4445
  %4482 = vst [vmem:[#allocation2 + $0xf8] sm:$0xff] %v4446
  %4483 = vst [vmem:[#allocation2 + $0x100] sm:$0xff] %v4447
  %4484 = vst [vmem:[#allocation2 + $0x108] sm:$0xff] %v4448
  %4485 = vst [vmem:[#allocation2 + $0x110] sm:$0xff] %v4449
  %4486 = vst [vmem:[#allocation2 + $0x118] sm:$0xff] %v4450
  %4487 = vst [vmem:[#allocation2 + $0x120] sm:$0xff] %v4451
  %4488 = vst [vmem:[#allocation2 + $0x128] sm:$0xff] %v4452
  %v4489 = vld [vmem:[#allocation2 + $0x3] sm:$0xff]
  %v4490 = vld [vmem:[#allocation2 + $0xb] sm:$0xff]
  %v4491 = vld [vmem:[#allocation2 + $0x13] sm:$0xff]
  %v4492 = vld [vmem:[#allocation2 + $0x1b] sm:$0xff]
  %v4493 = vld [vmem:[#allocation2 + $0x23] sm:$0xff]
  %v4494 = vld [vmem:[#allocation2 + $0x2b] sm:$0xff]
  %v4495 = vld [vmem:[#allocation2 + $0x33] sm:$0xff]
  %v4496 = vld [vmem:[#allocation2 + $0x3b] sm:$0xff]
  %v4497 = vld [vmem:[#allocation2 + $0x43] sm:$0xff]
  %v4498 = vld [vmem:[#allocation2 + $0x4b] sm:$0xff]
  %v4499 = vld [vmem:[#allocation2 + $0x53] sm:$0xff]
  %v4500 = vld [vmem:[#allocation2 + $0x5b] sm:$0xff]
  %v4501 = vld [vmem:[#allocation2 + $0x63] sm:$0xff]
  %v4502 = vld [vmem:[#allocation2 + $0x6b] sm:$0xff]
  %v4503 = vld [vmem:[#allocation2 + $0x73] sm:$0xff]
  %v4504 = vld [vmem:[#allocation2 + $0x7b] sm:$0xff]
  %v4505 = vld [vmem:[#allocation2 + $0x83] sm:$0xff]
  %v4506 = vld [vmem:[#allocation2 + $0x8b] sm:$0xff]
  %v4507 = vld [vmem:[#allocation2 + $0x93] sm:$0xff]
  %v4508 = vld [vmem:[#allocation2 + $0x9b] sm:$0xff]
  %v4509 = vld [vmem:[#allocation2 + $0xa3] sm:$0xff]
  %v4510 = vld [vmem:[#allocation2 + $0xab] sm:$0xff]
  %v4511 = vld [vmem:[#allocation2 + $0xb3] sm:$0xff]
  %v4512 = vld [vmem:[#allocation2 + $0xbb] sm:$0xff]
  %v4513 = vld [vmem:[#allocation2 + $0xc3] sm:$0xff]
  %v4514 = vld [vmem:[#allocation2 + $0xcb] sm:$0xff]
  %v4515 = vld [vmem:[#allocation2 + $0xd3] sm:$0xff]
  %v4516 = vld [vmem:[#allocation2 + $0xdb] sm:$0xff]
  %v4517 = vld [vmem:[#allocation2 + $0xe3] sm:$0xff]
  %v4518 = vld [vmem:[#allocation2 + $0xeb] sm:$0xff]
  %v4519 = vld [vmem:[#allocation2 + $0xf3] sm:$0xff]
  %v4520 = vld [vmem:[#allocation2 + $0xfb] sm:$0xff]
  %v4521 = vld [vmem:[#allocation2 + $0x103] sm:$0xff]
  %v4522 = vld [vmem:[#allocation2 + $0x10b] sm:$0xff]
  %v4523 = vld [vmem:[#allocation2 + $0x113] sm:$0xff]
  %v4524 = vld [vmem:[#allocation2 + $0x11b] sm:$0xff]
  %v4525 = vsel %vm2296, %v4489, 0.0
  %v4526 = vsel %vm2297, %v4490, 0.0
  %v4527 = vsel %vm2298, %v4491, 0.0
  %v4528 = vsel %vm2299, %v4492, 0.0
  %v4529 = vsel %vm2300, %v4493, 0.0
  %v4530 = vsel %vm2301, %v4494, 0.0
  %v4531 = vsel %vm2302, %v4495, 0.0
  %v4532 = vsel %vm2303, %v4496, 0.0
  %v4533 = vsel %vm2304, %v4497, 0.0
  %v4534 = vsel %vm2305, %v4498, 0.0
  %v4535 = vsel %vm2306, %v4499, 0.0
  %v4536 = vsel %vm2307, %v4500, 0.0
  %v4537 = vsel %vm2308, %v4501, 0.0
  %v4538 = vsel %vm2309, %v4502, 0.0
  %v4539 = vsel %vm2310, %v4503, 0.0
  %v4540 = vsel %vm2311, %v4504, 0.0
  %v4541 = vsel %vm2312, %v4505, 0.0
  %v4542 = vsel %vm2313, %v4506, 0.0
  %v4543 = vsel %vm2314, %v4507, 0.0
  %v4544 = vsel %vm2315, %v4508, 0.0
  %v4545 = vsel %vm2316, %v4509, 0.0
  %v4546 = vsel %vm2317, %v4510, 0.0
  %v4547 = vsel %vm2318, %v4511, 0.0
  %v4548 = vsel %vm2319, %v4512, 0.0
  %v4549 = vsel %vm2320, %v4513, 0.0
  %v4550 = vsel %vm2321, %v4514, 0.0
  %v4551 = vsel %vm2322, %v4515, 0.0
  %v4552 = vsel %vm2323, %v4516, 0.0
  %v4553 = vsel %vm2324, %v4517, 0.0
  %v4554 = vsel %vm2325, %v4518, 0.0
  %v4555 = vsel %vm2326, %v4519, 0.0
  %v4556 = vsel %vm2327, %v4520, 0.0
  %v4557 = vsel %vm2328, %v4521, 0.0
  %v4558 = vsel %vm2329, %v4522, 0.0
  %v4559 = vsel %vm2330, %v4523, 0.0
  %v4560 = vsel %vm2331, %v4524, 0.0
  %v4561 = vld [vmem:[#allocation2 + $0x4] sm:$0xff]
  %v4562 = vld [vmem:[#allocation2 + $0xc] sm:$0xff]
  %v4563 = vld [vmem:[#allocation2 + $0x14] sm:$0xff]
  %v4564 = vld [vmem:[#allocation2 + $0x1c] sm:$0xff]
  %v4565 = vld [vmem:[#allocation2 + $0x24] sm:$0xff]
  %v4566 = vld [vmem:[#allocation2 + $0x2c] sm:$0xff]
  %v4567 = vld [vmem:[#allocation2 + $0x34] sm:$0xff]
  %v4568 = vld [vmem:[#allocation2 + $0x3c] sm:$0xff]
  %v4569 = vld [vmem:[#allocation2 + $0x44] sm:$0xff]
  %v4570 = vld [vmem:[#allocation2 + $0x4c] sm:$0xff]
  %v4571 = vld [vmem:[#allocation2 + $0x54] sm:$0xff]
  %v4572 = vld [vmem:[#allocation2 + $0x5c] sm:$0xff]
  %v4573 = vld [vmem:[#allocation2 + $0x64] sm:$0xff]
  %v4574 = vld [vmem:[#allocation2 + $0x6c] sm:$0xff]
  %v4575 = vld [vmem:[#allocation2 + $0x74] sm:$0xff]
  %v4576 = vld [vmem:[#allocation2 + $0x7c] sm:$0xff]
  %v4577 = vld [vmem:[#allocation2 + $0x84] sm:$0xff]
  %v4578 = vld [vmem:[#allocation2 + $0x8c] sm:$0xff]
  %v4579 = vld [vmem:[#allocation2 + $0x94] sm:$0xff]
  %v4580 = vld [vmem:[#allocation2 + $0x9c] sm:$0xff]
  %v4581 = vld [vmem:[#allocation2 + $0xa4] sm:$0xff]
  %v4582 = vld [vmem:[#allocation2 + $0xac] sm:$0xff]
  %v4583 = vld [vmem:[#allocation2 + $0xb4] sm:$0xff]
  %v4584 = vld [vmem:[#allocation2 + $0xbc] sm:$0xff]
  %v4585 = vld [vmem:[#allocation2 + $0xc4] sm:$0xff]
  %v4586 = vld [vmem:[#allocation2 + $0xcc] sm:$0xff]
  %v4587 = vld [vmem:[#allocation2 + $0xd4] sm:$0xff]
  %v4588 = vld [vmem:[#allocation2 + $0xdc] sm:$0xff]
  %v4589 = vld [vmem:[#allocation2 + $0xe4] sm:$0xff]
  %v4590 = vld [vmem:[#allocation2 + $0xec] sm:$0xff]
  %v4591 = vld [vmem:[#allocation2 + $0xf4] sm:$0xff]
  %v4592 = vld [vmem:[#allocation2 + $0xfc] sm:$0xff]
  %v4593 = vld [vmem:[#allocation2 + $0x104] sm:$0xff]
  %v4594 = vld [vmem:[#allocation2 + $0x10c] sm:$0xff]
  %v4595 = vld [vmem:[#allocation2 + $0x114] sm:$0xff]
  %v4596 = vld [vmem:[#allocation2 + $0x11c] sm:$0xff]
  %v4597 = vsel %vm2440, %v4561, 0.0
  %v4598 = vsel %vm2441, %v4562, 0.0
  %v4599 = vsel %vm2442, %v4563, 0.0
  %v4600 = vsel %vm2443, %v4564, 0.0
  %v4601 = vsel %vm2444, %v4565, 0.0
  %v4602 = vsel %vm2445, %v4566, 0.0
  %v4603 = vsel %vm2446, %v4567, 0.0
  %v4604 = vsel %vm2447, %v4568, 0.0
  %v4605 = vsel %vm2448, %v4569, 0.0
  %v4606 = vsel %vm2449, %v4570, 0.0
  %v4607 = vsel %vm2450, %v4571, 0.0
  %v4608 = vsel %vm2451, %v4572, 0.0
  %v4609 = vsel %vm2452, %v4573, 0.0
  %v4610 = vsel %vm2453, %v4574, 0.0
  %v4611 = vsel %vm2454, %v4575, 0.0
  %v4612 = vsel %vm2455, %v4576, 0.0
  %v4613 = vsel %vm2456, %v4577, 0.0
  %v4614 = vsel %vm2457, %v4578, 0.0
  %v4615 = vsel %vm2458, %v4579, 0.0
  %v4616 = vsel %vm2459, %v4580, 0.0
  %v4617 = vsel %vm2460, %v4581, 0.0
  %v4618 = vsel %vm2461, %v4582, 0.0
  %v4619 = vsel %vm2462, %v4583, 0.0
  %v4620 = vsel %vm2463, %v4584, 0.0
  %v4621 = vsel %vm2464, %v4585, 0.0
  %v4622 = vsel %vm2465, %v4586, 0.0
  %v4623 = vsel %vm2466, %v4587, 0.0
  %v4624 = vsel %vm2467, %v4588, 0.0
  %v4625 = vsel %vm2468, %v4589, 0.0
  %v4626 = vsel %vm2469, %v4590, 0.0
  %v4627 = vsel %vm2470, %v4591, 0.0
  %v4628 = vsel %vm2471, %v4592, 0.0
  %v4629 = vsel %vm2472, %v4593, 0.0
  %v4630 = vsel %vm2473, %v4594, 0.0
  %v4631 = vsel %vm2474, %v4595, 0.0
  %v4632 = vsel %vm2475, %v4596, 0.0
  %4633 = vrot.lane.b32.xlu0 %v4597, 4
  %v4634 = vpop.permute.xlu0 %4633
  %4635 = vrot.lane.b32.xlu0 %v4598, 4
  %v4636 = vpop.permute.xlu0 %4635
  %4637 = vrot.lane.b32.xlu0 %v4599, 4
  %v4638 = vpop.permute.xlu0 %4637
  %4639 = vrot.lane.b32.xlu0 %v4600, 4
  %v4640 = vpop.permute.xlu0 %4639
  %4641 = vrot.lane.b32.xlu0 %v4601, 4
  %v4642 = vpop.permute.xlu0 %4641
  %4643 = vrot.lane.b32.xlu0 %v4602, 4
  %v4644 = vpop.permute.xlu0 %4643
  %4645 = vrot.lane.b32.xlu0 %v4603, 4
  %v4646 = vpop.permute.xlu0 %4645
  %4647 = vrot.lane.b32.xlu0 %v4604, 4
  %v4648 = vpop.permute.xlu0 %4647
  %4649 = vrot.lane.b32.xlu0 %v4605, 4
  %v4650 = vpop.permute.xlu0 %4649
  %4651 = vrot.lane.b32.xlu0 %v4606, 4
  %v4652 = vpop.permute.xlu0 %4651
  %4653 = vrot.lane.b32.xlu0 %v4607, 4
  %v4654 = vpop.permute.xlu0 %4653
  %4655 = vrot.lane.b32.xlu0 %v4608, 4
  %v4656 = vpop.permute.xlu0 %4655
  %4657 = vrot.lane.b32.xlu0 %v4609, 4
  %v4658 = vpop.permute.xlu0 %4657
  %4659 = vrot.lane.b32.xlu0 %v4610, 4
  %v4660 = vpop.permute.xlu0 %4659
  %4661 = vrot.lane.b32.xlu0 %v4611, 4
  %v4662 = vpop.permute.xlu0 %4661
  %4663 = vrot.lane.b32.xlu0 %v4612, 4
  %v4664 = vpop.permute.xlu0 %4663
  %4665 = vrot.lane.b32.xlu0 %v4613, 4
  %v4666 = vpop.permute.xlu0 %4665
  %4667 = vrot.lane.b32.xlu0 %v4614, 4
  %v4668 = vpop.permute.xlu0 %4667
  %4669 = vrot.lane.b32.xlu0 %v4615, 4
  %v4670 = vpop.permute.xlu0 %4669
  %4671 = vrot.lane.b32.xlu0 %v4616, 4
  %v4672 = vpop.permute.xlu0 %4671
  %4673 = vrot.lane.b32.xlu0 %v4617, 4
  %v4674 = vpop.permute.xlu0 %4673
  %4675 = vrot.lane.b32.xlu0 %v4618, 4
  %v4676 = vpop.permute.xlu0 %4675
  %4677 = vrot.lane.b32.xlu0 %v4619, 4
  %v4678 = vpop.permute.xlu0 %4677
  %4679 = vrot.lane.b32.xlu0 %v4620, 4
  %v4680 = vpop.permute.xlu0 %4679
  %4681 = vrot.lane.b32.xlu0 %v4621, 4
  %v4682 = vpop.permute.xlu0 %4681
  %4683 = vrot.lane.b32.xlu0 %v4622, 4
  %v4684 = vpop.permute.xlu0 %4683
  %4685 = vrot.lane.b32.xlu0 %v4623, 4
  %v4686 = vpop.permute.xlu0 %4685
  %4687 = vrot.lane.b32.xlu0 %v4624, 4
  %v4688 = vpop.permute.xlu0 %4687
  %4689 = vrot.lane.b32.xlu0 %v4625, 4
  %v4690 = vpop.permute.xlu0 %4689
  %4691 = vrot.lane.b32.xlu0 %v4626, 4
  %v4692 = vpop.permute.xlu0 %4691
  %4693 = vrot.lane.b32.xlu0 %v4627, 4
  %v4694 = vpop.permute.xlu0 %4693
  %4695 = vrot.lane.b32.xlu0 %v4628, 4
  %v4696 = vpop.permute.xlu0 %4695
  %4697 = vrot.lane.b32.xlu0 %v4629, 4
  %v4698 = vpop.permute.xlu0 %4697
  %4699 = vrot.lane.b32.xlu0 %v4630, 4
  %v4700 = vpop.permute.xlu0 %4699
  %4701 = vrot.lane.b32.xlu0 %v4631, 4
  %v4702 = vpop.permute.xlu0 %4701
  %4703 = vrot.lane.b32.xlu0 %v4632, 4
  %v4704 = vpop.permute.xlu0 %4703
  %v4705 = vadd.f32 %v4525, %v4634
  %v4706 = vadd.f32 %v4526, %v4636
  %v4707 = vadd.f32 %v4527, %v4638
  %v4708 = vadd.f32 %v4528, %v4640
  %v4709 = vadd.f32 %v4529, %v4642
  %v4710 = vadd.f32 %v4530, %v4644
  %v4711 = vadd.f32 %v4531, %v4646
  %v4712 = vadd.f32 %v4532, %v4648
  %v4713 = vadd.f32 %v4533, %v4650
  %v4714 = vadd.f32 %v4534, %v4652
  %v4715 = vadd.f32 %v4535, %v4654
  %v4716 = vadd.f32 %v4536, %v4656
  %v4717 = vadd.f32 %v4537, %v4658
  %v4718 = vadd.f32 %v4538, %v4660
  %v4719 = vadd.f32 %v4539, %v4662
  %v4720 = vadd.f32 %v4540, %v4664
  %v4721 = vadd.f32 %v4541, %v4666
  %v4722 = vadd.f32 %v4542, %v4668
  %v4723 = vadd.f32 %v4543, %v4670
  %v4724 = vadd.f32 %v4544, %v4672
  %v4725 = vadd.f32 %v4545, %v4674
  %v4726 = vadd.f32 %v4546, %v4676
  %v4727 = vadd.f32 %v4547, %v4678
  %v4728 = vadd.f32 %v4548, %v4680
  %v4729 = vadd.f32 %v4549, %v4682
  %v4730 = vadd.f32 %v4550, %v4684
  %v4731 = vadd.f32 %v4551, %v4686
  %v4732 = vadd.f32 %v4552, %v4688
  %v4733 = vadd.f32 %v4553, %v4690
  %v4734 = vadd.f32 %v4554, %v4692
  %v4735 = vadd.f32 %v4555, %v4694
  %v4736 = vadd.f32 %v4556, %v4696
  %v4737 = vadd.f32 %v4557, %v4698
  %v4738 = vadd.f32 %v4558, %v4700
  %v4739 = vadd.f32 %v4559, %v4702
  %v4740 = vadd.f32 %v4560, %v4704
  %v4741 = vld [vmem:[#allocation2 + $0x5] sm:$0xff]
  %v4742 = vld [vmem:[#allocation2 + $0xd] sm:$0xff]
  %v4743 = vld [vmem:[#allocation2 + $0x15] sm:$0xff]
  %v4744 = vld [vmem:[#allocation2 + $0x1d] sm:$0xff]
  %v4745 = vld [vmem:[#allocation2 + $0x25] sm:$0xff]
  %v4746 = vld [vmem:[#allocation2 + $0x2d] sm:$0xff]
  %v4747 = vld [vmem:[#allocation2 + $0x35] sm:$0xff]
  %v4748 = vld [vmem:[#allocation2 + $0x3d] sm:$0xff]
  %v4749 = vld [vmem:[#allocation2 + $0x45] sm:$0xff]
  %v4750 = vld [vmem:[#allocation2 + $0x4d] sm:$0xff]
  %v4751 = vld [vmem:[#allocation2 + $0x55] sm:$0xff]
  %v4752 = vld [vmem:[#allocation2 + $0x5d] sm:$0xff]
  %v4753 = vld [vmem:[#allocation2 + $0x65] sm:$0xff]
  %v4754 = vld [vmem:[#allocation2 + $0x6d] sm:$0xff]
  %v4755 = vld [vmem:[#allocation2 + $0x75] sm:$0xff]
  %v4756 = vld [vmem:[#allocation2 + $0x7d] sm:$0xff]
  %v4757 = vld [vmem:[#allocation2 + $0x85] sm:$0xff]
  %v4758 = vld [vmem:[#allocation2 + $0x8d] sm:$0xff]
  %v4759 = vld [vmem:[#allocation2 + $0x95] sm:$0xff]
  %v4760 = vld [vmem:[#allocation2 + $0x9d] sm:$0xff]
  %v4761 = vld [vmem:[#allocation2 + $0xa5] sm:$0xff]
  %v4762 = vld [vmem:[#allocation2 + $0xad] sm:$0xff]
  %v4763 = vld [vmem:[#allocation2 + $0xb5] sm:$0xff]
  %v4764 = vld [vmem:[#allocation2 + $0xbd] sm:$0xff]
  %v4765 = vld [vmem:[#allocation2 + $0xc5] sm:$0xff]
  %v4766 = vld [vmem:[#allocation2 + $0xcd] sm:$0xff]
  %v4767 = vld [vmem:[#allocation2 + $0xd5] sm:$0xff]
  %v4768 = vld [vmem:[#allocation2 + $0xdd] sm:$0xff]
  %v4769 = vld [vmem:[#allocation2 + $0xe5] sm:$0xff]
  %v4770 = vld [vmem:[#allocation2 + $0xed] sm:$0xff]
  %v4771 = vld [vmem:[#allocation2 + $0xf5] sm:$0xff]
  %v4772 = vld [vmem:[#allocation2 + $0xfd] sm:$0xff]
  %v4773 = vld [vmem:[#allocation2 + $0x105] sm:$0xff]
  %v4774 = vld [vmem:[#allocation2 + $0x10d] sm:$0xff]
  %v4775 = vld [vmem:[#allocation2 + $0x115] sm:$0xff]
  %v4776 = vld [vmem:[#allocation2 + $0x11d] sm:$0xff]
  %v4777 = vsel %vm2692, %v4741, 0.0
  %v4778 = vsel %vm2693, %v4742, 0.0
  %v4779 = vsel %vm2694, %v4743, 0.0
  %v4780 = vsel %vm2695, %v4744, 0.0
  %v4781 = vsel %vm2696, %v4745, 0.0
  %v4782 = vsel %vm2697, %v4746, 0.0
  %v4783 = vsel %vm2698, %v4747, 0.0
  %v4784 = vsel %vm2699, %v4748, 0.0
  %v4785 = vsel %vm2700, %v4749, 0.0
  %v4786 = vsel %vm2701, %v4750, 0.0
  %v4787 = vsel %vm2702, %v4751, 0.0
  %v4788 = vsel %vm2703, %v4752, 0.0
  %v4789 = vsel %vm2704, %v4753, 0.0
  %v4790 = vsel %vm2705, %v4754, 0.0
  %v4791 = vsel %vm2706, %v4755, 0.0
  %v4792 = vsel %vm2707, %v4756, 0.0
  %v4793 = vsel %vm2708, %v4757, 0.0
  %v4794 = vsel %vm2709, %v4758, 0.0
  %v4795 = vsel %vm2710, %v4759, 0.0
  %v4796 = vsel %vm2711, %v4760, 0.0
  %v4797 = vsel %vm2712, %v4761, 0.0
  %v4798 = vsel %vm2713, %v4762, 0.0
  %v4799 = vsel %vm2714, %v4763, 0.0
  %v4800 = vsel %vm2715, %v4764, 0.0
  %v4801 = vsel %vm2716, %v4765, 0.0
  %v4802 = vsel %vm2717, %v4766, 0.0
  %v4803 = vsel %vm2718, %v4767, 0.0
  %v4804 = vsel %vm2719, %v4768, 0.0
  %v4805 = vsel %vm2720, %v4769, 0.0
  %v4806 = vsel %vm2721, %v4770, 0.0
  %v4807 = vsel %vm2722, %v4771, 0.0
  %v4808 = vsel %vm2723, %v4772, 0.0
  %v4809 = vsel %vm2724, %v4773, 0.0
  %v4810 = vsel %vm2725, %v4774, 0.0
  %v4811 = vsel %vm2726, %v4775, 0.0
  %v4812 = vsel %vm2727, %v4776, 0.0
  %4813 = vrot.lane.b32.xlu0 %v4777, 8
  %v4814 = vpop.permute.xlu0 %4813
  %4815 = vrot.lane.b32.xlu0 %v4778, 8
  %v4816 = vpop.permute.xlu0 %4815
  %4817 = vrot.lane.b32.xlu0 %v4779, 8
  %v4818 = vpop.permute.xlu0 %4817
  %4819 = vrot.lane.b32.xlu0 %v4780, 8
  %v4820 = vpop.permute.xlu0 %4819
  %4821 = vrot.lane.b32.xlu0 %v4781, 8
  %v4822 = vpop.permute.xlu0 %4821
  %4823 = vrot.lane.b32.xlu0 %v4782, 8
  %v4824 = vpop.permute.xlu0 %4823
  %4825 = vrot.lane.b32.xlu0 %v4783, 8
  %v4826 = vpop.permute.xlu0 %4825
  %4827 = vrot.lane.b32.xlu0 %v4784, 8
  %v4828 = vpop.permute.xlu0 %4827
  %4829 = vrot.lane.b32.xlu0 %v4785, 8
  %v4830 = vpop.permute.xlu0 %4829
  %4831 = vrot.lane.b32.xlu0 %v4786, 8
  %v4832 = vpop.permute.xlu0 %4831
  %4833 = vrot.lane.b32.xlu0 %v4787, 8
  %v4834 = vpop.permute.xlu0 %4833
  %4835 = vrot.lane.b32.xlu0 %v4788, 8
  %v4836 = vpop.permute.xlu0 %4835
  %4837 = vrot.lane.b32.xlu0 %v4789, 8
  %v4838 = vpop.permute.xlu0 %4837
  %4839 = vrot.lane.b32.xlu0 %v4790, 8
  %v4840 = vpop.permute.xlu0 %4839
  %4841 = vrot.lane.b32.xlu0 %v4791, 8
  %v4842 = vpop.permute.xlu0 %4841
  %4843 = vrot.lane.b32.xlu0 %v4792, 8
  %v4844 = vpop.permute.xlu0 %4843
  %4845 = vrot.lane.b32.xlu0 %v4793, 8
  %v4846 = vpop.permute.xlu0 %4845
  %4847 = vrot.lane.b32.xlu0 %v4794, 8
  %v4848 = vpop.permute.xlu0 %4847
  %4849 = vrot.lane.b32.xlu0 %v4795, 8
  %v4850 = vpop.permute.xlu0 %4849
  %4851 = vrot.lane.b32.xlu0 %v4796, 8
  %v4852 = vpop.permute.xlu0 %4851
  %4853 = vrot.lane.b32.xlu0 %v4797, 8
  %v4854 = vpop.permute.xlu0 %4853
  %4855 = vrot.lane.b32.xlu0 %v4798, 8
  %v4856 = vpop.permute.xlu0 %4855
  %4857 = vrot.lane.b32.xlu0 %v4799, 8
  %v4858 = vpop.permute.xlu0 %4857
  %4859 = vrot.lane.b32.xlu0 %v4800, 8
  %v4860 = vpop.permute.xlu0 %4859
  %4861 = vrot.lane.b32.xlu0 %v4801, 8
  %v4862 = vpop.permute.xlu0 %4861
  %4863 = vrot.lane.b32.xlu0 %v4802, 8
  %v4864 = vpop.permute.xlu0 %4863
  %4865 = vrot.lane.b32.xlu0 %v4803, 8
  %v4866 = vpop.permute.xlu0 %4865
  %4867 = vrot.lane.b32.xlu0 %v4804, 8
  %v4868 = vpop.permute.xlu0 %4867
  %4869 = vrot.lane.b32.xlu0 %v4805, 8
  %v4870 = vpop.permute.xlu0 %4869
  %4871 = vrot.lane.b32.xlu0 %v4806, 8
  %v4872 = vpop.permute.xlu0 %4871
  %4873 = vrot.lane.b32.xlu0 %v4807, 8
  %v4874 = vpop.permute.xlu0 %4873
  %4875 = vrot.lane.b32.xlu0 %v4808, 8
  %v4876 = vpop.permute.xlu0 %4875
  %4877 = vrot.lane.b32.xlu0 %v4809, 8
  %v4878 = vpop.permute.xlu0 %4877
  %4879 = vrot.lane.b32.xlu0 %v4810, 8
  %v4880 = vpop.permute.xlu0 %4879
  %4881 = vrot.lane.b32.xlu0 %v4811, 8
  %v4882 = vpop.permute.xlu0 %4881
  %4883 = vrot.lane.b32.xlu0 %v4812, 8
  %v4884 = vpop.permute.xlu0 %4883
  %v4885 = vadd.f32 %v4705, %v4814
  %v4886 = vadd.f32 %v4706, %v4816
  %v4887 = vadd.f32 %v4707, %v4818
  %v4888 = vadd.f32 %v4708, %v4820
  %v4889 = vadd.f32 %v4709, %v4822
  %v4890 = vadd.f32 %v4710, %v4824
  %v4891 = vadd.f32 %v4711, %v4826
  %v4892 = vadd.f32 %v4712, %v4828
  %v4893 = vadd.f32 %v4713, %v4830
  %v4894 = vadd.f32 %v4714, %v4832
  %v4895 = vadd.f32 %v4715, %v4834
  %v4896 = vadd.f32 %v4716, %v4836
  %v4897 = vadd.f32 %v4717, %v4838
  %v4898 = vadd.f32 %v4718, %v4840
  %v4899 = vadd.f32 %v4719, %v4842
  %v4900 = vadd.f32 %v4720, %v4844
  %v4901 = vadd.f32 %v4721, %v4846
  %v4902 = vadd.f32 %v4722, %v4848
  %v4903 = vadd.f32 %v4723, %v4850
  %v4904 = vadd.f32 %v4724, %v4852
  %v4905 = vadd.f32 %v4725, %v4854
  %v4906 = vadd.f32 %v4726, %v4856
  %v4907 = vadd.f32 %v4727, %v4858
  %v4908 = vadd.f32 %v4728, %v4860
  %v4909 = vadd.f32 %v4729, %v4862
  %v4910 = vadd.f32 %v4730, %v4864
  %v4911 = vadd.f32 %v4731, %v4866
  %v4912 = vadd.f32 %v4732, %v4868
  %v4913 = vadd.f32 %v4733, %v4870
  %v4914 = vadd.f32 %v4734, %v4872
  %v4915 = vadd.f32 %v4735, %v4874
  %v4916 = vadd.f32 %v4736, %v4876
  %v4917 = vadd.f32 %v4737, %v4878
  %v4918 = vadd.f32 %v4738, %v4880
  %v4919 = vadd.f32 %v4739, %v4882
  %v4920 = vadd.f32 %v4740, %v4884
  %v4921 = vld [vmem:[#allocation2 + $0xf] sm:$0xff]
  %v4922 = vld [vmem:[#allocation2 + $0x17] sm:$0xff]
  %v4923 = vld [vmem:[#allocation2 + $0x1f] sm:$0xff]
  %v4924 = vld [vmem:[#allocation2 + $0x27] sm:$0xff]
  %v4925 = vld [vmem:[#allocation2 + $0x2f] sm:$0xff]
  %v4926 = vld [vmem:[#allocation2 + $0x37] sm:$0xff]
  %v4927 = vld [vmem:[#allocation2 + $0x3f] sm:$0xff]
  %v4928 = vld [vmem:[#allocation2 + $0x47] sm:$0xff]
  %v4929 = vld [vmem:[#allocation2 + $0x4f] sm:$0xff]
  %v4930 = vld [vmem:[#allocation2 + $0x57] sm:$0xff]
  %v4931 = vld [vmem:[#allocation2 + $0x5f] sm:$0xff]
  %v4932 = vld [vmem:[#allocation2 + $0x67] sm:$0xff]
  %v4933 = vld [vmem:[#allocation2 + $0x6f] sm:$0xff]
  %v4934 = vld [vmem:[#allocation2 + $0x77] sm:$0xff]
  %v4935 = vld [vmem:[#allocation2 + $0x7f] sm:$0xff]
  %v4936 = vld [vmem:[#allocation2 + $0x87] sm:$0xff]
  %v4937 = vld [vmem:[#allocation2 + $0x8f] sm:$0xff]
  %v4938 = vld [vmem:[#allocation2 + $0x97] sm:$0xff]
  %v4939 = vld [vmem:[#allocation2 + $0x9f] sm:$0xff]
  %v4940 = vld [vmem:[#allocation2 + $0xa7] sm:$0xff]
  %v4941 = vld [vmem:[#allocation2 + $0xaf] sm:$0xff]
  %v4942 = vld [vmem:[#allocation2 + $0xb7] sm:$0xff]
  %v4943 = vld [vmem:[#allocation2 + $0xbf] sm:$0xff]
  %v4944 = vld [vmem:[#allocation2 + $0xc7] sm:$0xff]
  %v4945 = vld [vmem:[#allocation2 + $0xcf] sm:$0xff]
  %v4946 = vld [vmem:[#allocation2 + $0xd7] sm:$0xff]
  %v4947 = vld [vmem:[#allocation2 + $0xdf] sm:$0xff]
  %v4948 = vld [vmem:[#allocation2 + $0xe7] sm:$0xff]
  %v4949 = vld [vmem:[#allocation2 + $0xef] sm:$0xff]
  %v4950 = vld [vmem:[#allocation2 + $0xf7] sm:$0xff]
  %v4951 = vld [vmem:[#allocation2 + $0xff] sm:$0xff]
  %v4952 = vld [vmem:[#allocation2 + $0x107] sm:$0xff]
  %v4953 = vld [vmem:[#allocation2 + $0x10f] sm:$0xff]
  %v4954 = vld [vmem:[#allocation2 + $0x117] sm:$0xff]
  %v4955 = vld [vmem:[#allocation2 + $0x11f] sm:$0xff]
  %v4956 = vld [vmem:[#allocation2 + $0x127] sm:$0xff]
  %v4957 = vsel %vm2944, %v4921, 0.0
  %v4958 = vsel %vm2945, %v4922, 0.0
  %v4959 = vsel %vm2946, %v4923, 0.0
  %v4960 = vsel %vm2947, %v4924, 0.0
  %v4961 = vsel %vm2948, %v4925, 0.0
  %v4962 = vsel %vm2949, %v4926, 0.0
  %v4963 = vsel %vm2950, %v4927, 0.0
  %v4964 = vsel %vm2951, %v4928, 0.0
  %v4965 = vsel %vm2952, %v4929, 0.0
  %v4966 = vsel %vm2953, %v4930, 0.0
  %v4967 = vsel %vm2954, %v4931, 0.0
  %v4968 = vsel %vm2955, %v4932, 0.0
  %v4969 = vsel %vm2956, %v4933, 0.0
  %v4970 = vsel %vm2957, %v4934, 0.0
  %v4971 = vsel %vm2958, %v4935, 0.0
  %v4972 = vsel %vm2959, %v4936, 0.0
  %v4973 = vsel %vm2960, %v4937, 0.0
  %v4974 = vsel %vm2961, %v4938, 0.0
  %v4975 = vsel %vm2962, %v4939, 0.0
  %v4976 = vsel %vm2963, %v4940, 0.0
  %v4977 = vsel %vm2964, %v4941, 0.0
  %v4978 = vsel %vm2965, %v4942, 0.0
  %v4979 = vsel %vm2966, %v4943, 0.0
  %v4980 = vsel %vm2967, %v4944, 0.0
  %v4981 = vsel %vm2968, %v4945, 0.0
  %v4982 = vsel %vm2969, %v4946, 0.0
  %v4983 = vsel %vm2970, %v4947, 0.0
  %v4984 = vsel %vm2971, %v4948, 0.0
  %v4985 = vsel %vm2972, %v4949, 0.0
  %v4986 = vsel %vm2973, %v4950, 0.0
  %v4987 = vsel %vm2974, %v4951, 0.0
  %v4988 = vsel %vm2975, %v4952, 0.0
  %v4989 = vsel %vm2976, %v4953, 0.0
  %v4990 = vsel %vm2977, %v4954, 0.0
  %v4991 = vsel %vm2978, %v4955, 0.0
  %v4992 = vsel %vm2979, %v4956, 0.0
  %4993 = vrot.lane.b32.xlu0 %v4957, 12
  %v4994 = vpop.permute.xlu0 %4993
  %4995 = vrot.lane.b32.xlu0 %v4958, 12
  %v4996 = vpop.permute.xlu0 %4995
  %4997 = vrot.lane.b32.xlu0 %v4959, 12
  %v4998 = vpop.permute.xlu0 %4997
  %4999 = vrot.lane.b32.xlu0 %v4960, 12
  %v5000 = vpop.permute.xlu0 %4999
  %5001 = vrot.lane.b32.xlu0 %v4961, 12
  %v5002 = vpop.permute.xlu0 %5001
  %5003 = vrot.lane.b32.xlu0 %v4962, 12
  %v5004 = vpop.permute.xlu0 %5003
  %5005 = vrot.lane.b32.xlu0 %v4963, 12
  %v5006 = vpop.permute.xlu0 %5005
  %5007 = vrot.lane.b32.xlu0 %v4964, 12
  %v5008 = vpop.permute.xlu0 %5007
  %5009 = vrot.lane.b32.xlu0 %v4965, 12
  %v5010 = vpop.permute.xlu0 %5009
  %5011 = vrot.lane.b32.xlu0 %v4966, 12
  %v5012 = vpop.permute.xlu0 %5011
  %5013 = vrot.lane.b32.xlu0 %v4967, 12
  %v5014 = vpop.permute.xlu0 %5013
  %5015 = vrot.lane.b32.xlu0 %v4968, 12
  %v5016 = vpop.permute.xlu0 %5015
  %5017 = vrot.lane.b32.xlu0 %v4969, 12
  %v5018 = vpop.permute.xlu0 %5017
  %5019 = vrot.lane.b32.xlu0 %v4970, 12
  %v5020 = vpop.permute.xlu0 %5019
  %5021 = vrot.lane.b32.xlu0 %v4971, 12
  %v5022 = vpop.permute.xlu0 %5021
  %5023 = vrot.lane.b32.xlu0 %v4972, 12
  %v5024 = vpop.permute.xlu0 %5023
  %5025 = vrot.lane.b32.xlu0 %v4973, 12
  %v5026 = vpop.permute.xlu0 %5025
  %5027 = vrot.lane.b32.xlu0 %v4974, 12
  %v5028 = vpop.permute.xlu0 %5027
  %5029 = vrot.lane.b32.xlu0 %v4975, 12
  %v5030 = vpop.permute.xlu0 %5029
  %5031 = vrot.lane.b32.xlu0 %v4976, 12
  %v5032 = vpop.permute.xlu0 %5031
  %5033 = vrot.lane.b32.xlu0 %v4977, 12
  %v5034 = vpop.permute.xlu0 %5033
  %5035 = vrot.lane.b32.xlu0 %v4978, 12
  %v5036 = vpop.permute.xlu0 %5035
  %5037 = vrot.lane.b32.xlu0 %v4979, 12
  %v5038 = vpop.permute.xlu0 %5037
  %5039 = vrot.lane.b32.xlu0 %v4980, 12
  %v5040 = vpop.permute.xlu0 %5039
  %5041 = vrot.lane.b32.xlu0 %v4981, 12
  %v5042 = vpop.permute.xlu0 %5041
  %5043 = vrot.lane.b32.xlu0 %v4982, 12
  %v5044 = vpop.permute.xlu0 %5043
  %5045 = vrot.lane.b32.xlu0 %v4983, 12
  %v5046 = vpop.permute.xlu0 %5045
  %5047 = vrot.lane.b32.xlu0 %v4984, 12
  %v5048 = vpop.permute.xlu0 %5047
  %5049 = vrot.lane.b32.xlu0 %v4985, 12
  %v5050 = vpop.permute.xlu0 %5049
  %5051 = vrot.lane.b32.xlu0 %v4986, 12
  %v5052 = vpop.permute.xlu0 %5051
  %5053 = vrot.lane.b32.xlu0 %v4987, 12
  %v5054 = vpop.permute.xlu0 %5053
  %5055 = vrot.lane.b32.xlu0 %v4988, 12
  %v5056 = vpop.permute.xlu0 %5055
  %5057 = vrot.lane.b32.xlu0 %v4989, 12
  %v5058 = vpop.permute.xlu0 %5057
  %5059 = vrot.lane.b32.xlu0 %v4990, 12
  %v5060 = vpop.permute.xlu0 %5059
  %5061 = vrot.lane.b32.xlu0 %v4991, 12
  %v5062 = vpop.permute.xlu0 %5061
  %5063 = vrot.lane.b32.xlu0 %v4992, 12
  %v5064 = vpop.permute.xlu0 %5063
  %v5065 = vadd.f32 %v4885, %v4994
  %v5066 = vadd.f32 %v4886, %v4996
  %v5067 = vadd.f32 %v4887, %v4998
  %v5068 = vadd.f32 %v4888, %v5000
  %v5069 = vadd.f32 %v4889, %v5002
  %v5070 = vadd.f32 %v4890, %v5004
  %v5071 = vadd.f32 %v4891, %v5006
  %v5072 = vadd.f32 %v4892, %v5008
  %v5073 = vadd.f32 %v4893, %v5010
  %v5074 = vadd.f32 %v4894, %v5012
  %v5075 = vadd.f32 %v4895, %v5014
  %v5076 = vadd.f32 %v4896, %v5016
  %v5077 = vadd.f32 %v4897, %v5018
  %v5078 = vadd.f32 %v4898, %v5020
  %v5079 = vadd.f32 %v4899, %v5022
  %v5080 = vadd.f32 %v4900, %v5024
  %v5081 = vadd.f32 %v4901, %v5026
  %v5082 = vadd.f32 %v4902, %v5028
  %v5083 = vadd.f32 %v4903, %v5030
  %v5084 = vadd.f32 %v4904, %v5032
  %v5085 = vadd.f32 %v4905, %v5034
  %v5086 = vadd.f32 %v4906, %v5036
  %v5087 = vadd.f32 %v4907, %v5038
  %v5088 = vadd.f32 %v4908, %v5040
  %v5089 = vadd.f32 %v4909, %v5042
  %v5090 = vadd.f32 %v4910, %v5044
  %v5091 = vadd.f32 %v4911, %v5046
  %v5092 = vadd.f32 %v4912, %v5048
  %v5093 = vadd.f32 %v4913, %v5050
  %v5094 = vadd.f32 %v4914, %v5052
  %v5095 = vadd.f32 %v4915, %v5054
  %v5096 = vadd.f32 %v4916, %v5056
  %v5097 = vadd.f32 %v4917, %v5058
  %v5098 = vadd.f32 %v4918, %v5060
  %v5099 = vadd.f32 %v4919, %v5062
  %v5100 = vadd.f32 %v4920, %v5064
  %v5101 = vld [vmem:[#allocation2 + $0x10] sm:$0xff]
  %v5102 = vld [vmem:[#allocation2 + $0x18] sm:$0xff]
  %v5103 = vld [vmem:[#allocation2 + $0x20] sm:$0xff]
  %v5104 = vld [vmem:[#allocation2 + $0x28] sm:$0xff]
  %v5105 = vld [vmem:[#allocation2 + $0x30] sm:$0xff]
  %v5106 = vld [vmem:[#allocation2 + $0x38] sm:$0xff]
  %v5107 = vld [vmem:[#allocation2 + $0x40] sm:$0xff]
  %v5108 = vld [vmem:[#allocation2 + $0x48] sm:$0xff]
  %v5109 = vld [vmem:[#allocation2 + $0x50] sm:$0xff]
  %v5110 = vld [vmem:[#allocation2 + $0x58] sm:$0xff]
  %v5111 = vld [vmem:[#allocation2 + $0x60] sm:$0xff]
  %v5112 = vld [vmem:[#allocation2 + $0x68] sm:$0xff]
  %v5113 = vld [vmem:[#allocation2 + $0x70] sm:$0xff]
  %v5114 = vld [vmem:[#allocation2 + $0x78] sm:$0xff]
  %v5115 = vld [vmem:[#allocation2 + $0x80] sm:$0xff]
  %v5116 = vld [vmem:[#allocation2 + $0x88] sm:$0xff]
  %v5117 = vld [vmem:[#allocation2 + $0x90] sm:$0xff]
  %v5118 = vld [vmem:[#allocation2 + $0x98] sm:$0xff]
  %v5119 = vld [vmem:[#allocation2 + $0xa0] sm:$0xff]
  %v5120 = vld [vmem:[#allocation2 + $0xa8] sm:$0xff]
  %v5121 = vld [vmem:[#allocation2 + $0xb0] sm:$0xff]
  %v5122 = vld [vmem:[#allocation2 + $0xb8] sm:$0xff]
  %v5123 = vld [vmem:[#allocation2 + $0xc0] sm:$0xff]
  %v5124 = vld [vmem:[#allocation2 + $0xc8] sm:$0xff]
  %v5125 = vld [vmem:[#allocation2 + $0xd0] sm:$0xff]
  %v5126 = vld [vmem:[#allocation2 + $0xd8] sm:$0xff]
  %v5127 = vld [vmem:[#allocation2 + $0xe0] sm:$0xff]
  %v5128 = vld [vmem:[#allocation2 + $0xe8] sm:$0xff]
  %v5129 = vld [vmem:[#allocation2 + $0xf0] sm:$0xff]
  %v5130 = vld [vmem:[#allocation2 + $0xf8] sm:$0xff]
  %v5131 = vld [vmem:[#allocation2 + $0x100] sm:$0xff]
  %v5132 = vld [vmem:[#allocation2 + $0x108] sm:$0xff]
  %v5133 = vld [vmem:[#allocation2 + $0x110] sm:$0xff]
  %v5134 = vld [vmem:[#allocation2 + $0x118] sm:$0xff]
  %v5135 = vld [vmem:[#allocation2 + $0x120] sm:$0xff]
  %v5136 = vld [vmem:[#allocation2 + $0x128] sm:$0xff]
  %5137 = vrot.lane.b32.xlu0 %v5101, 16
  %v5138 = vpop.permute.xlu0 %5137
  %5139 = vrot.lane.b32.xlu0 %v5102, 16
  %v5140 = vpop.permute.xlu0 %5139
  %5141 = vrot.lane.b32.xlu0 %v5103, 16
  %v5142 = vpop.permute.xlu0 %5141
  %5143 = vrot.lane.b32.xlu0 %v5104, 16
  %v5144 = vpop.permute.xlu0 %5143
  %5145 = vrot.lane.b32.xlu0 %v5105, 16
  %v5146 = vpop.permute.xlu0 %5145
  %5147 = vrot.lane.b32.xlu0 %v5106, 16
  %v5148 = vpop.permute.xlu0 %5147
  %5149 = vrot.lane.b32.xlu0 %v5107, 16
  %v5150 = vpop.permute.xlu0 %5149
  %5151 = vrot.lane.b32.xlu0 %v5108, 16
  %v5152 = vpop.permute.xlu0 %5151
  %5153 = vrot.lane.b32.xlu0 %v5109, 16
  %v5154 = vpop.permute.xlu0 %5153
  %5155 = vrot.lane.b32.xlu0 %v5110, 16
  %v5156 = vpop.permute.xlu0 %5155
  %5157 = vrot.lane.b32.xlu0 %v5111, 16
  %v5158 = vpop.permute.xlu0 %5157
  %5159 = vrot.lane.b32.xlu0 %v5112, 16
  %v5160 = vpop.permute.xlu0 %5159
  %5161 = vrot.lane.b32.xlu0 %v5113, 16
  %v5162 = vpop.permute.xlu0 %5161
  %5163 = vrot.lane.b32.xlu0 %v5114, 16
  %v5164 = vpop.permute.xlu0 %5163
  %5165 = vrot.lane.b32.xlu0 %v5115, 16
  %v5166 = vpop.permute.xlu0 %5165
  %5167 = vrot.lane.b32.xlu0 %v5116, 16
  %v5168 = vpop.permute.xlu0 %5167
  %5169 = vrot.lane.b32.xlu0 %v5117, 16
  %v5170 = vpop.permute.xlu0 %5169
  %5171 = vrot.lane.b32.xlu0 %v5118, 16
  %v5172 = vpop.permute.xlu0 %5171
  %5173 = vrot.lane.b32.xlu0 %v5119, 16
  %v5174 = vpop.permute.xlu0 %5173
  %5175 = vrot.lane.b32.xlu0 %v5120, 16
  %v5176 = vpop.permute.xlu0 %5175
  %5177 = vrot.lane.b32.xlu0 %v5121, 16
  %v5178 = vpop.permute.xlu0 %5177
  %5179 = vrot.lane.b32.xlu0 %v5122, 16
  %v5180 = vpop.permute.xlu0 %5179
  %5181 = vrot.lane.b32.xlu0 %v5123, 16
  %v5182 = vpop.permute.xlu0 %5181
  %5183 = vrot.lane.b32.xlu0 %v5124, 16
  %v5184 = vpop.permute.xlu0 %5183
  %5185 = vrot.lane.b32.xlu0 %v5125, 16
  %v5186 = vpop.permute.xlu0 %5185
  %5187 = vrot.lane.b32.xlu0 %v5126, 16
  %v5188 = vpop.permute.xlu0 %5187
  %5189 = vrot.lane.b32.xlu0 %v5127, 16
  %v5190 = vpop.permute.xlu0 %5189
  %5191 = vrot.lane.b32.xlu0 %v5128, 16
  %v5192 = vpop.permute.xlu0 %5191
  %5193 = vrot.lane.b32.xlu0 %v5129, 16
  %v5194 = vpop.permute.xlu0 %5193
  %5195 = vrot.lane.b32.xlu0 %v5130, 16
  %v5196 = vpop.permute.xlu0 %5195
  %5197 = vrot.lane.b32.xlu0 %v5131, 16
  %v5198 = vpop.permute.xlu0 %5197
  %5199 = vrot.lane.b32.xlu0 %v5132, 16
  %v5200 = vpop.permute.xlu0 %5199
  %5201 = vrot.lane.b32.xlu0 %v5133, 16
  %v5202 = vpop.permute.xlu0 %5201
  %5203 = vrot.lane.b32.xlu0 %v5134, 16
  %v5204 = vpop.permute.xlu0 %5203
  %5205 = vrot.lane.b32.xlu0 %v5135, 16
  %v5206 = vpop.permute.xlu0 %5205
  %5207 = vrot.lane.b32.xlu0 %v5136, 16
  %v5208 = vpop.permute.xlu0 %5207
  %v5209 = vadd.f32 %v5065, %v5138
  %v5210 = vadd.f32 %v5066, %v5140
  %v5211 = vadd.f32 %v5067, %v5142
  %v5212 = vadd.f32 %v5068, %v5144
  %v5213 = vadd.f32 %v5069, %v5146
  %v5214 = vadd.f32 %v5070, %v5148
  %v5215 = vadd.f32 %v5071, %v5150
  %v5216 = vadd.f32 %v5072, %v5152
  %v5217 = vadd.f32 %v5073, %v5154
  %v5218 = vadd.f32 %v5074, %v5156
  %v5219 = vadd.f32 %v5075, %v5158
  %v5220 = vadd.f32 %v5076, %v5160
  %v5221 = vadd.f32 %v5077, %v5162
  %v5222 = vadd.f32 %v5078, %v5164
  %v5223 = vadd.f32 %v5079, %v5166
  %v5224 = vadd.f32 %v5080, %v5168
  %v5225 = vadd.f32 %v5081, %v5170
  %v5226 = vadd.f32 %v5082, %v5172
  %v5227 = vadd.f32 %v5083, %v5174
  %v5228 = vadd.f32 %v5084, %v5176
  %v5229 = vadd.f32 %v5085, %v5178
  %v5230 = vadd.f32 %v5086, %v5180
  %v5231 = vadd.f32 %v5087, %v5182
  %v5232 = vadd.f32 %v5088, %v5184
  %v5233 = vadd.f32 %v5089, %v5186
  %v5234 = vadd.f32 %v5090, %v5188
  %v5235 = vadd.f32 %v5091, %v5190
  %v5236 = vadd.f32 %v5092, %v5192
  %v5237 = vadd.f32 %v5093, %v5194
  %v5238 = vadd.f32 %v5094, %v5196
  %v5239 = vadd.f32 %v5095, %v5198
  %v5240 = vadd.f32 %v5096, %v5200
  %v5241 = vadd.f32 %v5097, %v5202
  %v5242 = vadd.f32 %v5098, %v5204
  %v5243 = vadd.f32 %v5099, %v5206
  %v5244 = vadd.f32 %v5100, %v5208
  %v5245 = vld [vmem:[#allocation2 + $0x11] sm:$0xff]
  %v5246 = vld [vmem:[#allocation2 + $0x19] sm:$0xff]
  %v5247 = vld [vmem:[#allocation2 + $0x21] sm:$0xff]
  %v5248 = vld [vmem:[#allocation2 + $0x29] sm:$0xff]
  %v5249 = vld [vmem:[#allocation2 + $0x31] sm:$0xff]
  %v5250 = vld [vmem:[#allocation2 + $0x39] sm:$0xff]
  %v5251 = vld [vmem:[#allocation2 + $0x41] sm:$0xff]
  %v5252 = vld [vmem:[#allocation2 + $0x49] sm:$0xff]
  %v5253 = vld [vmem:[#allocation2 + $0x51] sm:$0xff]
  %v5254 = vld [vmem:[#allocation2 + $0x59] sm:$0xff]
  %v5255 = vld [vmem:[#allocation2 + $0x61] sm:$0xff]
  %v5256 = vld [vmem:[#allocation2 + $0x69] sm:$0xff]
  %v5257 = vld [vmem:[#allocation2 + $0x71] sm:$0xff]
  %v5258 = vld [vmem:[#allocation2 + $0x79] sm:$0xff]
  %v5259 = vld [vmem:[#allocation2 + $0x81] sm:$0xff]
  %v5260 = vld [vmem:[#allocation2 + $0x89] sm:$0xff]
  %v5261 = vld [vmem:[#allocation2 + $0x91] sm:$0xff]
  %v5262 = vld [vmem:[#allocation2 + $0x99] sm:$0xff]
  %v5263 = vld [vmem:[#allocation2 + $0xa1] sm:$0xff]
  %v5264 = vld [vmem:[#allocation2 + $0xa9] sm:$0xff]
  %v5265 = vld [vmem:[#allocation2 + $0xb1] sm:$0xff]
  %v5266 = vld [vmem:[#allocation2 + $0xb9] sm:$0xff]
  %v5267 = vld [vmem:[#allocation2 + $0xc1] sm:$0xff]
  %v5268 = vld [vmem:[#allocation2 + $0xc9] sm:$0xff]
  %v5269 = vld [vmem:[#allocation2 + $0xd1] sm:$0xff]
  %v5270 = vld [vmem:[#allocation2 + $0xd9] sm:$0xff]
  %v5271 = vld [vmem:[#allocation2 + $0xe1] sm:$0xff]
  %v5272 = vld [vmem:[#allocation2 + $0xe9] sm:$0xff]
  %v5273 = vld [vmem:[#allocation2 + $0xf1] sm:$0xff]
  %v5274 = vld [vmem:[#allocation2 + $0xf9] sm:$0xff]
  %v5275 = vld [vmem:[#allocation2 + $0x101] sm:$0xff]
  %v5276 = vld [vmem:[#allocation2 + $0x109] sm:$0xff]
  %v5277 = vld [vmem:[#allocation2 + $0x111] sm:$0xff]
  %v5278 = vld [vmem:[#allocation2 + $0x119] sm:$0xff]
  %v5279 = vld [vmem:[#allocation2 + $0x121] sm:$0xff]
  %v5280 = vld [vmem:[#allocation2 + $0x129] sm:$0xff]
  %v5281 = vsel %vm3340, %v5245, 0.0
  %v5282 = vsel %vm3341, %v5246, 0.0
  %v5283 = vsel %vm3342, %v5247, 0.0
  %v5284 = vsel %vm3343, %v5248, 0.0
  %v5285 = vsel %vm3344, %v5249, 0.0
  %v5286 = vsel %vm3345, %v5250, 0.0
  %v5287 = vsel %vm3346, %v5251, 0.0
  %v5288 = vsel %vm3347, %v5252, 0.0
  %v5289 = vsel %vm3348, %v5253, 0.0
  %v5290 = vsel %vm3349, %v5254, 0.0
  %v5291 = vsel %vm3350, %v5255, 0.0
  %v5292 = vsel %vm3351, %v5256, 0.0
  %v5293 = vsel %vm3352, %v5257, 0.0
  %v5294 = vsel %vm3353, %v5258, 0.0
  %v5295 = vsel %vm3354, %v5259, 0.0
  %v5296 = vsel %vm3355, %v5260, 0.0
  %v5297 = vsel %vm3356, %v5261, 0.0
  %v5298 = vsel %vm3357, %v5262, 0.0
  %v5299 = vsel %vm3358, %v5263, 0.0
  %v5300 = vsel %vm3359, %v5264, 0.0
  %v5301 = vsel %vm3360, %v5265, 0.0
  %v5302 = vsel %vm3361, %v5266, 0.0
  %v5303 = vsel %vm3362, %v5267, 0.0
  %v5304 = vsel %vm3363, %v5268, 0.0
  %v5305 = vsel %vm3364, %v5269, 0.0
  %v5306 = vsel %vm3365, %v5270, 0.0
  %v5307 = vsel %vm3366, %v5271, 0.0
  %v5308 = vsel %vm3367, %v5272, 0.0
  %v5309 = vsel %vm3368, %v5273, 0.0
  %v5310 = vsel %vm3369, %v5274, 0.0
  %v5311 = vsel %vm3370, %v5275, 0.0
  %v5312 = vsel %vm3371, %v5276, 0.0
  %v5313 = vsel %vm3372, %v5277, 0.0
  %v5314 = vsel %vm3373, %v5278, 0.0
  %v5315 = vsel %vm3374, %v5279, 0.0
  %v5316 = vsel %vm3375, %v5280, 0.0
  %5317 = vrot.lane.b32.xlu0 %v5281, 20
  %v5318 = vpop.permute.xlu0 %5317
  %5319 = vrot.lane.b32.xlu0 %v5282, 20
  %v5320 = vpop.permute.xlu0 %5319
  %5321 = vrot.lane.b32.xlu0 %v5283, 20
  %v5322 = vpop.permute.xlu0 %5321
  %5323 = vrot.lane.b32.xlu0 %v5284, 20
  %v5324 = vpop.permute.xlu0 %5323
  %5325 = vrot.lane.b32.xlu0 %v5285, 20
  %v5326 = vpop.permute.xlu0 %5325
  %5327 = vrot.lane.b32.xlu0 %v5286, 20
  %v5328 = vpop.permute.xlu0 %5327
  %5329 = vrot.lane.b32.xlu0 %v5287, 20
  %v5330 = vpop.permute.xlu0 %5329
  %5331 = vrot.lane.b32.xlu0 %v5288, 20
  %v5332 = vpop.permute.xlu0 %5331
  %5333 = vrot.lane.b32.xlu0 %v5289, 20
  %v5334 = vpop.permute.xlu0 %5333
  %5335 = vrot.lane.b32.xlu0 %v5290, 20
  %v5336 = vpop.permute.xlu0 %5335
  %5337 = vrot.lane.b32.xlu0 %v5291, 20
  %v5338 = vpop.permute.xlu0 %5337
  %5339 = vrot.lane.b32.xlu0 %v5292, 20
  %v5340 = vpop.permute.xlu0 %5339
  %5341 = vrot.lane.b32.xlu0 %v5293, 20
  %v5342 = vpop.permute.xlu0 %5341
  %5343 = vrot.lane.b32.xlu0 %v5294, 20
  %v5344 = vpop.permute.xlu0 %5343
  %5345 = vrot.lane.b32.xlu0 %v5295, 20
  %v5346 = vpop.permute.xlu0 %5345
  %5347 = vrot.lane.b32.xlu0 %v5296, 20
  %v5348 = vpop.permute.xlu0 %5347
  %5349 = vrot.lane.b32.xlu0 %v5297, 20
  %v5350 = vpop.permute.xlu0 %5349
  %5351 = vrot.lane.b32.xlu0 %v5298, 20
  %v5352 = vpop.permute.xlu0 %5351
  %5353 = vrot.lane.b32.xlu0 %v5299, 20
  %v5354 = vpop.permute.xlu0 %5353
  %5355 = vrot.lane.b32.xlu0 %v5300, 20
  %v5356 = vpop.permute.xlu0 %5355
  %5357 = vrot.lane.b32.xlu0 %v5301, 20
  %v5358 = vpop.permute.xlu0 %5357
  %5359 = vrot.lane.b32.xlu0 %v5302, 20
  %v5360 = vpop.permute.xlu0 %5359
  %5361 = vrot.lane.b32.xlu0 %v5303, 20
  %v5362 = vpop.permute.xlu0 %5361
  %5363 = vrot.lane.b32.xlu0 %v5304, 20
  %v5364 = vpop.permute.xlu0 %5363
  %5365 = vrot.lane.b32.xlu0 %v5305, 20
  %v5366 = vpop.permute.xlu0 %5365
  %5367 = vrot.lane.b32.xlu0 %v5306, 20
  %v5368 = vpop.permute.xlu0 %5367
  %5369 = vrot.lane.b32.xlu0 %v5307, 20
  %v5370 = vpop.permute.xlu0 %5369
  %5371 = vrot.lane.b32.xlu0 %v5308, 20
  %v5372 = vpop.permute.xlu0 %5371
  %5373 = vrot.lane.b32.xlu0 %v5309, 20
  %v5374 = vpop.permute.xlu0 %5373
  %5375 = vrot.lane.b32.xlu0 %v5310, 20
  %v5376 = vpop.permute.xlu0 %5375
  %5377 = vrot.lane.b32.xlu0 %v5311, 20
  %v5378 = vpop.permute.xlu0 %5377
  %5379 = vrot.lane.b32.xlu0 %v5312, 20
  %v5380 = vpop.permute.xlu0 %5379
  %5381 = vrot.lane.b32.xlu0 %v5313, 20
  %v5382 = vpop.permute.xlu0 %5381
  %5383 = vrot.lane.b32.xlu0 %v5314, 20
  %v5384 = vpop.permute.xlu0 %5383
  %5385 = vrot.lane.b32.xlu0 %v5315, 20
  %v5386 = vpop.permute.xlu0 %5385
  %5387 = vrot.lane.b32.xlu0 %v5316, 20
  %v5388 = vpop.permute.xlu0 %5387
  %v5389 = vadd.f32 %v5209, %v5318
  %v5390 = vadd.f32 %v5210, %v5320
  %v5391 = vadd.f32 %v5211, %v5322
  %v5392 = vadd.f32 %v5212, %v5324
  %v5393 = vadd.f32 %v5213, %v5326
  %v5394 = vadd.f32 %v5214, %v5328
  %v5395 = vadd.f32 %v5215, %v5330
  %v5396 = vadd.f32 %v5216, %v5332
  %v5397 = vadd.f32 %v5217, %v5334
  %v5398 = vadd.f32 %v5218, %v5336
  %v5399 = vadd.f32 %v5219, %v5338
  %v5400 = vadd.f32 %v5220, %v5340
  %v5401 = vadd.f32 %v5221, %v5342
  %v5402 = vadd.f32 %v5222, %v5344
  %v5403 = vadd.f32 %v5223, %v5346
  %v5404 = vadd.f32 %v5224, %v5348
  %v5405 = vadd.f32 %v5225, %v5350
  %v5406 = vadd.f32 %v5226, %v5352
  %v5407 = vadd.f32 %v5227, %v5354
  %v5408 = vadd.f32 %v5228, %v5356
  %v5409 = vadd.f32 %v5229, %v5358
  %v5410 = vadd.f32 %v5230, %v5360
  %v5411 = vadd.f32 %v5231, %v5362
  %v5412 = vadd.f32 %v5232, %v5364
  %v5413 = vadd.f32 %v5233, %v5366
  %v5414 = vadd.f32 %v5234, %v5368
  %v5415 = vadd.f32 %v5235, %v5370
  %v5416 = vadd.f32 %v5236, %v5372
  %v5417 = vadd.f32 %v5237, %v5374
  %v5418 = vadd.f32 %v5238, %v5376
  %v5419 = vadd.f32 %v5239, %v5378
  %v5420 = vadd.f32 %v5240, %v5380
  %v5421 = vadd.f32 %v5241, %v5382
  %v5422 = vadd.f32 %v5242, %v5384
  %v5423 = vadd.f32 %v5243, %v5386
  %v5424 = vadd.f32 %v5244, %v5388
  %v5425 = vld [vmem:[#allocation2 + $0x123] sm:$0xff]
  %v5426 = vld [vmem:[#allocation2 + $0x12b] sm:$0xff]
  %v5427 = vld [vmem:[#allocation2 + $0x133] sm:$0xff]
  %v5428 = vsel %vm3559, %v4492, 0.0
  %v5429 = vsel %vm3560, %v4493, 0.0
  %v5430 = vsel %vm3561, %v4494, 0.0
  %v5431 = vsel %vm3562, %v4495, 0.0
  %v5432 = vsel %vm3563, %v4496, 0.0
  %v5433 = vsel %vm3564, %v4497, 0.0
  %v5434 = vsel %vm3565, %v4498, 0.0
  %v5435 = vsel %vm3566, %v4499, 0.0
  %v5436 = vsel %vm3567, %v4500, 0.0
  %v5437 = vsel %vm3568, %v4501, 0.0
  %v5438 = vsel %vm3569, %v4502, 0.0
  %v5439 = vsel %vm3570, %v4503, 0.0
  %v5440 = vsel %vm3571, %v4504, 0.0
  %v5441 = vsel %vm3572, %v4505, 0.0
  %v5442 = vsel %vm3573, %v4506, 0.0
  %v5443 = vsel %vm3574, %v4507, 0.0
  %v5444 = vsel %vm3575, %v4508, 0.0
  %v5445 = vsel %vm3576, %v4509, 0.0
  %v5446 = vsel %vm3577, %v4510, 0.0
  %v5447 = vsel %vm3578, %v4511, 0.0
  %v5448 = vsel %vm3579, %v4512, 0.0
  %v5449 = vsel %vm3580, %v4513, 0.0
  %v5450 = vsel %vm3581, %v4514, 0.0
  %v5451 = vsel %vm3582, %v4515, 0.0
  %v5452 = vsel %vm3583, %v4516, 0.0
  %v5453 = vsel %vm3584, %v4517, 0.0
  %v5454 = vsel %vm3585, %v4518, 0.0
  %v5455 = vsel %vm3586, %v4519, 0.0
  %v5456 = vsel %vm3587, %v4520, 0.0
  %v5457 = vsel %vm3588, %v4521, 0.0
  %v5458 = vsel %vm3589, %v4522, 0.0
  %v5459 = vsel %vm3590, %v4523, 0.0
  %v5460 = vsel %vm3591, %v4524, 0.0
  %v5461 = vsel %vm3592, %v5425, 0.0
  %v5462 = vsel %vm3593, %v5426, 0.0
  %v5463 = vsel %vm3594, %v5427, 0.0
  %5464 = vrot.lane.b32.xlu0 %v5428, 24
  %v5465 = vpop.permute.xlu0 %5464
  %5466 = vrot.lane.b32.xlu0 %v5429, 24
  %v5467 = vpop.permute.xlu0 %5466
  %5468 = vrot.lane.b32.xlu0 %v5430, 24
  %v5469 = vpop.permute.xlu0 %5468
  %5470 = vrot.lane.b32.xlu0 %v5431, 24
  %v5471 = vpop.permute.xlu0 %5470
  %5472 = vrot.lane.b32.xlu0 %v5432, 24
  %v5473 = vpop.permute.xlu0 %5472
  %5474 = vrot.lane.b32.xlu0 %v5433, 24
  %v5475 = vpop.permute.xlu0 %5474
  %5476 = vrot.lane.b32.xlu0 %v5434, 24
  %v5477 = vpop.permute.xlu0 %5476
  %5478 = vrot.lane.b32.xlu0 %v5435, 24
  %v5479 = vpop.permute.xlu0 %5478
  %5480 = vrot.lane.b32.xlu0 %v5436, 24
  %v5481 = vpop.permute.xlu0 %5480
  %5482 = vrot.lane.b32.xlu0 %v5437, 24
  %v5483 = vpop.permute.xlu0 %5482
  %5484 = vrot.lane.b32.xlu0 %v5438, 24
  %v5485 = vpop.permute.xlu0 %5484
  %5486 = vrot.lane.b32.xlu0 %v5439, 24
  %v5487 = vpop.permute.xlu0 %5486
  %5488 = vrot.lane.b32.xlu0 %v5440, 24
  %v5489 = vpop.permute.xlu0 %5488
  %5490 = vrot.lane.b32.xlu0 %v5441, 24
  %v5491 = vpop.permute.xlu0 %5490
  %5492 = vrot.lane.b32.xlu0 %v5442, 24
  %v5493 = vpop.permute.xlu0 %5492
  %5494 = vrot.lane.b32.xlu0 %v5443, 24
  %v5495 = vpop.permute.xlu0 %5494
  %5496 = vrot.lane.b32.xlu0 %v5444, 24
  %v5497 = vpop.permute.xlu0 %5496
  %5498 = vrot.lane.b32.xlu0 %v5445, 24
  %v5499 = vpop.permute.xlu0 %5498
  %5500 = vrot.lane.b32.xlu0 %v5446, 24
  %v5501 = vpop.permute.xlu0 %5500
  %5502 = vrot.lane.b32.xlu0 %v5447, 24
  %v5503 = vpop.permute.xlu0 %5502
  %5504 = vrot.lane.b32.xlu0 %v5448, 24
  %v5505 = vpop.permute.xlu0 %5504
  %5506 = vrot.lane.b32.xlu0 %v5449, 24
  %v5507 = vpop.permute.xlu0 %5506
  %5508 = vrot.lane.b32.xlu0 %v5450, 24
  %v5509 = vpop.permute.xlu0 %5508
  %5510 = vrot.lane.b32.xlu0 %v5451, 24
  %v5511 = vpop.permute.xlu0 %5510
  %5512 = vrot.lane.b32.xlu0 %v5452, 24
  %v5513 = vpop.permute.xlu0 %5512
  %5514 = vrot.lane.b32.xlu0 %v5453, 24
  %v5515 = vpop.permute.xlu0 %5514
  %5516 = vrot.lane.b32.xlu0 %v5454, 24
  %v5517 = vpop.permute.xlu0 %5516
  %5518 = vrot.lane.b32.xlu0 %v5455, 24
  %v5519 = vpop.permute.xlu0 %5518
  %5520 = vrot.lane.b32.xlu0 %v5456, 24
  %v5521 = vpop.permute.xlu0 %5520
  %5522 = vrot.lane.b32.xlu0 %v5457, 24
  %v5523 = vpop.permute.xlu0 %5522
  %5524 = vrot.lane.b32.xlu0 %v5458, 24
  %v5525 = vpop.permute.xlu0 %5524
  %5526 = vrot.lane.b32.xlu0 %v5459, 24
  %v5527 = vpop.permute.xlu0 %5526
  %5528 = vrot.lane.b32.xlu0 %v5460, 24
  %v5529 = vpop.permute.xlu0 %5528
  %5530 = vrot.lane.b32.xlu0 %v5461, 24
  %v5531 = vpop.permute.xlu0 %5530
  %5532 = vrot.lane.b32.xlu0 %v5462, 24
  %v5533 = vpop.permute.xlu0 %5532
  %5534 = vrot.lane.b32.xlu0 %v5463, 24
  %v5535 = vpop.permute.xlu0 %5534
  %v5536 = vadd.f32 %v5389, %v5465
  %v5537 = vadd.f32 %v5390, %v5467
  %v5538 = vadd.f32 %v5391, %v5469
  %v5539 = vadd.f32 %v5392, %v5471
  %v5540 = vadd.f32 %v5393, %v5473
  %v5541 = vadd.f32 %v5394, %v5475
  %v5542 = vadd.f32 %v5395, %v5477
  %v5543 = vadd.f32 %v5396, %v5479
  %v5544 = vadd.f32 %v5397, %v5481
  %v5545 = vadd.f32 %v5398, %v5483
  %v5546 = vadd.f32 %v5399, %v5485
  %v5547 = vadd.f32 %v5400, %v5487
  %v5548 = vadd.f32 %v5401, %v5489
  %v5549 = vadd.f32 %v5402, %v5491
  %v5550 = vadd.f32 %v5403, %v5493
  %v5551 = vadd.f32 %v5404, %v5495
  %v5552 = vadd.f32 %v5405, %v5497
  %v5553 = vadd.f32 %v5406, %v5499
  %v5554 = vadd.f32 %v5407, %v5501
  %v5555 = vadd.f32 %v5408, %v5503
  %v5556 = vadd.f32 %v5409, %v5505
  %v5557 = vadd.f32 %v5410, %v5507
  %v5558 = vadd.f32 %v5411, %v5509
  %v5559 = vadd.f32 %v5412, %v5511
  %v5560 = vadd.f32 %v5413, %v5513
  %v5561 = vadd.f32 %v5414, %v5515
  %v5562 = vadd.f32 %v5415, %v5517
  %v5563 = vadd.f32 %v5416, %v5519
  %v5564 = vadd.f32 %v5417, %v5521
  %v5565 = vadd.f32 %v5418, %v5523
  %v5566 = vadd.f32 %v5419, %v5525
  %v5567 = vadd.f32 %v5420, %v5527
  %v5568 = vadd.f32 %v5421, %v5529
  %v5569 = vadd.f32 %v5422, %v5531
  %v5570 = vadd.f32 %v5423, %v5533
  %v5571 = vadd.f32 %v5424, %v5535
  %v5572 = vld [vmem:[#allocation2 + $0x124] sm:$0xff]
  %v5573 = vld [vmem:[#allocation2 + $0x12c] sm:$0xff]
  %v5574 = vld [vmem:[#allocation2 + $0x134] sm:$0xff]
  %v5575 = vsel %vm3778, %v4564, 0.0
  %v5576 = vsel %vm3779, %v4565, 0.0
  %v5577 = vsel %vm3780, %v4566, 0.0
  %v5578 = vsel %vm3781, %v4567, 0.0
  %v5579 = vsel %vm3782, %v4568, 0.0
  %v5580 = vsel %vm3783, %v4569, 0.0
  %v5581 = vsel %vm3784, %v4570, 0.0
  %v5582 = vsel %vm3785, %v4571, 0.0
  %v5583 = vsel %vm3786, %v4572, 0.0
  %v5584 = vsel %vm3787, %v4573, 0.0
  %v5585 = vsel %vm3788, %v4574, 0.0
  %v5586 = vsel %vm3789, %v4575, 0.0
  %v5587 = vsel %vm3790, %v4576, 0.0
  %v5588 = vsel %vm3791, %v4577, 0.0
  %v5589 = vsel %vm3792, %v4578, 0.0
  %v5590 = vsel %vm3793, %v4579, 0.0
  %v5591 = vsel %vm3794, %v4580, 0.0
  %v5592 = vsel %vm3795, %v4581, 0.0
  %v5593 = vsel %vm3796, %v4582, 0.0
  %v5594 = vsel %vm3797, %v4583, 0.0
  %v5595 = vsel %vm3798, %v4584, 0.0
  %v5596 = vsel %vm3799, %v4585, 0.0
  %v5597 = vsel %vm3800, %v4586, 0.0
  %v5598 = vsel %vm3801, %v4587, 0.0
  %v5599 = vsel %vm3802, %v4588, 0.0
  %v5600 = vsel %vm3803, %v4589, 0.0
  %v5601 = vsel %vm3804, %v4590, 0.0
  %v5602 = vsel %vm3805, %v4591, 0.0
  %v5603 = vsel %vm3806, %v4592, 0.0
  %v5604 = vsel %vm3807, %v4593, 0.0
  %v5605 = vsel %vm3808, %v4594, 0.0
  %v5606 = vsel %vm3809, %v4595, 0.0
  %v5607 = vsel %vm3810, %v4596, 0.0
  %v5608 = vsel %vm3811, %v5572, 0.0
  %v5609 = vsel %vm3812, %v5573, 0.0
  %v5610 = vsel %vm3813, %v5574, 0.0
  %5611 = vrot.lane.b32.xlu0 %v5575, 28
  %v5612 = vpop.permute.xlu0 %5611
  %5613 = vrot.lane.b32.xlu0 %v5576, 28
  %v5614 = vpop.permute.xlu0 %5613
  %5615 = vrot.lane.b32.xlu0 %v5577, 28
  %v5616 = vpop.permute.xlu0 %5615
  %5617 = vrot.lane.b32.xlu0 %v5578, 28
  %v5618 = vpop.permute.xlu0 %5617
  %5619 = vrot.lane.b32.xlu0 %v5579, 28
  %v5620 = vpop.permute.xlu0 %5619
  %5621 = vrot.lane.b32.xlu0 %v5580, 28
  %v5622 = vpop.permute.xlu0 %5621
  %5623 = vrot.lane.b32.xlu0 %v5581, 28
  %v5624 = vpop.permute.xlu0 %5623
  %5625 = vrot.lane.b32.xlu0 %v5582, 28
  %v5626 = vpop.permute.xlu0 %5625
  %5627 = vrot.lane.b32.xlu0 %v5583, 28
  %v5628 = vpop.permute.xlu0 %5627
  %5629 = vrot.lane.b32.xlu0 %v5584, 28
  %v5630 = vpop.permute.xlu0 %5629
  %5631 = vrot.lane.b32.xlu0 %v5585, 28
  %v5632 = vpop.permute.xlu0 %5631
  %5633 = vrot.lane.b32.xlu0 %v5586, 28
  %v5634 = vpop.permute.xlu0 %5633
  %5635 = vrot.lane.b32.xlu0 %v5587, 28
  %v5636 = vpop.permute.xlu0 %5635
  %5637 = vrot.lane.b32.xlu0 %v5588, 28
  %v5638 = vpop.permute.xlu0 %5637
  %5639 = vrot.lane.b32.xlu0 %v5589, 28
  %v5640 = vpop.permute.xlu0 %5639
  %5641 = vrot.lane.b32.xlu0 %v5590, 28
  %v5642 = vpop.permute.xlu0 %5641
  %5643 = vrot.lane.b32.xlu0 %v5591, 28
  %v5644 = vpop.permute.xlu0 %5643
  %5645 = vrot.lane.b32.xlu0 %v5592, 28
  %v5646 = vpop.permute.xlu0 %5645
  %5647 = vrot.lane.b32.xlu0 %v5593, 28
  %v5648 = vpop.permute.xlu0 %5647
  %5649 = vrot.lane.b32.xlu0 %v5594, 28
  %v5650 = vpop.permute.xlu0 %5649
  %5651 = vrot.lane.b32.xlu0 %v5595, 28
  %v5652 = vpop.permute.xlu0 %5651
  %5653 = vrot.lane.b32.xlu0 %v5596, 28
  %v5654 = vpop.permute.xlu0 %5653
  %5655 = vrot.lane.b32.xlu0 %v5597, 28
  %v5656 = vpop.permute.xlu0 %5655
  %5657 = vrot.lane.b32.xlu0 %v5598, 28
  %v5658 = vpop.permute.xlu0 %5657
  %5659 = vrot.lane.b32.xlu0 %v5599, 28
  %v5660 = vpop.permute.xlu0 %5659
  %5661 = vrot.lane.b32.xlu0 %v5600, 28
  %v5662 = vpop.permute.xlu0 %5661
  %5663 = vrot.lane.b32.xlu0 %v5601, 28
  %v5664 = vpop.permute.xlu0 %5663
  %5665 = vrot.lane.b32.xlu0 %v5602, 28
  %v5666 = vpop.permute.xlu0 %5665
  %5667 = vrot.lane.b32.xlu0 %v5603, 28
  %v5668 = vpop.permute.xlu0 %5667
  %5669 = vrot.lane.b32.xlu0 %v5604, 28
  %v5670 = vpop.permute.xlu0 %5669
  %5671 = vrot.lane.b32.xlu0 %v5605, 28
  %v5672 = vpop.permute.xlu0 %5671
  %5673 = vrot.lane.b32.xlu0 %v5606, 28
  %v5674 = vpop.permute.xlu0 %5673
  %5675 = vrot.lane.b32.xlu0 %v5607, 28
  %v5676 = vpop.permute.xlu0 %5675
  %5677 = vrot.lane.b32.xlu0 %v5608, 28
  %v5678 = vpop.permute.xlu0 %5677
  %5679 = vrot.lane.b32.xlu0 %v5609, 28
  %v5680 = vpop.permute.xlu0 %5679
  %5681 = vrot.lane.b32.xlu0 %v5610, 28
  %v5682 = vpop.permute.xlu0 %5681
  %v5683 = vadd.f32 %v5536, %v5612
  %v5684 = vadd.f32 %v5537, %v5614
  %v5685 = vadd.f32 %v5538, %v5616
  %v5686 = vadd.f32 %v5539, %v5618
  %v5687 = vadd.f32 %v5540, %v5620
  %v5688 = vadd.f32 %v5541, %v5622
  %v5689 = vadd.f32 %v5542, %v5624
  %v5690 = vadd.f32 %v5543, %v5626
  %v5691 = vadd.f32 %v5544, %v5628
  %v5692 = vadd.f32 %v5545, %v5630
  %v5693 = vadd.f32 %v5546, %v5632
  %v5694 = vadd.f32 %v5547, %v5634
  %v5695 = vadd.f32 %v5548, %v5636
  %v5696 = vadd.f32 %v5549, %v5638
  %v5697 = vadd.f32 %v5550, %v5640
  %v5698 = vadd.f32 %v5551, %v5642
  %v5699 = vadd.f32 %v5552, %v5644
  %v5700 = vadd.f32 %v5553, %v5646
  %v5701 = vadd.f32 %v5554, %v5648
  %v5702 = vadd.f32 %v5555, %v5650
  %v5703 = vadd.f32 %v5556, %v5652
  %v5704 = vadd.f32 %v5557, %v5654
  %v5705 = vadd.f32 %v5558, %v5656
  %v5706 = vadd.f32 %v5559, %v5658
  %v5707 = vadd.f32 %v5560, %v5660
  %v5708 = vadd.f32 %v5561, %v5662
  %v5709 = vadd.f32 %v5562, %v5664
  %v5710 = vadd.f32 %v5563, %v5666
  %v5711 = vadd.f32 %v5564, %v5668
  %v5712 = vadd.f32 %v5565, %v5670
  %v5713 = vadd.f32 %v5566, %v5672
  %v5714 = vadd.f32 %v5567, %v5674
  %v5715 = vadd.f32 %v5568, %v5676
  %v5716 = vadd.f32 %v5569, %v5678
  %v5717 = vadd.f32 %v5570, %v5680
  %v5718 = vadd.f32 %v5571, %v5682
  %v5719 = vld [vmem:[#allocation2 + $0x125] sm:$0xff]
  %v5720 = vld [vmem:[#allocation2 + $0x12d] sm:$0xff]
  %v5721 = vld [vmem:[#allocation2 + $0x135] sm:$0xff]
  %v5722 = vsel %vm3997, %v4744, 0.0
  %v5723 = vsel %vm3998, %v4745, 0.0
  %v5724 = vsel %vm3999, %v4746, 0.0
  %v5725 = vsel %vm4000, %v4747, 0.0
  %v5726 = vsel %vm4001, %v4748, 0.0
  %v5727 = vsel %vm4002, %v4749, 0.0
  %v5728 = vsel %vm4003, %v4750, 0.0
  %v5729 = vsel %vm4004, %v4751, 0.0
  %v5730 = vsel %vm4005, %v4752, 0.0
  %v5731 = vsel %vm4006, %v4753, 0.0
  %v5732 = vsel %vm4007, %v4754, 0.0
  %v5733 = vsel %vm4008, %v4755, 0.0
  %v5734 = vsel %vm4009, %v4756, 0.0
  %v5735 = vsel %vm4010, %v4757, 0.0
  %v5736 = vsel %vm4011, %v4758, 0.0
  %v5737 = vsel %vm4012, %v4759, 0.0
  %v5738 = vsel %vm4013, %v4760, 0.0
  %v5739 = vsel %vm4014, %v4761, 0.0
  %v5740 = vsel %vm4015, %v4762, 0.0
  %v5741 = vsel %vm4016, %v4763, 0.0
  %v5742 = vsel %vm4017, %v4764, 0.0
  %v5743 = vsel %vm4018, %v4765, 0.0
  %v5744 = vsel %vm4019, %v4766, 0.0
  %v5745 = vsel %vm4020, %v4767, 0.0
  %v5746 = vsel %vm4021, %v4768, 0.0
  %v5747 = vsel %vm4022, %v4769, 0.0
  %v5748 = vsel %vm4023, %v4770, 0.0
  %v5749 = vsel %vm4024, %v4771, 0.0
  %v5750 = vsel %vm4025, %v4772, 0.0
  %v5751 = vsel %vm4026, %v4773, 0.0
  %v5752 = vsel %vm4027, %v4774, 0.0
  %v5753 = vsel %vm4028, %v4775, 0.0
  %v5754 = vsel %vm4029, %v4776, 0.0
  %v5755 = vsel %vm4030, %v5719, 0.0
  %v5756 = vsel %vm4031, %v5720, 0.0
  %v5757 = vsel %vm4032, %v5721, 0.0
  %5758 = vrot.lane.b32.xlu0 %v5722, 32
  %v5759 = vpop.permute.xlu0 %5758
  %5760 = vrot.lane.b32.xlu0 %v5723, 32
  %v5761 = vpop.permute.xlu0 %5760
  %5762 = vrot.lane.b32.xlu0 %v5724, 32
  %v5763 = vpop.permute.xlu0 %5762
  %5764 = vrot.lane.b32.xlu0 %v5725, 32
  %v5765 = vpop.permute.xlu0 %5764
  %5766 = vrot.lane.b32.xlu0 %v5726, 32
  %v5767 = vpop.permute.xlu0 %5766
  %5768 = vrot.lane.b32.xlu0 %v5727, 32
  %v5769 = vpop.permute.xlu0 %5768
  %5770 = vrot.lane.b32.xlu0 %v5728, 32
  %v5771 = vpop.permute.xlu0 %5770
  %5772 = vrot.lane.b32.xlu0 %v5729, 32
  %v5773 = vpop.permute.xlu0 %5772
  %5774 = vrot.lane.b32.xlu0 %v5730, 32
  %v5775 = vpop.permute.xlu0 %5774
  %5776 = vrot.lane.b32.xlu0 %v5731, 32
  %v5777 = vpop.permute.xlu0 %5776
  %5778 = vrot.lane.b32.xlu0 %v5732, 32
  %v5779 = vpop.permute.xlu0 %5778
  %5780 = vrot.lane.b32.xlu0 %v5733, 32
  %v5781 = vpop.permute.xlu0 %5780
  %5782 = vrot.lane.b32.xlu0 %v5734, 32
  %v5783 = vpop.permute.xlu0 %5782
  %5784 = vrot.lane.b32.xlu0 %v5735, 32
  %v5785 = vpop.permute.xlu0 %5784
  %5786 = vrot.lane.b32.xlu0 %v5736, 32
  %v5787 = vpop.permute.xlu0 %5786
  %5788 = vrot.lane.b32.xlu0 %v5737, 32
  %v5789 = vpop.permute.xlu0 %5788
  %5790 = vrot.lane.b32.xlu0 %v5738, 32
  %v5791 = vpop.permute.xlu0 %5790
  %5792 = vrot.lane.b32.xlu0 %v5739, 32
  %v5793 = vpop.permute.xlu0 %5792
  %5794 = vrot.lane.b32.xlu0 %v5740, 32
  %v5795 = vpop.permute.xlu0 %5794
  %5796 = vrot.lane.b32.xlu0 %v5741, 32
  %v5797 = vpop.permute.xlu0 %5796
  %5798 = vrot.lane.b32.xlu0 %v5742, 32
  %v5799 = vpop.permute.xlu0 %5798
  %5800 = vrot.lane.b32.xlu0 %v5743, 32
  %v5801 = vpop.permute.xlu0 %5800
  %5802 = vrot.lane.b32.xlu0 %v5744, 32
  %v5803 = vpop.permute.xlu0 %5802
  %5804 = vrot.lane.b32.xlu0 %v5745, 32
  %v5805 = vpop.permute.xlu0 %5804
  %5806 = vrot.lane.b32.xlu0 %v5746, 32
  %v5807 = vpop.permute.xlu0 %5806
  %5808 = vrot.lane.b32.xlu0 %v5747, 32
  %v5809 = vpop.permute.xlu0 %5808
  %5810 = vrot.lane.b32.xlu0 %v5748, 32
  %v5811 = vpop.permute.xlu0 %5810
  %5812 = vrot.lane.b32.xlu0 %v5749, 32
  %v5813 = vpop.permute.xlu0 %5812
  %5814 = vrot.lane.b32.xlu0 %v5750, 32
  %v5815 = vpop.permute.xlu0 %5814
  %5816 = vrot.lane.b32.xlu0 %v5751, 32
  %v5817 = vpop.permute.xlu0 %5816
  %5818 = vrot.lane.b32.xlu0 %v5752, 32
  %v5819 = vpop.permute.xlu0 %5818
  %5820 = vrot.lane.b32.xlu0 %v5753, 32
  %v5821 = vpop.permute.xlu0 %5820
  %5822 = vrot.lane.b32.xlu0 %v5754, 32
  %v5823 = vpop.permute.xlu0 %5822
  %5824 = vrot.lane.b32.xlu0 %v5755, 32
  %v5825 = vpop.permute.xlu0 %5824
  %5826 = vrot.lane.b32.xlu0 %v5756, 32
  %v5827 = vpop.permute.xlu0 %5826
  %5828 = vrot.lane.b32.xlu0 %v5757, 32
  %v5829 = vpop.permute.xlu0 %5828
  %v5830 = vadd.f32 %v5683, %v5759
  %v5831 = vadd.f32 %v5684, %v5761
  %v5832 = vadd.f32 %v5685, %v5763
  %v5833 = vadd.f32 %v5686, %v5765
  %v5834 = vadd.f32 %v5687, %v5767
  %v5835 = vadd.f32 %v5688, %v5769
  %v5836 = vadd.f32 %v5689, %v5771
  %v5837 = vadd.f32 %v5690, %v5773
  %v5838 = vadd.f32 %v5691, %v5775
  %v5839 = vadd.f32 %v5692, %v5777
  %v5840 = vadd.f32 %v5693, %v5779
  %v5841 = vadd.f32 %v5694, %v5781
  %v5842 = vadd.f32 %v5695, %v5783
  %v5843 = vadd.f32 %v5696, %v5785
  %v5844 = vadd.f32 %v5697, %v5787
  %v5845 = vadd.f32 %v5698, %v5789
  %v5846 = vadd.f32 %v5699, %v5791
  %v5847 = vadd.f32 %v5700, %v5793
  %v5848 = vadd.f32 %v5701, %v5795
  %v5849 = vadd.f32 %v5702, %v5797
  %v5850 = vadd.f32 %v5703, %v5799
  %v5851 = vadd.f32 %v5704, %v5801
  %v5852 = vadd.f32 %v5705, %v5803
  %v5853 = vadd.f32 %v5706, %v5805
  %v5854 = vadd.f32 %v5707, %v5807
  %v5855 = vadd.f32 %v5708, %v5809
  %v5856 = vadd.f32 %v5709, %v5811
  %v5857 = vadd.f32 %v5710, %v5813
  %v5858 = vadd.f32 %v5711, %v5815
  %v5859 = vadd.f32 %v5712, %v5817
  %v5860 = vadd.f32 %v5713, %v5819
  %v5861 = vadd.f32 %v5714, %v5821
  %v5862 = vadd.f32 %v5715, %v5823
  %v5863 = vadd.f32 %v5716, %v5825
  %v5864 = vadd.f32 %v5717, %v5827
  %v5865 = vadd.f32 %v5718, %v5829
  %v5866 = vpack.c.bf16 %v5831, %v5830
  %v5867 = vpack.c.bf16 %v5833, %v5832
  %v5868 = vpack.c.bf16 %v5835, %v5834
  %v5869 = vpack.c.bf16 %v5837, %v5836
  %v5870 = vpack.c.bf16 %v5839, %v5838
  %v5871 = vpack.c.bf16 %v5841, %v5840
  %v5872 = vpack.c.bf16 %v5843, %v5842
  %v5873 = vpack.c.bf16 %v5845, %v5844
  %v5874 = vpack.c.bf16 %v5847, %v5846
  %v5875 = vpack.c.bf16 %v5849, %v5848
  %v5876 = vpack.c.bf16 %v5851, %v5850
  %v5877 = vpack.c.bf16 %v5853, %v5852
  %v5878 = vpack.c.bf16 %v5855, %v5854
  %v5879 = vpack.c.bf16 %v5857, %v5856
  %v5880 = vpack.c.bf16 %v5859, %v5858
  %v5881 = vpack.c.bf16 %v5861, %v5860
  %v5882 = vpack.c.bf16 %v5863, %v5862
  %v5883 = vpack.c.bf16 %v5865, %v5864
  %v5884 = vld [vmem:[%s5] sm:$0xf]
  %v5885 = vld [vmem:[%s5 + $0x4] sm:$0xf]
  %v5886 = vld [vmem:[%s5 + $0x8] sm:$0xf]
  %v5887 = vld [vmem:[%s5 + $0xc] sm:$0xf]
  %v5888 = vld [vmem:[%s5 + $0x10] sm:$0xf]
  %v5889 = vld [vmem:[%s5 + $0x14] sm:$0xf]
  %v5890 = vld [vmem:[%s5 + $0x18] sm:$0xf]
  %v5891 = vld [vmem:[%s5 + $0x1c] sm:$0xf]
  %v5892 = vld [vmem:[%s5 + $0x20] sm:$0xf]
  %v5893 = vld [vmem:[%s5 + $0x24] sm:$0xf]
  %v5894 = vld [vmem:[%s5 + $0x28] sm:$0xf]
  %v5895 = vld [vmem:[%s5 + $0x2c] sm:$0xf]
  %v5896 = vld [vmem:[%s5 + $0x30] sm:$0xf]
  %v5897 = vld [vmem:[%s5 + $0x34] sm:$0xf]
  %v5898 = vld [vmem:[%s5 + $0x38] sm:$0xf]
  %v5899 = vld [vmem:[%s5 + $0x3c] sm:$0xf]
  %v5900 = vld [vmem:[%s6] sm:$0x1]
  %v5902 = vlaneseq
  %v5903 = vshrl.u32 %v5902, 7
  %v5904 = vsub.s32 0, %v5903
  %v5905 = vrot.slane %v5900, %v5904
  %v5923 = vunpack.c.l.b16 %v5884
  %v5924 = vunpack.c.l.b16 %v5885
  %v5925 = vunpack.c.l.b16 %v5886
  %v5926 = vunpack.c.l.b16 %v5887
  %v5927 = vunpack.c.l.b16 %v5888
  %v5928 = vunpack.c.l.b16 %v5889
  %v5929 = vunpack.c.l.b16 %v5890
  %v5930 = vunpack.c.l.b16 %v5891
  %v5931 = vunpack.c.l.b16 %v5892
  %v5932 = vunpack.c.l.b16 %v5893
  %v5933 = vunpack.c.l.b16 %v5894
  %v5934 = vunpack.c.l.b16 %v5895
  %v5935 = vunpack.c.l.b16 %v5896
  %v5936 = vunpack.c.l.b16 %v5897
  %v5937 = vunpack.c.l.b16 %v5898
  %v5938 = vunpack.c.l.b16 %v5899
  %v5939 = vpack.c.b16 %v5924, %v5923
  %v5940 = vpack.c.b16 %v5926, %v5925
  %v5941 = vpack.c.b16 %v5928, %v5927
  %v5942 = vpack.c.b16 %v5930, %v5929
  %v5943 = vpack.c.b16 %v5932, %v5931
  %v5944 = vpack.c.b16 %v5934, %v5933
  %v5945 = vpack.c.b16 %v5936, %v5935
  %v5946 = vpack.c.b16 %v5938, %v5937
  %5955 = vmatprep.subr.bf16.mxu0 0
  %5956 = vmatpush1.bf16.msra.mxu0 %v5939
  %5957 = vmatprep.subr.bf16.mxu0 0
  %5958 = vmatpush1.bf16.msra.mxu0 %v5940
  %5959 = vmatprep.subr.bf16.mxu0 0
  %5960 = vmatpush1.bf16.msra.mxu0 %v5941
  %5961 = vmatprep.subr.bf16.mxu0 0
  %5962 = vmatpush1.bf16.msra.mxu0 %v5942
  %5963 = vmatprep.subr.bf16.mxu0 0
  %5964 = vmatpush1.bf16.msra.mxu0 %v5943
  %5965 = vmatprep.subr.bf16.mxu0 0
  %5966 = vmatpush1.bf16.msra.mxu0 %v5944
  %5967 = vmatprep.subr.bf16.mxu0 0
  %5968 = vmatpush1.bf16.msra.mxu0 %v5945
  %5969 = vmatprep.subr.bf16.mxu0 0
  %5970 = vmatpush1.bf16.msra.mxu0 %v5946
  %5971 = vmatprep.subr.bf16.mxu0 0
  %5972 = vmatpush1.bf16.msra.mxu0 0
  %5973 = vmatprep.subr.bf16.mxu0 0
  %5974 = vmatpush1.bf16.msra.mxu0 0
  %5975 = vmatprep.subr.bf16.mxu0 0
  %5976 = vmatpush1.bf16.msra.mxu0 0
  %5977 = vmatprep.subr.bf16.mxu0 0
  %5978 = vmatpush1.bf16.msra.mxu0 0
  %5979 = vmatprep.subr.bf16.mxu0 0
  %5980 = vmatpush1.bf16.msra.mxu0 0
  %5981 = vmatprep.subr.bf16.mxu0 0
  %5982 = vmatpush1.bf16.msra.mxu0 0
  %5983 = vmatprep.subr.bf16.mxu0 0
  %5984 = vmatpush1.bf16.msra.mxu0 0
  %5985 = vmatprep.subr.bf16.mxu0 0
  %5986 = vmatpush1.bf16.msra.mxu0 0
  %5987 = vmatprep.mubr.bf16.mxu0 0
  %5988 = vmatmul.mubr.bf16.gmra.mrb[0].mxu0 %v5866
  %v5989 = vpop.f32.mrb[0].mxu0
  %v5990 = vadd.f32 %v5905, %v5989
  %v5991 = vpop.f32.mrb[0].mxu0
  %v5992 = vpop.f32.mrb[0].mxu0
  %v5993 = vadd.f32 %v5905, %v5992
  %v5994 = vpop.f32.mrb[0].mxu0
  %5995 = vmatprep.mubr.bf16.mxu0 0
  %5996 = vmatmul.mubr.bf16.gmra.mrb[0].mxu0 %v5867
  %v5997 = vpop.f32.mrb[0].mxu0
  %v5998 = vadd.f32 %v5905, %v5997
  %v5999 = vpop.f32.mrb[0].mxu0
  %v6000 = vpop.f32.mrb[0].mxu0
  %v6001 = vadd.f32 %v5905, %v6000
  %v6002 = vpop.f32.mrb[0].mxu0
  %6003 = vmatprep.mubr.bf16.mxu0 0
  %6004 = vmatmul.mubr.bf16.gmra.mrb[0].mxu0 %v5868
  %v6005 = vpop.f32.mrb[0].mxu0
  %v6006 = vadd.f32 %v5905, %v6005
  %v6007 = vpop.f32.mrb[0].mxu0
  %v6008 = vpop.f32.mrb[0].mxu0
  %v6009 = vadd.f32 %v5905, %v6008
  %v6010 = vpop.f32.mrb[0].mxu0
  %6011 = vmatprep.mubr.bf16.mxu0 0
  %6012 = vmatmul.mubr.bf16.gmra.mrb[0].mxu0 %v5869
  %v6013 = vpop.f32.mrb[0].mxu0
  %v6014 = vadd.f32 %v5905, %v6013
  %v6015 = vpop.f32.mrb[0].mxu0
  %v6016 = vpop.f32.mrb[0].mxu0
  %v6017 = vadd.f32 %v5905, %v6016
  %v6018 = vpop.f32.mrb[0].mxu0
  %6019 = vmatprep.mubr.bf16.mxu0 0
  %6020 = vmatmul.mubr.bf16.gmra.mrb[0].mxu0 %v5870
  %v6021 = vpop.f32.mrb[0].mxu0
  %v6022 = vadd.f32 %v5905, %v6021
  %v6023 = vpop.f32.mrb[0].mxu0
  %v6024 = vpop.f32.mrb[0].mxu0
  %v6025 = vadd.f32 %v5905, %v6024
  %v6026 = vpop.f32.mrb[0].mxu0
  %6027 = vmatprep.mubr.bf16.mxu0 0
  %6028 = vmatmul.mubr.bf16.gmra.mrb[0].mxu0 %v5871
  %v6029 = vpop.f32.mrb[0].mxu0
  %v6030 = vadd.f32 %v5905, %v6029
  %v6031 = vpop.f32.mrb[0].mxu0
  %v6032 = vpop.f32.mrb[0].mxu0
  %v6033 = vadd.f32 %v5905, %v6032
  %v6034 = vpop.f32.mrb[0].mxu0
  %6035 = vmatprep.mubr.bf16.mxu0 0
  %6036 = vmatmul.mubr.bf16.gmra.mrb[0].mxu0 %v5872
  %v6037 = vpop.f32.mrb[0].mxu0
  %v6038 = vadd.f32 %v5905, %v6037
  %v6039 = vpop.f32.mrb[0].mxu0
  %v6040 = vpop.f32.mrb[0].mxu0
  %v6041 = vadd.f32 %v5905, %v6040
  %v6042 = vpop.f32.mrb[0].mxu0
  %6043 = vmatprep.mubr.bf16.mxu0 0
  %6044 = vmatmul.mubr.bf16.gmra.mrb[0].mxu0 %v5873
  %v6045 = vpop.f32.mrb[0].mxu0
  %v6046 = vadd.f32 %v5905, %v6045
  %v6047 = vpop.f32.mrb[0].mxu0
  %v6048 = vpop.f32.mrb[0].mxu0
  %v6049 = vadd.f32 %v5905, %v6048
  %v6050 = vpop.f32.mrb[0].mxu0
  %6051 = vmatprep.mubr.bf16.mxu0 0
  %6052 = vmatmul.mubr.bf16.gmra.mrb[0].mxu0 %v5874
  %v6053 = vpop.f32.mrb[0].mxu0
  %v6054 = vadd.f32 %v5905, %v6053
  %v6055 = vpop.f32.mrb[0].mxu0
  %v6056 = vpop.f32.mrb[0].mxu0
  %v6057 = vadd.f32 %v5905, %v6056
  %v6058 = vpop.f32.mrb[0].mxu0
  %6059 = vmatprep.mubr.bf16.mxu0 0
  %6060 = vmatmul.mubr.bf16.gmra.mrb[0].mxu0 %v5875
  %v6061 = vpop.f32.mrb[0].mxu0
  %v6062 = vadd.f32 %v5905, %v6061
  %v6063 = vpop.f32.mrb[0].mxu0
  %v6064 = vpop.f32.mrb[0].mxu0
  %v6065 = vadd.f32 %v5905, %v6064
  %v6066 = vpop.f32.mrb[0].mxu0
  %6067 = vmatprep.mubr.bf16.mxu0 0
  %6068 = vmatmul.mubr.bf16.gmra.mrb[0].mxu0 %v5876
  %v6069 = vpop.f32.mrb[0].mxu0
  %v6070 = vadd.f32 %v5905, %v6069
  %v6071 = vpop.f32.mrb[0].mxu0
  %v6072 = vpop.f32.mrb[0].mxu0
  %v6073 = vadd.f32 %v5905, %v6072
  %v6074 = vpop.f32.mrb[0].mxu0
  %6075 = vmatprep.mubr.bf16.mxu0 0
  %6076 = vmatmul.mubr.bf16.gmra.mrb[0].mxu0 %v5877
  %v6077 = vpop.f32.mrb[0].mxu0
  %v6078 = vadd.f32 %v5905, %v6077
  %v6079 = vpop.f32.mrb[0].mxu0
  %v6080 = vpop.f32.mrb[0].mxu0
  %v6081 = vadd.f32 %v5905, %v6080
  %v6082 = vpop.f32.mrb[0].mxu0
  %6083 = vmatprep.mubr.bf16.mxu0 0
  %6084 = vmatmul.mubr.bf16.gmra.mrb[0].mxu0 %v5878
  %v6085 = vpop.f32.mrb[0].mxu0
  %v6086 = vadd.f32 %v5905, %v6085
  %v6087 = vpop.f32.mrb[0].mxu0
  %v6088 = vpop.f32.mrb[0].mxu0
  %v6089 = vadd.f32 %v5905, %v6088
  %v6090 = vpop.f32.mrb[0].mxu0
  %6091 = vmatprep.mubr.bf16.mxu0 0
  %6092 = vmatmul.mubr.bf16.gmra.mrb[0].mxu0 %v5879
  %v6093 = vpop.f32.mrb[0].mxu0
  %v6094 = vadd.f32 %v5905, %v6093
  %v6095 = vpop.f32.mrb[0].mxu0
  %v6096 = vpop.f32.mrb[0].mxu0
  %v6097 = vadd.f32 %v5905, %v6096
  %v6098 = vpop.f32.mrb[0].mxu0
  %6099 = vmatprep.mubr.bf16.mxu0 0
  %6100 = vmatmul.mubr.bf16.gmra.mrb[0].mxu0 %v5880
  %v6101 = vpop.f32.mrb[0].mxu0
  %v6102 = vadd.f32 %v5905, %v6101
  %v6103 = vpop.f32.mrb[0].mxu0
  %v6104 = vpop.f32.mrb[0].mxu0
  %v6105 = vadd.f32 %v5905, %v6104
  %v6106 = vpop.f32.mrb[0].mxu0
  %6107 = vmatprep.mubr.bf16.mxu0 0
  %6108 = vmatmul.mubr.bf16.gmra.mrb[0].mxu0 %v5881
  %v6109 = vpop.f32.mrb[0].mxu0
  %v6110 = vadd.f32 %v5905, %v6109
  %v6111 = vpop.f32.mrb[0].mxu0
  %v6112 = vpop.f32.mrb[0].mxu0
  %v6113 = vadd.f32 %v5905, %v6112
  %v6114 = vpop.f32.mrb[0].mxu0
  %6115 = vmatprep.mubr.bf16.mxu0 0
  %6116 = vmatmul.mubr.bf16.gmra.mrb[0].mxu0 %v5882
  %v6117 = vpop.f32.mrb[0].mxu0
  %v6118 = vadd.f32 %v5905, %v6117
  %v6119 = vpop.f32.mrb[0].mxu0
  %v6120 = vpop.f32.mrb[0].mxu0
  %v6121 = vadd.f32 %v5905, %v6120
  %v6122 = vpop.f32.mrb[0].mxu0
  %6123 = vmatprep.mubr.bf16.mxu0 0
  %6124 = vmatmul.mubr.bf16.gmra.mrb[0].mxu0 %v5883
  %v6125 = vpop.f32.mrb[0].mxu0
  %v6126 = vadd.f32 %v5905, %v6125
  %v6127 = vpop.f32.mrb[0].mxu0
  %v6128 = vpop.f32.mrb[0].mxu0
  %v6129 = vadd.f32 %v5905, %v6128
  %v6130 = vpop.f32.mrb[0].mxu0
  %6131 = vdwg.mxu0
  %v6132 = vadd.f32 %v5990, %v277
  %v6133 = vadd.f32 %v5993, %v280
  %v6134 = vadd.f32 %v5998, %v285
  %v6135 = vadd.f32 %v6001, %v288
  %v6136 = vadd.f32 %v6006, %v293
  %v6137 = vadd.f32 %v6009, %v296
  %v6138 = vadd.f32 %v6014, %v301
  %v6139 = vadd.f32 %v6017, %v304
  %v6140 = vadd.f32 %v6022, %v309
  %v6141 = vadd.f32 %v6025, %v312
  %v6142 = vadd.f32 %v6030, %v317
  %v6143 = vadd.f32 %v6033, %v320
  %v6144 = vadd.f32 %v6038, %v325
  %v6145 = vadd.f32 %v6041, %v328
  %v6146 = vadd.f32 %v6046, %v333
  %v6147 = vadd.f32 %v6049, %v336
  %v6148 = vadd.f32 %v6054, %v341
  %v6149 = vadd.f32 %v6057, %v344
  %v6150 = vadd.f32 %v6062, %v349
  %v6151 = vadd.f32 %v6065, %v352
  %v6152 = vadd.f32 %v6070, %v357
  %v6153 = vadd.f32 %v6073, %v360
  %v6154 = vadd.f32 %v6078, %v365
  %v6155 = vadd.f32 %v6081, %v368
  %v6156 = vadd.f32 %v6086, %v373
  %v6157 = vadd.f32 %v6089, %v376
  %v6158 = vadd.f32 %v6094, %v381
  %v6159 = vadd.f32 %v6097, %v384
  %v6160 = vadd.f32 %v6102, %v389
  %v6161 = vadd.f32 %v6105, %v392
  %v6162 = vadd.f32 %v6110, %v397
  %v6163 = vadd.f32 %v6113, %v400
  %v6164 = vadd.f32 %v6118, %v405
  %v6165 = vadd.f32 %v6121, %v408
  %v6166 = vadd.f32 %v6126, %v413
  %v6167 = vadd.f32 %v6129, %v416
  %v6168 = vmax.f32 %v6132, 0.0
  %v6169 = vmax.f32 %v6133, 0.0
  %v6170 = vmax.f32 %v6134, 0.0
  %v6171 = vmax.f32 %v6135, 0.0
  %v6172 = vmax.f32 %v6136, 0.0
  %v6173 = vmax.f32 %v6137, 0.0
  %v6174 = vmax.f32 %v6138, 0.0
  %v6175 = vmax.f32 %v6139, 0.0
  %v6176 = vmax.f32 %v6140, 0.0
  %v6177 = vmax.f32 %v6141, 0.0
  %v6178 = vmax.f32 %v6142, 0.0
  %v6179 = vmax.f32 %v6143, 0.0
  %v6180 = vmax.f32 %v6144, 0.0
  %v6181 = vmax.f32 %v6145, 0.0
  %v6182 = vmax.f32 %v6146, 0.0
  %v6183 = vmax.f32 %v6147, 0.0
  %v6184 = vmax.f32 %v6148, 0.0
  %v6185 = vmax.f32 %v6149, 0.0
  %v6186 = vmax.f32 %v6150, 0.0
  %v6187 = vmax.f32 %v6151, 0.0
  %v6188 = vmax.f32 %v6152, 0.0
  %v6189 = vmax.f32 %v6153, 0.0
  %v6190 = vmax.f32 %v6154, 0.0
  %v6191 = vmax.f32 %v6155, 0.0
  %v6192 = vmax.f32 %v6156, 0.0
  %v6193 = vmax.f32 %v6157, 0.0
  %v6194 = vmax.f32 %v6158, 0.0
  %v6195 = vmax.f32 %v6159, 0.0
  %v6196 = vmax.f32 %v6160, 0.0
  %v6197 = vmax.f32 %v6161, 0.0
  %v6198 = vmax.f32 %v6162, 0.0
  %v6199 = vmax.f32 %v6163, 0.0
  %v6200 = vmax.f32 %v6164, 0.0
  %v6201 = vmax.f32 %v6165, 0.0
  %v6202 = vmax.f32 %v6166, 0.0
  %v6203 = vmax.f32 %v6167, 0.0
  %v6204 = vpack.c.bf16 %v6169, %v6168
  %v6205 = vpack.c.bf16 %v6171, %v6170
  %v6206 = vpack.c.bf16 %v6173, %v6172
  %v6207 = vpack.c.bf16 %v6175, %v6174
  %v6208 = vpack.c.bf16 %v6177, %v6176
  %v6209 = vpack.c.bf16 %v6179, %v6178
  %v6210 = vpack.c.bf16 %v6181, %v6180
  %v6211 = vpack.c.bf16 %v6183, %v6182
  %v6212 = vpack.c.bf16 %v6185, %v6184
  %v6213 = vpack.c.bf16 %v6187, %v6186
  %v6214 = vpack.c.bf16 %v6189, %v6188
  %v6215 = vpack.c.bf16 %v6191, %v6190
  %v6216 = vpack.c.bf16 %v6193, %v6192
  %v6217 = vpack.c.bf16 %v6195, %v6194
  %v6218 = vpack.c.bf16 %v6197, %v6196
  %v6219 = vpack.c.bf16 %v6199, %v6198
  %v6220 = vpack.c.bf16 %v6201, %v6200
  %v6221 = vpack.c.bf16 %v6203, %v6202
  %v6240 = vunpack.c.l.b16 %v6204
  %v6241 = vunpack.c.h.b16 %v6204
  %v6242 = vunpack.c.l.b16 %v6205
  %v6243 = vunpack.c.h.b16 %v6205
  %v6244 = vunpack.c.l.b16 %v6206
  %v6245 = vunpack.c.h.b16 %v6206
  %v6246 = vunpack.c.l.b16 %v6207
  %v6247 = vunpack.c.h.b16 %v6207
  %v6248 = vunpack.c.l.b16 %v6208
  %v6249 = vunpack.c.h.b16 %v6208
  %v6250 = vunpack.c.l.b16 %v6209
  %v6251 = vunpack.c.h.b16 %v6209
  %v6252 = vunpack.c.l.b16 %v6210
  %v6253 = vunpack.c.h.b16 %v6210
  %v6254 = vunpack.c.l.b16 %v6211
  %v6255 = vunpack.c.h.b16 %v6211
  %v6256 = vunpack.c.l.b16 %v6212
  %v6257 = vunpack.c.h.b16 %v6212
  %v6258 = vunpack.c.l.b16 %v6213
  %v6259 = vunpack.c.h.b16 %v6213
  %v6260 = vunpack.c.l.b16 %v6214
  %v6261 = vunpack.c.h.b16 %v6214
  %v6262 = vunpack.c.l.b16 %v6215
  %v6263 = vunpack.c.h.b16 %v6215
  %v6264 = vunpack.c.l.b16 %v6216
  %v6265 = vunpack.c.h.b16 %v6216
  %v6266 = vunpack.c.l.b16 %v6217
  %v6267 = vunpack.c.h.b16 %v6217
  %v6268 = vunpack.c.l.b16 %v6218
  %v6269 = vunpack.c.h.b16 %v6218
  %v6270 = vunpack.c.l.b16 %v6219
  %v6271 = vunpack.c.h.b16 %v6219
  %v6272 = vunpack.c.l.b16 %v6220
  %v6273 = vunpack.c.h.b16 %v6220
  %v6274 = vunpack.c.l.b16 %v6221
  %v6275 = vunpack.c.h.b16 %v6221
  %v6276 = vpack.c.b16 %v6240, %v6240
  %v6277 = vpack.c.b16 %v6241, %v6241
  %v6278 = vpack.c.b16 %v6242, %v6242
  %v6279 = vpack.c.b16 %v6243, %v6243
  %v6280 = vpack.c.b16 %v6244, %v6244
  %v6281 = vpack.c.b16 %v6245, %v6245
  %v6282 = vpack.c.b16 %v6246, %v6246
  %v6283 = vpack.c.b16 %v6247, %v6247
  %v6284 = vpack.c.b16 %v6248, %v6248
  %v6285 = vpack.c.b16 %v6249, %v6249
  %v6286 = vpack.c.b16 %v6250, %v6250
  %v6287 = vpack.c.b16 %v6251, %v6251
  %v6288 = vpack.c.b16 %v6252, %v6252
  %v6289 = vpack.c.b16 %v6253, %v6253
  %v6290 = vpack.c.b16 %v6254, %v6254
  %v6291 = vpack.c.b16 %v6255, %v6255
  %v6292 = vpack.c.b16 %v6256, %v6256
  %v6293 = vpack.c.b16 %v6257, %v6257
  %v6294 = vpack.c.b16 %v6258, %v6258
  %v6295 = vpack.c.b16 %v6259, %v6259
  %v6296 = vpack.c.b16 %v6260, %v6260
  %v6297 = vpack.c.b16 %v6261, %v6261
  %v6298 = vpack.c.b16 %v6262, %v6262
  %v6299 = vpack.c.b16 %v6263, %v6263
  %v6300 = vpack.c.b16 %v6264, %v6264
  %v6301 = vpack.c.b16 %v6265, %v6265
  %v6302 = vpack.c.b16 %v6266, %v6266
  %v6303 = vpack.c.b16 %v6267, %v6267
  %v6304 = vpack.c.b16 %v6268, %v6268
  %v6305 = vpack.c.b16 %v6269, %v6269
  %v6306 = vpack.c.b16 %v6270, %v6270
  %v6307 = vpack.c.b16 %v6271, %v6271
  %v6308 = vpack.c.b16 %v6272, %v6272
  %v6309 = vpack.c.b16 %v6273, %v6273
  %v6310 = vpack.c.b16 %v6274, %v6274
  %v6311 = vpack.c.b16 %v6275, %v6275
  %6348 = vst [vmem:[%s7] sm:$0xf] %v6276
  %6349 = vst [vmem:[%s7 + $0x4] sm:$0xf] %v6277
  %6350 = vst [vmem:[%s7 + $0x8] sm:$0xf] %v6278
  %6351 = vst [vmem:[%s7 + $0xc] sm:$0xf] %v6279
  %6352 = vst [vmem:[%s7 + $0x10] sm:$0xf] %v6280
  %6353 = vst [vmem:[%s7 + $0x14] sm:$0xf] %v6281
  %6354 = vst [vmem:[%s7 + $0x18] sm:$0xf] %v6282
  %6355 = vst [vmem:[%s7 + $0x1c] sm:$0xf] %v6283
  %6356 = vst [vmem:[%s7 + $0x20] sm:$0xf] %v6284
  %6357 = vst [vmem:[%s7 + $0x24] sm:$0xf] %v6285
  %6358 = vst [vmem:[%s7 + $0x28] sm:$0xf] %v6286
  %6359 = vst [vmem:[%s7 + $0x2c] sm:$0xf] %v6287
  %6360 = vst [vmem:[%s7 + $0x30] sm:$0xf] %v6288
  %6361 = vst [vmem:[%s7 + $0x34] sm:$0xf] %v6289
  %6362 = vst [vmem:[%s7 + $0x38] sm:$0xf] %v6290
  %6363 = vst [vmem:[%s7 + $0x3c] sm:$0xf] %v6291
  %6364 = vst [vmem:[%s7 + $0x40] sm:$0xf] %v6292
  %6365 = vst [vmem:[%s7 + $0x44] sm:$0xf] %v6293
  %6366 = vst [vmem:[%s7 + $0x48] sm:$0xf] %v6294
  %6367 = vst [vmem:[%s7 + $0x4c] sm:$0xf] %v6295
  %6368 = vst [vmem:[%s7 + $0x50] sm:$0xf] %v6296
  %6369 = vst [vmem:[%s7 + $0x54] sm:$0xf] %v6297
  %6370 = vst [vmem:[%s7 + $0x58] sm:$0xf] %v6298
  %6371 = vst [vmem:[%s7 + $0x5c] sm:$0xf] %v6299
  %6372 = vst [vmem:[%s7 + $0x60] sm:$0xf] %v6300
  %6373 = vst [vmem:[%s7 + $0x64] sm:$0xf] %v6301
  %6374 = vst [vmem:[%s7 + $0x68] sm:$0xf] %v6302
  %6375 = vst [vmem:[%s7 + $0x6c] sm:$0xf] %v6303
  %6376 = vst [vmem:[%s7 + $0x70] sm:$0xf] %v6304
  %6377 = vst [vmem:[%s7 + $0x74] sm:$0xf] %v6305
  %6378 = vst [vmem:[%s7 + $0x78] sm:$0xf] %v6306
  %6379 = vst [vmem:[%s7 + $0x7c] sm:$0xf] %v6307
  %6380 = vst [vmem:[%s7 + $0x80] sm:$0xf] %v6308
  %6381 = vst [vmem:[%s7 + $0x84] sm:$0xf] %v6309
  %6382 = vst [vmem:[%s7 + $0x88] sm:$0xf] %v6310
  %6383 = vst [vmem:[%s7 + $0x8c] sm:$0xf] %v6311
  // Predicated region
  $region30: #{cnn_switch_3l_forward.3} parent=0 // pred_check
    _
  $region31: #{cnn_switch_3l_forward.3} parent=0 // pred_check_branch
    %6385 = sbr.rel (0) target = $region33
  $region32: #{cnn_switch_3l_forward.3} parent=0 // pred_region
    _
  $region33: #{cnn_switch_3l_forward.3} parent=0 // pred_fallthru
    _
  // Predicated region
  $region34: #{cnn_switch_3l_forward.3} parent=0 // pred_check
    _
  $region35: #{cnn_switch_3l_forward.3} parent=0 // pred_check_branch
    %6387 = sbr.rel (0) target = $region37
  $region36: #{cnn_switch_3l_forward.3} parent=0 // pred_region
    _
  $region37: #{cnn_switch_3l_forward.3} parent=0 // pred_fallthru
    _

// kernel: cnn_switch_3l_forward.4
$region0: #{cnn_switch_3l_forward.4}
  #allocation0 [shape = 'u32[]', space=smem, size = 0x4, offset = 0x4, fixed_abs, tag = 'smem constant byte address 0x4 - core index']
  #allocation1 [shape = 'u32[144,128]{1,0:T(1,128)}', space=vmem, size = 0x12000, scoped, tag = 'internal scratch']
  #allocation2 [shape = 'f32[160,128]{1,0:T(8,128)}', space=vmem, size = 0x14000, scoped, tag = 'scratch operand']
  %s0 = inlined_call_operand.vmem [shape: bf16[128,512], index: 0, kind: input, shape index: {}]
  %s1 = inlined_call_operand.vmem [shape: bf16[512,128], index: 1, kind: input, shape index: {}]
  %s2 = inlined_call_operand.vmem [shape: f32[1,128], index: 2, kind: input, shape index: {}]
  %s3 = inlined_call_operand.vmem [shape: bf16[128,128], index: 3, kind: input, shape index: {}]
  %s4 = inlined_call_operand.vmem [shape: f32[1,128], index: 4, kind: input, shape index: {}]
  %s5 = inlined_call_operand.vmem [shape: bf16[128,128], index: 5, kind: input, shape index: {}]
  %s6 = inlined_call_operand.vmem [shape: f32[1,128], index: 6, kind: input, shape index: {}]
  %s7 = inlined_call_operand.vmem [shape: bf16[128,128], index: 7, kind: output, shape index: {}]
  %s8 = sld [smem:[#allocation0]]
  $region38: #{cnn_switch_3l_forward.4} parent=0
    _
  %s10 = ssub.s32 1, %s8
  %s11 = scalar_select 0, %s10, %s8
  // Predicated region
  $region2: #{cnn_switch_3l_forward.4} parent=0 // pred_check
    _
  $region3: #{cnn_switch_3l_forward.4} parent=0 // pred_check_branch
    %13 = sbr.rel (0) target = $region5
  $region4: #{cnn_switch_3l_forward.4} parent=0 // pred_region
    _
  $region5: #{cnn_switch_3l_forward.4} parent=0 // pred_fallthru
    _
  // Predicated region
  $region6: #{cnn_switch_3l_forward.4} parent=0 // pred_check
    _
  $region7: #{cnn_switch_3l_forward.4} parent=0 // pred_check_branch
    %15 = sbr.rel (0) target = $region9
  $region8: #{cnn_switch_3l_forward.4} parent=0 // pred_region
    _
  $region9: #{cnn_switch_3l_forward.4} parent=0 // pred_fallthru
    _
  // Predicated region
  $region10: #{cnn_switch_3l_forward.4} parent=0 // pred_check
    _
  $region11: #{cnn_switch_3l_forward.4} parent=0 // pred_check_branch
    %17 = sbr.rel (0) target = $region13
  $region12: #{cnn_switch_3l_forward.4} parent=0 // pred_region
    _
  $region13: #{cnn_switch_3l_forward.4} parent=0 // pred_fallthru
    _
  // Predicated region
  $region14: #{cnn_switch_3l_forward.4} parent=0 // pred_check
    _
  $region15: #{cnn_switch_3l_forward.4} parent=0 // pred_check_branch
    %19 = sbr.rel (0) target = $region17
  $region16: #{cnn_switch_3l_forward.4} parent=0 // pred_region
    _
  $region17: #{cnn_switch_3l_forward.4} parent=0 // pred_fallthru
    _
  // Predicated region
  $region18: #{cnn_switch_3l_forward.4} parent=0 // pred_check
    _
  $region19: #{cnn_switch_3l_forward.4} parent=0 // pred_check_branch
    %21 = sbr.rel (0) target = $region21
  $region20: #{cnn_switch_3l_forward.4} parent=0 // pred_region
    _
  $region21: #{cnn_switch_3l_forward.4} parent=0 // pred_fallthru
    _
  // Predicated region
  $region22: #{cnn_switch_3l_forward.4} parent=0 // pred_check
    _
  $region23: #{cnn_switch_3l_forward.4} parent=0 // pred_check_branch
    %23 = sbr.rel (0) target = $region25
  $region24: #{cnn_switch_3l_forward.4} parent=0 // pred_region
    _
  $region25: #{cnn_switch_3l_forward.4} parent=0 // pred_fallthru
    _
  // Predicated region
  $region26: #{cnn_switch_3l_forward.4} parent=0 // pred_check
    _
  $region27: #{cnn_switch_3l_forward.4} parent=0 // pred_check_branch
    %25 = sbr.rel (0) target = $region29
  $region28: #{cnn_switch_3l_forward.4} parent=0 // pred_region
    _
  $region29: #{cnn_switch_3l_forward.4} parent=0 // pred_fallthru
    _
  %v27 = vld [vmem:[%s0] sm:$0xff]
  %v28 = vld [vmem:[%s0 + $0x8] sm:$0xff]
  %v29 = vld [vmem:[%s0 + $0x10] sm:$0xff]
  %v30 = vld [vmem:[%s0 + $0x18] sm:$0xff]
  %v31 = vld [vmem:[%s0 + $0x20] sm:$0xff]
  %v32 = vld [vmem:[%s0 + $0x28] sm:$0xff]
  %v33 = vld [vmem:[%s0 + $0x30] sm:$0xff]
  %v34 = vld [vmem:[%s0 + $0x38] sm:$0xff]
  %v35 = vld [vmem:[%s0 + $0x40] sm:$0xff]
  %v36 = vld [vmem:[%s0 + $0x48] sm:$0xff]
  %v37 = vld [vmem:[%s0 + $0x50] sm:$0xff]
  %v38 = vld [vmem:[%s0 + $0x58] sm:$0xff]
  %v39 = vld [vmem:[%s0 + $0x60] sm:$0xff]
  %v40 = vld [vmem:[%s0 + $0x68] sm:$0xff]
  %v41 = vld [vmem:[%s0 + $0x70] sm:$0xff]
  %v42 = vld [vmem:[%s0 + $0x78] sm:$0xff]
  %v43 = vld [vmem:[%s0 + $0x80] sm:$0xff]
  %v44 = vld [vmem:[%s0 + $0x88] sm:$0xff]
  %v45 = vld [vmem:[%s0 + $0x90] sm:$0xff]
  %v46 = vld [vmem:[%s0 + $0x98] sm:$0xff]
  %v47 = vld [vmem:[%s0 + $0xa0] sm:$0xff]
  %v48 = vld [vmem:[%s0 + $0xa8] sm:$0xff]
  %v49 = vld [vmem:[%s0 + $0xb0] sm:$0xff]
  %v50 = vld [vmem:[%s0 + $0xb8] sm:$0xff]
  %v51 = vld [vmem:[%s0 + $0xc0] sm:$0xff]
  %v52 = vld [vmem:[%s0 + $0xc8] sm:$0xff]
  %v53 = vld [vmem:[%s0 + $0xd0] sm:$0xff]
  %v54 = vld [vmem:[%s0 + $0xd8] sm:$0xff]
  %v55 = vld [vmem:[%s0 + $0xe0] sm:$0xff]
  %v56 = vld [vmem:[%s0 + $0xe8] sm:$0xff]
  %v57 = vld [vmem:[%s0 + $0xf0] sm:$0xff]
  %v58 = vld [vmem:[%s0 + $0xf8] sm:$0xff]
  %v59 = vld [vmem:[%s1] sm:$0xf]
  %v60 = vld [vmem:[%s1 + $0x4] sm:$0xf]
  %v61 = vld [vmem:[%s1 + $0x8] sm:$0xf]
  %v62 = vld [vmem:[%s1 + $0xc] sm:$0xf]
  %v63 = vld [vmem:[%s1 + $0x10] sm:$0xf]
  %v64 = vld [vmem:[%s1 + $0x14] sm:$0xf]
  %v65 = vld [vmem:[%s1 + $0x18] sm:$0xf]
  %v66 = vld [vmem:[%s1 + $0x1c] sm:$0xf]
  %v67 = vld [vmem:[%s1 + $0x20] sm:$0xf]
  %v68 = vld [vmem:[%s1 + $0x24] sm:$0xf]
  %v69 = vld [vmem:[%s1 + $0x28] sm:$0xf]
  %v70 = vld [vmem:[%s1 + $0x2c] sm:$0xf]
  %v71 = vld [vmem:[%s1 + $0x30] sm:$0xf]
  %v72 = vld [vmem:[%s1 + $0x34] sm:$0xf]
  %v73 = vld [vmem:[%s1 + $0x38] sm:$0xf]
  %v74 = vld [vmem:[%s1 + $0x3c] sm:$0xf]
  %v75 = vld [vmem:[%s1 + $0x40] sm:$0xf]
  %v76 = vld [vmem:[%s1 + $0x44] sm:$0xf]
  %v77 = vld [vmem:[%s1 + $0x48] sm:$0xf]
  %v78 = vld [vmem:[%s1 + $0x4c] sm:$0xf]
  %v79 = vld [vmem:[%s1 + $0x50] sm:$0xf]
  %v80 = vld [vmem:[%s1 + $0x54] sm:$0xf]
  %v81 = vld [vmem:[%s1 + $0x58] sm:$0xf]
  %v82 = vld [vmem:[%s1 + $0x5c] sm:$0xf]
  %v83 = vld [vmem:[%s1 + $0x60] sm:$0xf]
  %v84 = vld [vmem:[%s1 + $0x64] sm:$0xf]
  %v85 = vld [vmem:[%s1 + $0x68] sm:$0xf]
  %v86 = vld [vmem:[%s1 + $0x6c] sm:$0xf]
  %v87 = vld [vmem:[%s1 + $0x70] sm:$0xf]
  %v88 = vld [vmem:[%s1 + $0x74] sm:$0xf]
  %v89 = vld [vmem:[%s1 + $0x78] sm:$0xf]
  %v90 = vld [vmem:[%s1 + $0x7c] sm:$0xf]
  %v91 = vld [vmem:[%s1 + $0x80] sm:$0xf]
  %v92 = vld [vmem:[%s1 + $0x84] sm:$0xf]
  %v93 = vld [vmem:[%s1 + $0x88] sm:$0xf]
  %v94 = vld [vmem:[%s1 + $0x8c] sm:$0xf]
  %v95 = vld [vmem:[%s1 + $0x90] sm:$0xf]
  %v96 = vld [vmem:[%s1 + $0x94] sm:$0xf]
  %v97 = vld [vmem:[%s1 + $0x98] sm:$0xf]
  %v98 = vld [vmem:[%s1 + $0x9c] sm:$0xf]
  %v99 = vld [vmem:[%s1 + $0xa0] sm:$0xf]
  %v100 = vld [vmem:[%s1 + $0xa4] sm:$0xf]
  %v101 = vld [vmem:[%s1 + $0xa8] sm:$0xf]
  %v102 = vld [vmem:[%s1 + $0xac] sm:$0xf]
  %v103 = vld [vmem:[%s1 + $0xb0] sm:$0xf]
  %v104 = vld [vmem:[%s1 + $0xb4] sm:$0xf]
  %v105 = vld [vmem:[%s1 + $0xb8] sm:$0xf]
  %v106 = vld [vmem:[%s1 + $0xbc] sm:$0xf]
  %v107 = vld [vmem:[%s1 + $0xc0] sm:$0xf]
  %v108 = vld [vmem:[%s1 + $0xc4] sm:$0xf]
  %v109 = vld [vmem:[%s1 + $0xc8] sm:$0xf]
  %v110 = vld [vmem:[%s1 + $0xcc] sm:$0xf]
  %v111 = vld [vmem:[%s1 + $0xd0] sm:$0xf]
  %v112 = vld [vmem:[%s1 + $0xd4] sm:$0xf]
  %v113 = vld [vmem:[%s1 + $0xd8] sm:$0xf]
  %v114 = vld [vmem:[%s1 + $0xdc] sm:$0xf]
  %v115 = vld [vmem:[%s1 + $0xe0] sm:$0xf]
  %v116 = vld [vmem:[%s1 + $0xe4] sm:$0xf]
  %v117 = vld [vmem:[%s1 + $0xe8] sm:$0xf]
  %v118 = vld [vmem:[%s1 + $0xec] sm:$0xf]
  %v119 = vld [vmem:[%s1 + $0xf0] sm:$0xf]
  %v120 = vld [vmem:[%s1 + $0xf4] sm:$0xf]
  %v121 = vld [vmem:[%s1 + $0xf8] sm:$0xf]
  %v122 = vld [vmem:[%s1 + $0xfc] sm:$0xf]
  %v123 = vld [vmem:[%s2] sm:$0x1]
  %v125 = vlaneseq
  %v126 = vshrl.u32 %v125, 7
  %v127 = vsub.s32 0, %v126
  %v128 = vrot.slane %v123, %v127
  %v162 = vunpack.c.l.b16 %v27
  %v163 = vunpack.c.h.b16 %v27
  %v164 = vunpack.c.l.b16 %v28
  %v165 = vunpack.c.h.b16 %v28
  %v166 = vunpack.c.l.b16 %v29
  %v167 = vunpack.c.h.b16 %v29
  %v168 = vunpack.c.l.b16 %v30
  %v169 = vunpack.c.h.b16 %v30
  %v170 = vunpack.c.l.b16 %v31
  %v171 = vunpack.c.h.b16 %v31
  %v172 = vunpack.c.l.b16 %v32
  %v173 = vunpack.c.h.b16 %v32
  %v174 = vunpack.c.l.b16 %v33
  %v175 = vunpack.c.h.b16 %v33
  %v176 = vunpack.c.l.b16 %v34
  %v177 = vunpack.c.h.b16 %v34
  %v178 = vunpack.c.l.b16 %v35
  %v179 = vunpack.c.h.b16 %v35
  %v180 = vunpack.c.l.b16 %v36
  %v181 = vunpack.c.h.b16 %v36
  %v182 = vunpack.c.l.b16 %v37
  %v183 = vunpack.c.h.b16 %v37
  %v184 = vunpack.c.l.b16 %v38
  %v185 = vunpack.c.h.b16 %v38
  %v186 = vunpack.c.l.b16 %v39
  %v187 = vunpack.c.h.b16 %v39
  %v188 = vunpack.c.l.b16 %v40
  %v189 = vunpack.c.h.b16 %v40
  %v190 = vunpack.c.l.b16 %v41
  %v191 = vunpack.c.h.b16 %v41
  %v192 = vunpack.c.l.b16 %v42
  %v193 = vunpack.c.h.b16 %v42
  %v194 = vunpack.c.l.b16 %v43
  %v195 = vunpack.c.h.b16 %v43
  %v196 = vunpack.c.l.b16 %v44
  %v197 = vunpack.c.h.b16 %v44
  %v198 = vunpack.c.l.b16 %v45
  %v199 = vunpack.c.h.b16 %v45
  %v200 = vunpack.c.l.b16 %v46
  %v201 = vunpack.c.h.b16 %v46
  %v202 = vunpack.c.l.b16 %v47
  %v203 = vunpack.c.h.b16 %v47
  %v204 = vunpack.c.l.b16 %v48
  %v205 = vunpack.c.h.b16 %v48
  %v206 = vunpack.c.l.b16 %v49
  %v207 = vunpack.c.h.b16 %v49
  %v208 = vunpack.c.l.b16 %v50
  %v209 = vunpack.c.h.b16 %v50
  %v210 = vunpack.c.l.b16 %v51
  %v211 = vunpack.c.h.b16 %v51
  %v212 = vunpack.c.l.b16 %v52
  %v213 = vunpack.c.h.b16 %v52
  %v214 = vunpack.c.l.b16 %v53
  %v215 = vunpack.c.h.b16 %v53
  %v216 = vunpack.c.l.b16 %v54
  %v217 = vunpack.c.h.b16 %v54
  %v218 = vunpack.c.l.b16 %v55
  %v219 = vunpack.c.h.b16 %v55
  %v220 = vunpack.c.l.b16 %v56
  %v221 = vunpack.c.h.b16 %v56
  %v222 = vunpack.c.l.b16 %v57
  %v223 = vunpack.c.h.b16 %v57
  %v224 = vunpack.c.l.b16 %v58
  %v225 = vunpack.c.h.b16 %v58
  %v226 = vpack.c.b16 %v166, %v162
  %v227 = vpack.c.b16 %v167, %v163
  %v228 = vpack.c.b16 %v168, %v164
  %v229 = vpack.c.b16 %v169, %v165
  %v230 = vpack.c.b16 %v174, %v170
  %v231 = vpack.c.b16 %v175, %v171
  %v232 = vpack.c.b16 %v176, %v172
  %v233 = vpack.c.b16 %v177, %v173
  %v234 = vpack.c.b16 %v182, %v178
  %v235 = vpack.c.b16 %v183, %v179
  %v236 = vpack.c.b16 %v184, %v180
  %v237 = vpack.c.b16 %v185, %v181
  %v238 = vpack.c.b16 %v190, %v186
  %v239 = vpack.c.b16 %v191, %v187
  %v240 = vpack.c.b16 %v192, %v188
  %v241 = vpack.c.b16 %v193, %v189
  %v242 = vpack.c.b16 %v198, %v194
  %v243 = vpack.c.b16 %v199, %v195
  %v244 = vpack.c.b16 %v200, %v196
  %v245 = vpack.c.b16 %v201, %v197
  %v246 = vpack.c.b16 %v206, %v202
  %v247 = vpack.c.b16 %v207, %v203
  %v248 = vpack.c.b16 %v208, %v204
  %v249 = vpack.c.b16 %v209, %v205
  %v250 = vpack.c.b16 %v214, %v210
  %v251 = vpack.c.b16 %v215, %v211
  %v252 = vpack.c.b16 %v216, %v212
  %v253 = vpack.c.b16 %v217, %v213
  %v254 = vpack.c.b16 %v222, %v218
  %v255 = vpack.c.b16 %v223, %v219
  %v256 = vpack.c.b16 %v224, %v220
  %v257 = vpack.c.b16 %v225, %v221
  %v354 = vunpack.c.l.b16 %v59
  %v355 = vunpack.c.l.b16 %v60
  %v356 = vunpack.c.l.b16 %v61
  %v357 = vunpack.c.l.b16 %v62
  %v358 = vunpack.c.l.b16 %v63
  %v359 = vunpack.c.l.b16 %v64
  %v360 = vunpack.c.l.b16 %v65
  %v361 = vunpack.c.l.b16 %v66
  %v362 = vunpack.c.l.b16 %v67
  %v363 = vunpack.c.l.b16 %v68
  %v364 = vunpack.c.l.b16 %v69
  %v365 = vunpack.c.l.b16 %v70
  %v366 = vunpack.c.l.b16 %v71
  %v367 = vunpack.c.l.b16 %v72
  %v368 = vunpack.c.l.b16 %v73
  %v369 = vunpack.c.l.b16 %v74
  %v370 = vunpack.c.l.b16 %v75
  %v371 = vunpack.c.l.b16 %v76
  %v372 = vunpack.c.l.b16 %v77
  %v373 = vunpack.c.l.b16 %v78
  %v374 = vunpack.c.l.b16 %v79
  %v375 = vunpack.c.l.b16 %v80
  %v376 = vunpack.c.l.b16 %v81
  %v377 = vunpack.c.l.b16 %v82
  %v378 = vunpack.c.l.b16 %v83
  %v379 = vunpack.c.l.b16 %v84
  %v380 = vunpack.c.l.b16 %v85
  %v381 = vunpack.c.l.b16 %v86
  %v382 = vunpack.c.l.b16 %v87
  %v383 = vunpack.c.l.b16 %v88
  %v384 = vunpack.c.l.b16 %v89
  %v385 = vunpack.c.l.b16 %v90
  %v386 = vunpack.c.l.b16 %v91
  %v387 = vunpack.c.l.b16 %v92
  %v388 = vunpack.c.l.b16 %v93
  %v389 = vunpack.c.l.b16 %v94
  %v390 = vunpack.c.l.b16 %v95
  %v391 = vunpack.c.l.b16 %v96
  %v392 = vunpack.c.l.b16 %v97
  %v393 = vunpack.c.l.b16 %v98
  %v394 = vunpack.c.l.b16 %v99
  %v395 = vunpack.c.l.b16 %v100
  %v396 = vunpack.c.l.b16 %v101
  %v397 = vunpack.c.l.b16 %v102
  %v398 = vunpack.c.l.b16 %v103
  %v399 = vunpack.c.l.b16 %v104
  %v400 = vunpack.c.l.b16 %v105
  %v401 = vunpack.c.l.b16 %v106
  %v402 = vunpack.c.l.b16 %v107
  %v403 = vunpack.c.l.b16 %v108
  %v404 = vunpack.c.l.b16 %v109
  %v405 = vunpack.c.l.b16 %v110
  %v406 = vunpack.c.l.b16 %v111
  %v407 = vunpack.c.l.b16 %v112
  %v408 = vunpack.c.l.b16 %v113
  %v409 = vunpack.c.l.b16 %v114
  %v410 = vunpack.c.l.b16 %v115
  %v411 = vunpack.c.l.b16 %v116
  %v412 = vunpack.c.l.b16 %v117
  %v413 = vunpack.c.l.b16 %v118
  %v414 = vunpack.c.l.b16 %v119
  %v415 = vunpack.c.l.b16 %v120
  %v416 = vunpack.c.l.b16 %v121
  %v417 = vunpack.c.l.b16 %v122
  %v418 = vpack.c.b16 %v355, %v354
  %v419 = vpack.c.b16 %v357, %v356
  %v420 = vpack.c.b16 %v359, %v358
  %v421 = vpack.c.b16 %v361, %v360
  %v422 = vpack.c.b16 %v363, %v362
  %v423 = vpack.c.b16 %v365, %v364
  %v424 = vpack.c.b16 %v367, %v366
  %v425 = vpack.c.b16 %v369, %v368
  %v426 = vpack.c.b16 %v371, %v370
  %v427 = vpack.c.b16 %v373, %v372
  %v428 = vpack.c.b16 %v375, %v374
  %v429 = vpack.c.b16 %v377, %v376
  %v430 = vpack.c.b16 %v379, %v378
  %v431 = vpack.c.b16 %v381, %v380
  %v432 = vpack.c.b16 %v383, %v382
  %v433 = vpack.c.b16 %v385, %v384
  %v434 = vpack.c.b16 %v387, %v386
  %v435 = vpack.c.b16 %v389, %v388
  %v436 = vpack.c.b16 %v391, %v390
  %v437 = vpack.c.b16 %v393, %v392
  %v438 = vpack.c.b16 %v395, %v394
  %v439 = vpack.c.b16 %v397, %v396
  %v440 = vpack.c.b16 %v399, %v398
  %v441 = vpack.c.b16 %v401, %v400
  %v442 = vpack.c.b16 %v403, %v402
  %v443 = vpack.c.b16 %v405, %v404
  %v444 = vpack.c.b16 %v407, %v406
  %v445 = vpack.c.b16 %v409, %v408
  %v446 = vpack.c.b16 %v411, %v410
  %v447 = vpack.c.b16 %v413, %v412
  %v448 = vpack.c.b16 %v415, %v414
  %v449 = vpack.c.b16 %v417, %v416
  %482 = vmatprep.subr.bf16.mxu0 0
  %483 = vmatpush1.bf16.msra.mxu0 %v418
  %484 = vmatprep.subr.bf16.mxu0 0
  %485 = vmatpush1.bf16.msra.mxu0 %v419
  %486 = vmatprep.subr.bf16.mxu0 0
  %487 = vmatpush1.bf16.msra.mxu0 %v420
  %488 = vmatprep.subr.bf16.mxu0 0
  %489 = vmatpush1.bf16.msra.mxu0 %v421
  %490 = vmatprep.subr.bf16.mxu0 0
  %491 = vmatpush1.bf16.msra.mxu0 %v422
  %492 = vmatprep.subr.bf16.mxu0 0
  %493 = vmatpush1.bf16.msra.mxu0 %v423
  %494 = vmatprep.subr.bf16.mxu0 0
  %495 = vmatpush1.bf16.msra.mxu0 %v424
  %496 = vmatprep.subr.bf16.mxu0 0
  %497 = vmatpush1.bf16.msra.mxu0 %v425
  %498 = vmatprep.subr.bf16.mxu0 0
  %499 = vmatpush1.bf16.msra.mxu0 %v426
  %500 = vmatprep.subr.bf16.mxu0 0
  %501 = vmatpush1.bf16.msra.mxu0 %v427
  %502 = vmatprep.subr.bf16.mxu0 0
  %503 = vmatpush1.bf16.msra.mxu0 %v428
  %504 = vmatprep.subr.bf16.mxu0 0
  %505 = vmatpush1.bf16.msra.mxu0 %v429
  %506 = vmatprep.subr.bf16.mxu0 0
  %507 = vmatpush1.bf16.msra.mxu0 %v430
  %508 = vmatprep.subr.bf16.mxu0 0
  %509 = vmatpush1.bf16.msra.mxu0 %v431
  %510 = vmatprep.subr.bf16.mxu0 0
  %511 = vmatpush1.bf16.msra.mxu0 %v432
  %512 = vmatprep.subr.bf16.mxu0 0
  %513 = vmatpush1.bf16.msra.mxu0 %v433
  %514 = vmatprep.mubr.bf16.mxu0 %v227
  %515 = vmatmul.mubr.bf16.gmra.mrb[0].mxu0 %v226
  %v516 = vpop.f32.mrb[0].mxu0
  %v517 = vadd.f32 %v128, %v516
  %v518 = vpop.f32.mrb[0].mxu0
  %v519 = vpop.f32.mrb[0].mxu0
  %v520 = vadd.f32 %v128, %v519
  %v521 = vpop.f32.mrb[0].mxu0
  %522 = vmatprep.mubr.bf16.mxu0 %v231
  %523 = vmatmul.mubr.bf16.gmra.mrb[0].mxu0 %v230
  %v524 = vpop.f32.mrb[0].mxu0
  %v525 = vadd.f32 %v128, %v524
  %v526 = vpop.f32.mrb[0].mxu0
  %v527 = vpop.f32.mrb[0].mxu0
  %v528 = vadd.f32 %v128, %v527
  %v529 = vpop.f32.mrb[0].mxu0
  %530 = vmatprep.mubr.bf16.mxu0 %v235
  %531 = vmatmul.mubr.bf16.gmra.mrb[0].mxu0 %v234
  %v532 = vpop.f32.mrb[0].mxu0
  %v533 = vadd.f32 %v128, %v532
  %v534 = vpop.f32.mrb[0].mxu0
  %v535 = vpop.f32.mrb[0].mxu0
  %v536 = vadd.f32 %v128, %v535
  %v537 = vpop.f32.mrb[0].mxu0
  %538 = vmatprep.mubr.bf16.mxu0 %v239
  %539 = vmatmul.mubr.bf16.gmra.mrb[0].mxu0 %v238
  %v540 = vpop.f32.mrb[0].mxu0
  %v541 = vadd.f32 %v128, %v540
  %v542 = vpop.f32.mrb[0].mxu0
  %v543 = vpop.f32.mrb[0].mxu0
  %v544 = vadd.f32 %v128, %v543
  %v545 = vpop.f32.mrb[0].mxu0
  %546 = vmatprep.mubr.bf16.mxu0 %v243
  %547 = vmatmul.mubr.bf16.gmra.mrb[0].mxu0 %v242
  %v548 = vpop.f32.mrb[0].mxu0
  %v549 = vadd.f32 %v128, %v548
  %v550 = vpop.f32.mrb[0].mxu0
  %v551 = vpop.f32.mrb[0].mxu0
  %v552 = vadd.f32 %v128, %v551
  %v553 = vpop.f32.mrb[0].mxu0
  %554 = vmatprep.mubr.bf16.mxu0 %v247
  %555 = vmatmul.mubr.bf16.gmra.mrb[0].mxu0 %v246
  %v556 = vpop.f32.mrb[0].mxu0
  %v557 = vadd.f32 %v128, %v556
  %v558 = vpop.f32.mrb[0].mxu0
  %v559 = vpop.f32.mrb[0].mxu0
  %v560 = vadd.f32 %v128, %v559
  %v561 = vpop.f32.mrb[0].mxu0
  %562 = vmatprep.mubr.bf16.mxu0 %v251
  %563 = vmatmul.mubr.bf16.gmra.mrb[0].mxu0 %v250
  %v564 = vpop.f32.mrb[0].mxu0
  %v565 = vadd.f32 %v128, %v564
  %v566 = vpop.f32.mrb[0].mxu0
  %v567 = vpop.f32.mrb[0].mxu0
  %v568 = vadd.f32 %v128, %v567
  %v569 = vpop.f32.mrb[0].mxu0
  %570 = vmatprep.mubr.bf16.mxu0 %v255
  %571 = vmatmul.mubr.bf16.gmra.mrb[0].mxu0 %v254
  %v572 = vpop.f32.mrb[0].mxu0
  %v573 = vadd.f32 %v128, %v572
  %v574 = vpop.f32.mrb[0].mxu0
  %v575 = vpop.f32.mrb[0].mxu0
  %v576 = vadd.f32 %v128, %v575
  %v577 = vpop.f32.mrb[0].mxu0
  %578 = vdwg.mxu0
  %579 = vmatprep.subr.bf16.mxu0 0
  %580 = vmatpush1.bf16.msra.mxu0 %v434
  %581 = vmatprep.subr.bf16.mxu0 0
  %582 = vmatpush1.bf16.msra.mxu0 %v435
  %583 = vmatprep.subr.bf16.mxu0 0
  %584 = vmatpush1.bf16.msra.mxu0 %v436
  %585 = vmatprep.subr.bf16.mxu0 0
  %586 = vmatpush1.bf16.msra.mxu0 %v437
  %587 = vmatprep.subr.bf16.mxu0 0
  %588 = vmatpush1.bf16.msra.mxu0 %v438
  %589 = vmatprep.subr.bf16.mxu0 0
  %590 = vmatpush1.bf16.msra.mxu0 %v439
  %591 = vmatprep.subr.bf16.mxu0 0
  %592 = vmatpush1.bf16.msra.mxu0 %v440
  %593 = vmatprep.subr.bf16.mxu0 0
  %594 = vmatpush1.bf16.msra.mxu0 %v441
  %595 = vmatprep.subr.bf16.mxu0 0
  %596 = vmatpush1.bf16.msra.mxu0 %v442
  %597 = vmatprep.subr.bf16.mxu0 0
  %598 = vmatpush1.bf16.msra.mxu0 %v443
  %599 = vmatprep.subr.bf16.mxu0 0
  %600 = vmatpush1.bf16.msra.mxu0 %v444
  %601 = vmatprep.subr.bf16.mxu0 0
  %602 = vmatpush1.bf16.msra.mxu0 %v445
  %603 = vmatprep.subr.bf16.mxu0 0
  %604 = vmatpush1.bf16.msra.mxu0 %v446
  %605 = vmatprep.subr.bf16.mxu0 0
  %606 = vmatpush1.bf16.msra.mxu0 %v447
  %607 = vmatprep.subr.bf16.mxu0 0
  %608 = vmatpush1.bf16.msra.mxu0 %v448
  %609 = vmatprep.subr.bf16.mxu0 0
  %610 = vmatpush1.bf16.msra.mxu0 %v449
  %611 = vmatprep.mubr.bf16.mxu0 %v229
  %612 = vmatmul.mubr.bf16.gmra.mrb[0].mxu0 %v228
  %v613 = vpop.f32.mrb[0].mxu0
  %v614 = vadd.f32 %v517, %v613
  %v615 = vpop.f32.mrb[0].mxu0
  %v616 = vpop.f32.mrb[0].mxu0
  %v617 = vadd.f32 %v520, %v616
  %v618 = vpop.f32.mrb[0].mxu0
  %619 = vmatprep.mubr.bf16.mxu0 %v233
  %620 = vmatmul.mubr.bf16.gmra.mrb[0].mxu0 %v232
  %v621 = vpop.f32.mrb[0].mxu0
  %v622 = vadd.f32 %v525, %v621
  %v623 = vpop.f32.mrb[0].mxu0
  %v624 = vpop.f32.mrb[0].mxu0
  %v625 = vadd.f32 %v528, %v624
  %v626 = vpop.f32.mrb[0].mxu0
  %627 = vmatprep.mubr.bf16.mxu0 %v237
  %628 = vmatmul.mubr.bf16.gmra.mrb[0].mxu0 %v236
  %v629 = vpop.f32.mrb[0].mxu0
  %v630 = vadd.f32 %v533, %v629
  %v631 = vpop.f32.mrb[0].mxu0
  %v632 = vpop.f32.mrb[0].mxu0
  %v633 = vadd.f32 %v536, %v632
  %v634 = vpop.f32.mrb[0].mxu0
  %635 = vmatprep.mubr.bf16.mxu0 %v241
  %636 = vmatmul.mubr.bf16.gmra.mrb[0].mxu0 %v240
  %v637 = vpop.f32.mrb[0].mxu0
  %v638 = vadd.f32 %v541, %v637
  %v639 = vpop.f32.mrb[0].mxu0
  %v640 = vpop.f32.mrb[0].mxu0
  %v641 = vadd.f32 %v544, %v640
  %v642 = vpop.f32.mrb[0].mxu0
  %643 = vmatprep.mubr.bf16.mxu0 %v245
  %644 = vmatmul.mubr.bf16.gmra.mrb[0].mxu0 %v244
  %v645 = vpop.f32.mrb[0].mxu0
  %v646 = vadd.f32 %v549, %v645
  %v647 = vpop.f32.mrb[0].mxu0
  %v648 = vpop.f32.mrb[0].mxu0
  %v649 = vadd.f32 %v552, %v648
  %v650 = vpop.f32.mrb[0].mxu0
  %651 = vmatprep.mubr.bf16.mxu0 %v249
  %652 = vmatmul.mubr.bf16.gmra.mrb[0].mxu0 %v248
  %v653 = vpop.f32.mrb[0].mxu0
  %v654 = vadd.f32 %v557, %v653
  %v655 = vpop.f32.mrb[0].mxu0
  %v656 = vpop.f32.mrb[0].mxu0
  %v657 = vadd.f32 %v560, %v656
  %v658 = vpop.f32.mrb[0].mxu0
  %659 = vmatprep.mubr.bf16.mxu0 %v253
  %660 = vmatmul.mubr.bf16.gmra.mrb[0].mxu0 %v252
  %v661 = vpop.f32.mrb[0].mxu0
  %v662 = vadd.f32 %v565, %v661
  %v663 = vpop.f32.mrb[0].mxu0
  %v664 = vpop.f32.mrb[0].mxu0
  %v665 = vadd.f32 %v568, %v664
  %v666 = vpop.f32.mrb[0].mxu0
  %667 = vmatprep.mubr.bf16.mxu0 %v257
  %668 = vmatmul.mubr.bf16.gmra.mrb[0].mxu0 %v256
  %v669 = vpop.f32.mrb[0].mxu0
  %v670 = vadd.f32 %v573, %v669
  %v671 = vpop.f32.mrb[0].mxu0
  %v672 = vpop.f32.mrb[0].mxu0
  %v673 = vadd.f32 %v576, %v672
  %v674 = vpop.f32.mrb[0].mxu0
  %675 = vdwg.mxu0
  %676 = vst [vmem:[#allocation2] sm:$0xff] 0.0
  %677 = vst [vmem:[#allocation2 + $0x8] sm:$0xff] 0.0
  %678 = vst [vmem:[#allocation2 + $0x90] sm:$0xff] 0.0
  %679 = vst [vmem:[#allocation2 + $0x98] sm:$0xff] 0.0
  %v680 = vlaneseq
  %v681 = vshrl.u32 %v680, 7
  %v682 = vadd.s32 %v681, 8
  %v683 = vadd.s32 %v681, 16
  %v684 = vadd.s32 %v681, 24
  %v685 = vadd.s32 %v681, 32
  %v686 = vadd.s32 %v681, 40
  %v687 = vadd.s32 %v681, 48
  %v688 = vadd.s32 %v681, 56
  %v689 = vadd.s32 %v681, 64
  %v690 = vadd.s32 %v681, 72
  %v691 = vadd.s32 %v681, 80
  %v692 = vadd.s32 %v681, 88
  %v693 = vadd.s32 %v681, 96
  %v694 = vadd.s32 %v681, 104
  %v695 = vadd.s32 %v681, 112
  %v696 = vadd.s32 %v681, 120
  %v697 = vcvt.s32.f32 %v681
  %v698 = vcvt.s32.f32 %v682
  %v699 = vcvt.s32.f32 %v683
  %v700 = vcvt.s32.f32 %v684
  %v701 = vcvt.s32.f32 %v685
  %v702 = vcvt.s32.f32 %v686
  %v703 = vcvt.s32.f32 %v687
  %v704 = vcvt.s32.f32 %v688
  %v705 = vcvt.s32.f32 %v689
  %v706 = vcvt.s32.f32 %v690
  %v707 = vcvt.s32.f32 %v691
  %v708 = vcvt.s32.f32 %v692
  %v709 = vcvt.s32.f32 %v693
  %v710 = vcvt.s32.f32 %v694
  %v711 = vcvt.s32.f32 %v695
  %v712 = vcvt.s32.f32 %v696
  %v713 = vadd.f32 %v697, 0.5
  %v714 = vadd.f32 %v698, 0.5
  %v715 = vadd.f32 %v699, 0.5
  %v716 = vadd.f32 %v700, 0.5
  %v717 = vadd.f32 %v701, 0.5
  %v718 = vadd.f32 %v702, 0.5
  %v719 = vadd.f32 %v703, 0.5
  %v720 = vadd.f32 %v704, 0.5
  %v721 = vadd.f32 %v705, 0.5
  %v722 = vadd.f32 %v706, 0.5
  %v723 = vadd.f32 %v707, 0.5
  %v724 = vadd.f32 %v708, 0.5
  %v725 = vadd.f32 %v709, 0.5
  %v726 = vadd.f32 %v710, 0.5
  %v727 = vadd.f32 %v711, 0.5
  %v728 = vadd.f32 %v712, 0.5
  %v729 = vmul.f32 %v713, 0.015625
  %v730 = vmul.f32 %v714, 0.015625
  %v731 = vmul.f32 %v715, 0.015625
  %v732 = vmul.f32 %v716, 0.015625
  %v733 = vmul.f32 %v717, 0.015625
  %v734 = vmul.f32 %v718, 0.015625
  %v735 = vmul.f32 %v719, 0.015625
  %v736 = vmul.f32 %v720, 0.015625
  %v737 = vmul.f32 %v721, 0.015625
  %v738 = vmul.f32 %v722, 0.015625
  %v739 = vmul.f32 %v723, 0.015625
  %v740 = vmul.f32 %v724, 0.015625
  %v741 = vmul.f32 %v725, 0.015625
  %v742 = vmul.f32 %v726, 0.015625
  %v743 = vmul.f32 %v727, 0.015625
  %v744 = vmul.f32 %v728, 0.015625
  %v745 = vfloor.f32 %v729
  %v746 = vfloor.f32 %v730
  %v747 = vfloor.f32 %v731
  %v748 = vfloor.f32 %v732
  %v749 = vfloor.f32 %v733
  %v750 = vfloor.f32 %v734
  %v751 = vfloor.f32 %v735
  %v752 = vfloor.f32 %v736
  %v753 = vfloor.f32 %v737
  %v754 = vfloor.f32 %v738
  %v755 = vfloor.f32 %v739
  %v756 = vfloor.f32 %v740
  %v757 = vfloor.f32 %v741
  %v758 = vfloor.f32 %v742
  %v759 = vfloor.f32 %v743
  %v760 = vfloor.f32 %v744
  %v761 = vmul.f32 %v745, 64.0
  %v762 = vmul.f32 %v746, 64.0
  %v763 = vmul.f32 %v747, 64.0
  %v764 = vmul.f32 %v748, 64.0
  %v765 = vmul.f32 %v749, 64.0
  %v766 = vmul.f32 %v750, 64.0
  %v767 = vmul.f32 %v751, 64.0
  %v768 = vmul.f32 %v752, 64.0
  %v769 = vmul.f32 %v753, 64.0
  %v770 = vmul.f32 %v754, 64.0
  %v771 = vmul.f32 %v755, 64.0
  %v772 = vmul.f32 %v756, 64.0
  %v773 = vmul.f32 %v757, 64.0
  %v774 = vmul.f32 %v758, 64.0
  %v775 = vmul.f32 %v759, 64.0
  %v776 = vmul.f32 %v760, 64.0
  %v777 = vsub.f32 %v697, %v761
  %v778 = vsub.f32 %v698, %v762
  %v779 = vsub.f32 %v699, %v763
  %v780 = vsub.f32 %v700, %v764
  %v781 = vsub.f32 %v701, %v765
  %v782 = vsub.f32 %v702, %v766
  %v783 = vsub.f32 %v703, %v767
  %v784 = vsub.f32 %v704, %v768
  %v785 = vsub.f32 %v705, %v769
  %v786 = vsub.f32 %v706, %v770
  %v787 = vsub.f32 %v707, %v771
  %v788 = vsub.f32 %v708, %v772
  %v789 = vsub.f32 %v709, %v773
  %v790 = vsub.f32 %v710, %v774
  %v791 = vsub.f32 %v711, %v775
  %v792 = vsub.f32 %v712, %v776
  %v793 = vadd.f32 %v777, 0.5
  %v794 = vadd.f32 %v778, 0.5
  %v795 = vadd.f32 %v779, 0.5
  %v796 = vadd.f32 %v780, 0.5
  %v797 = vadd.f32 %v781, 0.5
  %v798 = vadd.f32 %v782, 0.5
  %v799 = vadd.f32 %v783, 0.5
  %v800 = vadd.f32 %v784, 0.5
  %v801 = vadd.f32 %v785, 0.5
  %v802 = vadd.f32 %v786, 0.5
  %v803 = vadd.f32 %v787, 0.5
  %v804 = vadd.f32 %v788, 0.5
  %v805 = vadd.f32 %v789, 0.5
  %v806 = vadd.f32 %v790, 0.5
  %v807 = vadd.f32 %v791, 0.5
  %v808 = vadd.f32 %v792, 0.5
  %v809 = vmul.f32 %v793, 0.125
  %v810 = vmul.f32 %v794, 0.125
  %v811 = vmul.f32 %v795, 0.125
  %v812 = vmul.f32 %v796, 0.125
  %v813 = vmul.f32 %v797, 0.125
  %v814 = vmul.f32 %v798, 0.125
  %v815 = vmul.f32 %v799, 0.125
  %v816 = vmul.f32 %v800, 0.125
  %v817 = vmul.f32 %v801, 0.125
  %v818 = vmul.f32 %v802, 0.125
  %v819 = vmul.f32 %v803, 0.125
  %v820 = vmul.f32 %v804, 0.125
  %v821 = vmul.f32 %v805, 0.125
  %v822 = vmul.f32 %v806, 0.125
  %v823 = vmul.f32 %v807, 0.125
  %v824 = vmul.f32 %v808, 0.125
  %v825 = vfloor.f32 %v809
  %v826 = vfloor.f32 %v810
  %v827 = vfloor.f32 %v811
  %v828 = vfloor.f32 %v812
  %v829 = vfloor.f32 %v813
  %v830 = vfloor.f32 %v814
  %v831 = vfloor.f32 %v815
  %v832 = vfloor.f32 %v816
  %v833 = vfloor.f32 %v817
  %v834 = vfloor.f32 %v818
  %v835 = vfloor.f32 %v819
  %v836 = vfloor.f32 %v820
  %v837 = vfloor.f32 %v821
  %v838 = vfloor.f32 %v822
  %v839 = vfloor.f32 %v823
  %v840 = vfloor.f32 %v824
  %v841 = vmul.f32 %v825, 8.0
  %v842 = vmul.f32 %v826, 8.0
  %v843 = vmul.f32 %v827, 8.0
  %v844 = vmul.f32 %v828, 8.0
  %v845 = vmul.f32 %v829, 8.0
  %v846 = vmul.f32 %v830, 8.0
  %v847 = vmul.f32 %v831, 8.0
  %v848 = vmul.f32 %v832, 8.0
  %v849 = vmul.f32 %v833, 8.0
  %v850 = vmul.f32 %v834, 8.0
  %v851 = vmul.f32 %v835, 8.0
  %v852 = vmul.f32 %v836, 8.0
  %v853 = vmul.f32 %v837, 8.0
  %v854 = vmul.f32 %v838, 8.0
  %v855 = vmul.f32 %v839, 8.0
  %v856 = vmul.f32 %v840, 8.0
  %v857 = vsub.f32 %v777, %v841
  %v858 = vsub.f32 %v778, %v842
  %v859 = vsub.f32 %v779, %v843
  %v860 = vsub.f32 %v780, %v844
  %v861 = vsub.f32 %v781, %v845
  %v862 = vsub.f32 %v782, %v846
  %v863 = vsub.f32 %v783, %v847
  %v864 = vsub.f32 %v784, %v848
  %v865 = vsub.f32 %v785, %v849
  %v866 = vsub.f32 %v786, %v850
  %v867 = vsub.f32 %v787, %v851
  %v868 = vsub.f32 %v788, %v852
  %v869 = vsub.f32 %v789, %v853
  %v870 = vsub.f32 %v790, %v854
  %v871 = vsub.f32 %v791, %v855
  %v872 = vsub.f32 %v792, %v856
  %v873 = vadd.f32 %v825, -1.0
  %v874 = vadd.f32 %v826, -1.0
  %v875 = vadd.f32 %v827, -1.0
  %v876 = vadd.f32 %v828, -1.0
  %v877 = vadd.f32 %v829, -1.0
  %v878 = vadd.f32 %v830, -1.0
  %v879 = vadd.f32 %v831, -1.0
  %v880 = vadd.f32 %v832, -1.0
  %v881 = vadd.f32 %v833, -1.0
  %v882 = vadd.f32 %v834, -1.0
  %v883 = vadd.f32 %v835, -1.0
  %v884 = vadd.f32 %v836, -1.0
  %v885 = vadd.f32 %v837, -1.0
  %v886 = vadd.f32 %v838, -1.0
  %v887 = vadd.f32 %v839, -1.0
  %v888 = vadd.f32 %v840, -1.0
  %vm889 = vcmp.ge.f32.partialorder %v873, 0.0
  %vm890 = vcmp.ge.f32.partialorder %v874, 0.0
  %vm891 = vcmp.ge.f32.partialorder %v875, 0.0
  %vm892 = vcmp.ge.f32.partialorder %v876, 0.0
  %vm893 = vcmp.ge.f32.partialorder %v877, 0.0
  %vm894 = vcmp.ge.f32.partialorder %v878, 0.0
  %vm895 = vcmp.ge.f32.partialorder %v879, 0.0
  %vm896 = vcmp.ge.f32.partialorder %v880, 0.0
  %vm897 = vcmp.ge.f32.partialorder %v881, 0.0
  %vm898 = vcmp.ge.f32.partialorder %v882, 0.0
  %vm899 = vcmp.ge.f32.partialorder %v883, 0.0
  %vm900 = vcmp.ge.f32.partialorder %v884, 0.0
  %vm901 = vcmp.ge.f32.partialorder %v885, 0.0
  %vm902 = vcmp.ge.f32.partialorder %v886, 0.0
  %vm903 = vcmp.ge.f32.partialorder %v887, 0.0
  %vm904 = vcmp.ge.f32.partialorder %v888, 0.0
  %vm905 = vcmp.le.f32.partialorder %v873, 7.0
  %vm906 = vcmp.le.f32.partialorder %v874, 7.0
  %vm907 = vcmp.le.f32.partialorder %v875, 7.0
  %vm908 = vcmp.le.f32.partialorder %v876, 7.0
  %vm909 = vcmp.le.f32.partialorder %v877, 7.0
  %vm910 = vcmp.le.f32.partialorder %v878, 7.0
  %vm911 = vcmp.le.f32.partialorder %v879, 7.0
  %vm912 = vcmp.le.f32.partialorder %v880, 7.0
  %vm913 = vcmp.le.f32.partialorder %v881, 7.0
  %vm914 = vcmp.le.f32.partialorder %v882, 7.0
  %vm915 = vcmp.le.f32.partialorder %v883, 7.0
  %vm916 = vcmp.le.f32.partialorder %v884, 7.0
  %vm917 = vcmp.le.f32.partialorder %v885, 7.0
  %vm918 = vcmp.le.f32.partialorder %v886, 7.0
  %vm919 = vcmp.le.f32.partialorder %v887, 7.0
  %vm920 = vcmp.le.f32.partialorder %v888, 7.0
  %vm921 = vmand %vm889, %vm905
  %vm922 = vmand %vm890, %vm906
  %vm923 = vmand %vm891, %vm907
  %vm924 = vmand %vm892, %vm908
  %vm925 = vmand %vm893, %vm909
  %vm926 = vmand %vm894, %vm910
  %vm927 = vmand %vm895, %vm911
  %vm928 = vmand %vm896, %vm912
  %vm929 = vmand %vm897, %vm913
  %vm930 = vmand %vm898, %vm914
  %vm931 = vmand %vm899, %vm915
  %vm932 = vmand %vm900, %vm916
  %vm933 = vmand %vm901, %vm917
  %vm934 = vmand %vm902, %vm918
  %vm935 = vmand %vm903, %vm919
  %vm936 = vmand %vm904, %vm920
  %v937 = vadd.f32 %v857, -1.0
  %v938 = vadd.f32 %v858, -1.0
  %v939 = vadd.f32 %v859, -1.0
  %v940 = vadd.f32 %v860, -1.0
  %v941 = vadd.f32 %v861, -1.0
  %v942 = vadd.f32 %v862, -1.0
  %v943 = vadd.f32 %v863, -1.0
  %v944 = vadd.f32 %v864, -1.0
  %v945 = vadd.f32 %v865, -1.0
  %v946 = vadd.f32 %v866, -1.0
  %v947 = vadd.f32 %v867, -1.0
  %v948 = vadd.f32 %v868, -1.0
  %v949 = vadd.f32 %v869, -1.0
  %v950 = vadd.f32 %v870, -1.0
  %v951 = vadd.f32 %v871, -1.0
  %v952 = vadd.f32 %v872, -1.0
  %vm953 = vcmp.ge.f32.partialorder %v937, 0.0
  %vm954 = vcmp.ge.f32.partialorder %v938, 0.0
  %vm955 = vcmp.ge.f32.partialorder %v939, 0.0
  %vm956 = vcmp.ge.f32.partialorder %v940, 0.0
  %vm957 = vcmp.ge.f32.partialorder %v941, 0.0
  %vm958 = vcmp.ge.f32.partialorder %v942, 0.0
  %vm959 = vcmp.ge.f32.partialorder %v943, 0.0
  %vm960 = vcmp.ge.f32.partialorder %v944, 0.0
  %vm961 = vcmp.ge.f32.partialorder %v945, 0.0
  %vm962 = vcmp.ge.f32.partialorder %v946, 0.0
  %vm963 = vcmp.ge.f32.partialorder %v947, 0.0
  %vm964 = vcmp.ge.f32.partialorder %v948, 0.0
  %vm965 = vcmp.ge.f32.partialorder %v949, 0.0
  %vm966 = vcmp.ge.f32.partialorder %v950, 0.0
  %vm967 = vcmp.ge.f32.partialorder %v951, 0.0
  %vm968 = vcmp.ge.f32.partialorder %v952, 0.0
  %vm969 = vmand %vm921, %vm953
  %vm970 = vmand %vm922, %vm954
  %vm971 = vmand %vm923, %vm955
  %vm972 = vmand %vm924, %vm956
  %vm973 = vmand %vm925, %vm957
  %vm974 = vmand %vm926, %vm958
  %vm975 = vmand %vm927, %vm959
  %vm976 = vmand %vm928, %vm960
  %vm977 = vmand %vm929, %vm961
  %vm978 = vmand %vm930, %vm962
  %vm979 = vmand %vm931, %vm963
  %vm980 = vmand %vm932, %vm964
  %vm981 = vmand %vm933, %vm965
  %vm982 = vmand %vm934, %vm966
  %vm983 = vmand %vm935, %vm967
  %vm984 = vmand %vm936, %vm968
  %vm985 = vcmp.le.f32.partialorder %v937, 7.0
  %vm986 = vcmp.le.f32.partialorder %v938, 7.0
  %vm987 = vcmp.le.f32.partialorder %v939, 7.0
  %vm988 = vcmp.le.f32.partialorder %v940, 7.0
  %vm989 = vcmp.le.f32.partialorder %v941, 7.0
  %vm990 = vcmp.le.f32.partialorder %v942, 7.0
  %vm991 = vcmp.le.f32.partialorder %v943, 7.0
  %vm992 = vcmp.le.f32.partialorder %v944, 7.0
  %vm993 = vcmp.le.f32.partialorder %v945, 7.0
  %vm994 = vcmp.le.f32.partialorder %v946, 7.0
  %vm995 = vcmp.le.f32.partialorder %v947, 7.0
  %vm996 = vcmp.le.f32.partialorder %v948, 7.0
  %vm997 = vcmp.le.f32.partialorder %v949, 7.0
  %vm998 = vcmp.le.f32.partialorder %v950, 7.0
  %vm999 = vcmp.le.f32.partialorder %v951, 7.0
  %vm1000 = vcmp.le.f32.partialorder %v952, 7.0
  %vm1001 = vmand %vm969, %vm985
  %vm1002 = vmand %vm970, %vm986
  %vm1003 = vmand %vm971, %vm987
  %vm1004 = vmand %vm972, %vm988
  %vm1005 = vmand %vm973, %vm989
  %vm1006 = vmand %vm974, %vm990
  %vm1007 = vmand %vm975, %vm991
  %vm1008 = vmand %vm976, %vm992
  %vm1009 = vmand %vm977, %vm993
  %vm1010 = vmand %vm978, %vm994
  %vm1011 = vmand %vm979, %vm995
  %vm1012 = vmand %vm980, %vm996
  %vm1013 = vmand %vm981, %vm997
  %vm1014 = vmand %vm982, %vm998
  %vm1015 = vmand %vm983, %vm999
  %vm1016 = vmand %vm984, %vm1000
  %v1017 = vadd.f32 %v857, 0.0
  %v1018 = vadd.f32 %v858, 0.0
  %v1019 = vadd.f32 %v859, 0.0
  %v1020 = vadd.f32 %v860, 0.0
  %v1021 = vadd.f32 %v861, 0.0
  %v1022 = vadd.f32 %v862, 0.0
  %v1023 = vadd.f32 %v863, 0.0
  %v1024 = vadd.f32 %v864, 0.0
  %v1025 = vadd.f32 %v865, 0.0
  %v1026 = vadd.f32 %v866, 0.0
  %v1027 = vadd.f32 %v867, 0.0
  %v1028 = vadd.f32 %v868, 0.0
  %v1029 = vadd.f32 %v869, 0.0
  %v1030 = vadd.f32 %v870, 0.0
  %v1031 = vadd.f32 %v871, 0.0
  %v1032 = vadd.f32 %v872, 0.0
  %vm1033 = vcmp.ge.f32.partialorder %v1017, 0.0
  %vm1034 = vcmp.ge.f32.partialorder %v1018, 0.0
  %vm1035 = vcmp.ge.f32.partialorder %v1019, 0.0
  %vm1036 = vcmp.ge.f32.partialorder %v1020, 0.0
  %vm1037 = vcmp.ge.f32.partialorder %v1021, 0.0
  %vm1038 = vcmp.ge.f32.partialorder %v1022, 0.0
  %vm1039 = vcmp.ge.f32.partialorder %v1023, 0.0
  %vm1040 = vcmp.ge.f32.partialorder %v1024, 0.0
  %vm1041 = vcmp.ge.f32.partialorder %v1025, 0.0
  %vm1042 = vcmp.ge.f32.partialorder %v1026, 0.0
  %vm1043 = vcmp.ge.f32.partialorder %v1027, 0.0
  %vm1044 = vcmp.ge.f32.partialorder %v1028, 0.0
  %vm1045 = vcmp.ge.f32.partialorder %v1029, 0.0
  %vm1046 = vcmp.ge.f32.partialorder %v1030, 0.0
  %vm1047 = vcmp.ge.f32.partialorder %v1031, 0.0
  %vm1048 = vcmp.ge.f32.partialorder %v1032, 0.0
  %vm1049 = vmand %vm921, %vm1033
  %vm1050 = vmand %vm922, %vm1034
  %vm1051 = vmand %vm923, %vm1035
  %vm1052 = vmand %vm924, %vm1036
  %vm1053 = vmand %vm925, %vm1037
  %vm1054 = vmand %vm926, %vm1038
  %vm1055 = vmand %vm927, %vm1039
  %vm1056 = vmand %vm928, %vm1040
  %vm1057 = vmand %vm929, %vm1041
  %vm1058 = vmand %vm930, %vm1042
  %vm1059 = vmand %vm931, %vm1043
  %vm1060 = vmand %vm932, %vm1044
  %vm1061 = vmand %vm933, %vm1045
  %vm1062 = vmand %vm934, %vm1046
  %vm1063 = vmand %vm935, %vm1047
  %vm1064 = vmand %vm936, %vm1048
  %vm1065 = vcmp.le.f32.partialorder %v1017, 7.0
  %vm1066 = vcmp.le.f32.partialorder %v1018, 7.0
  %vm1067 = vcmp.le.f32.partialorder %v1019, 7.0
  %vm1068 = vcmp.le.f32.partialorder %v1020, 7.0
  %vm1069 = vcmp.le.f32.partialorder %v1021, 7.0
  %vm1070 = vcmp.le.f32.partialorder %v1022, 7.0
  %vm1071 = vcmp.le.f32.partialorder %v1023, 7.0
  %vm1072 = vcmp.le.f32.partialorder %v1024, 7.0
  %vm1073 = vcmp.le.f32.partialorder %v1025, 7.0
  %vm1074 = vcmp.le.f32.partialorder %v1026, 7.0
  %vm1075 = vcmp.le.f32.partialorder %v1027, 7.0
  %vm1076 = vcmp.le.f32.partialorder %v1028, 7.0
  %vm1077 = vcmp.le.f32.partialorder %v1029, 7.0
  %vm1078 = vcmp.le.f32.partialorder %v1030, 7.0
  %vm1079 = vcmp.le.f32.partialorder %v1031, 7.0
  %vm1080 = vcmp.le.f32.partialorder %v1032, 7.0
  %vm1081 = vmand %vm1049, %vm1065
  %vm1082 = vmand %vm1050, %vm1066
  %vm1083 = vmand %vm1051, %vm1067
  %vm1084 = vmand %vm1052, %vm1068
  %vm1085 = vmand %vm1053, %vm1069
  %vm1086 = vmand %vm1054, %vm1070
  %vm1087 = vmand %vm1055, %vm1071
  %vm1088 = vmand %vm1056, %vm1072
  %vm1089 = vmand %vm1057, %vm1073
  %vm1090 = vmand %vm1058, %vm1074
  %vm1091 = vmand %vm1059, %vm1075
  %vm1092 = vmand %vm1060, %vm1076
  %vm1093 = vmand %vm1061, %vm1077
  %vm1094 = vmand %vm1062, %vm1078
  %vm1095 = vmand %vm1063, %vm1079
  %vm1096 = vmand %vm1064, %vm1080
  %v1097 = vadd.f32 %v857, 1.0
  %v1098 = vadd.f32 %v858, 1.0
  %v1099 = vadd.f32 %v859, 1.0
  %v1100 = vadd.f32 %v860, 1.0
  %v1101 = vadd.f32 %v861, 1.0
  %v1102 = vadd.f32 %v862, 1.0
  %v1103 = vadd.f32 %v863, 1.0
  %v1104 = vadd.f32 %v864, 1.0
  %v1105 = vadd.f32 %v865, 1.0
  %v1106 = vadd.f32 %v866, 1.0
  %v1107 = vadd.f32 %v867, 1.0
  %v1108 = vadd.f32 %v868, 1.0
  %v1109 = vadd.f32 %v869, 1.0
  %v1110 = vadd.f32 %v870, 1.0
  %v1111 = vadd.f32 %v871, 1.0
  %v1112 = vadd.f32 %v872, 1.0
  %vm1113 = vcmp.ge.f32.partialorder %v1097, 0.0
  %vm1114 = vcmp.ge.f32.partialorder %v1098, 0.0
  %vm1115 = vcmp.ge.f32.partialorder %v1099, 0.0
  %vm1116 = vcmp.ge.f32.partialorder %v1100, 0.0
  %vm1117 = vcmp.ge.f32.partialorder %v1101, 0.0
  %vm1118 = vcmp.ge.f32.partialorder %v1102, 0.0
  %vm1119 = vcmp.ge.f32.partialorder %v1103, 0.0
  %vm1120 = vcmp.ge.f32.partialorder %v1104, 0.0
  %vm1121 = vcmp.ge.f32.partialorder %v1105, 0.0
  %vm1122 = vcmp.ge.f32.partialorder %v1106, 0.0
  %vm1123 = vcmp.ge.f32.partialorder %v1107, 0.0
  %vm1124 = vcmp.ge.f32.partialorder %v1108, 0.0
  %vm1125 = vcmp.ge.f32.partialorder %v1109, 0.0
  %vm1126 = vcmp.ge.f32.partialorder %v1110, 0.0
  %vm1127 = vcmp.ge.f32.partialorder %v1111, 0.0
  %vm1128 = vcmp.ge.f32.partialorder %v1112, 0.0
  %vm1129 = vmand %vm921, %vm1113
  %vm1130 = vmand %vm922, %vm1114
  %vm1131 = vmand %vm923, %vm1115
  %vm1132 = vmand %vm924, %vm1116
  %vm1133 = vmand %vm925, %vm1117
  %vm1134 = vmand %vm926, %vm1118
  %vm1135 = vmand %vm927, %vm1119
  %vm1136 = vmand %vm928, %vm1120
  %vm1137 = vmand %vm929, %vm1121
  %vm1138 = vmand %vm930, %vm1122
  %vm1139 = vmand %vm931, %vm1123
  %vm1140 = vmand %vm932, %vm1124
  %vm1141 = vmand %vm933, %vm1125
  %vm1142 = vmand %vm934, %vm1126
  %vm1143 = vmand %vm935, %vm1127
  %vm1144 = vmand %vm936, %vm1128
  %vm1145 = vcmp.le.f32.partialorder %v1097, 7.0
  %vm1146 = vcmp.le.f32.partialorder %v1098, 7.0
  %vm1147 = vcmp.le.f32.partialorder %v1099, 7.0
  %vm1148 = vcmp.le.f32.partialorder %v1100, 7.0
  %vm1149 = vcmp.le.f32.partialorder %v1101, 7.0
  %vm1150 = vcmp.le.f32.partialorder %v1102, 7.0
  %vm1151 = vcmp.le.f32.partialorder %v1103, 7.0
  %vm1152 = vcmp.le.f32.partialorder %v1104, 7.0
  %vm1153 = vcmp.le.f32.partialorder %v1105, 7.0
  %vm1154 = vcmp.le.f32.partialorder %v1106, 7.0
  %vm1155 = vcmp.le.f32.partialorder %v1107, 7.0
  %vm1156 = vcmp.le.f32.partialorder %v1108, 7.0
  %vm1157 = vcmp.le.f32.partialorder %v1109, 7.0
  %vm1158 = vcmp.le.f32.partialorder %v1110, 7.0
  %vm1159 = vcmp.le.f32.partialorder %v1111, 7.0
  %vm1160 = vcmp.le.f32.partialorder %v1112, 7.0
  %vm1161 = vmand %vm1129, %vm1145
  %vm1162 = vmand %vm1130, %vm1146
  %vm1163 = vmand %vm1131, %vm1147
  %vm1164 = vmand %vm1132, %vm1148
  %vm1165 = vmand %vm1133, %vm1149
  %vm1166 = vmand %vm1134, %vm1150
  %vm1167 = vmand %vm1135, %vm1151
  %vm1168 = vmand %vm1136, %vm1152
  %vm1169 = vmand %vm1137, %vm1153
  %vm1170 = vmand %vm1138, %vm1154
  %vm1171 = vmand %vm1139, %vm1155
  %vm1172 = vmand %vm1140, %vm1156
  %vm1173 = vmand %vm1141, %vm1157
  %vm1174 = vmand %vm1142, %vm1158
  %vm1175 = vmand %vm1143, %vm1159
  %vm1176 = vmand %vm1144, %vm1160
  %v1177 = vadd.f32 %v825, 0.0
  %v1178 = vadd.f32 %v826, 0.0
  %v1179 = vadd.f32 %v827, 0.0
  %v1180 = vadd.f32 %v828, 0.0
  %v1181 = vadd.f32 %v829, 0.0
  %v1182 = vadd.f32 %v830, 0.0
  %v1183 = vadd.f32 %v831, 0.0
  %v1184 = vadd.f32 %v832, 0.0
  %v1185 = vadd.f32 %v833, 0.0
  %v1186 = vadd.f32 %v834, 0.0
  %v1187 = vadd.f32 %v835, 0.0
  %v1188 = vadd.f32 %v836, 0.0
  %v1189 = vadd.f32 %v837, 0.0
  %v1190 = vadd.f32 %v838, 0.0
  %v1191 = vadd.f32 %v839, 0.0
  %v1192 = vadd.f32 %v840, 0.0
  %vm1193 = vcmp.ge.f32.partialorder %v1177, 0.0
  %vm1194 = vcmp.ge.f32.partialorder %v1178, 0.0
  %vm1195 = vcmp.ge.f32.partialorder %v1179, 0.0
  %vm1196 = vcmp.ge.f32.partialorder %v1180, 0.0
  %vm1197 = vcmp.ge.f32.partialorder %v1181, 0.0
  %vm1198 = vcmp.ge.f32.partialorder %v1182, 0.0
  %vm1199 = vcmp.ge.f32.partialorder %v1183, 0.0
  %vm1200 = vcmp.ge.f32.partialorder %v1184, 0.0
  %vm1201 = vcmp.ge.f32.partialorder %v1185, 0.0
  %vm1202 = vcmp.ge.f32.partialorder %v1186, 0.0
  %vm1203 = vcmp.ge.f32.partialorder %v1187, 0.0
  %vm1204 = vcmp.ge.f32.partialorder %v1188, 0.0
  %vm1205 = vcmp.ge.f32.partialorder %v1189, 0.0
  %vm1206 = vcmp.ge.f32.partialorder %v1190, 0.0
  %vm1207 = vcmp.ge.f32.partialorder %v1191, 0.0
  %vm1208 = vcmp.ge.f32.partialorder %v1192, 0.0
  %vm1209 = vcmp.le.f32.partialorder %v1177, 7.0
  %vm1210 = vcmp.le.f32.partialorder %v1178, 7.0
  %vm1211 = vcmp.le.f32.partialorder %v1179, 7.0
  %vm1212 = vcmp.le.f32.partialorder %v1180, 7.0
  %vm1213 = vcmp.le.f32.partialorder %v1181, 7.0
  %vm1214 = vcmp.le.f32.partialorder %v1182, 7.0
  %vm1215 = vcmp.le.f32.partialorder %v1183, 7.0
  %vm1216 = vcmp.le.f32.partialorder %v1184, 7.0
  %vm1217 = vcmp.le.f32.partialorder %v1185, 7.0
  %vm1218 = vcmp.le.f32.partialorder %v1186, 7.0
  %vm1219 = vcmp.le.f32.partialorder %v1187, 7.0
  %vm1220 = vcmp.le.f32.partialorder %v1188, 7.0
  %vm1221 = vcmp.le.f32.partialorder %v1189, 7.0
  %vm1222 = vcmp.le.f32.partialorder %v1190, 7.0
  %vm1223 = vcmp.le.f32.partialorder %v1191, 7.0
  %vm1224 = vcmp.le.f32.partialorder %v1192, 7.0
  %vm1225 = vmand %vm1193, %vm1209
  %vm1226 = vmand %vm1194, %vm1210
  %vm1227 = vmand %vm1195, %vm1211
  %vm1228 = vmand %vm1196, %vm1212
  %vm1229 = vmand %vm1197, %vm1213
  %vm1230 = vmand %vm1198, %vm1214
  %vm1231 = vmand %vm1199, %vm1215
  %vm1232 = vmand %vm1200, %vm1216
  %vm1233 = vmand %vm1201, %vm1217
  %vm1234 = vmand %vm1202, %vm1218
  %vm1235 = vmand %vm1203, %vm1219
  %vm1236 = vmand %vm1204, %vm1220
  %vm1237 = vmand %vm1205, %vm1221
  %vm1238 = vmand %vm1206, %vm1222
  %vm1239 = vmand %vm1207, %vm1223
  %vm1240 = vmand %vm1208, %vm1224
  %vm1241 = vmand %vm1225, %vm953
  %vm1242 = vmand %vm1226, %vm954
  %vm1243 = vmand %vm1227, %vm955
  %vm1244 = vmand %vm1228, %vm956
  %vm1245 = vmand %vm1229, %vm957
  %vm1246 = vmand %vm1230, %vm958
  %vm1247 = vmand %vm1231, %vm959
  %vm1248 = vmand %vm1232, %vm960
  %vm1249 = vmand %vm1233, %vm961
  %vm1250 = vmand %vm1234, %vm962
  %vm1251 = vmand %vm1235, %vm963
  %vm1252 = vmand %vm1236, %vm964
  %vm1253 = vmand %vm1237, %vm965
  %vm1254 = vmand %vm1238, %vm966
  %vm1255 = vmand %vm1239, %vm967
  %vm1256 = vmand %vm1240, %vm968
  %vm1257 = vmand %vm1241, %vm985
  %vm1258 = vmand %vm1242, %vm986
  %vm1259 = vmand %vm1243, %vm987
  %vm1260 = vmand %vm1244, %vm988
  %vm1261 = vmand %vm1245, %vm989
  %vm1262 = vmand %vm1246, %vm990
  %vm1263 = vmand %vm1247, %vm991
  %vm1264 = vmand %vm1248, %vm992
  %vm1265 = vmand %vm1249, %vm993
  %vm1266 = vmand %vm1250, %vm994
  %vm1267 = vmand %vm1251, %vm995
  %vm1268 = vmand %vm1252, %vm996
  %vm1269 = vmand %vm1253, %vm997
  %vm1270 = vmand %vm1254, %vm998
  %vm1271 = vmand %vm1255, %vm999
  %vm1272 = vmand %vm1256, %vm1000
  %vm1273 = vmand %vm1225, %vm1113
  %vm1274 = vmand %vm1226, %vm1114
  %vm1275 = vmand %vm1227, %vm1115
  %vm1276 = vmand %vm1228, %vm1116
  %vm1277 = vmand %vm1229, %vm1117
  %vm1278 = vmand %vm1230, %vm1118
  %vm1279 = vmand %vm1231, %vm1119
  %vm1280 = vmand %vm1232, %vm1120
  %vm1281 = vmand %vm1233, %vm1121
  %vm1282 = vmand %vm1234, %vm1122
  %vm1283 = vmand %vm1235, %vm1123
  %vm1284 = vmand %vm1236, %vm1124
  %vm1285 = vmand %vm1237, %vm1125
  %vm1286 = vmand %vm1238, %vm1126
  %vm1287 = vmand %vm1239, %vm1127
  %vm1288 = vmand %vm1240, %vm1128
  %vm1289 = vmand %vm1273, %vm1145
  %vm1290 = vmand %vm1274, %vm1146
  %vm1291 = vmand %vm1275, %vm1147
  %vm1292 = vmand %vm1276, %vm1148
  %vm1293 = vmand %vm1277, %vm1149
  %vm1294 = vmand %vm1278, %vm1150
  %vm1295 = vmand %vm1279, %vm1151
  %vm1296 = vmand %vm1280, %vm1152
  %vm1297 = vmand %vm1281, %vm1153
  %vm1298 = vmand %vm1282, %vm1154
  %vm1299 = vmand %vm1283, %vm1155
  %vm1300 = vmand %vm1284, %vm1156
  %vm1301 = vmand %vm1285, %vm1157
  %vm1302 = vmand %vm1286, %vm1158
  %vm1303 = vmand %vm1287, %vm1159
  %vm1304 = vmand %vm1288, %vm1160
  %v1305 = vadd.f32 %v825, 1.0
  %v1306 = vadd.f32 %v826, 1.0
  %v1307 = vadd.f32 %v827, 1.0
  %v1308 = vadd.f32 %v828, 1.0
  %v1309 = vadd.f32 %v829, 1.0
  %v1310 = vadd.f32 %v830, 1.0
  %v1311 = vadd.f32 %v831, 1.0
  %v1312 = vadd.f32 %v832, 1.0
  %v1313 = vadd.f32 %v833, 1.0
  %v1314 = vadd.f32 %v834, 1.0
  %v1315 = vadd.f32 %v835, 1.0
  %v1316 = vadd.f32 %v836, 1.0
  %v1317 = vadd.f32 %v837, 1.0
  %v1318 = vadd.f32 %v838, 1.0
  %v1319 = vadd.f32 %v839, 1.0
  %v1320 = vadd.f32 %v840, 1.0
  %vm1321 = vcmp.ge.f32.partialorder %v1305, 0.0
  %vm1322 = vcmp.ge.f32.partialorder %v1306, 0.0
  %vm1323 = vcmp.ge.f32.partialorder %v1307, 0.0
  %vm1324 = vcmp.ge.f32.partialorder %v1308, 0.0
  %vm1325 = vcmp.ge.f32.partialorder %v1309, 0.0
  %vm1326 = vcmp.ge.f32.partialorder %v1310, 0.0
  %vm1327 = vcmp.ge.f32.partialorder %v1311, 0.0
  %vm1328 = vcmp.ge.f32.partialorder %v1312, 0.0
  %vm1329 = vcmp.ge.f32.partialorder %v1313, 0.0
  %vm1330 = vcmp.ge.f32.partialorder %v1314, 0.0
  %vm1331 = vcmp.ge.f32.partialorder %v1315, 0.0
  %vm1332 = vcmp.ge.f32.partialorder %v1316, 0.0
  %vm1333 = vcmp.ge.f32.partialorder %v1317, 0.0
  %vm1334 = vcmp.ge.f32.partialorder %v1318, 0.0
  %vm1335 = vcmp.ge.f32.partialorder %v1319, 0.0
  %vm1336 = vcmp.ge.f32.partialorder %v1320, 0.0
  %vm1337 = vcmp.le.f32.partialorder %v1305, 7.0
  %vm1338 = vcmp.le.f32.partialorder %v1306, 7.0
  %vm1339 = vcmp.le.f32.partialorder %v1307, 7.0
  %vm1340 = vcmp.le.f32.partialorder %v1308, 7.0
  %vm1341 = vcmp.le.f32.partialorder %v1309, 7.0
  %vm1342 = vcmp.le.f32.partialorder %v1310, 7.0
  %vm1343 = vcmp.le.f32.partialorder %v1311, 7.0
  %vm1344 = vcmp.le.f32.partialorder %v1312, 7.0
  %vm1345 = vcmp.le.f32.partialorder %v1313, 7.0
  %vm1346 = vcmp.le.f32.partialorder %v1314, 7.0
  %vm1347 = vcmp.le.f32.partialorder %v1315, 7.0
  %vm1348 = vcmp.le.f32.partialorder %v1316, 7.0
  %vm1349 = vcmp.le.f32.partialorder %v1317, 7.0
  %vm1350 = vcmp.le.f32.partialorder %v1318, 7.0
  %vm1351 = vcmp.le.f32.partialorder %v1319, 7.0
  %vm1352 = vcmp.le.f32.partialorder %v1320, 7.0
  %vm1353 = vmand %vm1321, %vm1337
  %vm1354 = vmand %vm1322, %vm1338
  %vm1355 = vmand %vm1323, %vm1339
  %vm1356 = vmand %vm1324, %vm1340
  %vm1357 = vmand %vm1325, %vm1341
  %vm1358 = vmand %vm1326, %vm1342
  %vm1359 = vmand %vm1327, %vm1343
  %vm1360 = vmand %vm1328, %vm1344
  %vm1361 = vmand %vm1329, %vm1345
  %vm1362 = vmand %vm1330, %vm1346
  %vm1363 = vmand %vm1331, %vm1347
  %vm1364 = vmand %vm1332, %vm1348
  %vm1365 = vmand %vm1333, %vm1349
  %vm1366 = vmand %vm1334, %vm1350
  %vm1367 = vmand %vm1335, %vm1351
  %vm1368 = vmand %vm1336, %vm1352
  %vm1369 = vmand %vm1353, %vm953
  %vm1370 = vmand %vm1354, %vm954
  %vm1371 = vmand %vm1355, %vm955
  %vm1372 = vmand %vm1356, %vm956
  %vm1373 = vmand %vm1357, %vm957
  %vm1374 = vmand %vm1358, %vm958
  %vm1375 = vmand %vm1359, %vm959
  %vm1376 = vmand %vm1360, %vm960
  %vm1377 = vmand %vm1361, %vm961
  %vm1378 = vmand %vm1362, %vm962
  %vm1379 = vmand %vm1363, %vm963
  %vm1380 = vmand %vm1364, %vm964
  %vm1381 = vmand %vm1365, %vm965
  %vm1382 = vmand %vm1366, %vm966
  %vm1383 = vmand %vm1367, %vm967
  %vm1384 = vmand %vm1368, %vm968
  %vm1385 = vmand %vm1369, %vm985
  %vm1386 = vmand %vm1370, %vm986
  %vm1387 = vmand %vm1371, %vm987
  %vm1388 = vmand %vm1372, %vm988
  %vm1389 = vmand %vm1373, %vm989
  %vm1390 = vmand %vm1374, %vm990
  %vm1391 = vmand %vm1375, %vm991
  %vm1392 = vmand %vm1376, %vm992
  %vm1393 = vmand %vm1377, %vm993
  %vm1394 = vmand %vm1378, %vm994
  %vm1395 = vmand %vm1379, %vm995
  %vm1396 = vmand %vm1380, %vm996
  %vm1397 = vmand %vm1381, %vm997
  %vm1398 = vmand %vm1382, %vm998
  %vm1399 = vmand %vm1383, %vm999
  %vm1400 = vmand %vm1384, %vm1000
  %vm1401 = vmand %vm1353, %vm1033
  %vm1402 = vmand %vm1354, %vm1034
  %vm1403 = vmand %vm1355, %vm1035
  %vm1404 = vmand %vm1356, %vm1036
  %vm1405 = vmand %vm1357, %vm1037
  %vm1406 = vmand %vm1358, %vm1038
  %vm1407 = vmand %vm1359, %vm1039
  %vm1408 = vmand %vm1360, %vm1040
  %vm1409 = vmand %vm1361, %vm1041
  %vm1410 = vmand %vm1362, %vm1042
  %vm1411 = vmand %vm1363, %vm1043
  %vm1412 = vmand %vm1364, %vm1044
  %vm1413 = vmand %vm1365, %vm1045
  %vm1414 = vmand %vm1366, %vm1046
  %vm1415 = vmand %vm1367, %vm1047
  %vm1416 = vmand %vm1368, %vm1048
  %vm1417 = vmand %vm1401, %vm1065
  %vm1418 = vmand %vm1402, %vm1066
  %vm1419 = vmand %vm1403, %vm1067
  %vm1420 = vmand %vm1404, %vm1068
  %vm1421 = vmand %vm1405, %vm1069
  %vm1422 = vmand %vm1406, %vm1070
  %vm1423 = vmand %vm1407, %vm1071
  %vm1424 = vmand %vm1408, %vm1072
  %vm1425 = vmand %vm1409, %vm1073
  %vm1426 = vmand %vm1410, %vm1074
  %vm1427 = vmand %vm1411, %vm1075
  %vm1428 = vmand %vm1412, %vm1076
  %vm1429 = vmand %vm1413, %vm1077
  %vm1430 = vmand %vm1414, %vm1078
  %vm1431 = vmand %vm1415, %vm1079
  %vm1432 = vmand %vm1416, %vm1080
  %vm1433 = vmand %vm1353, %vm1113
  %vm1434 = vmand %vm1354, %vm1114
  %vm1435 = vmand %vm1355, %vm1115
  %vm1436 = vmand %vm1356, %vm1116
  %vm1437 = vmand %vm1357, %vm1117
  %vm1438 = vmand %vm1358, %vm1118
  %vm1439 = vmand %vm1359, %vm1119
  %vm1440 = vmand %vm1360, %vm1120
  %vm1441 = vmand %vm1361, %vm1121
  %vm1442 = vmand %vm1362, %vm1122
  %vm1443 = vmand %vm1363, %vm1123
  %vm1444 = vmand %vm1364, %vm1124
  %vm1445 = vmand %vm1365, %vm1125
  %vm1446 = vmand %vm1366, %vm1126
  %vm1447 = vmand %vm1367, %vm1127
  %vm1448 = vmand %vm1368, %vm1128
  %vm1449 = vmand %vm1433, %vm1145
  %vm1450 = vmand %vm1434, %vm1146
  %vm1451 = vmand %vm1435, %vm1147
  %vm1452 = vmand %vm1436, %vm1148
  %vm1453 = vmand %vm1437, %vm1149
  %vm1454 = vmand %vm1438, %vm1150
  %vm1455 = vmand %vm1439, %vm1151
  %vm1456 = vmand %vm1440, %vm1152
  %vm1457 = vmand %vm1441, %vm1153
  %vm1458 = vmand %vm1442, %vm1154
  %vm1459 = vmand %vm1443, %vm1155
  %vm1460 = vmand %vm1444, %vm1156
  %vm1461 = vmand %vm1445, %vm1157
  %vm1462 = vmand %vm1446, %vm1158
  %vm1463 = vmand %vm1447, %vm1159
  %vm1464 = vmand %vm1448, %vm1160
  %1465 = vst [vmem:[#allocation2 + $0x10] sm:$0xff] %v614
  %1466 = vst [vmem:[#allocation2 + $0x18] sm:$0xff] %v617
  %1467 = vst [vmem:[#allocation2 + $0x20] sm:$0xff] %v622
  %1468 = vst [vmem:[#allocation2 + $0x28] sm:$0xff] %v625
  %1469 = vst [vmem:[#allocation2 + $0x30] sm:$0xff] %v630
  %1470 = vst [vmem:[#allocation2 + $0x38] sm:$0xff] %v633
  %1471 = vst [vmem:[#allocation2 + $0x40] sm:$0xff] %v638
  %1472 = vst [vmem:[#allocation2 + $0x48] sm:$0xff] %v641
  %1473 = vst [vmem:[#allocation2 + $0x50] sm:$0xff] %v646
  %1474 = vst [vmem:[#allocation2 + $0x58] sm:$0xff] %v649
  %1475 = vst [vmem:[#allocation2 + $0x60] sm:$0xff] %v654
  %1476 = vst [vmem:[#allocation2 + $0x68] sm:$0xff] %v657
  %1477 = vst [vmem:[#allocation2 + $0x70] sm:$0xff] %v662
  %1478 = vst [vmem:[#allocation2 + $0x78] sm:$0xff] %v665
  %1479 = vst [vmem:[#allocation2 + $0x80] sm:$0xff] %v670
  %1480 = vst [vmem:[#allocation2 + $0x88] sm:$0xff] %v673
  %v1481 = vld [vmem:[#allocation2 + $0x7] sm:$0xff]
  %v1482 = vld [vmem:[#allocation2 + $0xf] sm:$0xff]
  %v1483 = vld [vmem:[#allocation2 + $0x17] sm:$0xff]
  %v1484 = vld [vmem:[#allocation2 + $0x1f] sm:$0xff]
  %v1485 = vld [vmem:[#allocation2 + $0x27] sm:$0xff]
  %v1486 = vld [vmem:[#allocation2 + $0x2f] sm:$0xff]
  %v1487 = vld [vmem:[#allocation2 + $0x37] sm:$0xff]
  %v1488 = vld [vmem:[#allocation2 + $0x3f] sm:$0xff]
  %v1489 = vld [vmem:[#allocation2 + $0x47] sm:$0xff]
  %v1490 = vld [vmem:[#allocation2 + $0x4f] sm:$0xff]
  %v1491 = vld [vmem:[#allocation2 + $0x57] sm:$0xff]
  %v1492 = vld [vmem:[#allocation2 + $0x5f] sm:$0xff]
  %v1493 = vld [vmem:[#allocation2 + $0x67] sm:$0xff]
  %v1494 = vld [vmem:[#allocation2 + $0x6f] sm:$0xff]
  %v1495 = vld [vmem:[#allocation2 + $0x77] sm:$0xff]
  %v1496 = vld [vmem:[#allocation2 + $0x7f] sm:$0xff]
  %v1497 = vsel %vm1001, 1, 0
  %v1498 = vsel %vm1002, 1, 0
  %v1499 = vsel %vm1003, 1, 0
  %v1500 = vsel %vm1004, 1, 0
  %v1501 = vsel %vm1005, 1, 0
  %v1502 = vsel %vm1006, 1, 0
  %v1503 = vsel %vm1007, 1, 0
  %v1504 = vsel %vm1008, 1, 0
  %v1505 = vsel %vm1009, 1, 0
  %v1506 = vsel %vm1010, 1, 0
  %v1507 = vsel %vm1011, 1, 0
  %v1508 = vsel %vm1012, 1, 0
  %v1509 = vsel %vm1013, 1, 0
  %v1510 = vsel %vm1014, 1, 0
  %v1511 = vsel %vm1015, 1, 0
  %v1512 = vsel %vm1016, 1, 0
  %vm1513 = vcmp.eq.s32.totalorder %v1497, 1
  %vm1514 = vcmp.eq.s32.totalorder %v1498, 1
  %vm1515 = vcmp.eq.s32.totalorder %v1499, 1
  %vm1516 = vcmp.eq.s32.totalorder %v1500, 1
  %vm1517 = vcmp.eq.s32.totalorder %v1501, 1
  %vm1518 = vcmp.eq.s32.totalorder %v1502, 1
  %vm1519 = vcmp.eq.s32.totalorder %v1503, 1
  %vm1520 = vcmp.eq.s32.totalorder %v1504, 1
  %vm1521 = vcmp.eq.s32.totalorder %v1505, 1
  %vm1522 = vcmp.eq.s32.totalorder %v1506, 1
  %vm1523 = vcmp.eq.s32.totalorder %v1507, 1
  %vm1524 = vcmp.eq.s32.totalorder %v1508, 1
  %vm1525 = vcmp.eq.s32.totalorder %v1509, 1
  %vm1526 = vcmp.eq.s32.totalorder %v1510, 1
  %vm1527 = vcmp.eq.s32.totalorder %v1511, 1
  %vm1528 = vcmp.eq.s32.totalorder %v1512, 1
  %v1529 = vsel %vm1513, %v1481, 0.0
  %v1530 = vsel %vm1514, %v1482, 0.0
  %v1531 = vsel %vm1515, %v1483, 0.0
  %v1532 = vsel %vm1516, %v1484, 0.0
  %v1533 = vsel %vm1517, %v1485, 0.0
  %v1534 = vsel %vm1518, %v1486, 0.0
  %v1535 = vsel %vm1519, %v1487, 0.0
  %v1536 = vsel %vm1520, %v1488, 0.0
  %v1537 = vsel %vm1521, %v1489, 0.0
  %v1538 = vsel %vm1522, %v1490, 0.0
  %v1539 = vsel %vm1523, %v1491, 0.0
  %v1540 = vsel %vm1524, %v1492, 0.0
  %v1541 = vsel %vm1525, %v1493, 0.0
  %v1542 = vsel %vm1526, %v1494, 0.0
  %v1543 = vsel %vm1527, %v1495, 0.0
  %v1544 = vsel %vm1528, %v1496, 0.0
  %v1545 = vld [vmem:[#allocation2 + $0x8] sm:$0xff]
  %v1546 = vld [vmem:[#allocation2 + $0x10] sm:$0xff]
  %v1547 = vld [vmem:[#allocation2 + $0x18] sm:$0xff]
  %v1548 = vld [vmem:[#allocation2 + $0x20] sm:$0xff]
  %v1549 = vld [vmem:[#allocation2 + $0x28] sm:$0xff]
  %v1550 = vld [vmem:[#allocation2 + $0x30] sm:$0xff]
  %v1551 = vld [vmem:[#allocation2 + $0x38] sm:$0xff]
  %v1552 = vld [vmem:[#allocation2 + $0x40] sm:$0xff]
  %v1553 = vld [vmem:[#allocation2 + $0x48] sm:$0xff]
  %v1554 = vld [vmem:[#allocation2 + $0x50] sm:$0xff]
  %v1555 = vld [vmem:[#allocation2 + $0x58] sm:$0xff]
  %v1556 = vld [vmem:[#allocation2 + $0x60] sm:$0xff]
  %v1557 = vld [vmem:[#allocation2 + $0x68] sm:$0xff]
  %v1558 = vld [vmem:[#allocation2 + $0x70] sm:$0xff]
  %v1559 = vld [vmem:[#allocation2 + $0x78] sm:$0xff]
  %v1560 = vld [vmem:[#allocation2 + $0x80] sm:$0xff]
  %v1561 = vsel %vm1081, 1, 0
  %v1562 = vsel %vm1082, 1, 0
  %v1563 = vsel %vm1083, 1, 0
  %v1564 = vsel %vm1084, 1, 0
  %v1565 = vsel %vm1085, 1, 0
  %v1566 = vsel %vm1086, 1, 0
  %v1567 = vsel %vm1087, 1, 0
  %v1568 = vsel %vm1088, 1, 0
  %v1569 = vsel %vm1089, 1, 0
  %v1570 = vsel %vm1090, 1, 0
  %v1571 = vsel %vm1091, 1, 0
  %v1572 = vsel %vm1092, 1, 0
  %v1573 = vsel %vm1093, 1, 0
  %v1574 = vsel %vm1094, 1, 0
  %v1575 = vsel %vm1095, 1, 0
  %v1576 = vsel %vm1096, 1, 0
  %vm1577 = vcmp.eq.s32.totalorder %v1561, 1
  %vm1578 = vcmp.eq.s32.totalorder %v1562, 1
  %vm1579 = vcmp.eq.s32.totalorder %v1563, 1
  %vm1580 = vcmp.eq.s32.totalorder %v1564, 1
  %vm1581 = vcmp.eq.s32.totalorder %v1565, 1
  %vm1582 = vcmp.eq.s32.totalorder %v1566, 1
  %vm1583 = vcmp.eq.s32.totalorder %v1567, 1
  %vm1584 = vcmp.eq.s32.totalorder %v1568, 1
  %vm1585 = vcmp.eq.s32.totalorder %v1569, 1
  %vm1586 = vcmp.eq.s32.totalorder %v1570, 1
  %vm1587 = vcmp.eq.s32.totalorder %v1571, 1
  %vm1588 = vcmp.eq.s32.totalorder %v1572, 1
  %vm1589 = vcmp.eq.s32.totalorder %v1573, 1
  %vm1590 = vcmp.eq.s32.totalorder %v1574, 1
  %vm1591 = vcmp.eq.s32.totalorder %v1575, 1
  %vm1592 = vcmp.eq.s32.totalorder %v1576, 1
  %v1593 = vsel %vm1577, %v1545, 0.0
  %v1594 = vsel %vm1578, %v1546, 0.0
  %v1595 = vsel %vm1579, %v1547, 0.0
  %v1596 = vsel %vm1580, %v1548, 0.0
  %v1597 = vsel %vm1581, %v1549, 0.0
  %v1598 = vsel %vm1582, %v1550, 0.0
  %v1599 = vsel %vm1583, %v1551, 0.0
  %v1600 = vsel %vm1584, %v1552, 0.0
  %v1601 = vsel %vm1585, %v1553, 0.0
  %v1602 = vsel %vm1586, %v1554, 0.0
  %v1603 = vsel %vm1587, %v1555, 0.0
  %v1604 = vsel %vm1588, %v1556, 0.0
  %v1605 = vsel %vm1589, %v1557, 0.0
  %v1606 = vsel %vm1590, %v1558, 0.0
  %v1607 = vsel %vm1591, %v1559, 0.0
  %v1608 = vsel %vm1592, %v1560, 0.0
  %1609 = vrot.lane.b32.xlu0 %v1593, 8
  %v1610 = vpop.permute.xlu0 %1609
  %1611 = vrot.lane.b32.xlu0 %v1594, 8
  %v1612 = vpop.permute.xlu0 %1611
  %1613 = vrot.lane.b32.xlu0 %v1595, 8
  %v1614 = vpop.permute.xlu0 %1613
  %1615 = vrot.lane.b32.xlu0 %v1596, 8
  %v1616 = vpop.permute.xlu0 %1615
  %1617 = vrot.lane.b32.xlu0 %v1597, 8
  %v1618 = vpop.permute.xlu0 %1617
  %1619 = vrot.lane.b32.xlu0 %v1598, 8
  %v1620 = vpop.permute.xlu0 %1619
  %1621 = vrot.lane.b32.xlu0 %v1599, 8
  %v1622 = vpop.permute.xlu0 %1621
  %1623 = vrot.lane.b32.xlu0 %v1600, 8
  %v1624 = vpop.permute.xlu0 %1623
  %1625 = vrot.lane.b32.xlu0 %v1601, 8
  %v1626 = vpop.permute.xlu0 %1625
  %1627 = vrot.lane.b32.xlu0 %v1602, 8
  %v1628 = vpop.permute.xlu0 %1627
  %1629 = vrot.lane.b32.xlu0 %v1603, 8
  %v1630 = vpop.permute.xlu0 %1629
  %1631 = vrot.lane.b32.xlu0 %v1604, 8
  %v1632 = vpop.permute.xlu0 %1631
  %1633 = vrot.lane.b32.xlu0 %v1605, 8
  %v1634 = vpop.permute.xlu0 %1633
  %1635 = vrot.lane.b32.xlu0 %v1606, 8
  %v1636 = vpop.permute.xlu0 %1635
  %1637 = vrot.lane.b32.xlu0 %v1607, 8
  %v1638 = vpop.permute.xlu0 %1637
  %1639 = vrot.lane.b32.xlu0 %v1608, 8
  %v1640 = vpop.permute.xlu0 %1639
  %v1641 = vadd.f32 %v1529, %v1610
  %v1642 = vadd.f32 %v1530, %v1612
  %v1643 = vadd.f32 %v1531, %v1614
  %v1644 = vadd.f32 %v1532, %v1616
  %v1645 = vadd.f32 %v1533, %v1618
  %v1646 = vadd.f32 %v1534, %v1620
  %v1647 = vadd.f32 %v1535, %v1622
  %v1648 = vadd.f32 %v1536, %v1624
  %v1649 = vadd.f32 %v1537, %v1626
  %v1650 = vadd.f32 %v1538, %v1628
  %v1651 = vadd.f32 %v1539, %v1630
  %v1652 = vadd.f32 %v1540, %v1632
  %v1653 = vadd.f32 %v1541, %v1634
  %v1654 = vadd.f32 %v1542, %v1636
  %v1655 = vadd.f32 %v1543, %v1638
  %v1656 = vadd.f32 %v1544, %v1640
  %v1657 = vld [vmem:[#allocation2 + $0x9] sm:$0xff]
  %v1658 = vld [vmem:[#allocation2 + $0x11] sm:$0xff]
  %v1659 = vld [vmem:[#allocation2 + $0x19] sm:$0xff]
  %v1660 = vld [vmem:[#allocation2 + $0x21] sm:$0xff]
  %v1661 = vld [vmem:[#allocation2 + $0x29] sm:$0xff]
  %v1662 = vld [vmem:[#allocation2 + $0x31] sm:$0xff]
  %v1663 = vld [vmem:[#allocation2 + $0x39] sm:$0xff]
  %v1664 = vld [vmem:[#allocation2 + $0x41] sm:$0xff]
  %v1665 = vld [vmem:[#allocation2 + $0x49] sm:$0xff]
  %v1666 = vld [vmem:[#allocation2 + $0x51] sm:$0xff]
  %v1667 = vld [vmem:[#allocation2 + $0x59] sm:$0xff]
  %v1668 = vld [vmem:[#allocation2 + $0x61] sm:$0xff]
  %v1669 = vld [vmem:[#allocation2 + $0x69] sm:$0xff]
  %v1670 = vld [vmem:[#allocation2 + $0x71] sm:$0xff]
  %v1671 = vld [vmem:[#allocation2 + $0x79] sm:$0xff]
  %v1672 = vld [vmem:[#allocation2 + $0x81] sm:$0xff]
  %v1673 = vsel %vm1161, 1, 0
  %v1674 = vsel %vm1162, 1, 0
  %v1675 = vsel %vm1163, 1, 0
  %v1676 = vsel %vm1164, 1, 0
  %v1677 = vsel %vm1165, 1, 0
  %v1678 = vsel %vm1166, 1, 0
  %v1679 = vsel %vm1167, 1, 0
  %v1680 = vsel %vm1168, 1, 0
  %v1681 = vsel %vm1169, 1, 0
  %v1682 = vsel %vm1170, 1, 0
  %v1683 = vsel %vm1171, 1, 0
  %v1684 = vsel %vm1172, 1, 0
  %v1685 = vsel %vm1173, 1, 0
  %v1686 = vsel %vm1174, 1, 0
  %v1687 = vsel %vm1175, 1, 0
  %v1688 = vsel %vm1176, 1, 0
  %vm1689 = vcmp.eq.s32.totalorder %v1673, 1
  %vm1690 = vcmp.eq.s32.totalorder %v1674, 1
  %vm1691 = vcmp.eq.s32.totalorder %v1675, 1
  %vm1692 = vcmp.eq.s32.totalorder %v1676, 1
  %vm1693 = vcmp.eq.s32.totalorder %v1677, 1
  %vm1694 = vcmp.eq.s32.totalorder %v1678, 1
  %vm1695 = vcmp.eq.s32.totalorder %v1679, 1
  %vm1696 = vcmp.eq.s32.totalorder %v1680, 1
  %vm1697 = vcmp.eq.s32.totalorder %v1681, 1
  %vm1698 = vcmp.eq.s32.totalorder %v1682, 1
  %vm1699 = vcmp.eq.s32.totalorder %v1683, 1
  %vm1700 = vcmp.eq.s32.totalorder %v1684, 1
  %vm1701 = vcmp.eq.s32.totalorder %v1685, 1
  %vm1702 = vcmp.eq.s32.totalorder %v1686, 1
  %vm1703 = vcmp.eq.s32.totalorder %v1687, 1
  %vm1704 = vcmp.eq.s32.totalorder %v1688, 1
  %v1705 = vsel %vm1689, %v1657, 0.0
  %v1706 = vsel %vm1690, %v1658, 0.0
  %v1707 = vsel %vm1691, %v1659, 0.0
  %v1708 = vsel %vm1692, %v1660, 0.0
  %v1709 = vsel %vm1693, %v1661, 0.0
  %v1710 = vsel %vm1694, %v1662, 0.0
  %v1711 = vsel %vm1695, %v1663, 0.0
  %v1712 = vsel %vm1696, %v1664, 0.0
  %v1713 = vsel %vm1697, %v1665, 0.0
  %v1714 = vsel %vm1698, %v1666, 0.0
  %v1715 = vsel %vm1699, %v1667, 0.0
  %v1716 = vsel %vm1700, %v1668, 0.0
  %v1717 = vsel %vm1701, %v1669, 0.0
  %v1718 = vsel %vm1702, %v1670, 0.0
  %v1719 = vsel %vm1703, %v1671, 0.0
  %v1720 = vsel %vm1704, %v1672, 0.0
  %1721 = vrot.lane.b32.xlu0 %v1705, 16
  %v1722 = vpop.permute.xlu0 %1721
  %1723 = vrot.lane.b32.xlu0 %v1706, 16
  %v1724 = vpop.permute.xlu0 %1723
  %1725 = vrot.lane.b32.xlu0 %v1707, 16
  %v1726 = vpop.permute.xlu0 %1725
  %1727 = vrot.lane.b32.xlu0 %v1708, 16
  %v1728 = vpop.permute.xlu0 %1727
  %1729 = vrot.lane.b32.xlu0 %v1709, 16
  %v1730 = vpop.permute.xlu0 %1729
  %1731 = vrot.lane.b32.xlu0 %v1710, 16
  %v1732 = vpop.permute.xlu0 %1731
  %1733 = vrot.lane.b32.xlu0 %v1711, 16
  %v1734 = vpop.permute.xlu0 %1733
  %1735 = vrot.lane.b32.xlu0 %v1712, 16
  %v1736 = vpop.permute.xlu0 %1735
  %1737 = vrot.lane.b32.xlu0 %v1713, 16
  %v1738 = vpop.permute.xlu0 %1737
  %1739 = vrot.lane.b32.xlu0 %v1714, 16
  %v1740 = vpop.permute.xlu0 %1739
  %1741 = vrot.lane.b32.xlu0 %v1715, 16
  %v1742 = vpop.permute.xlu0 %1741
  %1743 = vrot.lane.b32.xlu0 %v1716, 16
  %v1744 = vpop.permute.xlu0 %1743
  %1745 = vrot.lane.b32.xlu0 %v1717, 16
  %v1746 = vpop.permute.xlu0 %1745
  %1747 = vrot.lane.b32.xlu0 %v1718, 16
  %v1748 = vpop.permute.xlu0 %1747
  %1749 = vrot.lane.b32.xlu0 %v1719, 16
  %v1750 = vpop.permute.xlu0 %1749
  %1751 = vrot.lane.b32.xlu0 %v1720, 16
  %v1752 = vpop.permute.xlu0 %1751
  %v1753 = vadd.f32 %v1641, %v1722
  %v1754 = vadd.f32 %v1642, %v1724
  %v1755 = vadd.f32 %v1643, %v1726
  %v1756 = vadd.f32 %v1644, %v1728
  %v1757 = vadd.f32 %v1645, %v1730
  %v1758 = vadd.f32 %v1646, %v1732
  %v1759 = vadd.f32 %v1647, %v1734
  %v1760 = vadd.f32 %v1648, %v1736
  %v1761 = vadd.f32 %v1649, %v1738
  %v1762 = vadd.f32 %v1650, %v1740
  %v1763 = vadd.f32 %v1651, %v1742
  %v1764 = vadd.f32 %v1652, %v1744
  %v1765 = vadd.f32 %v1653, %v1746
  %v1766 = vadd.f32 %v1654, %v1748
  %v1767 = vadd.f32 %v1655, %v1750
  %v1768 = vadd.f32 %v1656, %v1752
  %v1769 = vld [vmem:[#allocation2 + $0x87] sm:$0xff]
  %v1770 = vsel %vm1257, 1, 0
  %v1771 = vsel %vm1258, 1, 0
  %v1772 = vsel %vm1259, 1, 0
  %v1773 = vsel %vm1260, 1, 0
  %v1774 = vsel %vm1261, 1, 0
  %v1775 = vsel %vm1262, 1, 0
  %v1776 = vsel %vm1263, 1, 0
  %v1777 = vsel %vm1264, 1, 0
  %v1778 = vsel %vm1265, 1, 0
  %v1779 = vsel %vm1266, 1, 0
  %v1780 = vsel %vm1267, 1, 0
  %v1781 = vsel %vm1268, 1, 0
  %v1782 = vsel %vm1269, 1, 0
  %v1783 = vsel %vm1270, 1, 0
  %v1784 = vsel %vm1271, 1, 0
  %v1785 = vsel %vm1272, 1, 0
  %vm1786 = vcmp.eq.s32.totalorder %v1770, 1
  %vm1787 = vcmp.eq.s32.totalorder %v1771, 1
  %vm1788 = vcmp.eq.s32.totalorder %v1772, 1
  %vm1789 = vcmp.eq.s32.totalorder %v1773, 1
  %vm1790 = vcmp.eq.s32.totalorder %v1774, 1
  %vm1791 = vcmp.eq.s32.totalorder %v1775, 1
  %vm1792 = vcmp.eq.s32.totalorder %v1776, 1
  %vm1793 = vcmp.eq.s32.totalorder %v1777, 1
  %vm1794 = vcmp.eq.s32.totalorder %v1778, 1
  %vm1795 = vcmp.eq.s32.totalorder %v1779, 1
  %vm1796 = vcmp.eq.s32.totalorder %v1780, 1
  %vm1797 = vcmp.eq.s32.totalorder %v1781, 1
  %vm1798 = vcmp.eq.s32.totalorder %v1782, 1
  %vm1799 = vcmp.eq.s32.totalorder %v1783, 1
  %vm1800 = vcmp.eq.s32.totalorder %v1784, 1
  %vm1801 = vcmp.eq.s32.totalorder %v1785, 1
  %v1802 = vsel %vm1786, %v1482, 0.0
  %v1803 = vsel %vm1787, %v1483, 0.0
  %v1804 = vsel %vm1788, %v1484, 0.0
  %v1805 = vsel %vm1789, %v1485, 0.0
  %v1806 = vsel %vm1790, %v1486, 0.0
  %v1807 = vsel %vm1791, %v1487, 0.0
  %v1808 = vsel %vm1792, %v1488, 0.0
  %v1809 = vsel %vm1793, %v1489, 0.0
  %v1810 = vsel %vm1794, %v1490, 0.0
  %v1811 = vsel %vm1795, %v1491, 0.0
  %v1812 = vsel %vm1796, %v1492, 0.0
  %v1813 = vsel %vm1797, %v1493, 0.0
  %v1814 = vsel %vm1798, %v1494, 0.0
  %v1815 = vsel %vm1799, %v1495, 0.0
  %v1816 = vsel %vm1800, %v1496, 0.0
  %v1817 = vsel %vm1801, %v1769, 0.0
  %1818 = vrot.lane.b32.xlu0 %v1802, 24
  %v1819 = vpop.permute.xlu0 %1818
  %1820 = vrot.lane.b32.xlu0 %v1803, 24
  %v1821 = vpop.permute.xlu0 %1820
  %1822 = vrot.lane.b32.xlu0 %v1804, 24
  %v1823 = vpop.permute.xlu0 %1822
  %1824 = vrot.lane.b32.xlu0 %v1805, 24
  %v1825 = vpop.permute.xlu0 %1824
  %1826 = vrot.lane.b32.xlu0 %v1806, 24
  %v1827 = vpop.permute.xlu0 %1826
  %1828 = vrot.lane.b32.xlu0 %v1807, 24
  %v1829 = vpop.permute.xlu0 %1828
  %1830 = vrot.lane.b32.xlu0 %v1808, 24
  %v1831 = vpop.permute.xlu0 %1830
  %1832 = vrot.lane.b32.xlu0 %v1809, 24
  %v1833 = vpop.permute.xlu0 %1832
  %1834 = vrot.lane.b32.xlu0 %v1810, 24
  %v1835 = vpop.permute.xlu0 %1834
  %1836 = vrot.lane.b32.xlu0 %v1811, 24
  %v1837 = vpop.permute.xlu0 %1836
  %1838 = vrot.lane.b32.xlu0 %v1812, 24
  %v1839 = vpop.permute.xlu0 %1838
  %1840 = vrot.lane.b32.xlu0 %v1813, 24
  %v1841 = vpop.permute.xlu0 %1840
  %1842 = vrot.lane.b32.xlu0 %v1814, 24
  %v1843 = vpop.permute.xlu0 %1842
  %1844 = vrot.lane.b32.xlu0 %v1815, 24
  %v1845 = vpop.permute.xlu0 %1844
  %1846 = vrot.lane.b32.xlu0 %v1816, 24
  %v1847 = vpop.permute.xlu0 %1846
  %1848 = vrot.lane.b32.xlu0 %v1817, 24
  %v1849 = vpop.permute.xlu0 %1848
  %v1850 = vadd.f32 %v1753, %v1819
  %v1851 = vadd.f32 %v1754, %v1821
  %v1852 = vadd.f32 %v1755, %v1823
  %v1853 = vadd.f32 %v1756, %v1825
  %v1854 = vadd.f32 %v1757, %v1827
  %v1855 = vadd.f32 %v1758, %v1829
  %v1856 = vadd.f32 %v1759, %v1831
  %v1857 = vadd.f32 %v1760, %v1833
  %v1858 = vadd.f32 %v1761, %v1835
  %v1859 = vadd.f32 %v1762, %v1837
  %v1860 = vadd.f32 %v1763, %v1839
  %v1861 = vadd.f32 %v1764, %v1841
  %v1862 = vadd.f32 %v1765, %v1843
  %v1863 = vadd.f32 %v1766, %v1845
  %v1864 = vadd.f32 %v1767, %v1847
  %v1865 = vadd.f32 %v1768, %v1849
  %v1866 = vld [vmem:[#allocation2 + $0x88] sm:$0xff]
  %1867 = vrot.lane.b32.xlu0 %v1546, 32
  %v1868 = vpop.permute.xlu0 %1867
  %1869 = vrot.lane.b32.xlu0 %v1547, 32
  %v1870 = vpop.permute.xlu0 %1869
  %1871 = vrot.lane.b32.xlu0 %v1548, 32
  %v1872 = vpop.permute.xlu0 %1871
  %1873 = vrot.lane.b32.xlu0 %v1549, 32
  %v1874 = vpop.permute.xlu0 %1873
  %1875 = vrot.lane.b32.xlu0 %v1550, 32
  %v1876 = vpop.permute.xlu0 %1875
  %1877 = vrot.lane.b32.xlu0 %v1551, 32
  %v1878 = vpop.permute.xlu0 %1877
  %1879 = vrot.lane.b32.xlu0 %v1552, 32
  %v1880 = vpop.permute.xlu0 %1879
  %1881 = vrot.lane.b32.xlu0 %v1553, 32
  %v1882 = vpop.permute.xlu0 %1881
  %1883 = vrot.lane.b32.xlu0 %v1554, 32
  %v1884 = vpop.permute.xlu0 %1883
  %1885 = vrot.lane.b32.xlu0 %v1555, 32
  %v1886 = vpop.permute.xlu0 %1885
  %1887 = vrot.lane.b32.xlu0 %v1556, 32
  %v1888 = vpop.permute.xlu0 %1887
  %1889 = vrot.lane.b32.xlu0 %v1557, 32
  %v1890 = vpop.permute.xlu0 %1889
  %1891 = vrot.lane.b32.xlu0 %v1558, 32
  %v1892 = vpop.permute.xlu0 %1891
  %1893 = vrot.lane.b32.xlu0 %v1559, 32
  %v1894 = vpop.permute.xlu0 %1893
  %1895 = vrot.lane.b32.xlu0 %v1560, 32
  %v1896 = vpop.permute.xlu0 %1895
  %1897 = vrot.lane.b32.xlu0 %v1866, 32
  %v1898 = vpop.permute.xlu0 %1897
  %v1899 = vadd.f32 %v1850, %v1868
  %v1900 = vadd.f32 %v1851, %v1870
  %v1901 = vadd.f32 %v1852, %v1872
  %v1902 = vadd.f32 %v1853, %v1874
  %v1903 = vadd.f32 %v1854, %v1876
  %v1904 = vadd.f32 %v1855, %v1878
  %v1905 = vadd.f32 %v1856, %v1880
  %v1906 = vadd.f32 %v1857, %v1882
  %v1907 = vadd.f32 %v1858, %v1884
  %v1908 = vadd.f32 %v1859, %v1886
  %v1909 = vadd.f32 %v1860, %v1888
  %v1910 = vadd.f32 %v1861, %v1890
  %v1911 = vadd.f32 %v1862, %v1892
  %v1912 = vadd.f32 %v1863, %v1894
  %v1913 = vadd.f32 %v1864, %v1896
  %v1914 = vadd.f32 %v1865, %v1898
  %v1915 = vld [vmem:[#allocation2 + $0x89] sm:$0xff]
  %v1916 = vsel %vm1289, 1, 0
  %v1917 = vsel %vm1290, 1, 0
  %v1918 = vsel %vm1291, 1, 0
  %v1919 = vsel %vm1292, 1, 0
  %v1920 = vsel %vm1293, 1, 0
  %v1921 = vsel %vm1294, 1, 0
  %v1922 = vsel %vm1295, 1, 0
  %v1923 = vsel %vm1296, 1, 0
  %v1924 = vsel %vm1297, 1, 0
  %v1925 = vsel %vm1298, 1, 0
  %v1926 = vsel %vm1299, 1, 0
  %v1927 = vsel %vm1300, 1, 0
  %v1928 = vsel %vm1301, 1, 0
  %v1929 = vsel %vm1302, 1, 0
  %v1930 = vsel %vm1303, 1, 0
  %v1931 = vsel %vm1304, 1, 0
  %vm1932 = vcmp.eq.s32.totalorder %v1916, 1
  %vm1933 = vcmp.eq.s32.totalorder %v1917, 1
  %vm1934 = vcmp.eq.s32.totalorder %v1918, 1
  %vm1935 = vcmp.eq.s32.totalorder %v1919, 1
  %vm1936 = vcmp.eq.s32.totalorder %v1920, 1
  %vm1937 = vcmp.eq.s32.totalorder %v1921, 1
  %vm1938 = vcmp.eq.s32.totalorder %v1922, 1
  %vm1939 = vcmp.eq.s32.totalorder %v1923, 1
  %vm1940 = vcmp.eq.s32.totalorder %v1924, 1
  %vm1941 = vcmp.eq.s32.totalorder %v1925, 1
  %vm1942 = vcmp.eq.s32.totalorder %v1926, 1
  %vm1943 = vcmp.eq.s32.totalorder %v1927, 1
  %vm1944 = vcmp.eq.s32.totalorder %v1928, 1
  %vm1945 = vcmp.eq.s32.totalorder %v1929, 1
  %vm1946 = vcmp.eq.s32.totalorder %v1930, 1
  %vm1947 = vcmp.eq.s32.totalorder %v1931, 1
  %v1948 = vsel %vm1932, %v1658, 0.0
  %v1949 = vsel %vm1933, %v1659, 0.0
  %v1950 = vsel %vm1934, %v1660, 0.0
  %v1951 = vsel %vm1935, %v1661, 0.0
  %v1952 = vsel %vm1936, %v1662, 0.0
  %v1953 = vsel %vm1937, %v1663, 0.0
  %v1954 = vsel %vm1938, %v1664, 0.0
  %v1955 = vsel %vm1939, %v1665, 0.0
  %v1956 = vsel %vm1940, %v1666, 0.0
  %v1957 = vsel %vm1941, %v1667, 0.0
  %v1958 = vsel %vm1942, %v1668, 0.0
  %v1959 = vsel %vm1943, %v1669, 0.0
  %v1960 = vsel %vm1944, %v1670, 0.0
  %v1961 = vsel %vm1945, %v1671, 0.0
  %v1962 = vsel %vm1946, %v1672, 0.0
  %v1963 = vsel %vm1947, %v1915, 0.0
  %1964 = vrot.lane.b32.xlu0 %v1948, 40
  %v1965 = vpop.permute.xlu0 %1964
  %1966 = vrot.lane.b32.xlu0 %v1949, 40
  %v1967 = vpop.permute.xlu0 %1966
  %1968 = vrot.lane.b32.xlu0 %v1950, 40
  %v1969 = vpop.permute.xlu0 %1968
  %1970 = vrot.lane.b32.xlu0 %v1951, 40
  %v1971 = vpop.permute.xlu0 %1970
  %1972 = vrot.lane.b32.xlu0 %v1952, 40
  %v1973 = vpop.permute.xlu0 %1972
  %1974 = vrot.lane.b32.xlu0 %v1953, 40
  %v1975 = vpop.permute.xlu0 %1974
  %1976 = vrot.lane.b32.xlu0 %v1954, 40
  %v1977 = vpop.permute.xlu0 %1976
  %1978 = vrot.lane.b32.xlu0 %v1955, 40
  %v1979 = vpop.permute.xlu0 %1978
  %1980 = vrot.lane.b32.xlu0 %v1956, 40
  %v1981 = vpop.permute.xlu0 %1980
  %1982 = vrot.lane.b32.xlu0 %v1957, 40
  %v1983 = vpop.permute.xlu0 %1982
  %1984 = vrot.lane.b32.xlu0 %v1958, 40
  %v1985 = vpop.permute.xlu0 %1984
  %1986 = vrot.lane.b32.xlu0 %v1959, 40
  %v1987 = vpop.permute.xlu0 %1986
  %1988 = vrot.lane.b32.xlu0 %v1960, 40
  %v1989 = vpop.permute.xlu0 %1988
  %1990 = vrot.lane.b32.xlu0 %v1961, 40
  %v1991 = vpop.permute.xlu0 %1990
  %1992 = vrot.lane.b32.xlu0 %v1962, 40
  %v1993 = vpop.permute.xlu0 %1992
  %1994 = vrot.lane.b32.xlu0 %v1963, 40
  %v1995 = vpop.permute.xlu0 %1994
  %v1996 = vadd.f32 %v1899, %v1965
  %v1997 = vadd.f32 %v1900, %v1967
  %v1998 = vadd.f32 %v1901, %v1969
  %v1999 = vadd.f32 %v1902, %v1971
  %v2000 = vadd.f32 %v1903, %v1973
  %v2001 = vadd.f32 %v1904, %v1975
  %v2002 = vadd.f32 %v1905, %v1977
  %v2003 = vadd.f32 %v1906, %v1979
  %v2004 = vadd.f32 %v1907, %v1981
  %v2005 = vadd.f32 %v1908, %v1983
  %v2006 = vadd.f32 %v1909, %v1985
  %v2007 = vadd.f32 %v1910, %v1987
  %v2008 = vadd.f32 %v1911, %v1989
  %v2009 = vadd.f32 %v1912, %v1991
  %v2010 = vadd.f32 %v1913, %v1993
  %v2011 = vadd.f32 %v1914, %v1995
  %v2012 = vld [vmem:[#allocation2 + $0x8f] sm:$0xff]
  %v2013 = vsel %vm1385, 1, 0
  %v2014 = vsel %vm1386, 1, 0
  %v2015 = vsel %vm1387, 1, 0
  %v2016 = vsel %vm1388, 1, 0
  %v2017 = vsel %vm1389, 1, 0
  %v2018 = vsel %vm1390, 1, 0
  %v2019 = vsel %vm1391, 1, 0
  %v2020 = vsel %vm1392, 1, 0
  %v2021 = vsel %vm1393, 1, 0
  %v2022 = vsel %vm1394, 1, 0
  %v2023 = vsel %vm1395, 1, 0
  %v2024 = vsel %vm1396, 1, 0
  %v2025 = vsel %vm1397, 1, 0
  %v2026 = vsel %vm1398, 1, 0
  %v2027 = vsel %vm1399, 1, 0
  %v2028 = vsel %vm1400, 1, 0
  %vm2029 = vcmp.eq.s32.totalorder %v2013, 1
  %vm2030 = vcmp.eq.s32.totalorder %v2014, 1
  %vm2031 = vcmp.eq.s32.totalorder %v2015, 1
  %vm2032 = vcmp.eq.s32.totalorder %v2016, 1
  %vm2033 = vcmp.eq.s32.totalorder %v2017, 1
  %vm2034 = vcmp.eq.s32.totalorder %v2018, 1
  %vm2035 = vcmp.eq.s32.totalorder %v2019, 1
  %vm2036 = vcmp.eq.s32.totalorder %v2020, 1
  %vm2037 = vcmp.eq.s32.totalorder %v2021, 1
  %vm2038 = vcmp.eq.s32.totalorder %v2022, 1
  %vm2039 = vcmp.eq.s32.totalorder %v2023, 1
  %vm2040 = vcmp.eq.s32.totalorder %v2024, 1
  %vm2041 = vcmp.eq.s32.totalorder %v2025, 1
  %vm2042 = vcmp.eq.s32.totalorder %v2026, 1
  %vm2043 = vcmp.eq.s32.totalorder %v2027, 1
  %vm2044 = vcmp.eq.s32.totalorder %v2028, 1
  %v2045 = vsel %vm2029, %v1483, 0.0
  %v2046 = vsel %vm2030, %v1484, 0.0
  %v2047 = vsel %vm2031, %v1485, 0.0
  %v2048 = vsel %vm2032, %v1486, 0.0
  %v2049 = vsel %vm2033, %v1487, 0.0
  %v2050 = vsel %vm2034, %v1488, 0.0
  %v2051 = vsel %vm2035, %v1489, 0.0
  %v2052 = vsel %vm2036, %v1490, 0.0
  %v2053 = vsel %vm2037, %v1491, 0.0
  %v2054 = vsel %vm2038, %v1492, 0.0
  %v2055 = vsel %vm2039, %v1493, 0.0
  %v2056 = vsel %vm2040, %v1494, 0.0
  %v2057 = vsel %vm2041, %v1495, 0.0
  %v2058 = vsel %vm2042, %v1496, 0.0
  %v2059 = vsel %vm2043, %v1769, 0.0
  %v2060 = vsel %vm2044, %v2012, 0.0
  %2061 = vrot.lane.b32.xlu0 %v2045, 48
  %v2062 = vpop.permute.xlu0 %2061
  %2063 = vrot.lane.b32.xlu0 %v2046, 48
  %v2064 = vpop.permute.xlu0 %2063
  %2065 = vrot.lane.b32.xlu0 %v2047, 48
  %v2066 = vpop.permute.xlu0 %2065
  %2067 = vrot.lane.b32.xlu0 %v2048, 48
  %v2068 = vpop.permute.xlu0 %2067
  %2069 = vrot.lane.b32.xlu0 %v2049, 48
  %v2070 = vpop.permute.xlu0 %2069
  %2071 = vrot.lane.b32.xlu0 %v2050, 48
  %v2072 = vpop.permute.xlu0 %2071
  %2073 = vrot.lane.b32.xlu0 %v2051, 48
  %v2074 = vpop.permute.xlu0 %2073
  %2075 = vrot.lane.b32.xlu0 %v2052, 48
  %v2076 = vpop.permute.xlu0 %2075
  %2077 = vrot.lane.b32.xlu0 %v2053, 48
  %v2078 = vpop.permute.xlu0 %2077
  %2079 = vrot.lane.b32.xlu0 %v2054, 48
  %v2080 = vpop.permute.xlu0 %2079
  %2081 = vrot.lane.b32.xlu0 %v2055, 48
  %v2082 = vpop.permute.xlu0 %2081
  %2083 = vrot.lane.b32.xlu0 %v2056, 48
  %v2084 = vpop.permute.xlu0 %2083
  %2085 = vrot.lane.b32.xlu0 %v2057, 48
  %v2086 = vpop.permute.xlu0 %2085
  %2087 = vrot.lane.b32.xlu0 %v2058, 48
  %v2088 = vpop.permute.xlu0 %2087
  %2089 = vrot.lane.b32.xlu0 %v2059, 48
  %v2090 = vpop.permute.xlu0 %2089
  %2091 = vrot.lane.b32.xlu0 %v2060, 48
  %v2092 = vpop.permute.xlu0 %2091
  %v2093 = vadd.f32 %v1996, %v2062
  %v2094 = vadd.f32 %v1997, %v2064
  %v2095 = vadd.f32 %v1998, %v2066
  %v2096 = vadd.f32 %v1999, %v2068
  %v2097 = vadd.f32 %v2000, %v2070
  %v2098 = vadd.f32 %v2001, %v2072
  %v2099 = vadd.f32 %v2002, %v2074
  %v2100 = vadd.f32 %v2003, %v2076
  %v2101 = vadd.f32 %v2004, %v2078
  %v2102 = vadd.f32 %v2005, %v2080
  %v2103 = vadd.f32 %v2006, %v2082
  %v2104 = vadd.f32 %v2007, %v2084
  %v2105 = vadd.f32 %v2008, %v2086
  %v2106 = vadd.f32 %v2009, %v2088
  %v2107 = vadd.f32 %v2010, %v2090
  %v2108 = vadd.f32 %v2011, %v2092
  %v2109 = vld [vmem:[#allocation2 + $0x90] sm:$0xff]
  %v2110 = vsel %vm1417, 1, 0
  %v2111 = vsel %vm1418, 1, 0
  %v2112 = vsel %vm1419, 1, 0
  %v2113 = vsel %vm1420, 1, 0
  %v2114 = vsel %vm1421, 1, 0
  %v2115 = vsel %vm1422, 1, 0
  %v2116 = vsel %vm1423, 1, 0
  %v2117 = vsel %vm1424, 1, 0
  %v2118 = vsel %vm1425, 1, 0
  %v2119 = vsel %vm1426, 1, 0
  %v2120 = vsel %vm1427, 1, 0
  %v2121 = vsel %vm1428, 1, 0
  %v2122 = vsel %vm1429, 1, 0
  %v2123 = vsel %vm1430, 1, 0
  %v2124 = vsel %vm1431, 1, 0
  %v2125 = vsel %vm1432, 1, 0
  %vm2126 = vcmp.eq.s32.totalorder %v2110, 1
  %vm2127 = vcmp.eq.s32.totalorder %v2111, 1
  %vm2128 = vcmp.eq.s32.totalorder %v2112, 1
  %vm2129 = vcmp.eq.s32.totalorder %v2113, 1
  %vm2130 = vcmp.eq.s32.totalorder %v2114, 1
  %vm2131 = vcmp.eq.s32.totalorder %v2115, 1
  %vm2132 = vcmp.eq.s32.totalorder %v2116, 1
  %vm2133 = vcmp.eq.s32.totalorder %v2117, 1
  %vm2134 = vcmp.eq.s32.totalorder %v2118, 1
  %vm2135 = vcmp.eq.s32.totalorder %v2119, 1
  %vm2136 = vcmp.eq.s32.totalorder %v2120, 1
  %vm2137 = vcmp.eq.s32.totalorder %v2121, 1
  %vm2138 = vcmp.eq.s32.totalorder %v2122, 1
  %vm2139 = vcmp.eq.s32.totalorder %v2123, 1
  %vm2140 = vcmp.eq.s32.totalorder %v2124, 1
  %vm2141 = vcmp.eq.s32.totalorder %v2125, 1
  %v2142 = vsel %vm2126, %v1547, 0.0
  %v2143 = vsel %vm2127, %v1548, 0.0
  %v2144 = vsel %vm2128, %v1549, 0.0
  %v2145 = vsel %vm2129, %v1550, 0.0
  %v2146 = vsel %vm2130, %v1551, 0.0
  %v2147 = vsel %vm2131, %v1552, 0.0
  %v2148 = vsel %vm2132, %v1553, 0.0
  %v2149 = vsel %vm2133, %v1554, 0.0
  %v2150 = vsel %vm2134, %v1555, 0.0
  %v2151 = vsel %vm2135, %v1556, 0.0
  %v2152 = vsel %vm2136, %v1557, 0.0
  %v2153 = vsel %vm2137, %v1558, 0.0
  %v2154 = vsel %vm2138, %v1559, 0.0
  %v2155 = vsel %vm2139, %v1560, 0.0
  %v2156 = vsel %vm2140, %v1866, 0.0
  %v2157 = vsel %vm2141, %v2109, 0.0
  %2158 = vrot.lane.b32.xlu0 %v2142, 56
  %v2159 = vpop.permute.xlu0 %2158
  %2160 = vrot.lane.b32.xlu0 %v2143, 56
  %v2161 = vpop.permute.xlu0 %2160
  %2162 = vrot.lane.b32.xlu0 %v2144, 56
  %v2163 = vpop.permute.xlu0 %2162
  %2164 = vrot.lane.b32.xlu0 %v2145, 56
  %v2165 = vpop.permute.xlu0 %2164
  %2166 = vrot.lane.b32.xlu0 %v2146, 56
  %v2167 = vpop.permute.xlu0 %2166
  %2168 = vrot.lane.b32.xlu0 %v2147, 56
  %v2169 = vpop.permute.xlu0 %2168
  %2170 = vrot.lane.b32.xlu0 %v2148, 56
  %v2171 = vpop.permute.xlu0 %2170
  %2172 = vrot.lane.b32.xlu0 %v2149, 56
  %v2173 = vpop.permute.xlu0 %2172
  %2174 = vrot.lane.b32.xlu0 %v2150, 56
  %v2175 = vpop.permute.xlu0 %2174
  %2176 = vrot.lane.b32.xlu0 %v2151, 56
  %v2177 = vpop.permute.xlu0 %2176
  %2178 = vrot.lane.b32.xlu0 %v2152, 56
  %v2179 = vpop.permute.xlu0 %2178
  %2180 = vrot.lane.b32.xlu0 %v2153, 56
  %v2181 = vpop.permute.xlu0 %2180
  %2182 = vrot.lane.b32.xlu0 %v2154, 56
  %v2183 = vpop.permute.xlu0 %2182
  %2184 = vrot.lane.b32.xlu0 %v2155, 56
  %v2185 = vpop.permute.xlu0 %2184
  %2186 = vrot.lane.b32.xlu0 %v2156, 56
  %v2187 = vpop.permute.xlu0 %2186
  %2188 = vrot.lane.b32.xlu0 %v2157, 56
  %v2189 = vpop.permute.xlu0 %2188
  %v2190 = vadd.f32 %v2093, %v2159
  %v2191 = vadd.f32 %v2094, %v2161
  %v2192 = vadd.f32 %v2095, %v2163
  %v2193 = vadd.f32 %v2096, %v2165
  %v2194 = vadd.f32 %v2097, %v2167
  %v2195 = vadd.f32 %v2098, %v2169
  %v2196 = vadd.f32 %v2099, %v2171
  %v2197 = vadd.f32 %v2100, %v2173
  %v2198 = vadd.f32 %v2101, %v2175
  %v2199 = vadd.f32 %v2102, %v2177
  %v2200 = vadd.f32 %v2103, %v2179
  %v2201 = vadd.f32 %v2104, %v2181
  %v2202 = vadd.f32 %v2105, %v2183
  %v2203 = vadd.f32 %v2106, %v2185
  %v2204 = vadd.f32 %v2107, %v2187
  %v2205 = vadd.f32 %v2108, %v2189
  %v2206 = vld [vmem:[#allocation2 + $0x91] sm:$0xff]
  %v2207 = vsel %vm1449, 1, 0
  %v2208 = vsel %vm1450, 1, 0
  %v2209 = vsel %vm1451, 1, 0
  %v2210 = vsel %vm1452, 1, 0
  %v2211 = vsel %vm1453, 1, 0
  %v2212 = vsel %vm1454, 1, 0
  %v2213 = vsel %vm1455, 1, 0
  %v2214 = vsel %vm1456, 1, 0
  %v2215 = vsel %vm1457, 1, 0
  %v2216 = vsel %vm1458, 1, 0
  %v2217 = vsel %vm1459, 1, 0
  %v2218 = vsel %vm1460, 1, 0
  %v2219 = vsel %vm1461, 1, 0
  %v2220 = vsel %vm1462, 1, 0
  %v2221 = vsel %vm1463, 1, 0
  %v2222 = vsel %vm1464, 1, 0
  %vm2223 = vcmp.eq.s32.totalorder %v2207, 1
  %vm2224 = vcmp.eq.s32.totalorder %v2208, 1
  %vm2225 = vcmp.eq.s32.totalorder %v2209, 1
  %vm2226 = vcmp.eq.s32.totalorder %v2210, 1
  %vm2227 = vcmp.eq.s32.totalorder %v2211, 1
  %vm2228 = vcmp.eq.s32.totalorder %v2212, 1
  %vm2229 = vcmp.eq.s32.totalorder %v2213, 1
  %vm2230 = vcmp.eq.s32.totalorder %v2214, 1
  %vm2231 = vcmp.eq.s32.totalorder %v2215, 1
  %vm2232 = vcmp.eq.s32.totalorder %v2216, 1
  %vm2233 = vcmp.eq.s32.totalorder %v2217, 1
  %vm2234 = vcmp.eq.s32.totalorder %v2218, 1
  %vm2235 = vcmp.eq.s32.totalorder %v2219, 1
  %vm2236 = vcmp.eq.s32.totalorder %v2220, 1
  %vm2237 = vcmp.eq.s32.totalorder %v2221, 1
  %vm2238 = vcmp.eq.s32.totalorder %v2222, 1
  %v2239 = vsel %vm2223, %v1659, 0.0
  %v2240 = vsel %vm2224, %v1660, 0.0
  %v2241 = vsel %vm2225, %v1661, 0.0
  %v2242 = vsel %vm2226, %v1662, 0.0
  %v2243 = vsel %vm2227, %v1663, 0.0
  %v2244 = vsel %vm2228, %v1664, 0.0
  %v2245 = vsel %vm2229, %v1665, 0.0
  %v2246 = vsel %vm2230, %v1666, 0.0
  %v2247 = vsel %vm2231, %v1667, 0.0
  %v2248 = vsel %vm2232, %v1668, 0.0
  %v2249 = vsel %vm2233, %v1669, 0.0
  %v2250 = vsel %vm2234, %v1670, 0.0
  %v2251 = vsel %vm2235, %v1671, 0.0
  %v2252 = vsel %vm2236, %v1672, 0.0
  %v2253 = vsel %vm2237, %v1915, 0.0
  %v2254 = vsel %vm2238, %v2206, 0.0
  %2255 = vrot.lane.b32.xlu0 %v2239, 64
  %v2256 = vpop.permute.xlu0 %2255
  %2257 = vrot.lane.b32.xlu0 %v2240, 64
  %v2258 = vpop.permute.xlu0 %2257
  %2259 = vrot.lane.b32.xlu0 %v2241, 64
  %v2260 = vpop.permute.xlu0 %2259
  %2261 = vrot.lane.b32.xlu0 %v2242, 64
  %v2262 = vpop.permute.xlu0 %2261
  %2263 = vrot.lane.b32.xlu0 %v2243, 64
  %v2264 = vpop.permute.xlu0 %2263
  %2265 = vrot.lane.b32.xlu0 %v2244, 64
  %v2266 = vpop.permute.xlu0 %2265
  %2267 = vrot.lane.b32.xlu0 %v2245, 64
  %v2268 = vpop.permute.xlu0 %2267
  %2269 = vrot.lane.b32.xlu0 %v2246, 64
  %v2270 = vpop.permute.xlu0 %2269
  %2271 = vrot.lane.b32.xlu0 %v2247, 64
  %v2272 = vpop.permute.xlu0 %2271
  %2273 = vrot.lane.b32.xlu0 %v2248, 64
  %v2274 = vpop.permute.xlu0 %2273
  %2275 = vrot.lane.b32.xlu0 %v2249, 64
  %v2276 = vpop.permute.xlu0 %2275
  %2277 = vrot.lane.b32.xlu0 %v2250, 64
  %v2278 = vpop.permute.xlu0 %2277
  %2279 = vrot.lane.b32.xlu0 %v2251, 64
  %v2280 = vpop.permute.xlu0 %2279
  %2281 = vrot.lane.b32.xlu0 %v2252, 64
  %v2282 = vpop.permute.xlu0 %2281
  %2283 = vrot.lane.b32.xlu0 %v2253, 64
  %v2284 = vpop.permute.xlu0 %2283
  %2285 = vrot.lane.b32.xlu0 %v2254, 64
  %v2286 = vpop.permute.xlu0 %2285
  %v2287 = vadd.f32 %v2190, %v2256
  %v2288 = vadd.f32 %v2191, %v2258
  %v2289 = vadd.f32 %v2192, %v2260
  %v2290 = vadd.f32 %v2193, %v2262
  %v2291 = vadd.f32 %v2194, %v2264
  %v2292 = vadd.f32 %v2195, %v2266
  %v2293 = vadd.f32 %v2196, %v2268
  %v2294 = vadd.f32 %v2197, %v2270
  %v2295 = vadd.f32 %v2198, %v2272
  %v2296 = vadd.f32 %v2199, %v2274
  %v2297 = vadd.f32 %v2200, %v2276
  %v2298 = vadd.f32 %v2201, %v2278
  %v2299 = vadd.f32 %v2202, %v2280
  %v2300 = vadd.f32 %v2203, %v2282
  %v2301 = vadd.f32 %v2204, %v2284
  %v2302 = vadd.f32 %v2205, %v2286
  %v2303 = vpack.c.bf16 %v2288, %v2287
  %v2304 = vpack.c.bf16 %v2290, %v2289
  %v2305 = vpack.c.bf16 %v2292, %v2291
  %v2306 = vpack.c.bf16 %v2294, %v2293
  %v2307 = vpack.c.bf16 %v2296, %v2295
  %v2308 = vpack.c.bf16 %v2298, %v2297
  %v2309 = vpack.c.bf16 %v2300, %v2299
  %v2310 = vpack.c.bf16 %v2302, %v2301
  %v2311 = vld [vmem:[%s3] sm:$0xf]
  %v2312 = vld [vmem:[%s3 + $0x4] sm:$0xf]
  %v2313 = vld [vmem:[%s3 + $0x8] sm:$0xf]
  %v2314 = vld [vmem:[%s3 + $0xc] sm:$0xf]
  %v2315 = vld [vmem:[%s3 + $0x10] sm:$0xf]
  %v2316 = vld [vmem:[%s3 + $0x14] sm:$0xf]
  %v2317 = vld [vmem:[%s3 + $0x18] sm:$0xf]
  %v2318 = vld [vmem:[%s3 + $0x1c] sm:$0xf]
  %v2319 = vld [vmem:[%s3 + $0x20] sm:$0xf]
  %v2320 = vld [vmem:[%s3 + $0x24] sm:$0xf]
  %v2321 = vld [vmem:[%s3 + $0x28] sm:$0xf]
  %v2322 = vld [vmem:[%s3 + $0x2c] sm:$0xf]
  %v2323 = vld [vmem:[%s3 + $0x30] sm:$0xf]
  %v2324 = vld [vmem:[%s3 + $0x34] sm:$0xf]
  %v2325 = vld [vmem:[%s3 + $0x38] sm:$0xf]
  %v2326 = vld [vmem:[%s3 + $0x3c] sm:$0xf]
  %v2327 = vld [vmem:[%s4] sm:$0x1]
  %v2329 = vlaneseq
  %v2330 = vshrl.u32 %v2329, 7
  %v2331 = vsub.s32 0, %v2330
  %v2332 = vrot.slane %v2327, %v2331
  %v2350 = vunpack.c.l.b16 %v2311
  %v2351 = vunpack.c.l.b16 %v2312
  %v2352 = vunpack.c.l.b16 %v2313
  %v2353 = vunpack.c.l.b16 %v2314
  %v2354 = vunpack.c.l.b16 %v2315
  %v2355 = vunpack.c.l.b16 %v2316
  %v2356 = vunpack.c.l.b16 %v2317
  %v2357 = vunpack.c.l.b16 %v2318
  %v2358 = vunpack.c.l.b16 %v2319
  %v2359 = vunpack.c.l.b16 %v2320
  %v2360 = vunpack.c.l.b16 %v2321
  %v2361 = vunpack.c.l.b16 %v2322
  %v2362 = vunpack.c.l.b16 %v2323
  %v2363 = vunpack.c.l.b16 %v2324
  %v2364 = vunpack.c.l.b16 %v2325
  %v2365 = vunpack.c.l.b16 %v2326
  %v2366 = vpack.c.b16 %v2351, %v2350
  %v2367 = vpack.c.b16 %v2353, %v2352
  %v2368 = vpack.c.b16 %v2355, %v2354
  %v2369 = vpack.c.b16 %v2357, %v2356
  %v2370 = vpack.c.b16 %v2359, %v2358
  %v2371 = vpack.c.b16 %v2361, %v2360
  %v2372 = vpack.c.b16 %v2363, %v2362
  %v2373 = vpack.c.b16 %v2365, %v2364
  %2382 = vmatprep.subr.bf16.mxu0 0
  %2383 = vmatpush1.bf16.msra.mxu0 %v2366
  %2384 = vmatprep.subr.bf16.mxu0 0
  %2385 = vmatpush1.bf16.msra.mxu0 %v2367
  %2386 = vmatprep.subr.bf16.mxu0 0
  %2387 = vmatpush1.bf16.msra.mxu0 %v2368
  %2388 = vmatprep.subr.bf16.mxu0 0
  %2389 = vmatpush1.bf16.msra.mxu0 %v2369
  %2390 = vmatprep.subr.bf16.mxu0 0
  %2391 = vmatpush1.bf16.msra.mxu0 %v2370
  %2392 = vmatprep.subr.bf16.mxu0 0
  %2393 = vmatpush1.bf16.msra.mxu0 %v2371
  %2394 = vmatprep.subr.bf16.mxu0 0
  %2395 = vmatpush1.bf16.msra.mxu0 %v2372
  %2396 = vmatprep.subr.bf16.mxu0 0
  %2397 = vmatpush1.bf16.msra.mxu0 %v2373
  %2398 = vmatprep.subr.bf16.mxu0 0
  %2399 = vmatpush1.bf16.msra.mxu0 0
  %2400 = vmatprep.subr.bf16.mxu0 0
  %2401 = vmatpush1.bf16.msra.mxu0 0
  %2402 = vmatprep.subr.bf16.mxu0 0
  %2403 = vmatpush1.bf16.msra.mxu0 0
  %2404 = vmatprep.subr.bf16.mxu0 0
  %2405 = vmatpush1.bf16.msra.mxu0 0
  %2406 = vmatprep.subr.bf16.mxu0 0
  %2407 = vmatpush1.bf16.msra.mxu0 0
  %2408 = vmatprep.subr.bf16.mxu0 0
  %2409 = vmatpush1.bf16.msra.mxu0 0
  %2410 = vmatprep.subr.bf16.mxu0 0
  %2411 = vmatpush1.bf16.msra.mxu0 0
  %2412 = vmatprep.subr.bf16.mxu0 0
  %2413 = vmatpush1.bf16.msra.mxu0 0
  %2414 = vmatprep.mubr.bf16.mxu0 0
  %2415 = vmatmul.mubr.bf16.gmra.mrb[0].mxu0 %v2303
  %v2416 = vpop.f32.mrb[0].mxu0
  %v2417 = vadd.f32 %v2332, %v2416
  %v2418 = vpop.f32.mrb[0].mxu0
  %v2419 = vpop.f32.mrb[0].mxu0
  %v2420 = vadd.f32 %v2332, %v2419
  %v2421 = vpop.f32.mrb[0].mxu0
  %2422 = vmatprep.mubr.bf16.mxu0 0
  %2423 = vmatmul.mubr.bf16.gmra.mrb[0].mxu0 %v2304
  %v2424 = vpop.f32.mrb[0].mxu0
  %v2425 = vadd.f32 %v2332, %v2424
  %v2426 = vpop.f32.mrb[0].mxu0
  %v2427 = vpop.f32.mrb[0].mxu0
  %v2428 = vadd.f32 %v2332, %v2427
  %v2429 = vpop.f32.mrb[0].mxu0
  %2430 = vmatprep.mubr.bf16.mxu0 0
  %2431 = vmatmul.mubr.bf16.gmra.mrb[0].mxu0 %v2305
  %v2432 = vpop.f32.mrb[0].mxu0
  %v2433 = vadd.f32 %v2332, %v2432
  %v2434 = vpop.f32.mrb[0].mxu0
  %v2435 = vpop.f32.mrb[0].mxu0
  %v2436 = vadd.f32 %v2332, %v2435
  %v2437 = vpop.f32.mrb[0].mxu0
  %2438 = vmatprep.mubr.bf16.mxu0 0
  %2439 = vmatmul.mubr.bf16.gmra.mrb[0].mxu0 %v2306
  %v2440 = vpop.f32.mrb[0].mxu0
  %v2441 = vadd.f32 %v2332, %v2440
  %v2442 = vpop.f32.mrb[0].mxu0
  %v2443 = vpop.f32.mrb[0].mxu0
  %v2444 = vadd.f32 %v2332, %v2443
  %v2445 = vpop.f32.mrb[0].mxu0
  %2446 = vmatprep.mubr.bf16.mxu0 0
  %2447 = vmatmul.mubr.bf16.gmra.mrb[0].mxu0 %v2307
  %v2448 = vpop.f32.mrb[0].mxu0
  %v2449 = vadd.f32 %v2332, %v2448
  %v2450 = vpop.f32.mrb[0].mxu0
  %v2451 = vpop.f32.mrb[0].mxu0
  %v2452 = vadd.f32 %v2332, %v2451
  %v2453 = vpop.f32.mrb[0].mxu0
  %2454 = vmatprep.mubr.bf16.mxu0 0
  %2455 = vmatmul.mubr.bf16.gmra.mrb[0].mxu0 %v2308
  %v2456 = vpop.f32.mrb[0].mxu0
  %v2457 = vadd.f32 %v2332, %v2456
  %v2458 = vpop.f32.mrb[0].mxu0
  %v2459 = vpop.f32.mrb[0].mxu0
  %v2460 = vadd.f32 %v2332, %v2459
  %v2461 = vpop.f32.mrb[0].mxu0
  %2462 = vmatprep.mubr.bf16.mxu0 0
  %2463 = vmatmul.mubr.bf16.gmra.mrb[0].mxu0 %v2309
  %v2464 = vpop.f32.mrb[0].mxu0
  %v2465 = vadd.f32 %v2332, %v2464
  %v2466 = vpop.f32.mrb[0].mxu0
  %v2467 = vpop.f32.mrb[0].mxu0
  %v2468 = vadd.f32 %v2332, %v2467
  %v2469 = vpop.f32.mrb[0].mxu0
  %2470 = vmatprep.mubr.bf16.mxu0 0
  %2471 = vmatmul.mubr.bf16.gmra.mrb[0].mxu0 %v2310
  %v2472 = vpop.f32.mrb[0].mxu0
  %v2473 = vadd.f32 %v2332, %v2472
  %v2474 = vpop.f32.mrb[0].mxu0
  %v2475 = vpop.f32.mrb[0].mxu0
  %v2476 = vadd.f32 %v2332, %v2475
  %v2477 = vpop.f32.mrb[0].mxu0
  %2478 = vdwg.mxu0
  %v2479 = vmax.f32 %v2417, 0.0
  %v2480 = vmax.f32 %v2420, 0.0
  %v2481 = vmax.f32 %v2425, 0.0
  %v2482 = vmax.f32 %v2428, 0.0
  %v2483 = vmax.f32 %v2433, 0.0
  %v2484 = vmax.f32 %v2436, 0.0
  %v2485 = vmax.f32 %v2441, 0.0
  %v2486 = vmax.f32 %v2444, 0.0
  %v2487 = vmax.f32 %v2449, 0.0
  %v2488 = vmax.f32 %v2452, 0.0
  %v2489 = vmax.f32 %v2457, 0.0
  %v2490 = vmax.f32 %v2460, 0.0
  %v2491 = vmax.f32 %v2465, 0.0
  %v2492 = vmax.f32 %v2468, 0.0
  %v2493 = vmax.f32 %v2473, 0.0
  %v2494 = vmax.f32 %v2476, 0.0
  %2495 = vst [vmem:[#allocation2 + $0x10] sm:$0xff] %v2479
  %2496 = vst [vmem:[#allocation2 + $0x18] sm:$0xff] %v2480
  %2497 = vst [vmem:[#allocation2 + $0x20] sm:$0xff] %v2481
  %2498 = vst [vmem:[#allocation2 + $0x28] sm:$0xff] %v2482
  %2499 = vst [vmem:[#allocation2 + $0x30] sm:$0xff] %v2483
  %2500 = vst [vmem:[#allocation2 + $0x38] sm:$0xff] %v2484
  %2501 = vst [vmem:[#allocation2 + $0x40] sm:$0xff] %v2485
  %2502 = vst [vmem:[#allocation2 + $0x48] sm:$0xff] %v2486
  %2503 = vst [vmem:[#allocation2 + $0x50] sm:$0xff] %v2487
  %2504 = vst [vmem:[#allocation2 + $0x58] sm:$0xff] %v2488
  %2505 = vst [vmem:[#allocation2 + $0x60] sm:$0xff] %v2489
  %2506 = vst [vmem:[#allocation2 + $0x68] sm:$0xff] %v2490
  %2507 = vst [vmem:[#allocation2 + $0x70] sm:$0xff] %v2491
  %2508 = vst [vmem:[#allocation2 + $0x78] sm:$0xff] %v2492
  %2509 = vst [vmem:[#allocation2 + $0x80] sm:$0xff] %v2493
  %2510 = vst [vmem:[#allocation2 + $0x88] sm:$0xff] %v2494
  %v2511 = vld [vmem:[#allocation2 + $0x7] sm:$0xff]
  %v2512 = vld [vmem:[#allocation2 + $0xf] sm:$0xff]
  %v2513 = vld [vmem:[#allocation2 + $0x17] sm:$0xff]
  %v2514 = vld [vmem:[#allocation2 + $0x1f] sm:$0xff]
  %v2515 = vld [vmem:[#allocation2 + $0x27] sm:$0xff]
  %v2516 = vld [vmem:[#allocation2 + $0x2f] sm:$0xff]
  %v2517 = vld [vmem:[#allocation2 + $0x37] sm:$0xff]
  %v2518 = vld [vmem:[#allocation2 + $0x3f] sm:$0xff]
  %v2519 = vld [vmem:[#allocation2 + $0x47] sm:$0xff]
  %v2520 = vld [vmem:[#allocation2 + $0x4f] sm:$0xff]
  %v2521 = vld [vmem:[#allocation2 + $0x57] sm:$0xff]
  %v2522 = vld [vmem:[#allocation2 + $0x5f] sm:$0xff]
  %v2523 = vld [vmem:[#allocation2 + $0x67] sm:$0xff]
  %v2524 = vld [vmem:[#allocation2 + $0x6f] sm:$0xff]
  %v2525 = vld [vmem:[#allocation2 + $0x77] sm:$0xff]
  %v2526 = vld [vmem:[#allocation2 + $0x7f] sm:$0xff]
  %v2527 = vsel %vm1513, %v2511, 0.0
  %v2528 = vsel %vm1514, %v2512, 0.0
  %v2529 = vsel %vm1515, %v2513, 0.0
  %v2530 = vsel %vm1516, %v2514, 0.0
  %v2531 = vsel %vm1517, %v2515, 0.0
  %v2532 = vsel %vm1518, %v2516, 0.0
  %v2533 = vsel %vm1519, %v2517, 0.0
  %v2534 = vsel %vm1520, %v2518, 0.0
  %v2535 = vsel %vm1521, %v2519, 0.0
  %v2536 = vsel %vm1522, %v2520, 0.0
  %v2537 = vsel %vm1523, %v2521, 0.0
  %v2538 = vsel %vm1524, %v2522, 0.0
  %v2539 = vsel %vm1525, %v2523, 0.0
  %v2540 = vsel %vm1526, %v2524, 0.0
  %v2541 = vsel %vm1527, %v2525, 0.0
  %v2542 = vsel %vm1528, %v2526, 0.0
  %v2543 = vld [vmem:[#allocation2 + $0x8] sm:$0xff]
  %v2544 = vld [vmem:[#allocation2 + $0x10] sm:$0xff]
  %v2545 = vld [vmem:[#allocation2 + $0x18] sm:$0xff]
  %v2546 = vld [vmem:[#allocation2 + $0x20] sm:$0xff]
  %v2547 = vld [vmem:[#allocation2 + $0x28] sm:$0xff]
  %v2548 = vld [vmem:[#allocation2 + $0x30] sm:$0xff]
  %v2549 = vld [vmem:[#allocation2 + $0x38] sm:$0xff]
  %v2550 = vld [vmem:[#allocation2 + $0x40] sm:$0xff]
  %v2551 = vld [vmem:[#allocation2 + $0x48] sm:$0xff]
  %v2552 = vld [vmem:[#allocation2 + $0x50] sm:$0xff]
  %v2553 = vld [vmem:[#allocation2 + $0x58] sm:$0xff]
  %v2554 = vld [vmem:[#allocation2 + $0x60] sm:$0xff]
  %v2555 = vld [vmem:[#allocation2 + $0x68] sm:$0xff]
  %v2556 = vld [vmem:[#allocation2 + $0x70] sm:$0xff]
  %v2557 = vld [vmem:[#allocation2 + $0x78] sm:$0xff]
  %v2558 = vld [vmem:[#allocation2 + $0x80] sm:$0xff]
  %v2559 = vsel %vm1577, %v2543, 0.0
  %v2560 = vsel %vm1578, %v2544, 0.0
  %v2561 = vsel %vm1579, %v2545, 0.0
  %v2562 = vsel %vm1580, %v2546, 0.0
  %v2563 = vsel %vm1581, %v2547, 0.0
  %v2564 = vsel %vm1582, %v2548, 0.0
  %v2565 = vsel %vm1583, %v2549, 0.0
  %v2566 = vsel %vm1584, %v2550, 0.0
  %v2567 = vsel %vm1585, %v2551, 0.0
  %v2568 = vsel %vm1586, %v2552, 0.0
  %v2569 = vsel %vm1587, %v2553, 0.0
  %v2570 = vsel %vm1588, %v2554, 0.0
  %v2571 = vsel %vm1589, %v2555, 0.0
  %v2572 = vsel %vm1590, %v2556, 0.0
  %v2573 = vsel %vm1591, %v2557, 0.0
  %v2574 = vsel %vm1592, %v2558, 0.0
  %2575 = vrot.lane.b32.xlu0 %v2559, 4
  %v2576 = vpop.permute.xlu0 %2575
  %2577 = vrot.lane.b32.xlu0 %v2560, 4
  %v2578 = vpop.permute.xlu0 %2577
  %2579 = vrot.lane.b32.xlu0 %v2561, 4
  %v2580 = vpop.permute.xlu0 %2579
  %2581 = vrot.lane.b32.xlu0 %v2562, 4
  %v2582 = vpop.permute.xlu0 %2581
  %2583 = vrot.lane.b32.xlu0 %v2563, 4
  %v2584 = vpop.permute.xlu0 %2583
  %2585 = vrot.lane.b32.xlu0 %v2564, 4
  %v2586 = vpop.permute.xlu0 %2585
  %2587 = vrot.lane.b32.xlu0 %v2565, 4
  %v2588 = vpop.permute.xlu0 %2587
  %2589 = vrot.lane.b32.xlu0 %v2566, 4
  %v2590 = vpop.permute.xlu0 %2589
  %2591 = vrot.lane.b32.xlu0 %v2567, 4
  %v2592 = vpop.permute.xlu0 %2591
  %2593 = vrot.lane.b32.xlu0 %v2568, 4
  %v2594 = vpop.permute.xlu0 %2593
  %2595 = vrot.lane.b32.xlu0 %v2569, 4
  %v2596 = vpop.permute.xlu0 %2595
  %2597 = vrot.lane.b32.xlu0 %v2570, 4
  %v2598 = vpop.permute.xlu0 %2597
  %2599 = vrot.lane.b32.xlu0 %v2571, 4
  %v2600 = vpop.permute.xlu0 %2599
  %2601 = vrot.lane.b32.xlu0 %v2572, 4
  %v2602 = vpop.permute.xlu0 %2601
  %2603 = vrot.lane.b32.xlu0 %v2573, 4
  %v2604 = vpop.permute.xlu0 %2603
  %2605 = vrot.lane.b32.xlu0 %v2574, 4
  %v2606 = vpop.permute.xlu0 %2605
  %v2607 = vadd.f32 %v2527, %v2576
  %v2608 = vadd.f32 %v2528, %v2578
  %v2609 = vadd.f32 %v2529, %v2580
  %v2610 = vadd.f32 %v2530, %v2582
  %v2611 = vadd.f32 %v2531, %v2584
  %v2612 = vadd.f32 %v2532, %v2586
  %v2613 = vadd.f32 %v2533, %v2588
  %v2614 = vadd.f32 %v2534, %v2590
  %v2615 = vadd.f32 %v2535, %v2592
  %v2616 = vadd.f32 %v2536, %v2594
  %v2617 = vadd.f32 %v2537, %v2596
  %v2618 = vadd.f32 %v2538, %v2598
  %v2619 = vadd.f32 %v2539, %v2600
  %v2620 = vadd.f32 %v2540, %v2602
  %v2621 = vadd.f32 %v2541, %v2604
  %v2622 = vadd.f32 %v2542, %v2606
  %v2623 = vld [vmem:[#allocation2 + $0x9] sm:$0xff]
  %v2624 = vld [vmem:[#allocation2 + $0x11] sm:$0xff]
  %v2625 = vld [vmem:[#allocation2 + $0x19] sm:$0xff]
  %v2626 = vld [vmem:[#allocation2 + $0x21] sm:$0xff]
  %v2627 = vld [vmem:[#allocation2 + $0x29] sm:$0xff]
  %v2628 = vld [vmem:[#allocation2 + $0x31] sm:$0xff]
  %v2629 = vld [vmem:[#allocation2 + $0x39] sm:$0xff]
  %v2630 = vld [vmem:[#allocation2 + $0x41] sm:$0xff]
  %v2631 = vld [vmem:[#allocation2 + $0x49] sm:$0xff]
  %v2632 = vld [vmem:[#allocation2 + $0x51] sm:$0xff]
  %v2633 = vld [vmem:[#allocation2 + $0x59] sm:$0xff]
  %v2634 = vld [vmem:[#allocation2 + $0x61] sm:$0xff]
  %v2635 = vld [vmem:[#allocation2 + $0x69] sm:$0xff]
  %v2636 = vld [vmem:[#allocation2 + $0x71] sm:$0xff]
  %v2637 = vld [vmem:[#allocation2 + $0x79] sm:$0xff]
  %v2638 = vld [vmem:[#allocation2 + $0x81] sm:$0xff]
  %v2639 = vsel %vm1689, %v2623, 0.0
  %v2640 = vsel %vm1690, %v2624, 0.0
  %v2641 = vsel %vm1691, %v2625, 0.0
  %v2642 = vsel %vm1692, %v2626, 0.0
  %v2643 = vsel %vm1693, %v2627, 0.0
  %v2644 = vsel %vm1694, %v2628, 0.0
  %v2645 = vsel %vm1695, %v2629, 0.0
  %v2646 = vsel %vm1696, %v2630, 0.0
  %v2647 = vsel %vm1697, %v2631, 0.0
  %v2648 = vsel %vm1698, %v2632, 0.0
  %v2649 = vsel %vm1699, %v2633, 0.0
  %v2650 = vsel %vm1700, %v2634, 0.0
  %v2651 = vsel %vm1701, %v2635, 0.0
  %v2652 = vsel %vm1702, %v2636, 0.0
  %v2653 = vsel %vm1703, %v2637, 0.0
  %v2654 = vsel %vm1704, %v2638, 0.0
  %2655 = vrot.lane.b32.xlu0 %v2639, 8
  %v2656 = vpop.permute.xlu0 %2655
  %2657 = vrot.lane.b32.xlu0 %v2640, 8
  %v2658 = vpop.permute.xlu0 %2657
  %2659 = vrot.lane.b32.xlu0 %v2641, 8
  %v2660 = vpop.permute.xlu0 %2659
  %2661 = vrot.lane.b32.xlu0 %v2642, 8
  %v2662 = vpop.permute.xlu0 %2661
  %2663 = vrot.lane.b32.xlu0 %v2643, 8
  %v2664 = vpop.permute.xlu0 %2663
  %2665 = vrot.lane.b32.xlu0 %v2644, 8
  %v2666 = vpop.permute.xlu0 %2665
  %2667 = vrot.lane.b32.xlu0 %v2645, 8
  %v2668 = vpop.permute.xlu0 %2667
  %2669 = vrot.lane.b32.xlu0 %v2646, 8
  %v2670 = vpop.permute.xlu0 %2669
  %2671 = vrot.lane.b32.xlu0 %v2647, 8
  %v2672 = vpop.permute.xlu0 %2671
  %2673 = vrot.lane.b32.xlu0 %v2648, 8
  %v2674 = vpop.permute.xlu0 %2673
  %2675 = vrot.lane.b32.xlu0 %v2649, 8
  %v2676 = vpop.permute.xlu0 %2675
  %2677 = vrot.lane.b32.xlu0 %v2650, 8
  %v2678 = vpop.permute.xlu0 %2677
  %2679 = vrot.lane.b32.xlu0 %v2651, 8
  %v2680 = vpop.permute.xlu0 %2679
  %2681 = vrot.lane.b32.xlu0 %v2652, 8
  %v2682 = vpop.permute.xlu0 %2681
  %2683 = vrot.lane.b32.xlu0 %v2653, 8
  %v2684 = vpop.permute.xlu0 %2683
  %2685 = vrot.lane.b32.xlu0 %v2654, 8
  %v2686 = vpop.permute.xlu0 %2685
  %v2687 = vadd.f32 %v2607, %v2656
  %v2688 = vadd.f32 %v2608, %v2658
  %v2689 = vadd.f32 %v2609, %v2660
  %v2690 = vadd.f32 %v2610, %v2662
  %v2691 = vadd.f32 %v2611, %v2664
  %v2692 = vadd.f32 %v2612, %v2666
  %v2693 = vadd.f32 %v2613, %v2668
  %v2694 = vadd.f32 %v2614, %v2670
  %v2695 = vadd.f32 %v2615, %v2672
  %v2696 = vadd.f32 %v2616, %v2674
  %v2697 = vadd.f32 %v2617, %v2676
  %v2698 = vadd.f32 %v2618, %v2678
  %v2699 = vadd.f32 %v2619, %v2680
  %v2700 = vadd.f32 %v2620, %v2682
  %v2701 = vadd.f32 %v2621, %v2684
  %v2702 = vadd.f32 %v2622, %v2686
  %v2703 = vld [vmem:[#allocation2 + $0x87] sm:$0xff]
  %v2704 = vsel %vm1786, %v2512, 0.0
  %v2705 = vsel %vm1787, %v2513, 0.0
  %v2706 = vsel %vm1788, %v2514, 0.0
  %v2707 = vsel %vm1789, %v2515, 0.0
  %v2708 = vsel %vm1790, %v2516, 0.0
  %v2709 = vsel %vm1791, %v2517, 0.0
  %v2710 = vsel %vm1792, %v2518, 0.0
  %v2711 = vsel %vm1793, %v2519, 0.0
  %v2712 = vsel %vm1794, %v2520, 0.0
  %v2713 = vsel %vm1795, %v2521, 0.0
  %v2714 = vsel %vm1796, %v2522, 0.0
  %v2715 = vsel %vm1797, %v2523, 0.0
  %v2716 = vsel %vm1798, %v2524, 0.0
  %v2717 = vsel %vm1799, %v2525, 0.0
  %v2718 = vsel %vm1800, %v2526, 0.0
  %v2719 = vsel %vm1801, %v2703, 0.0
  %2720 = vrot.lane.b32.xlu0 %v2704, 12
  %v2721 = vpop.permute.xlu0 %2720
  %2722 = vrot.lane.b32.xlu0 %v2705, 12
  %v2723 = vpop.permute.xlu0 %2722
  %2724 = vrot.lane.b32.xlu0 %v2706, 12
  %v2725 = vpop.permute.xlu0 %2724
  %2726 = vrot.lane.b32.xlu0 %v2707, 12
  %v2727 = vpop.permute.xlu0 %2726
  %2728 = vrot.lane.b32.xlu0 %v2708, 12
  %v2729 = vpop.permute.xlu0 %2728
  %2730 = vrot.lane.b32.xlu0 %v2709, 12
  %v2731 = vpop.permute.xlu0 %2730
  %2732 = vrot.lane.b32.xlu0 %v2710, 12
  %v2733 = vpop.permute.xlu0 %2732
  %2734 = vrot.lane.b32.xlu0 %v2711, 12
  %v2735 = vpop.permute.xlu0 %2734
  %2736 = vrot.lane.b32.xlu0 %v2712, 12
  %v2737 = vpop.permute.xlu0 %2736
  %2738 = vrot.lane.b32.xlu0 %v2713, 12
  %v2739 = vpop.permute.xlu0 %2738
  %2740 = vrot.lane.b32.xlu0 %v2714, 12
  %v2741 = vpop.permute.xlu0 %2740
  %2742 = vrot.lane.b32.xlu0 %v2715, 12
  %v2743 = vpop.permute.xlu0 %2742
  %2744 = vrot.lane.b32.xlu0 %v2716, 12
  %v2745 = vpop.permute.xlu0 %2744
  %2746 = vrot.lane.b32.xlu0 %v2717, 12
  %v2747 = vpop.permute.xlu0 %2746
  %2748 = vrot.lane.b32.xlu0 %v2718, 12
  %v2749 = vpop.permute.xlu0 %2748
  %2750 = vrot.lane.b32.xlu0 %v2719, 12
  %v2751 = vpop.permute.xlu0 %2750
  %v2752 = vadd.f32 %v2687, %v2721
  %v2753 = vadd.f32 %v2688, %v2723
  %v2754 = vadd.f32 %v2689, %v2725
  %v2755 = vadd.f32 %v2690, %v2727
  %v2756 = vadd.f32 %v2691, %v2729
  %v2757 = vadd.f32 %v2692, %v2731
  %v2758 = vadd.f32 %v2693, %v2733
  %v2759 = vadd.f32 %v2694, %v2735
  %v2760 = vadd.f32 %v2695, %v2737
  %v2761 = vadd.f32 %v2696, %v2739
  %v2762 = vadd.f32 %v2697, %v2741
  %v2763 = vadd.f32 %v2698, %v2743
  %v2764 = vadd.f32 %v2699, %v2745
  %v2765 = vadd.f32 %v2700, %v2747
  %v2766 = vadd.f32 %v2701, %v2749
  %v2767 = vadd.f32 %v2702, %v2751
  %v2768 = vld [vmem:[#allocation2 + $0x88] sm:$0xff]
  %2769 = vrot.lane.b32.xlu0 %v2544, 16
  %v2770 = vpop.permute.xlu0 %2769
  %2771 = vrot.lane.b32.xlu0 %v2545, 16
  %v2772 = vpop.permute.xlu0 %2771
  %2773 = vrot.lane.b32.xlu0 %v2546, 16
  %v2774 = vpop.permute.xlu0 %2773
  %2775 = vrot.lane.b32.xlu0 %v2547, 16
  %v2776 = vpop.permute.xlu0 %2775
  %2777 = vrot.lane.b32.xlu0 %v2548, 16
  %v2778 = vpop.permute.xlu0 %2777
  %2779 = vrot.lane.b32.xlu0 %v2549, 16
  %v2780 = vpop.permute.xlu0 %2779
  %2781 = vrot.lane.b32.xlu0 %v2550, 16
  %v2782 = vpop.permute.xlu0 %2781
  %2783 = vrot.lane.b32.xlu0 %v2551, 16
  %v2784 = vpop.permute.xlu0 %2783
  %2785 = vrot.lane.b32.xlu0 %v2552, 16
  %v2786 = vpop.permute.xlu0 %2785
  %2787 = vrot.lane.b32.xlu0 %v2553, 16
  %v2788 = vpop.permute.xlu0 %2787
  %2789 = vrot.lane.b32.xlu0 %v2554, 16
  %v2790 = vpop.permute.xlu0 %2789
  %2791 = vrot.lane.b32.xlu0 %v2555, 16
  %v2792 = vpop.permute.xlu0 %2791
  %2793 = vrot.lane.b32.xlu0 %v2556, 16
  %v2794 = vpop.permute.xlu0 %2793
  %2795 = vrot.lane.b32.xlu0 %v2557, 16
  %v2796 = vpop.permute.xlu0 %2795
  %2797 = vrot.lane.b32.xlu0 %v2558, 16
  %v2798 = vpop.permute.xlu0 %2797
  %2799 = vrot.lane.b32.xlu0 %v2768, 16
  %v2800 = vpop.permute.xlu0 %2799
  %v2801 = vadd.f32 %v2752, %v2770
  %v2802 = vadd.f32 %v2753, %v2772
  %v2803 = vadd.f32 %v2754, %v2774
  %v2804 = vadd.f32 %v2755, %v2776
  %v2805 = vadd.f32 %v2756, %v2778
  %v2806 = vadd.f32 %v2757, %v2780
  %v2807 = vadd.f32 %v2758, %v2782
  %v2808 = vadd.f32 %v2759, %v2784
  %v2809 = vadd.f32 %v2760, %v2786
  %v2810 = vadd.f32 %v2761, %v2788
  %v2811 = vadd.f32 %v2762, %v2790
  %v2812 = vadd.f32 %v2763, %v2792
  %v2813 = vadd.f32 %v2764, %v2794
  %v2814 = vadd.f32 %v2765, %v2796
  %v2815 = vadd.f32 %v2766, %v2798
  %v2816 = vadd.f32 %v2767, %v2800
  %v2817 = vld [vmem:[#allocation2 + $0x89] sm:$0xff]
  %v2818 = vsel %vm1932, %v2624, 0.0
  %v2819 = vsel %vm1933, %v2625, 0.0
  %v2820 = vsel %vm1934, %v2626, 0.0
  %v2821 = vsel %vm1935, %v2627, 0.0
  %v2822 = vsel %vm1936, %v2628, 0.0
  %v2823 = vsel %vm1937, %v2629, 0.0
  %v2824 = vsel %vm1938, %v2630, 0.0
  %v2825 = vsel %vm1939, %v2631, 0.0
  %v2826 = vsel %vm1940, %v2632, 0.0
  %v2827 = vsel %vm1941, %v2633, 0.0
  %v2828 = vsel %vm1942, %v2634, 0.0
  %v2829 = vsel %vm1943, %v2635, 0.0
  %v2830 = vsel %vm1944, %v2636, 0.0
  %v2831 = vsel %vm1945, %v2637, 0.0
  %v2832 = vsel %vm1946, %v2638, 0.0
  %v2833 = vsel %vm1947, %v2817, 0.0
  %2834 = vrot.lane.b32.xlu0 %v2818, 20
  %v2835 = vpop.permute.xlu0 %2834
  %2836 = vrot.lane.b32.xlu0 %v2819, 20
  %v2837 = vpop.permute.xlu0 %2836
  %2838 = vrot.lane.b32.xlu0 %v2820, 20
  %v2839 = vpop.permute.xlu0 %2838
  %2840 = vrot.lane.b32.xlu0 %v2821, 20
  %v2841 = vpop.permute.xlu0 %2840
  %2842 = vrot.lane.b32.xlu0 %v2822, 20
  %v2843 = vpop.permute.xlu0 %2842
  %2844 = vrot.lane.b32.xlu0 %v2823, 20
  %v2845 = vpop.permute.xlu0 %2844
  %2846 = vrot.lane.b32.xlu0 %v2824, 20
  %v2847 = vpop.permute.xlu0 %2846
  %2848 = vrot.lane.b32.xlu0 %v2825, 20
  %v2849 = vpop.permute.xlu0 %2848
  %2850 = vrot.lane.b32.xlu0 %v2826, 20
  %v2851 = vpop.permute.xlu0 %2850
  %2852 = vrot.lane.b32.xlu0 %v2827, 20
  %v2853 = vpop.permute.xlu0 %2852
  %2854 = vrot.lane.b32.xlu0 %v2828, 20
  %v2855 = vpop.permute.xlu0 %2854
  %2856 = vrot.lane.b32.xlu0 %v2829, 20
  %v2857 = vpop.permute.xlu0 %2856
  %2858 = vrot.lane.b32.xlu0 %v2830, 20
  %v2859 = vpop.permute.xlu0 %2858
  %2860 = vrot.lane.b32.xlu0 %v2831, 20
  %v2861 = vpop.permute.xlu0 %2860
  %2862 = vrot.lane.b32.xlu0 %v2832, 20
  %v2863 = vpop.permute.xlu0 %2862
  %2864 = vrot.lane.b32.xlu0 %v2833, 20
  %v2865 = vpop.permute.xlu0 %2864
  %v2866 = vadd.f32 %v2801, %v2835
  %v2867 = vadd.f32 %v2802, %v2837
  %v2868 = vadd.f32 %v2803, %v2839
  %v2869 = vadd.f32 %v2804, %v2841
  %v2870 = vadd.f32 %v2805, %v2843
  %v2871 = vadd.f32 %v2806, %v2845
  %v2872 = vadd.f32 %v2807, %v2847
  %v2873 = vadd.f32 %v2808, %v2849
  %v2874 = vadd.f32 %v2809, %v2851
  %v2875 = vadd.f32 %v2810, %v2853
  %v2876 = vadd.f32 %v2811, %v2855
  %v2877 = vadd.f32 %v2812, %v2857
  %v2878 = vadd.f32 %v2813, %v2859
  %v2879 = vadd.f32 %v2814, %v2861
  %v2880 = vadd.f32 %v2815, %v2863
  %v2881 = vadd.f32 %v2816, %v2865
  %v2882 = vld [vmem:[#allocation2 + $0x8f] sm:$0xff]
  %v2883 = vsel %vm2029, %v2513, 0.0
  %v2884 = vsel %vm2030, %v2514, 0.0
  %v2885 = vsel %vm2031, %v2515, 0.0
  %v2886 = vsel %vm2032, %v2516, 0.0
  %v2887 = vsel %vm2033, %v2517, 0.0
  %v2888 = vsel %vm2034, %v2518, 0.0
  %v2889 = vsel %vm2035, %v2519, 0.0
  %v2890 = vsel %vm2036, %v2520, 0.0
  %v2891 = vsel %vm2037, %v2521, 0.0
  %v2892 = vsel %vm2038, %v2522, 0.0
  %v2893 = vsel %vm2039, %v2523, 0.0
  %v2894 = vsel %vm2040, %v2524, 0.0
  %v2895 = vsel %vm2041, %v2525, 0.0
  %v2896 = vsel %vm2042, %v2526, 0.0
  %v2897 = vsel %vm2043, %v2703, 0.0
  %v2898 = vsel %vm2044, %v2882, 0.0
  %2899 = vrot.lane.b32.xlu0 %v2883, 24
  %v2900 = vpop.permute.xlu0 %2899
  %2901 = vrot.lane.b32.xlu0 %v2884, 24
  %v2902 = vpop.permute.xlu0 %2901
  %2903 = vrot.lane.b32.xlu0 %v2885, 24
  %v2904 = vpop.permute.xlu0 %2903
  %2905 = vrot.lane.b32.xlu0 %v2886, 24
  %v2906 = vpop.permute.xlu0 %2905
  %2907 = vrot.lane.b32.xlu0 %v2887, 24
  %v2908 = vpop.permute.xlu0 %2907
  %2909 = vrot.lane.b32.xlu0 %v2888, 24
  %v2910 = vpop.permute.xlu0 %2909
  %2911 = vrot.lane.b32.xlu0 %v2889, 24
  %v2912 = vpop.permute.xlu0 %2911
  %2913 = vrot.lane.b32.xlu0 %v2890, 24
  %v2914 = vpop.permute.xlu0 %2913
  %2915 = vrot.lane.b32.xlu0 %v2891, 24
  %v2916 = vpop.permute.xlu0 %2915
  %2917 = vrot.lane.b32.xlu0 %v2892, 24
  %v2918 = vpop.permute.xlu0 %2917
  %2919 = vrot.lane.b32.xlu0 %v2893, 24
  %v2920 = vpop.permute.xlu0 %2919
  %2921 = vrot.lane.b32.xlu0 %v2894, 24
  %v2922 = vpop.permute.xlu0 %2921
  %2923 = vrot.lane.b32.xlu0 %v2895, 24
  %v2924 = vpop.permute.xlu0 %2923
  %2925 = vrot.lane.b32.xlu0 %v2896, 24
  %v2926 = vpop.permute.xlu0 %2925
  %2927 = vrot.lane.b32.xlu0 %v2897, 24
  %v2928 = vpop.permute.xlu0 %2927
  %2929 = vrot.lane.b32.xlu0 %v2898, 24
  %v2930 = vpop.permute.xlu0 %2929
  %v2931 = vadd.f32 %v2866, %v2900
  %v2932 = vadd.f32 %v2867, %v2902
  %v2933 = vadd.f32 %v2868, %v2904
  %v2934 = vadd.f32 %v2869, %v2906
  %v2935 = vadd.f32 %v2870, %v2908
  %v2936 = vadd.f32 %v2871, %v2910
  %v2937 = vadd.f32 %v2872, %v2912
  %v2938 = vadd.f32 %v2873, %v2914
  %v2939 = vadd.f32 %v2874, %v2916
  %v2940 = vadd.f32 %v2875, %v2918
  %v2941 = vadd.f32 %v2876, %v2920
  %v2942 = vadd.f32 %v2877, %v2922
  %v2943 = vadd.f32 %v2878, %v2924
  %v2944 = vadd.f32 %v2879, %v2926
  %v2945 = vadd.f32 %v2880, %v2928
  %v2946 = vadd.f32 %v2881, %v2930
  %v2947 = vld [vmem:[#allocation2 + $0x90] sm:$0xff]
  %v2948 = vsel %vm2126, %v2545, 0.0
  %v2949 = vsel %vm2127, %v2546, 0.0
  %v2950 = vsel %vm2128, %v2547, 0.0
  %v2951 = vsel %vm2129, %v2548, 0.0
  %v2952 = vsel %vm2130, %v2549, 0.0
  %v2953 = vsel %vm2131, %v2550, 0.0
  %v2954 = vsel %vm2132, %v2551, 0.0
  %v2955 = vsel %vm2133, %v2552, 0.0
  %v2956 = vsel %vm2134, %v2553, 0.0
  %v2957 = vsel %vm2135, %v2554, 0.0
  %v2958 = vsel %vm2136, %v2555, 0.0
  %v2959 = vsel %vm2137, %v2556, 0.0
  %v2960 = vsel %vm2138, %v2557, 0.0
  %v2961 = vsel %vm2139, %v2558, 0.0
  %v2962 = vsel %vm2140, %v2768, 0.0
  %v2963 = vsel %vm2141, %v2947, 0.0
  %2964 = vrot.lane.b32.xlu0 %v2948, 28
  %v2965 = vpop.permute.xlu0 %2964
  %2966 = vrot.lane.b32.xlu0 %v2949, 28
  %v2967 = vpop.permute.xlu0 %2966
  %2968 = vrot.lane.b32.xlu0 %v2950, 28
  %v2969 = vpop.permute.xlu0 %2968
  %2970 = vrot.lane.b32.xlu0 %v2951, 28
  %v2971 = vpop.permute.xlu0 %2970
  %2972 = vrot.lane.b32.xlu0 %v2952, 28
  %v2973 = vpop.permute.xlu0 %2972
  %2974 = vrot.lane.b32.xlu0 %v2953, 28
  %v2975 = vpop.permute.xlu0 %2974
  %2976 = vrot.lane.b32.xlu0 %v2954, 28
  %v2977 = vpop.permute.xlu0 %2976
  %2978 = vrot.lane.b32.xlu0 %v2955, 28
  %v2979 = vpop.permute.xlu0 %2978
  %2980 = vrot.lane.b32.xlu0 %v2956, 28
  %v2981 = vpop.permute.xlu0 %2980
  %2982 = vrot.lane.b32.xlu0 %v2957, 28
  %v2983 = vpop.permute.xlu0 %2982
  %2984 = vrot.lane.b32.xlu0 %v2958, 28
  %v2985 = vpop.permute.xlu0 %2984
  %2986 = vrot.lane.b32.xlu0 %v2959, 28
  %v2987 = vpop.permute.xlu0 %2986
  %2988 = vrot.lane.b32.xlu0 %v2960, 28
  %v2989 = vpop.permute.xlu0 %2988
  %2990 = vrot.lane.b32.xlu0 %v2961, 28
  %v2991 = vpop.permute.xlu0 %2990
  %2992 = vrot.lane.b32.xlu0 %v2962, 28
  %v2993 = vpop.permute.xlu0 %2992
  %2994 = vrot.lane.b32.xlu0 %v2963, 28
  %v2995 = vpop.permute.xlu0 %2994
  %v2996 = vadd.f32 %v2931, %v2965
  %v2997 = vadd.f32 %v2932, %v2967
  %v2998 = vadd.f32 %v2933, %v2969
  %v2999 = vadd.f32 %v2934, %v2971
  %v3000 = vadd.f32 %v2935, %v2973
  %v3001 = vadd.f32 %v2936, %v2975
  %v3002 = vadd.f32 %v2937, %v2977
  %v3003 = vadd.f32 %v2938, %v2979
  %v3004 = vadd.f32 %v2939, %v2981
  %v3005 = vadd.f32 %v2940, %v2983
  %v3006 = vadd.f32 %v2941, %v2985
  %v3007 = vadd.f32 %v2942, %v2987
  %v3008 = vadd.f32 %v2943, %v2989
  %v3009 = vadd.f32 %v2944, %v2991
  %v3010 = vadd.f32 %v2945, %v2993
  %v3011 = vadd.f32 %v2946, %v2995
  %v3012 = vld [vmem:[#allocation2 + $0x91] sm:$0xff]
  %v3013 = vsel %vm2223, %v2625, 0.0
  %v3014 = vsel %vm2224, %v2626, 0.0
  %v3015 = vsel %vm2225, %v2627, 0.0
  %v3016 = vsel %vm2226, %v2628, 0.0
  %v3017 = vsel %vm2227, %v2629, 0.0
  %v3018 = vsel %vm2228, %v2630, 0.0
  %v3019 = vsel %vm2229, %v2631, 0.0
  %v3020 = vsel %vm2230, %v2632, 0.0
  %v3021 = vsel %vm2231, %v2633, 0.0
  %v3022 = vsel %vm2232, %v2634, 0.0
  %v3023 = vsel %vm2233, %v2635, 0.0
  %v3024 = vsel %vm2234, %v2636, 0.0
  %v3025 = vsel %vm2235, %v2637, 0.0
  %v3026 = vsel %vm2236, %v2638, 0.0
  %v3027 = vsel %vm2237, %v2817, 0.0
  %v3028 = vsel %vm2238, %v3012, 0.0
  %3029 = vrot.lane.b32.xlu0 %v3013, 32
  %v3030 = vpop.permute.xlu0 %3029
  %3031 = vrot.lane.b32.xlu0 %v3014, 32
  %v3032 = vpop.permute.xlu0 %3031
  %3033 = vrot.lane.b32.xlu0 %v3015, 32
  %v3034 = vpop.permute.xlu0 %3033
  %3035 = vrot.lane.b32.xlu0 %v3016, 32
  %v3036 = vpop.permute.xlu0 %3035
  %3037 = vrot.lane.b32.xlu0 %v3017, 32
  %v3038 = vpop.permute.xlu0 %3037
  %3039 = vrot.lane.b32.xlu0 %v3018, 32
  %v3040 = vpop.permute.xlu0 %3039
  %3041 = vrot.lane.b32.xlu0 %v3019, 32
  %v3042 = vpop.permute.xlu0 %3041
  %3043 = vrot.lane.b32.xlu0 %v3020, 32
  %v3044 = vpop.permute.xlu0 %3043
  %3045 = vrot.lane.b32.xlu0 %v3021, 32
  %v3046 = vpop.permute.xlu0 %3045
  %3047 = vrot.lane.b32.xlu0 %v3022, 32
  %v3048 = vpop.permute.xlu0 %3047
  %3049 = vrot.lane.b32.xlu0 %v3023, 32
  %v3050 = vpop.permute.xlu0 %3049
  %3051 = vrot.lane.b32.xlu0 %v3024, 32
  %v3052 = vpop.permute.xlu0 %3051
  %3053 = vrot.lane.b32.xlu0 %v3025, 32
  %v3054 = vpop.permute.xlu0 %3053
  %3055 = vrot.lane.b32.xlu0 %v3026, 32
  %v3056 = vpop.permute.xlu0 %3055
  %3057 = vrot.lane.b32.xlu0 %v3027, 32
  %v3058 = vpop.permute.xlu0 %3057
  %3059 = vrot.lane.b32.xlu0 %v3028, 32
  %v3060 = vpop.permute.xlu0 %3059
  %v3061 = vadd.f32 %v2996, %v3030
  %v3062 = vadd.f32 %v2997, %v3032
  %v3063 = vadd.f32 %v2998, %v3034
  %v3064 = vadd.f32 %v2999, %v3036
  %v3065 = vadd.f32 %v3000, %v3038
  %v3066 = vadd.f32 %v3001, %v3040
  %v3067 = vadd.f32 %v3002, %v3042
  %v3068 = vadd.f32 %v3003, %v3044
  %v3069 = vadd.f32 %v3004, %v3046
  %v3070 = vadd.f32 %v3005, %v3048
  %v3071 = vadd.f32 %v3006, %v3050
  %v3072 = vadd.f32 %v3007, %v3052
  %v3073 = vadd.f32 %v3008, %v3054
  %v3074 = vadd.f32 %v3009, %v3056
  %v3075 = vadd.f32 %v3010, %v3058
  %v3076 = vadd.f32 %v3011, %v3060
  %v3077 = vpack.c.bf16 %v3062, %v3061
  %v3078 = vpack.c.bf16 %v3064, %v3063
  %v3079 = vpack.c.bf16 %v3066, %v3065
  %v3080 = vpack.c.bf16 %v3068, %v3067
  %v3081 = vpack.c.bf16 %v3070, %v3069
  %v3082 = vpack.c.bf16 %v3072, %v3071
  %v3083 = vpack.c.bf16 %v3074, %v3073
  %v3084 = vpack.c.bf16 %v3076, %v3075
  %v3085 = vld [vmem:[%s5] sm:$0xf]
  %v3086 = vld [vmem:[%s5 + $0x4] sm:$0xf]
  %v3087 = vld [vmem:[%s5 + $0x8] sm:$0xf]
  %v3088 = vld [vmem:[%s5 + $0xc] sm:$0xf]
  %v3089 = vld [vmem:[%s5 + $0x10] sm:$0xf]
  %v3090 = vld [vmem:[%s5 + $0x14] sm:$0xf]
  %v3091 = vld [vmem:[%s5 + $0x18] sm:$0xf]
  %v3092 = vld [vmem:[%s5 + $0x1c] sm:$0xf]
  %v3093 = vld [vmem:[%s5 + $0x20] sm:$0xf]
  %v3094 = vld [vmem:[%s5 + $0x24] sm:$0xf]
  %v3095 = vld [vmem:[%s5 + $0x28] sm:$0xf]
  %v3096 = vld [vmem:[%s5 + $0x2c] sm:$0xf]
  %v3097 = vld [vmem:[%s5 + $0x30] sm:$0xf]
  %v3098 = vld [vmem:[%s5 + $0x34] sm:$0xf]
  %v3099 = vld [vmem:[%s5 + $0x38] sm:$0xf]
  %v3100 = vld [vmem:[%s5 + $0x3c] sm:$0xf]
  %v3101 = vld [vmem:[%s6] sm:$0x1]
  %v3103 = vlaneseq
  %v3104 = vshrl.u32 %v3103, 7
  %v3105 = vsub.s32 0, %v3104
  %v3106 = vrot.slane %v3101, %v3105
  %v3124 = vunpack.c.l.b16 %v3085
  %v3125 = vunpack.c.l.b16 %v3086
  %v3126 = vunpack.c.l.b16 %v3087
  %v3127 = vunpack.c.l.b16 %v3088
  %v3128 = vunpack.c.l.b16 %v3089
  %v3129 = vunpack.c.l.b16 %v3090
  %v3130 = vunpack.c.l.b16 %v3091
  %v3131 = vunpack.c.l.b16 %v3092
  %v3132 = vunpack.c.l.b16 %v3093
  %v3133 = vunpack.c.l.b16 %v3094
  %v3134 = vunpack.c.l.b16 %v3095
  %v3135 = vunpack.c.l.b16 %v3096
  %v3136 = vunpack.c.l.b16 %v3097
  %v3137 = vunpack.c.l.b16 %v3098
  %v3138 = vunpack.c.l.b16 %v3099
  %v3139 = vunpack.c.l.b16 %v3100
  %v3140 = vpack.c.b16 %v3125, %v3124
  %v3141 = vpack.c.b16 %v3127, %v3126
  %v3142 = vpack.c.b16 %v3129, %v3128
  %v3143 = vpack.c.b16 %v3131, %v3130
  %v3144 = vpack.c.b16 %v3133, %v3132
  %v3145 = vpack.c.b16 %v3135, %v3134
  %v3146 = vpack.c.b16 %v3137, %v3136
  %v3147 = vpack.c.b16 %v3139, %v3138
  %3156 = vmatprep.subr.bf16.mxu0 0
  %3157 = vmatpush1.bf16.msra.mxu0 %v3140
  %3158 = vmatprep.subr.bf16.mxu0 0
  %3159 = vmatpush1.bf16.msra.mxu0 %v3141
  %3160 = vmatprep.subr.bf16.mxu0 0
  %3161 = vmatpush1.bf16.msra.mxu0 %v3142
  %3162 = vmatprep.subr.bf16.mxu0 0
  %3163 = vmatpush1.bf16.msra.mxu0 %v3143
  %3164 = vmatprep.subr.bf16.mxu0 0
  %3165 = vmatpush1.bf16.msra.mxu0 %v3144
  %3166 = vmatprep.subr.bf16.mxu0 0
  %3167 = vmatpush1.bf16.msra.mxu0 %v3145
  %3168 = vmatprep.subr.bf16.mxu0 0
  %3169 = vmatpush1.bf16.msra.mxu0 %v3146
  %3170 = vmatprep.subr.bf16.mxu0 0
  %3171 = vmatpush1.bf16.msra.mxu0 %v3147
  %3172 = vmatprep.subr.bf16.mxu0 0
  %3173 = vmatpush1.bf16.msra.mxu0 0
  %3174 = vmatprep.subr.bf16.mxu0 0
  %3175 = vmatpush1.bf16.msra.mxu0 0
  %3176 = vmatprep.subr.bf16.mxu0 0
  %3177 = vmatpush1.bf16.msra.mxu0 0
  %3178 = vmatprep.subr.bf16.mxu0 0
  %3179 = vmatpush1.bf16.msra.mxu0 0
  %3180 = vmatprep.subr.bf16.mxu0 0
  %3181 = vmatpush1.bf16.msra.mxu0 0
  %3182 = vmatprep.subr.bf16.mxu0 0
  %3183 = vmatpush1.bf16.msra.mxu0 0
  %3184 = vmatprep.subr.bf16.mxu0 0
  %3185 = vmatpush1.bf16.msra.mxu0 0
  %3186 = vmatprep.subr.bf16.mxu0 0
  %3187 = vmatpush1.bf16.msra.mxu0 0
  %3188 = vmatprep.mubr.bf16.mxu0 0
  %3189 = vmatmul.mubr.bf16.gmra.mrb[0].mxu0 %v3077
  %v3190 = vpop.f32.mrb[0].mxu0
  %v3191 = vadd.f32 %v3106, %v3190
  %v3192 = vpop.f32.mrb[0].mxu0
  %v3193 = vpop.f32.mrb[0].mxu0
  %v3194 = vadd.f32 %v3106, %v3193
  %v3195 = vpop.f32.mrb[0].mxu0
  %3196 = vmatprep.mubr.bf16.mxu0 0
  %3197 = vmatmul.mubr.bf16.gmra.mrb[0].mxu0 %v3078
  %v3198 = vpop.f32.mrb[0].mxu0
  %v3199 = vadd.f32 %v3106, %v3198
  %v3200 = vpop.f32.mrb[0].mxu0
  %v3201 = vpop.f32.mrb[0].mxu0
  %v3202 = vadd.f32 %v3106, %v3201
  %v3203 = vpop.f32.mrb[0].mxu0
  %3204 = vmatprep.mubr.bf16.mxu0 0
  %3205 = vmatmul.mubr.bf16.gmra.mrb[0].mxu0 %v3079
  %v3206 = vpop.f32.mrb[0].mxu0
  %v3207 = vadd.f32 %v3106, %v3206
  %v3208 = vpop.f32.mrb[0].mxu0
  %v3209 = vpop.f32.mrb[0].mxu0
  %v3210 = vadd.f32 %v3106, %v3209
  %v3211 = vpop.f32.mrb[0].mxu0
  %3212 = vmatprep.mubr.bf16.mxu0 0
  %3213 = vmatmul.mubr.bf16.gmra.mrb[0].mxu0 %v3080
  %v3214 = vpop.f32.mrb[0].mxu0
  %v3215 = vadd.f32 %v3106, %v3214
  %v3216 = vpop.f32.mrb[0].mxu0
  %v3217 = vpop.f32.mrb[0].mxu0
  %v3218 = vadd.f32 %v3106, %v3217
  %v3219 = vpop.f32.mrb[0].mxu0
  %3220 = vmatprep.mubr.bf16.mxu0 0
  %3221 = vmatmul.mubr.bf16.gmra.mrb[0].mxu0 %v3081
  %v3222 = vpop.f32.mrb[0].mxu0
  %v3223 = vadd.f32 %v3106, %v3222
  %v3224 = vpop.f32.mrb[0].mxu0
  %v3225 = vpop.f32.mrb[0].mxu0
  %v3226 = vadd.f32 %v3106, %v3225
  %v3227 = vpop.f32.mrb[0].mxu0
  %3228 = vmatprep.mubr.bf16.mxu0 0
  %3229 = vmatmul.mubr.bf16.gmra.mrb[0].mxu0 %v3082
  %v3230 = vpop.f32.mrb[0].mxu0
  %v3231 = vadd.f32 %v3106, %v3230
  %v3232 = vpop.f32.mrb[0].mxu0
  %v3233 = vpop.f32.mrb[0].mxu0
  %v3234 = vadd.f32 %v3106, %v3233
  %v3235 = vpop.f32.mrb[0].mxu0
  %3236 = vmatprep.mubr.bf16.mxu0 0
  %3237 = vmatmul.mubr.bf16.gmra.mrb[0].mxu0 %v3083
  %v3238 = vpop.f32.mrb[0].mxu0
  %v3239 = vadd.f32 %v3106, %v3238
  %v3240 = vpop.f32.mrb[0].mxu0
  %v3241 = vpop.f32.mrb[0].mxu0
  %v3242 = vadd.f32 %v3106, %v3241
  %v3243 = vpop.f32.mrb[0].mxu0
  %3244 = vmatprep.mubr.bf16.mxu0 0
  %3245 = vmatmul.mubr.bf16.gmra.mrb[0].mxu0 %v3084
  %v3246 = vpop.f32.mrb[0].mxu0
  %v3247 = vadd.f32 %v3106, %v3246
  %v3248 = vpop.f32.mrb[0].mxu0
  %v3249 = vpop.f32.mrb[0].mxu0
  %v3250 = vadd.f32 %v3106, %v3249
  %v3251 = vpop.f32.mrb[0].mxu0
  %3252 = vdwg.mxu0
  %v3253 = vadd.f32 %v3191, %v614
  %v3254 = vadd.f32 %v3194, %v617
  %v3255 = vadd.f32 %v3199, %v622
  %v3256 = vadd.f32 %v3202, %v625
  %v3257 = vadd.f32 %v3207, %v630
  %v3258 = vadd.f32 %v3210, %v633
  %v3259 = vadd.f32 %v3215, %v638
  %v3260 = vadd.f32 %v3218, %v641
  %v3261 = vadd.f32 %v3223, %v646
  %v3262 = vadd.f32 %v3226, %v649
  %v3263 = vadd.f32 %v3231, %v654
  %v3264 = vadd.f32 %v3234, %v657
  %v3265 = vadd.f32 %v3239, %v662
  %v3266 = vadd.f32 %v3242, %v665
  %v3267 = vadd.f32 %v3247, %v670
  %v3268 = vadd.f32 %v3250, %v673
  %v3269 = vmax.f32 %v3253, 0.0
  %v3270 = vmax.f32 %v3254, 0.0
  %v3271 = vmax.f32 %v3255, 0.0
  %v3272 = vmax.f32 %v3256, 0.0
  %v3273 = vmax.f32 %v3257, 0.0
  %v3274 = vmax.f32 %v3258, 0.0
  %v3275 = vmax.f32 %v3259, 0.0
  %v3276 = vmax.f32 %v3260, 0.0
  %v3277 = vmax.f32 %v3261, 0.0
  %v3278 = vmax.f32 %v3262, 0.0
  %v3279 = vmax.f32 %v3263, 0.0
  %v3280 = vmax.f32 %v3264, 0.0
  %v3281 = vmax.f32 %v3265, 0.0
  %v3282 = vmax.f32 %v3266, 0.0
  %v3283 = vmax.f32 %v3267, 0.0
  %v3284 = vmax.f32 %v3268, 0.0
  %v3285 = vpack.c.bf16 %v3270, %v3269
  %v3286 = vpack.c.bf16 %v3272, %v3271
  %v3287 = vpack.c.bf16 %v3274, %v3273
  %v3288 = vpack.c.bf16 %v3276, %v3275
  %v3289 = vpack.c.bf16 %v3278, %v3277
  %v3290 = vpack.c.bf16 %v3280, %v3279
  %v3291 = vpack.c.bf16 %v3282, %v3281
  %v3292 = vpack.c.bf16 %v3284, %v3283
  %v3301 = vunpack.c.l.b16 %v3285
  %v3302 = vunpack.c.h.b16 %v3285
  %v3303 = vunpack.c.l.b16 %v3286
  %v3304 = vunpack.c.h.b16 %v3286
  %v3305 = vunpack.c.l.b16 %v3287
  %v3306 = vunpack.c.h.b16 %v3287
  %v3307 = vunpack.c.l.b16 %v3288
  %v3308 = vunpack.c.h.b16 %v3288
  %v3309 = vunpack.c.l.b16 %v3289
  %v3310 = vunpack.c.h.b16 %v3289
  %v3311 = vunpack.c.l.b16 %v3290
  %v3312 = vunpack.c.h.b16 %v3290
  %v3313 = vunpack.c.l.b16 %v3291
  %v3314 = vunpack.c.h.b16 %v3291
  %v3315 = vunpack.c.l.b16 %v3292
  %v3316 = vunpack.c.h.b16 %v3292
  %v3317 = vpack.c.b16 %v3301, %v3301
  %v3318 = vpack.c.b16 %v3302, %v3302
  %v3319 = vpack.c.b16 %v3303, %v3303
  %v3320 = vpack.c.b16 %v3304, %v3304
  %v3321 = vpack.c.b16 %v3305, %v3305
  %v3322 = vpack.c.b16 %v3306, %v3306
  %v3323 = vpack.c.b16 %v3307, %v3307
  %v3324 = vpack.c.b16 %v3308, %v3308
  %v3325 = vpack.c.b16 %v3309, %v3309
  %v3326 = vpack.c.b16 %v3310, %v3310
  %v3327 = vpack.c.b16 %v3311, %v3311
  %v3328 = vpack.c.b16 %v3312, %v3312
  %v3329 = vpack.c.b16 %v3313, %v3313
  %v3330 = vpack.c.b16 %v3314, %v3314
  %v3331 = vpack.c.b16 %v3315, %v3315
  %v3332 = vpack.c.b16 %v3316, %v3316
  %3349 = vst [vmem:[%s7] sm:$0xf] %v3317
  %3350 = vst [vmem:[%s7 + $0x4] sm:$0xf] %v3318
  %3351 = vst [vmem:[%s7 + $0x8] sm:$0xf] %v3319
  %3352 = vst [vmem:[%s7 + $0xc] sm:$0xf] %v3320
  %3353 = vst [vmem:[%s7 + $0x10] sm:$0xf] %v3321
  %3354 = vst [vmem:[%s7 + $0x14] sm:$0xf] %v3322
  %3355 = vst [vmem:[%s7 + $0x18] sm:$0xf] %v3323
  %3356 = vst [vmem:[%s7 + $0x1c] sm:$0xf] %v3324
  %3357 = vst [vmem:[%s7 + $0x20] sm:$0xf] %v3325
  %3358 = vst [vmem:[%s7 + $0x24] sm:$0xf] %v3326
  %3359 = vst [vmem:[%s7 + $0x28] sm:$0xf] %v3327
  %3360 = vst [vmem:[%s7 + $0x2c] sm:$0xf] %v3328
  %3361 = vst [vmem:[%s7 + $0x30] sm:$0xf] %v3329
  %3362 = vst [vmem:[%s7 + $0x34] sm:$0xf] %v3330
  %3363 = vst [vmem:[%s7 + $0x38] sm:$0xf] %v3331
  %3364 = vst [vmem:[%s7 + $0x3c] sm:$0xf] %v3332
  // Predicated region
  $region30: #{cnn_switch_3l_forward.4} parent=0 // pred_check
    _
  $region31: #{cnn_switch_3l_forward.4} parent=0 // pred_check_branch
    %3366 = sbr.rel (0) target = $region33
  $region32: #{cnn_switch_3l_forward.4} parent=0 // pred_region
    _
  $region33: #{cnn_switch_3l_forward.4} parent=0 // pred_fallthru
    _
  // Predicated region
  $region34: #{cnn_switch_3l_forward.4} parent=0 // pred_check
    _
  $region35: #{cnn_switch_3l_forward.4} parent=0 // pred_check_branch
    %3368 = sbr.rel (0) target = $region37
  $region36: #{cnn_switch_3l_forward.4} parent=0 // pred_region
    _
  $region37: #{cnn_switch_3l_forward.4} parent=0 // pred_fallthru
    _

// kernel: cnn_switch_3l_forward.5
$region0: #{cnn_switch_3l_forward.5}
  #allocation0 [shape = 'u32[]', space=smem, size = 0x4, offset = 0x4, fixed_abs, tag = 'smem constant byte address 0x4 - core index']
  #allocation1 [shape = 'u32[144,128]{1,0:T(1,128)}', space=vmem, size = 0x12000, scoped, tag = 'internal scratch']
  %s0 = inlined_call_operand.vmem [shape: bf16[2,512], index: 0, kind: input, shape index: {}]
  %s1 = inlined_call_operand.vmem [shape: bf16[512,128], index: 1, kind: input, shape index: {}]
  %s2 = inlined_call_operand.vmem [shape: f32[1,128], index: 2, kind: input, shape index: {}]
  %s3 = inlined_call_operand.vmem [shape: f32[128,128], index: 3, kind: input, shape index: {}]
  %s4 = inlined_call_operand.vmem [shape: f32[1,128], index: 4, kind: input, shape index: {}]
  %s5 = inlined_call_operand.vmem [shape: f32[128,128], index: 5, kind: input, shape index: {}]
  %s6 = inlined_call_operand.vmem [shape: f32[1,128], index: 6, kind: input, shape index: {}]
  %s7 = inlined_call_operand.vmem [shape: f32[128,128], index: 7, kind: input, shape index: {}]
  %s8 = inlined_call_operand.vmem [shape: f32[1,128], index: 8, kind: input, shape index: {}]
  %s9 = inlined_call_operand.hbm [shape: f32[2,128], index: 9, kind: output, shape index: {}]
  %s10 = sld [smem:[#allocation0]]
  $region46: #{cnn_switch_3l_forward.5} parent=0
    _
  %s12 = ssub.s32 1, %s10
  %s13 = scalar_select 0, %s12, %s10
  $region1: #{cnn_switch_3l_forward.5} parent=0
    #allocation2 [shape = 'u8[1024]{0}', space=vmem, size = 0x400, scoped, tag = 'output window, operand 0, single buffered']
    #allocation3 [shape = 's32[1]{0}', space=sflag, size = 0x4, scoped, tag = 'scoped memory for cnn_switch_3l_forward.5']
    %14 = vsyncpa [#allocation3], 0
    // Predicated region
    $region2: #{cnn_switch_3l_forward.5} parent=1 // pred_check
      _
    $region3: #{cnn_switch_3l_forward.5} parent=1 // pred_check_branch
      %16 = sbr.rel (0) target = $region5
    $region4: #{cnn_switch_3l_forward.5} parent=1 // pred_region
      _
    $region5: #{cnn_switch_3l_forward.5} parent=1 // pred_fallthru
      _
    // Predicated region
    $region6: #{cnn_switch_3l_forward.5} parent=1 // pred_check
      _
    $region7: #{cnn_switch_3l_forward.5} parent=1 // pred_check_branch
      %18 = sbr.rel (0) target = $region9
    $region8: #{cnn_switch_3l_forward.5} parent=1 // pred_region
      _
    $region9: #{cnn_switch_3l_forward.5} parent=1 // pred_fallthru
      _
    // Predicated region
    $region10: #{cnn_switch_3l_forward.5} parent=1 // pred_check
      _
    $region11: #{cnn_switch_3l_forward.5} parent=1 // pred_check_branch
      %20 = sbr.rel (0) target = $region13
    $region12: #{cnn_switch_3l_forward.5} parent=1 // pred_region
      _
    $region13: #{cnn_switch_3l_forward.5} parent=1 // pred_fallthru
      _
    // Predicated region
    $region14: #{cnn_switch_3l_forward.5} parent=1 // pred_check
      _
    $region15: #{cnn_switch_3l_forward.5} parent=1 // pred_check_branch
      %22 = sbr.rel (0) target = $region17
    $region16: #{cnn_switch_3l_forward.5} parent=1 // pred_region
      _
    $region17: #{cnn_switch_3l_forward.5} parent=1 // pred_fallthru
      _
    // Predicated region
    $region18: #{cnn_switch_3l_forward.5} parent=1 // pred_check
      _
    $region19: #{cnn_switch_3l_forward.5} parent=1 // pred_check_branch
      %24 = sbr.rel (0) target = $region21
    $region20: #{cnn_switch_3l_forward.5} parent=1 // pred_region
      _
    $region21: #{cnn_switch_3l_forward.5} parent=1 // pred_fallthru
      _
    // Predicated region
    $region22: #{cnn_switch_3l_forward.5} parent=1 // pred_check
      _
    $region23: #{cnn_switch_3l_forward.5} parent=1 // pred_check_branch
      %26 = sbr.rel (0) target = $region25
    $region24: #{cnn_switch_3l_forward.5} parent=1 // pred_region
      _
    $region25: #{cnn_switch_3l_forward.5} parent=1 // pred_fallthru
      _
    // Predicated region
    $region26: #{cnn_switch_3l_forward.5} parent=1 // pred_check
      _
    $region27: #{cnn_switch_3l_forward.5} parent=1 // pred_check_branch
      %28 = sbr.rel (0) target = $region29
    $region28: #{cnn_switch_3l_forward.5} parent=1 // pred_region
      _
    $region29: #{cnn_switch_3l_forward.5} parent=1 // pred_fallthru
      _
    // Predicated region
    $region30: #{cnn_switch_3l_forward.5} parent=1 // pred_check
      _
    $region31: #{cnn_switch_3l_forward.5} parent=1 // pred_check_branch
      %30 = sbr.rel (0) target = $region33
    $region32: #{cnn_switch_3l_forward.5} parent=1 // pred_region
      _
    $region33: #{cnn_switch_3l_forward.5} parent=1 // pred_fallthru
      _
    // Predicated region
    $region34: #{cnn_switch_3l_forward.5} parent=1 // pred_check
      _
    $region35: #{cnn_switch_3l_forward.5} parent=1 // pred_check_branch
      %32 = sbr.rel (0) target = $region37
    $region36: #{cnn_switch_3l_forward.5} parent=1 // pred_region
      _
    $region37: #{cnn_switch_3l_forward.5} parent=1 // pred_fallthru
      _
    %v34 = vld [vmem:[%s0] sm:$0xf]
    %v35 = vld [vmem:[%s1] sm:$0xf]
    %v36 = vld [vmem:[%s1 + $0x4] sm:$0xf]
    %v37 = vld [vmem:[%s1 + $0x8] sm:$0xf]
    %v38 = vld [vmem:[%s1 + $0xc] sm:$0xf]
    %v39 = vld [vmem:[%s1 + $0x10] sm:$0xf]
    %v40 = vld [vmem:[%s1 + $0x14] sm:$0xf]
    %v41 = vld [vmem:[%s1 + $0x18] sm:$0xf]
    %v42 = vld [vmem:[%s1 + $0x1c] sm:$0xf]
    %v43 = vld [vmem:[%s1 + $0x20] sm:$0xf]
    %v44 = vld [vmem:[%s1 + $0x24] sm:$0xf]
    %v45 = vld [vmem:[%s1 + $0x28] sm:$0xf]
    %v46 = vld [vmem:[%s1 + $0x2c] sm:$0xf]
    %v47 = vld [vmem:[%s1 + $0x30] sm:$0xf]
    %v48 = vld [vmem:[%s1 + $0x34] sm:$0xf]
    %v49 = vld [vmem:[%s1 + $0x38] sm:$0xf]
    %v50 = vld [vmem:[%s1 + $0x3c] sm:$0xf]
    %v51 = vld [vmem:[%s1 + $0x40] sm:$0xf]
    %v52 = vld [vmem:[%s1 + $0x44] sm:$0xf]
    %v53 = vld [vmem:[%s1 + $0x48] sm:$0xf]
    %v54 = vld [vmem:[%s1 + $0x4c] sm:$0xf]
    %v55 = vld [vmem:[%s1 + $0x50] sm:$0xf]
    %v56 = vld [vmem:[%s1 + $0x54] sm:$0xf]
    %v57 = vld [vmem:[%s1 + $0x58] sm:$0xf]
    %v58 = vld [vmem:[%s1 + $0x5c] sm:$0xf]
    %v59 = vld [vmem:[%s1 + $0x60] sm:$0xf]
    %v60 = vld [vmem:[%s1 + $0x64] sm:$0xf]
    %v61 = vld [vmem:[%s1 + $0x68] sm:$0xf]
    %v62 = vld [vmem:[%s1 + $0x6c] sm:$0xf]
    %v63 = vld [vmem:[%s1 + $0x70] sm:$0xf]
    %v64 = vld [vmem:[%s1 + $0x74] sm:$0xf]
    %v65 = vld [vmem:[%s1 + $0x78] sm:$0xf]
    %v66 = vld [vmem:[%s1 + $0x7c] sm:$0xf]
    %v67 = vld [vmem:[%s1 + $0x80] sm:$0xf]
    %v68 = vld [vmem:[%s1 + $0x84] sm:$0xf]
    %v69 = vld [vmem:[%s1 + $0x88] sm:$0xf]
    %v70 = vld [vmem:[%s1 + $0x8c] sm:$0xf]
    %v71 = vld [vmem:[%s1 + $0x90] sm:$0xf]
    %v72 = vld [vmem:[%s1 + $0x94] sm:$0xf]
    %v73 = vld [vmem:[%s1 + $0x98] sm:$0xf]
    %v74 = vld [vmem:[%s1 + $0x9c] sm:$0xf]
    %v75 = vld [vmem:[%s1 + $0xa0] sm:$0xf]
    %v76 = vld [vmem:[%s1 + $0xa4] sm:$0xf]
    %v77 = vld [vmem:[%s1 + $0xa8] sm:$0xf]
    %v78 = vld [vmem:[%s1 + $0xac] sm:$0xf]
    %v79 = vld [vmem:[%s1 + $0xb0] sm:$0xf]
    %v80 = vld [vmem:[%s1 + $0xb4] sm:$0xf]
    %v81 = vld [vmem:[%s1 + $0xb8] sm:$0xf]
    %v82 = vld [vmem:[%s1 + $0xbc] sm:$0xf]
    %v83 = vld [vmem:[%s1 + $0xc0] sm:$0xf]
    %v84 = vld [vmem:[%s1 + $0xc4] sm:$0xf]
    %v85 = vld [vmem:[%s1 + $0xc8] sm:$0xf]
    %v86 = vld [vmem:[%s1 + $0xcc] sm:$0xf]
    %v87 = vld [vmem:[%s1 + $0xd0] sm:$0xf]
    %v88 = vld [vmem:[%s1 + $0xd4] sm:$0xf]
    %v89 = vld [vmem:[%s1 + $0xd8] sm:$0xf]
    %v90 = vld [vmem:[%s1 + $0xdc] sm:$0xf]
    %v91 = vld [vmem:[%s1 + $0xe0] sm:$0xf]
    %v92 = vld [vmem:[%s1 + $0xe4] sm:$0xf]
    %v93 = vld [vmem:[%s1 + $0xe8] sm:$0xf]
    %v94 = vld [vmem:[%s1 + $0xec] sm:$0xf]
    %v95 = vld [vmem:[%s1 + $0xf0] sm:$0xf]
    %v96 = vld [vmem:[%s1 + $0xf4] sm:$0xf]
    %v97 = vld [vmem:[%s1 + $0xf8] sm:$0xf]
    %v98 = vld [vmem:[%s1 + $0xfc] sm:$0xf]
    %v99 = vld [vmem:[%s2] sm:$0x1]
    %v101 = vlaneseq
    %v102 = vshrl.u32 %v101, 7
    %v103 = vsub.s32 0, %v102
    %v104 = vrot.slane %v99, %v103
    %v108 = vunpack.c.l.s4 1966171168
    %v109 = vunpack.c.0.s8 %v108
    %v110 = vlaneseq
    %v111 = vshrl.u32 %v110, 7
    %v112 = vsub.s32 %v109, %v111
    %v113 = vrot.slane %v34, %v112
    %v114 = vcombine.high %v113, %v113
    %v116 = vunpack.c.l.s4 1966171168
    %v117 = vunpack.c.0.s8 %v116
    %v118 = vlaneseq
    %v119 = vshrl.u32 %v118, 7
    %v120 = vsub.s32 %v117, %v119
    %v121 = vrot.slane %v113, %v120
    %v123 = vunpack.c.l.s4 1966171168
    %v124 = vunpack.c.0.s8 %v123
    %v125 = vlaneseq
    %v126 = vshrl.u32 %v125, 7
    %v127 = vsub.s32 %v124, %v126
    %v128 = vrot.slane %v114, %v127
    %v129 = vcombine.high %v121, %v121
    %v130 = vcombine.high %v128, %v128
    %v199 = vunpack.c.l.b16 %v35
    %v200 = vunpack.c.l.b16 %v36
    %v201 = vunpack.c.l.b16 %v37
    %v202 = vunpack.c.l.b16 %v38
    %v203 = vunpack.c.l.b16 %v39
    %v204 = vunpack.c.l.b16 %v40
    %v205 = vunpack.c.l.b16 %v41
    %v206 = vunpack.c.l.b16 %v42
    %v207 = vunpack.c.l.b16 %v43
    %v208 = vunpack.c.l.b16 %v44
    %v209 = vunpack.c.l.b16 %v45
    %v210 = vunpack.c.l.b16 %v46
    %v211 = vunpack.c.l.b16 %v47
    %v212 = vunpack.c.l.b16 %v48
    %v213 = vunpack.c.l.b16 %v49
    %v214 = vunpack.c.l.b16 %v50
    %v215 = vunpack.c.l.b16 %v51
    %v216 = vunpack.c.l.b16 %v52
    %v217 = vunpack.c.l.b16 %v53
    %v218 = vunpack.c.l.b16 %v54
    %v219 = vunpack.c.l.b16 %v55
    %v220 = vunpack.c.l.b16 %v56
    %v221 = vunpack.c.l.b16 %v57
    %v222 = vunpack.c.l.b16 %v58
    %v223 = vunpack.c.l.b16 %v59
    %v224 = vunpack.c.l.b16 %v60
    %v225 = vunpack.c.l.b16 %v61
    %v226 = vunpack.c.l.b16 %v62
    %v227 = vunpack.c.l.b16 %v63
    %v228 = vunpack.c.l.b16 %v64
    %v229 = vunpack.c.l.b16 %v65
    %v230 = vunpack.c.l.b16 %v66
    %v231 = vunpack.c.l.b16 %v67
    %v232 = vunpack.c.l.b16 %v68
    %v233 = vunpack.c.l.b16 %v69
    %v234 = vunpack.c.l.b16 %v70
    %v235 = vunpack.c.l.b16 %v71
    %v236 = vunpack.c.l.b16 %v72
    %v237 = vunpack.c.l.b16 %v73
    %v238 = vunpack.c.l.b16 %v74
    %v239 = vunpack.c.l.b16 %v75
    %v240 = vunpack.c.l.b16 %v76
    %v241 = vunpack.c.l.b16 %v77
    %v242 = vunpack.c.l.b16 %v78
    %v243 = vunpack.c.l.b16 %v79
    %v244 = vunpack.c.l.b16 %v80
    %v245 = vunpack.c.l.b16 %v81
    %v246 = vunpack.c.l.b16 %v82
    %v247 = vunpack.c.l.b16 %v83
    %v248 = vunpack.c.l.b16 %v84
    %v249 = vunpack.c.l.b16 %v85
    %v250 = vunpack.c.l.b16 %v86
    %v251 = vunpack.c.l.b16 %v87
    %v252 = vunpack.c.l.b16 %v88
    %v253 = vunpack.c.l.b16 %v89
    %v254 = vunpack.c.l.b16 %v90
    %v255 = vunpack.c.l.b16 %v91
    %v256 = vunpack.c.l.b16 %v92
    %v257 = vunpack.c.l.b16 %v93
    %v258 = vunpack.c.l.b16 %v94
    %v259 = vunpack.c.l.b16 %v95
    %v260 = vunpack.c.l.b16 %v96
    %v261 = vunpack.c.l.b16 %v97
    %v262 = vunpack.c.l.b16 %v98
    %v263 = vpack.c.b16 %v200, %v199
    %v264 = vpack.c.b16 %v202, %v201
    %v265 = vpack.c.b16 %v204, %v203
    %v266 = vpack.c.b16 %v206, %v205
    %v267 = vpack.c.b16 %v208, %v207
    %v268 = vpack.c.b16 %v210, %v209
    %v269 = vpack.c.b16 %v212, %v211
    %v270 = vpack.c.b16 %v214, %v213
    %v271 = vpack.c.b16 %v216, %v215
    %v272 = vpack.c.b16 %v218, %v217
    %v273 = vpack.c.b16 %v220, %v219
    %v274 = vpack.c.b16 %v222, %v221
    %v275 = vpack.c.b16 %v224, %v223
    %v276 = vpack.c.b16 %v226, %v225
    %v277 = vpack.c.b16 %v228, %v227
    %v278 = vpack.c.b16 %v230, %v229
    %v279 = vpack.c.b16 %v232, %v231
    %v280 = vpack.c.b16 %v234, %v233
    %v281 = vpack.c.b16 %v236, %v235
    %v282 = vpack.c.b16 %v238, %v237
    %v283 = vpack.c.b16 %v240, %v239
    %v284 = vpack.c.b16 %v242, %v241
    %v285 = vpack.c.b16 %v244, %v243
    %v286 = vpack.c.b16 %v246, %v245
    %v287 = vpack.c.b16 %v248, %v247
    %v288 = vpack.c.b16 %v250, %v249
    %v289 = vpack.c.b16 %v252, %v251
    %v290 = vpack.c.b16 %v254, %v253
    %v291 = vpack.c.b16 %v256, %v255
    %v292 = vpack.c.b16 %v258, %v257
    %v293 = vpack.c.b16 %v260, %v259
    %v294 = vpack.c.b16 %v262, %v261
    %327 = vmatprep.subr.bf16.mxu0 0
    %328 = vmatpush1.bf16.msra.mxu0 %v263
    %329 = vmatprep.subr.bf16.mxu0 0
    %330 = vmatpush1.bf16.msra.mxu0 %v264
    %331 = vmatprep.subr.bf16.mxu0 0
    %332 = vmatpush1.bf16.msra.mxu0 %v265
    %333 = vmatprep.subr.bf16.mxu0 0
    %334 = vmatpush1.bf16.msra.mxu0 %v266
    %335 = vmatprep.subr.bf16.mxu0 0
    %336 = vmatpush1.bf16.msra.mxu0 %v267
    %337 = vmatprep.subr.bf16.mxu0 0
    %338 = vmatpush1.bf16.msra.mxu0 %v268
    %339 = vmatprep.subr.bf16.mxu0 0
    %340 = vmatpush1.bf16.msra.mxu0 %v269
    %341 = vmatprep.subr.bf16.mxu0 0
    %342 = vmatpush1.bf16.msra.mxu0 %v270
    %343 = vmatprep.subr.bf16.mxu0 0
    %344 = vmatpush1.bf16.msra.mxu0 %v271
    %345 = vmatprep.subr.bf16.mxu0 0
    %346 = vmatpush1.bf16.msra.mxu0 %v272
    %347 = vmatprep.subr.bf16.mxu0 0
    %348 = vmatpush1.bf16.msra.mxu0 %v273
    %349 = vmatprep.subr.bf16.mxu0 0
    %350 = vmatpush1.bf16.msra.mxu0 %v274
    %351 = vmatprep.subr.bf16.mxu0 0
    %352 = vmatpush1.bf16.msra.mxu0 %v275
    %353 = vmatprep.subr.bf16.mxu0 0
    %354 = vmatpush1.bf16.msra.mxu0 %v276
    %355 = vmatprep.subr.bf16.mxu0 0
    %356 = vmatpush1.bf16.msra.mxu0 %v277
    %357 = vmatprep.subr.bf16.mxu0 0
    %358 = vmatpush1.bf16.msra.mxu0 %v278
    %359 = vmatprep.mubr.bf16.mxu0 %v128
    %360 = vmatmul.mubr.bf16.gmra.mrb[0].mxu0 %v121
    %v361 = vpop.f32.mrb[0].mxu0
    %v362 = vadd.f32 %v104, %v361
    %v363 = vpop.f32.mrb[0].mxu0
    %v364 = vpop.f32.mrb[0].mxu0
    %v365 = vpop.f32.mrb[0].mxu0
    %366 = vdwg.mxu0
    %367 = vmatprep.subr.bf16.mxu0 0
    %368 = vmatpush1.bf16.msra.mxu0 %v279
    %369 = vmatprep.subr.bf16.mxu0 0
    %370 = vmatpush1.bf16.msra.mxu0 %v280
    %371 = vmatprep.subr.bf16.mxu0 0
    %372 = vmatpush1.bf16.msra.mxu0 %v281
    %373 = vmatprep.subr.bf16.mxu0 0
    %374 = vmatpush1.bf16.msra.mxu0 %v282
    %375 = vmatprep.subr.bf16.mxu0 0
    %376 = vmatpush1.bf16.msra.mxu0 %v283
    %377 = vmatprep.subr.bf16.mxu0 0
    %378 = vmatpush1.bf16.msra.mxu0 %v284
    %379 = vmatprep.subr.bf16.mxu0 0
    %380 = vmatpush1.bf16.msra.mxu0 %v285
    %381 = vmatprep.subr.bf16.mxu0 0
    %382 = vmatpush1.bf16.msra.mxu0 %v286
    %383 = vmatprep.subr.bf16.mxu0 0
    %384 = vmatpush1.bf16.msra.mxu0 %v287
    %385 = vmatprep.subr.bf16.mxu0 0
    %386 = vmatpush1.bf16.msra.mxu0 %v288
    %387 = vmatprep.subr.bf16.mxu0 0
    %388 = vmatpush1.bf16.msra.mxu0 %v289
    %389 = vmatprep.subr.bf16.mxu0 0
    %390 = vmatpush1.bf16.msra.mxu0 %v290
    %391 = vmatprep.subr.bf16.mxu0 0
    %392 = vmatpush1.bf16.msra.mxu0 %v291
    %393 = vmatprep.subr.bf16.mxu0 0
    %394 = vmatpush1.bf16.msra.mxu0 %v292
    %395 = vmatprep.subr.bf16.mxu0 0
    %396 = vmatpush1.bf16.msra.mxu0 %v293
    %397 = vmatprep.subr.bf16.mxu0 0
    %398 = vmatpush1.bf16.msra.mxu0 %v294
    %399 = vmatprep.mubr.bf16.mxu0 %v130
    %400 = vmatmul.mubr.bf16.gmra.mrb[0].mxu0 %v129
    %v401 = vpop.f32.mrb[0].mxu0
    %v402 = vadd.f32 %v362, %v401
    %v403 = vpop.f32.mrb[0].mxu0
    %v404 = vpop.f32.mrb[0].mxu0
    %v405 = vpop.f32.mrb[0].mxu0
    %406 = vdwg.mxu0
    %v407 = vld [vmem:[%s3] sm:$0xff]
    %v408 = vld [vmem:[%s3 + $0x8] sm:$0xff]
    %v409 = vld [vmem:[%s3 + $0x10] sm:$0xff]
    %v410 = vld [vmem:[%s3 + $0x18] sm:$0xff]
    %v411 = vld [vmem:[%s3 + $0x20] sm:$0xff]
    %v412 = vld [vmem:[%s3 + $0x28] sm:$0xff]
    %v413 = vld [vmem:[%s3 + $0x30] sm:$0xff]
    %v414 = vld [vmem:[%s3 + $0x38] sm:$0xff]
    %v415 = vld [vmem:[%s3 + $0x40] sm:$0xff]
    %v416 = vld [vmem:[%s3 + $0x48] sm:$0xff]
    %v417 = vld [vmem:[%s3 + $0x50] sm:$0xff]
    %v418 = vld [vmem:[%s3 + $0x58] sm:$0xff]
    %v419 = vld [vmem:[%s3 + $0x60] sm:$0xff]
    %v420 = vld [vmem:[%s3 + $0x68] sm:$0xff]
    %v421 = vld [vmem:[%s3 + $0x70] sm:$0xff]
    %v422 = vld [vmem:[%s3 + $0x78] sm:$0xff]
    %v423 = vld [vmem:[%s4] sm:$0x1]
    %v425 = vlaneseq
    %v426 = vshrl.u32 %v425, 7
    %v427 = vsub.s32 0, %v426
    %v428 = vrot.slane %v423, %v427
    %430 = vmatprep.subr.mxu0 0.0
    %431 = vmatpush1.msra.mxu0 %v407
    %432 = vmatprep.subr.mxu0 0.0
    %433 = vmatpush1.msra.mxu0 %v408
    %434 = vmatprep.subr.mxu0 0.0
    %435 = vmatpush1.msra.mxu0 %v409
    %436 = vmatprep.subr.mxu0 0.0
    %437 = vmatpush1.msra.mxu0 %v410
    %438 = vmatprep.subr.mxu0 0.0
    %439 = vmatpush1.msra.mxu0 %v411
    %440 = vmatprep.subr.mxu0 0.0
    %441 = vmatpush1.msra.mxu0 %v412
    %442 = vmatprep.subr.mxu0 0.0
    %443 = vmatpush1.msra.mxu0 %v413
    %444 = vmatprep.subr.mxu0 0.0
    %445 = vmatpush1.msra.mxu0 %v414
    %446 = vmatprep.subr.mxu0 0.0
    %447 = vmatpush1.msra.mxu0 %v415
    %448 = vmatprep.subr.mxu0 0.0
    %449 = vmatpush1.msra.mxu0 %v416
    %450 = vmatprep.subr.mxu0 0.0
    %451 = vmatpush1.msra.mxu0 %v417
    %452 = vmatprep.subr.mxu0 0.0
    %453 = vmatpush1.msra.mxu0 %v418
    %454 = vmatprep.subr.mxu0 0.0
    %455 = vmatpush1.msra.mxu0 %v419
    %456 = vmatprep.subr.mxu0 0.0
    %457 = vmatpush1.msra.mxu0 %v420
    %458 = vmatprep.subr.mxu0 0.0
    %459 = vmatpush1.msra.mxu0 %v421
    %460 = vmatprep.subr.mxu0 0.0
    %461 = vmatpush1.msra.mxu0 %v422
    %462 = vmatprep.subr.mxu0 0.0
    %463 = vmatpush1.msra.mxu0 0.0
    %464 = vmatprep.subr.mxu0 0.0
    %465 = vmatpush1.msra.mxu0 0.0
    %466 = vmatprep.subr.mxu0 0.0
    %467 = vmatpush1.msra.mxu0 0.0
    %468 = vmatprep.subr.mxu0 0.0
    %469 = vmatpush1.msra.mxu0 0.0
    %470 = vmatprep.subr.mxu0 0.0
    %471 = vmatpush1.msra.mxu0 0.0
    %472 = vmatprep.subr.mxu0 0.0
    %473 = vmatpush1.msra.mxu0 0.0
    %474 = vmatprep.subr.mxu0 0.0
    %475 = vmatpush1.msra.mxu0 0.0
    %476 = vmatprep.subr.mxu0 0.0
    %477 = vmatpush1.msra.mxu0 0.0
    %478 = vmatprep.subr.mxu0 0.0
    %479 = vmatpush1.msra.mxu0 0.0
    %480 = vmatprep.subr.mxu0 0.0
    %481 = vmatpush1.msra.mxu0 0.0
    %482 = vmatprep.subr.mxu0 0.0
    %483 = vmatpush1.msra.mxu0 0.0
    %484 = vmatprep.subr.mxu0 0.0
    %485 = vmatpush1.msra.mxu0 0.0
    %486 = vmatprep.subr.mxu0 0.0
    %487 = vmatpush1.msra.mxu0 0.0
    %488 = vmatprep.subr.mxu0 0.0
    %489 = vmatpush1.msra.mxu0 0.0
    %490 = vmatprep.subr.mxu0 0.0
    %491 = vmatpush1.msra.mxu0 0.0
    %492 = vmatprep.subr.mxu0 0.0
    %493 = vmatpush1.msra.mxu0 0.0
    %494 = vmatprep.mubr.f32.mxu0 0.0
    %495 = vmatmul.mubr.f32.gmra.mrb[0].mxu0 %v402
    %v496 = vpop.f32.mrb[0].mxu0
    %v497 = vadd.f32 %v428, %v496
    %v498 = vpop.f32.mrb[0].mxu0
    %499 = vdwg.mxu0
    %v500 = vmax.f32 %v497, 0.0
    %v501 = vld [vmem:[%s5] sm:$0xff]
    %v502 = vld [vmem:[%s5 + $0x8] sm:$0xff]
    %v503 = vld [vmem:[%s5 + $0x10] sm:$0xff]
    %v504 = vld [vmem:[%s5 + $0x18] sm:$0xff]
    %v505 = vld [vmem:[%s5 + $0x20] sm:$0xff]
    %v506 = vld [vmem:[%s5 + $0x28] sm:$0xff]
    %v507 = vld [vmem:[%s5 + $0x30] sm:$0xff]
    %v508 = vld [vmem:[%s5 + $0x38] sm:$0xff]
    %v509 = vld [vmem:[%s5 + $0x40] sm:$0xff]
    %v510 = vld [vmem:[%s5 + $0x48] sm:$0xff]
    %v511 = vld [vmem:[%s5 + $0x50] sm:$0xff]
    %v512 = vld [vmem:[%s5 + $0x58] sm:$0xff]
    %v513 = vld [vmem:[%s5 + $0x60] sm:$0xff]
    %v514 = vld [vmem:[%s5 + $0x68] sm:$0xff]
    %v515 = vld [vmem:[%s5 + $0x70] sm:$0xff]
    %v516 = vld [vmem:[%s5 + $0x78] sm:$0xff]
    %v517 = vld [vmem:[%s6] sm:$0x1]
    %v519 = vlaneseq
    %v520 = vshrl.u32 %v519, 7
    %v521 = vsub.s32 0, %v520
    %v522 = vrot.slane %v517, %v521
    %524 = vmatprep.subr.mxu0 0.0
    %525 = vmatpush1.msra.mxu0 %v501
    %526 = vmatprep.subr.mxu0 0.0
    %527 = vmatpush1.msra.mxu0 %v502
    %528 = vmatprep.subr.mxu0 0.0
    %529 = vmatpush1.msra.mxu0 %v503
    %530 = vmatprep.subr.mxu0 0.0
    %531 = vmatpush1.msra.mxu0 %v504
    %532 = vmatprep.subr.mxu0 0.0
    %533 = vmatpush1.msra.mxu0 %v505
    %534 = vmatprep.subr.mxu0 0.0
    %535 = vmatpush1.msra.mxu0 %v506
    %536 = vmatprep.subr.mxu0 0.0
    %537 = vmatpush1.msra.mxu0 %v507
    %538 = vmatprep.subr.mxu0 0.0
    %539 = vmatpush1.msra.mxu0 %v508
    %540 = vmatprep.subr.mxu0 0.0
    %541 = vmatpush1.msra.mxu0 %v509
    %542 = vmatprep.subr.mxu0 0.0
    %543 = vmatpush1.msra.mxu0 %v510
    %544 = vmatprep.subr.mxu0 0.0
    %545 = vmatpush1.msra.mxu0 %v511
    %546 = vmatprep.subr.mxu0 0.0
    %547 = vmatpush1.msra.mxu0 %v512
    %548 = vmatprep.subr.mxu0 0.0
    %549 = vmatpush1.msra.mxu0 %v513
    %550 = vmatprep.subr.mxu0 0.0
    %551 = vmatpush1.msra.mxu0 %v514
    %552 = vmatprep.subr.mxu0 0.0
    %553 = vmatpush1.msra.mxu0 %v515
    %554 = vmatprep.subr.mxu0 0.0
    %555 = vmatpush1.msra.mxu0 %v516
    %556 = vmatprep.subr.mxu0 0.0
    %557 = vmatpush1.msra.mxu0 0.0
    %558 = vmatprep.subr.mxu0 0.0
    %559 = vmatpush1.msra.mxu0 0.0
    %560 = vmatprep.subr.mxu0 0.0
    %561 = vmatpush1.msra.mxu0 0.0
    %562 = vmatprep.subr.mxu0 0.0
    %563 = vmatpush1.msra.mxu0 0.0
    %564 = vmatprep.subr.mxu0 0.0
    %565 = vmatpush1.msra.mxu0 0.0
    %566 = vmatprep.subr.mxu0 0.0
    %567 = vmatpush1.msra.mxu0 0.0
    %568 = vmatprep.subr.mxu0 0.0
    %569 = vmatpush1.msra.mxu0 0.0
    %570 = vmatprep.subr.mxu0 0.0
    %571 = vmatpush1.msra.mxu0 0.0
    %572 = vmatprep.subr.mxu0 0.0
    %573 = vmatpush1.msra.mxu0 0.0
    %574 = vmatprep.subr.mxu0 0.0
    %575 = vmatpush1.msra.mxu0 0.0
    %576 = vmatprep.subr.mxu0 0.0
    %577 = vmatpush1.msra.mxu0 0.0
    %578 = vmatprep.subr.mxu0 0.0
    %579 = vmatpush1.msra.mxu0 0.0
    %580 = vmatprep.subr.mxu0 0.0
    %581 = vmatpush1.msra.mxu0 0.0
    %582 = vmatprep.subr.mxu0 0.0
    %583 = vmatpush1.msra.mxu0 0.0
    %584 = vmatprep.subr.mxu0 0.0
    %585 = vmatpush1.msra.mxu0 0.0
    %586 = vmatprep.subr.mxu0 0.0
    %587 = vmatpush1.msra.mxu0 0.0
    %588 = vmatprep.mubr.f32.mxu0 0.0
    %589 = vmatmul.mubr.f32.gmra.mrb[0].mxu0 %v500
    %v590 = vpop.f32.mrb[0].mxu0
    %v591 = vadd.f32 %v522, %v590
    %v592 = vpop.f32.mrb[0].mxu0
    %593 = vdwg.mxu0
    %v594 = vadd.f32 %v591, %v402
    %v595 = vmax.f32 %v594, 0.0
    %v596 = vld [vmem:[%s7] sm:$0xff]
    %v597 = vld [vmem:[%s7 + $0x8] sm:$0xff]
    %v598 = vld [vmem:[%s7 + $0x10] sm:$0xff]
    %v599 = vld [vmem:[%s7 + $0x18] sm:$0xff]
    %v600 = vld [vmem:[%s7 + $0x20] sm:$0xff]
    %v601 = vld [vmem:[%s7 + $0x28] sm:$0xff]
    %v602 = vld [vmem:[%s7 + $0x30] sm:$0xff]
    %v603 = vld [vmem:[%s7 + $0x38] sm:$0xff]
    %v604 = vld [vmem:[%s7 + $0x40] sm:$0xff]
    %v605 = vld [vmem:[%s7 + $0x48] sm:$0xff]
    %v606 = vld [vmem:[%s7 + $0x50] sm:$0xff]
    %v607 = vld [vmem:[%s7 + $0x58] sm:$0xff]
    %v608 = vld [vmem:[%s7 + $0x60] sm:$0xff]
    %v609 = vld [vmem:[%s7 + $0x68] sm:$0xff]
    %v610 = vld [vmem:[%s7 + $0x70] sm:$0xff]
    %v611 = vld [vmem:[%s7 + $0x78] sm:$0xff]
    %v612 = vld [vmem:[%s8] sm:$0x1]
    %v614 = vlaneseq
    %v615 = vshrl.u32 %v614, 7
    %v616 = vsub.s32 0, %v615
    %v617 = vrot.slane %v612, %v616
    %619 = vmatprep.subr.mxu0 0.0
    %620 = vmatpush1.msra.mxu0 %v596
    %621 = vmatprep.subr.mxu0 0.0
    %622 = vmatpush1.msra.mxu0 %v597
    %623 = vmatprep.subr.mxu0 0.0
    %624 = vmatpush1.msra.mxu0 %v598
    %625 = vmatprep.subr.mxu0 0.0
    %626 = vmatpush1.msra.mxu0 %v599
    %627 = vmatprep.subr.mxu0 0.0
    %628 = vmatpush1.msra.mxu0 %v600
    %629 = vmatprep.subr.mxu0 0.0
    %630 = vmatpush1.msra.mxu0 %v601
    %631 = vmatprep.subr.mxu0 0.0
    %632 = vmatpush1.msra.mxu0 %v602
    %633 = vmatprep.subr.mxu0 0.0
    %634 = vmatpush1.msra.mxu0 %v603
    %635 = vmatprep.subr.mxu0 0.0
    %636 = vmatpush1.msra.mxu0 %v604
    %637 = vmatprep.subr.mxu0 0.0
    %638 = vmatpush1.msra.mxu0 %v605
    %639 = vmatprep.subr.mxu0 0.0
    %640 = vmatpush1.msra.mxu0 %v606
    %641 = vmatprep.subr.mxu0 0.0
    %642 = vmatpush1.msra.mxu0 %v607
    %643 = vmatprep.subr.mxu0 0.0
    %644 = vmatpush1.msra.mxu0 %v608
    %645 = vmatprep.subr.mxu0 0.0
    %646 = vmatpush1.msra.mxu0 %v609
    %647 = vmatprep.subr.mxu0 0.0
    %648 = vmatpush1.msra.mxu0 %v610
    %649 = vmatprep.subr.mxu0 0.0
    %650 = vmatpush1.msra.mxu0 %v611
    %651 = vmatprep.subr.mxu0 0.0
    %652 = vmatpush1.msra.mxu0 0.0
    %653 = vmatprep.subr.mxu0 0.0
    %654 = vmatpush1.msra.mxu0 0.0
    %655 = vmatprep.subr.mxu0 0.0
    %656 = vmatpush1.msra.mxu0 0.0
    %657 = vmatprep.subr.mxu0 0.0
    %658 = vmatpush1.msra.mxu0 0.0
    %659 = vmatprep.subr.mxu0 0.0
    %660 = vmatpush1.msra.mxu0 0.0
    %661 = vmatprep.subr.mxu0 0.0
    %662 = vmatpush1.msra.mxu0 0.0
    %663 = vmatprep.subr.mxu0 0.0
    %664 = vmatpush1.msra.mxu0 0.0
    %665 = vmatprep.subr.mxu0 0.0
    %666 = vmatpush1.msra.mxu0 0.0
    %667 = vmatprep.subr.mxu0 0.0
    %668 = vmatpush1.msra.mxu0 0.0
    %669 = vmatprep.subr.mxu0 0.0
    %670 = vmatpush1.msra.mxu0 0.0
    %671 = vmatprep.subr.mxu0 0.0
    %672 = vmatpush1.msra.mxu0 0.0
    %673 = vmatprep.subr.mxu0 0.0
    %674 = vmatpush1.msra.mxu0 0.0
    %675 = vmatprep.subr.mxu0 0.0
    %676 = vmatpush1.msra.mxu0 0.0
    %677 = vmatprep.subr.mxu0 0.0
    %678 = vmatpush1.msra.mxu0 0.0
    %679 = vmatprep.subr.mxu0 0.0
    %680 = vmatpush1.msra.mxu0 0.0
    %681 = vmatprep.subr.mxu0 0.0
    %682 = vmatpush1.msra.mxu0 0.0
    %683 = vmatprep.mubr.f32.mxu0 0.0
    %684 = vmatmul.mubr.f32.gmra.mrb[0].mxu0 %v595
    %v685 = vpop.f32.mrb[0].mxu0
    %v686 = vadd.f32 %v617, %v685
    %v687 = vpop.f32.mrb[0].mxu0
    %688 = vdwg.mxu0
    %689 = vst [vmem:[#allocation2] sm:$0x3] %v686
    // Predicated region
    $region38: #{cnn_switch_3l_forward.5} parent=1 // pred_check
      _
    $region39: #{cnn_switch_3l_forward.5} parent=1 // pred_check_branch
      %691 = sbr.rel (0) target = $region41
    $region40: #{cnn_switch_3l_forward.5} parent=1 // pred_region
      %s693 = ssub.s32 32, 32
      %694 = vsyncadd [#allocation3], %s693
      %s696 = sshll.u32 [#allocation2], 4
      %s697 = int_to_ptr.vmem [resolvable:$true] %s696
      %699 = dma.vmem_to_hbm [thread:$0]  %s697, 32, %s9, [#allocation3]
    $region41: #{cnn_switch_3l_forward.5} parent=1 // pred_fallthru
      _
    // Predicated region
    $region42: #{cnn_switch_3l_forward.5} parent=1 // pred_check
      _
    $region43: #{cnn_switch_3l_forward.5} parent=1 // pred_check_branch
      %701 = sbr.rel (0) target = $region45
    $region44: #{cnn_switch_3l_forward.5} parent=1 // pred_region
      %702 = dma.done [#allocation3], 32
    $region45: #{cnn_switch_3l_forward.5} parent=1 // pred_fallthru
      _
    %703 = vsyncpa [#allocation3], 1

</llo_original>
